<compile_context>
chip_gen: v7x
topology: tpu7x:2x2x1
jax: 0.10.0
libtpu: 0.0.40
codegen_flags: <defaults>
</compile_context>

<pallas_src>
import functools
import math

import jax
import jax.numpy as jnp
from jax.experimental import pallas as pl
from jax.experimental.pallas import tpu as pltpu


# ----------------------------------------------------------------------------
# Fused Pallas kernel: 2 x TransformerEncoderLayer (+ extra residual) + scatter_mean.
# ----------------------------------------------------------------------------
def _layernorm(y, gamma, beta, eps=1e-5):
    mu = jnp.mean(y, axis=-1, keepdims=True)
    diff = y - mu
    var = jnp.mean(diff * diff, axis=-1, keepdims=True)
    return diff * jax.lax.rsqrt(var + eps) * gamma + beta


def fused_forward_kernel(src_ref, col_ref,
                         wqkv_ref, bqkv_ref, wo_ref, bo_ref,
                         g1_ref, bt1_ref, w1_ref, bf1_ref, w2_ref, bf2_ref,
                         g2_ref, bt2_ref,
                         out_ref, *, n_layer, nh, hd, n_embd, batch, seq):
    BS, D = src_ref.shape            # [B*S, D]
    M = out_ref.shape[0]             # N + 2
    S = seq

    # Causal mask built in-kernel (upper-triangular additive -inf).
    rows = jax.lax.broadcasted_iota(jnp.int32, (S, S), 0)
    cols = jax.lax.broadcasted_iota(jnp.int32, (S, S), 1)
    mask = jnp.where(cols > rows, jnp.float32(-1e30), jnp.float32(0.0))

    scale = jnp.float32(1.0 / math.sqrt(hd))

    h = src_ref[...]                 # [BS, D], f32

    for l in range(n_layer):         # static unroll over the 2 layers
        wqkv = wqkv_ref[l]
        bqkv = bqkv_ref[l]
        wo = wo_ref[l]
        bo = bo_ref[l]
        g1, bt1 = g1_ref[l], bt1_ref[l]
        w1, bf1 = w1_ref[l], bf1_ref[l]
        w2, bf2 = w2_ref[l], bf2_ref[l]
        g2, bt2 = g2_ref[l], bt2_ref[l]

        # --- self attention (all rows of all batches share one QKV matmul) ----
        qkv = jnp.dot(h, wqkv, preferred_element_type=jnp.float32) + bqkv   # [BS, 3D]

        attn_rows = []
        for b in range(batch):                         # static unroll, B = 2
            qkv_b = qkv[b * S:(b + 1) * S]             # [S, 3D]
            acc = jnp.zeros((S, D), jnp.float32)
            for head in range(nh):                     # static unroll, nh = 3
                lo = head * hd
                q = qkv_b[:, lo:lo + hd]               # [S, hd]
                k = qkv_b[:, D + lo:D + lo + hd]
                v = qkv_b[:, 2 * D + lo:2 * D + lo + hd]
                sc = jax.lax.dot_general(q, k, (((1,), (1,)), ((), ())),
                                         preferred_element_type=jnp.float32)
                sc = sc * scale + mask
                sc = sc - jnp.max(sc, axis=-1, keepdims=True)
                p = jnp.exp(sc)
                p = p * pl.reciprocal(jnp.sum(p, axis=-1, keepdims=True), approx=True)
                o = jnp.dot(p, v, preferred_element_type=jnp.float32)       # [S, hd]
                # accumulate per-head output projection (no head concat)
                acc = acc + jnp.dot(o, wo[lo:lo + hd, :],
                                    preferred_element_type=jnp.float32)
            attn_rows.append(acc)
        attn = jnp.concatenate(attn_rows, axis=0) + bo                      # [BS, D]

        # --- post-norm residual #1 --------------------------------------------
        y = _layernorm(h + attn, g1, bt1)

        # --- feed forward (ReLU, FFN zero-padded 64 -> 128) --------------------
        h1 = jnp.maximum(jnp.dot(y, w1, preferred_element_type=jnp.float32) + bf1, 0.0)
        ff = jnp.dot(h1, w2, preferred_element_type=jnp.float32) + bf2

        # --- post-norm residual #2 + extra outer residual ----------------------
        z = _layernorm(y + ff, g2, bt2)
        h = z + h                     # TransformerModel.forward: output += residual

    # --- fused scatter_mean(hidden[:, :n_embd], col, dim_size=M) ---------------
    hidden = h[:, :n_embd]                                                  # [BS, n_embd]
    node_ids = jax.lax.broadcasted_iota(jnp.int32, (M, BS), 0)
    onehot = (col_ref[...] == node_ids).astype(jnp.float32)                 # [M, BS]
    ssum = jnp.dot(onehot, hidden, preferred_element_type=jnp.float32)      # [M, n_embd]
    cnt = jnp.sum(onehot, axis=-1, keepdims=True)
    out_ref[...] = jnp.where(cnt > 0, ssum / jnp.maximum(cnt, 1.0), 0.0)


# ----------------------------------------------------------------------------
# Full forward (small glue in JAX, everything hot in one Pallas call).
# ----------------------------------------------------------------------------
def meta_transformer_forward(x, input_seqs, query_seqs, in_out_emb, layer_params,
                             *, n_embd, n_head):
    # Unused module-forward args (edge_index, edge_attr, query_mask, start_right,
    # query_seqs_gt, prev_hidden_states) do not participate in the computation.
    N = x.shape[0]
    B = input_seqs.shape[0]

    # append masked_token_emb and false_token_emb (zeros) rows
    x_ext = jnp.concatenate([x, jnp.zeros((2, n_embd), x.dtype)], axis=0)   # [N+2, n_embd]

    inputs_ids = jnp.concatenate([input_seqs, query_seqs], axis=1)          # [B, S]
    S = inputs_ids.shape[1]
    inputs_embeds = x_ext[inputs_ids]                                       # [B, S, n_embd]

    # --- PositionalEncoding, pe_type='sin', position_ids=None ----------------
    pe_dim, io_dim = 64, in_out_emb.shape[-1]
    pos = jnp.arange(S, dtype=jnp.float32)[:, None]
    div = jnp.exp(jnp.arange(0, pe_dim, 2, dtype=jnp.float32)
                  * (-math.log(10000.0) / pe_dim))
    pe = jnp.zeros((S, pe_dim), jnp.float32)
    pe = pe.at[:, 0::2].set(jnp.sin(pos * div))
    pe = pe.at[:, 1::2].set(jnp.cos(pos * div))
    io_ids = jnp.tile(jnp.array([0, 1], jnp.int32), S // 2)                 # [0,1,0,1,...]
    io = in_out_emb[io_ids]                                                 # [S, 256]
    src = jnp.concatenate(
        [inputs_embeds,
         jnp.broadcast_to(pe[None], (B, S, pe_dim)),
         jnp.broadcast_to(io[None], (B, S, io_dim))], axis=-1)              # [B, S, D]
    src = src.astype(jnp.float32)

    D = src.shape[-1]
    hd = D // n_head
    n_layer = len(layer_params)

    # Fold batch into the row axis: one block of [B*S, D].
    src2d = src.reshape(B * S, D)

    # Stack per-layer params; zero-pad FFN width to a lane-dense 128 (exact math:
    # padded w1 columns produce 0, ReLU(0)=0, padded w2 rows contribute 0).
    FF = layer_params[0][6].shape[1]
    FF_PAD = max(128, ((FF + 127) // 128) * 128)

    wqkv = jnp.stack([p[0] for p in layer_params])                          # [L, D, 3D]
    bqkv = jnp.stack([p[1] for p in layer_params])                          # [L, 1, 3D]
    wo = jnp.stack([p[2] for p in layer_params])                            # [L, D, D]
    bo = jnp.stack([p[3] for p in layer_params])                            # [L, 1, D]
    g1 = jnp.stack([p[4] for p in layer_params])                            # [L, 1, D]
    bt1 = jnp.stack([p[5] for p in layer_params])
    w1 = jnp.stack([jnp.pad(p[6], ((0, 0), (0, FF_PAD - FF))) for p in layer_params])
    bf1 = jnp.stack([jnp.pad(p[7], ((0, 0), (0, FF_PAD - FF))) for p in layer_params])
    w2 = jnp.stack([jnp.pad(p[8], ((0, FF_PAD - FF), (0, 0))) for p in layer_params])
    bf2 = jnp.stack([p[9] for p in layer_params])
    g2 = jnp.stack([p[10] for p in layer_params])
    bt2 = jnp.stack([p[11] for p in layer_params])

    col = inputs_ids.reshape(1, B * S).astype(jnp.int32)                    # [1, B*S]
    M = N + 2

    kernel = functools.partial(fused_forward_kernel, n_layer=n_layer, nh=n_head,
                               hd=hd, n_embd=n_embd, batch=B, seq=S)
    # Single fused pallas_call: no grid, all inputs (weights + activation) become
    # one VMEM-resident block (~6 MB f32), zero per-step pipeline overhead.
    x_label = pl.pallas_call(
        kernel,
        out_shape=jax.ShapeDtypeStruct((M, n_embd), jnp.float32),
        compiler_params=pltpu.CompilerParams(vmem_limit_bytes=32 * 1024 * 1024),
    )(src2d, col, wqkv, bqkv, wo, bo, g1, bt1, w1, bf1, w2, bf2, g2, bt2)
    return x_label[:-2]                                                     # drop masked/false rows


# ----------------------------------------------------------------------------
# Deterministic parameter init (synthetic; shapes follow the module __init__).
# ----------------------------------------------------------------------------
def init_layer_params(key, D, FF, n_layer):
    params = []
    for _ in range(n_layer):
        key, k0, k1, k2, k3 = jax.random.split(key, 5)
        wqkv = jax.random.normal(k0, (D, 3 * D), jnp.float32) * 0.02
        bqkv = jnp.zeros((1, 3 * D), jnp.float32)
        wo = jax.random.normal(k1, (D, D), jnp.float32) * 0.02
        bo = jnp.zeros((1, D), jnp.float32)
        g1 = jnp.ones((1, D), jnp.float32)
        bt1 = jnp.zeros((1, D), jnp.float32)
        w1 = jax.random.normal(k2, (D, FF), jnp.float32) * 0.02
        bf1 = jnp.zeros((1, FF), jnp.float32)
        w2 = jax.random.normal(k3, (FF, D), jnp.float32) * 0.02
        bf2 = jnp.zeros((1, D), jnp.float32)
        g2 = jnp.ones((1, D), jnp.float32)
        bt2 = jnp.zeros((1, D), jnp.float32)
        params.append((wqkv, bqkv, wo, bo, g1, bt1, w1, bf1, w2, bf2, g2, bt2))
    return params, key


if __name__ == "__main__":
    # config: n_embd=64, n_head=3, n_layer=2  ->  D = 64 + 64 + 256 = 384, head_dim = 128
    N_EMBD, N_HEAD, N_LAYER = 64, 3, 2
    D = N_EMBD + 64 + 256
    FF = N_EMBD                       # dim_feedforward = config.n_embd
    B, L_IN, L_Q = 2, 6, 2            # seq_len = 8 (must be even for in/out embedding)
    N_NODES = 10

    key = jax.random.PRNGKey(0)
    key, kx, ki, kq, kio = jax.random.split(key, 5)
    x = jax.random.normal(kx, (N_NODES, N_EMBD), jnp.float32)
    input_seqs = jax.random.randint(ki, (B, L_IN), 0, N_NODES)
    query_seqs = jax.random.randint(kq, (B, L_Q), 0, N_NODES + 2)  # may index masked/false token
    in_out_emb = jax.random.normal(kio, (2, 256), jnp.float32)     # nn.Embedding(2, 256)
    layer_params, key = init_layer_params(key, D, FF, N_LAYER)

    # TODO(synk): nn.Dropout is p=0 in this config, so it is a no-op and is omitted.
    out = meta_transformer_forward(x, input_seqs, query_seqs, in_out_emb, layer_params,
                                   n_embd=N_EMBD, n_head=N_HEAD)
    out = jax.block_until_ready(out)
    assert out.shape == (N_NODES, N_EMBD), out.shape
    assert bool(jnp.all(jnp.isfinite(out)))
    print("KERNEL_OK")
</pallas_src>

<mosaic_0001>
module attributes {stable_mosaic.version = 11 : i64} {
  func.func @fused_forward_kernel(%arg0: memref<16x384xf32, #tpu.memory_space<vmem>>, %arg1: memref<1x16xi32, #tpu.memory_space<vmem>>, %arg2: memref<2x384x1152xf32, #tpu.memory_space<vmem>>, %arg3: memref<2x1x1152xf32, #tpu.memory_space<vmem>>, %arg4: memref<2x384x384xf32, #tpu.memory_space<vmem>>, %arg5: memref<2x1x384xf32, #tpu.memory_space<vmem>>, %arg6: memref<2x1x384xf32, #tpu.memory_space<vmem>>, %arg7: memref<2x1x384xf32, #tpu.memory_space<vmem>>, %arg8: memref<2x384x128xf32, #tpu.memory_space<vmem>>, %arg9: memref<2x1x128xf32, #tpu.memory_space<vmem>>, %arg10: memref<2x128x384xf32, #tpu.memory_space<vmem>>, %arg11: memref<2x1x384xf32, #tpu.memory_space<vmem>>, %arg12: memref<2x1x384xf32, #tpu.memory_space<vmem>>, %arg13: memref<2x1x384xf32, #tpu.memory_space<vmem>>, %arg14: memref<12x64xf32, #tpu.memory_space<vmem>>) attributes {dimension_semantics = [], scalar_prefetch = 0 : i64, scratch_operands = 0 : i64, tpu.core_type = #tpu.core_type<tc>} {
    %0 = tpu.iota {dimensions = array<i32: 0>} : vector<8x8xi32>
    %1 = tpu.iota {dimensions = array<i32: 1>} : vector<8x8xi32>
    %2 = arith.cmpi sgt, %1, %0 : vector<8x8xi32>
    %cst = arith.constant -1.000000e+30 : f32
    %cst_0 = arith.constant 0.000000e+00 : f32
    %3 = vector.broadcast %cst : f32 to vector<8x8xf32>
    %4 = vector.broadcast %cst_0 : f32 to vector<8x8xf32>
    %5 = arith.select %2, %3, %4 : vector<8x8xi1>, vector<8x8xf32>
    %c0 = arith.constant 0 : index
    %c0_1 = arith.constant 0 : index
    %6 = vector.load %arg0[%c0, %c0_1] : memref<16x384xf32, #tpu.memory_space<vmem>>, vector<16x384xf32>
    %c0_2 = arith.constant 0 : index
    %c0_3 = arith.constant 0 : index
    %c0_4 = arith.constant 0 : index
    %7 = vector.load %arg2[%c0_2, %c0_3, %c0_4] : memref<2x384x1152xf32, #tpu.memory_space<vmem>>, vector<1x384x1152xf32>
    %8 = vector.shape_cast %7 : vector<1x384x1152xf32> to vector<384x1152xf32>
    %c0_5 = arith.constant 0 : index
    %c0_6 = arith.constant 0 : index
    %c0_7 = arith.constant 0 : index
    %9 = vector.load %arg3[%c0_5, %c0_6, %c0_7] : memref<2x1x1152xf32, #tpu.memory_space<vmem>>, vector<1x1x1152xf32>
    %10 = vector.shape_cast %9 : vector<1x1x1152xf32> to vector<1x1152xf32>
    %c0_8 = arith.constant 0 : index
    %c0_9 = arith.constant 0 : index
    %c0_10 = arith.constant 0 : index
    %11 = vector.load %arg4[%c0_8, %c0_9, %c0_10] : memref<2x384x384xf32, #tpu.memory_space<vmem>>, vector<1x384x384xf32>
    %12 = vector.shape_cast %11 : vector<1x384x384xf32> to vector<384x384xf32>
    %c0_11 = arith.constant 0 : index
    %c0_12 = arith.constant 0 : index
    %c0_13 = arith.constant 0 : index
    %13 = vector.load %arg5[%c0_11, %c0_12, %c0_13] : memref<2x1x384xf32, #tpu.memory_space<vmem>>, vector<1x1x384xf32>
    %14 = vector.shape_cast %13 : vector<1x1x384xf32> to vector<1x384xf32>
    %c0_14 = arith.constant 0 : index
    %c0_15 = arith.constant 0 : index
    %c0_16 = arith.constant 0 : index
    %15 = vector.load %arg6[%c0_14, %c0_15, %c0_16] : memref<2x1x384xf32, #tpu.memory_space<vmem>>, vector<1x1x384xf32>
    %16 = vector.shape_cast %15 : vector<1x1x384xf32> to vector<1x384xf32>
    %c0_17 = arith.constant 0 : index
    %c0_18 = arith.constant 0 : index
    %c0_19 = arith.constant 0 : index
    %17 = vector.load %arg7[%c0_17, %c0_18, %c0_19] : memref<2x1x384xf32, #tpu.memory_space<vmem>>, vector<1x1x384xf32>
    %18 = vector.shape_cast %17 : vector<1x1x384xf32> to vector<1x384xf32>
    %c0_20 = arith.constant 0 : index
    %c0_21 = arith.constant 0 : index
    %c0_22 = arith.constant 0 : index
    %19 = vector.load %arg8[%c0_20, %c0_21, %c0_22] : memref<2x384x128xf32, #tpu.memory_space<vmem>>, vector<1x384x128xf32>
    %20 = vector.shape_cast %19 : vector<1x384x128xf32> to vector<384x128xf32>
    %c0_23 = arith.constant 0 : index
    %c0_24 = arith.constant 0 : index
    %c0_25 = arith.constant 0 : index
    %21 = vector.load %arg9[%c0_23, %c0_24, %c0_25] : memref<2x1x128xf32, #tpu.memory_space<vmem>>, vector<1x1x128xf32>
    %22 = vector.shape_cast %21 : vector<1x1x128xf32> to vector<1x128xf32>
    %c0_26 = arith.constant 0 : index
    %c0_27 = arith.constant 0 : index
    %c0_28 = arith.constant 0 : index
    %23 = vector.load %arg10[%c0_26, %c0_27, %c0_28] : memref<2x128x384xf32, #tpu.memory_space<vmem>>, vector<1x128x384xf32>
    %24 = vector.shape_cast %23 : vector<1x128x384xf32> to vector<128x384xf32>
    %c0_29 = arith.constant 0 : index
    %c0_30 = arith.constant 0 : index
    %c0_31 = arith.constant 0 : index
    %25 = vector.load %arg11[%c0_29, %c0_30, %c0_31] : memref<2x1x384xf32, #tpu.memory_space<vmem>>, vector<1x1x384xf32>
    %26 = vector.shape_cast %25 : vector<1x1x384xf32> to vector<1x384xf32>
    %c0_32 = arith.constant 0 : index
    %c0_33 = arith.constant 0 : index
    %c0_34 = arith.constant 0 : index
    %27 = vector.load %arg12[%c0_32, %c0_33, %c0_34] : memref<2x1x384xf32, #tpu.memory_space<vmem>>, vector<1x1x384xf32>
    %28 = vector.shape_cast %27 : vector<1x1x384xf32> to vector<1x384xf32>
    %c0_35 = arith.constant 0 : index
    %c0_36 = arith.constant 0 : index
    %c0_37 = arith.constant 0 : index
    %29 = vector.load %arg13[%c0_35, %c0_36, %c0_37] : memref<2x1x384xf32, #tpu.memory_space<vmem>>, vector<1x1x384xf32>
    %30 = vector.shape_cast %29 : vector<1x1x384xf32> to vector<1x384xf32>
    %cst_38 = arith.constant dense<0.000000e+00> : vector<16x1152xf32>
    %31 = tpu.matmul %6, %8, %cst_38 {dimension_numbers = #tpu.dot_dimension_numbers<[1], [0], [0], [1], [0, 0, 1, 1], [], []>} : vector<16x384xf32>, vector<384x1152xf32>, vector<16x1152xf32> -> vector<16x1152xf32>
    %32 = vector.broadcast %10 : vector<1x1152xf32> to vector<16x1152xf32>
    %33 = arith.addf %31, %32 : vector<16x1152xf32>
    %34 = vector.extract_strided_slice %33 {offsets = [0, 0], sizes = [8, 1152], strides = [1, 1]} : vector<16x1152xf32> to vector<8x1152xf32>
    %cst_39 = arith.constant 0.000000e+00 : f32
    %35 = vector.broadcast %cst_39 : f32 to vector<8x384xf32>
    %36 = vector.extract_strided_slice %34 {offsets = [0, 0], sizes = [8, 128], strides = [1, 1]} : vector<8x1152xf32> to vector<8x128xf32>
    %37 = vector.extract_strided_slice %34 {offsets = [0, 384], sizes = [8, 128], strides = [1, 1]} : vector<8x1152xf32> to vector<8x128xf32>
    %38 = vector.extract_strided_slice %34 {offsets = [0, 768], sizes = [8, 128], strides = [1, 1]} : vector<8x1152xf32> to vector<8x128xf32>
    %cst_40 = arith.constant dense<0.000000e+00> : vector<8x8xf32>
    %39 = tpu.matmul %36, %37, %cst_40 {dimension_numbers = #tpu.dot_dimension_numbers<[1], [1], [0], [0], [0, 0, 1, 0], [], []>} : vector<8x128xf32>, vector<8x128xf32>, vector<8x8xf32> -> vector<8x8xf32>
    %cst_41 = arith.constant 0.0883883461 : f32
    %40 = vector.broadcast %cst_41 : f32 to vector<8x8xf32>
    %41 = arith.mulf %39, %40 : vector<8x8xf32>
    %42 = arith.addf %41, %5 : vector<8x8xf32>
    %cst_42 = arith.constant dense<0xFF800000> : vector<8xf32>
    %43 = vector.multi_reduction <maximumf>, %42, %cst_42 [1] : vector<8x8xf32> to vector<8xf32>
    %44 = vector.shape_cast %43 : vector<8xf32> to vector<8x1xf32>
    %45 = vector.broadcast %44 : vector<8x1xf32> to vector<8x8xf32>
    %46 = arith.subf %42, %45 : vector<8x8xf32>
    %47 = math.exp %46 : vector<8x8xf32>
    %cst_43 = arith.constant dense<0.000000e+00> : vector<8xf32>
    %48 = vector.multi_reduction <add>, %47, %cst_43 [1] : vector<8x8xf32> to vector<8xf32>
    %49 = vector.shape_cast %48 : vector<8xf32> to vector<8x1xf32>
    %50 = tpu.reciprocal %49 {approx = true} : vector<8x1xf32> -> vector<8x1xf32>
    %51 = vector.broadcast %50 : vector<8x1xf32> to vector<8x8xf32>
    %52 = arith.mulf %47, %51 : vector<8x8xf32>
    %cst_44 = arith.constant dense<0.000000e+00> : vector<8x128xf32>
    %53 = tpu.matmul %52, %38, %cst_44 {dimension_numbers = #tpu.dot_dimension_numbers<[1], [0], [0], [1], [0, 0, 1, 1], [], []>} : vector<8x8xf32>, vector<8x128xf32>, vector<8x128xf32> -> vector<8x128xf32>
    %54 = vector.extract_strided_slice %12 {offsets = [0, 0], sizes = [128, 384], strides = [1, 1]} : vector<384x384xf32> to vector<128x384xf32>
    %cst_45 = arith.constant dense<0.000000e+00> : vector<8x384xf32>
    %55 = tpu.matmul %53, %54, %cst_45 {dimension_numbers = #tpu.dot_dimension_numbers<[1], [0], [0], [1], [0, 0, 1, 1], [], []>} : vector<8x128xf32>, vector<128x384xf32>, vector<8x384xf32> -> vector<8x384xf32>
    %56 = arith.addf %35, %55 : vector<8x384xf32>
    %57 = vector.extract_strided_slice %34 {offsets = [0, 128], sizes = [8, 128], strides = [1, 1]} : vector<8x1152xf32> to vector<8x128xf32>
    %58 = vector.extract_strided_slice %34 {offsets = [0, 512], sizes = [8, 128], strides = [1, 1]} : vector<8x1152xf32> to vector<8x128xf32>
    %59 = vector.extract_strided_slice %34 {offsets = [0, 896], sizes = [8, 128], strides = [1, 1]} : vector<8x1152xf32> to vector<8x128xf32>
    %cst_46 = arith.constant dense<0.000000e+00> : vector<8x8xf32>
    %60 = tpu.matmul %57, %58, %cst_46 {dimension_numbers = #tpu.dot_dimension_numbers<[1], [1], [0], [0], [0, 0, 1, 0], [], []>} : vector<8x128xf32>, vector<8x128xf32>, vector<8x8xf32> -> vector<8x8xf32>
    %cst_47 = arith.constant 0.0883883461 : f32
    %61 = vector.broadcast %cst_47 : f32 to vector<8x8xf32>
    %62 = arith.mulf %60, %61 : vector<8x8xf32>
    %63 = arith.addf %62, %5 : vector<8x8xf32>
    %cst_48 = arith.constant dense<0xFF800000> : vector<8xf32>
    %64 = vector.multi_reduction <maximumf>, %63, %cst_48 [1] : vector<8x8xf32> to vector<8xf32>
    %65 = vector.shape_cast %64 : vector<8xf32> to vector<8x1xf32>
    %66 = vector.broadcast %65 : vector<8x1xf32> to vector<8x8xf32>
    %67 = arith.subf %63, %66 : vector<8x8xf32>
    %68 = math.exp %67 : vector<8x8xf32>
    %cst_49 = arith.constant dense<0.000000e+00> : vector<8xf32>
    %69 = vector.multi_reduction <add>, %68, %cst_49 [1] : vector<8x8xf32> to vector<8xf32>
    %70 = vector.shape_cast %69 : vector<8xf32> to vector<8x1xf32>
    %71 = tpu.reciprocal %70 {approx = true} : vector<8x1xf32> -> vector<8x1xf32>
    %72 = vector.broadcast %71 : vector<8x1xf32> to vector<8x8xf32>
    %73 = arith.mulf %68, %72 : vector<8x8xf32>
    %cst_50 = arith.constant dense<0.000000e+00> : vector<8x128xf32>
    %74 = tpu.matmul %73, %59, %cst_50 {dimension_numbers = #tpu.dot_dimension_numbers<[1], [0], [0], [1], [0, 0, 1, 1], [], []>} : vector<8x8xf32>, vector<8x128xf32>, vector<8x128xf32> -> vector<8x128xf32>
    %75 = vector.extract_strided_slice %12 {offsets = [128, 0], sizes = [128, 384], strides = [1, 1]} : vector<384x384xf32> to vector<128x384xf32>
    %cst_51 = arith.constant dense<0.000000e+00> : vector<8x384xf32>
    %76 = tpu.matmul %74, %75, %cst_51 {dimension_numbers = #tpu.dot_dimension_numbers<[1], [0], [0], [1], [0, 0, 1, 1], [], []>} : vector<8x128xf32>, vector<128x384xf32>, vector<8x384xf32> -> vector<8x384xf32>
    %77 = arith.addf %56, %76 : vector<8x384xf32>
    %78 = vector.extract_strided_slice %34 {offsets = [0, 256], sizes = [8, 128], strides = [1, 1]} : vector<8x1152xf32> to vector<8x128xf32>
    %79 = vector.extract_strided_slice %34 {offsets = [0, 640], sizes = [8, 128], strides = [1, 1]} : vector<8x1152xf32> to vector<8x128xf32>
    %80 = vector.extract_strided_slice %34 {offsets = [0, 1024], sizes = [8, 128], strides = [1, 1]} : vector<8x1152xf32> to vector<8x128xf32>
    %cst_52 = arith.constant dense<0.000000e+00> : vector<8x8xf32>
    %81 = tpu.matmul %78, %79, %cst_52 {dimension_numbers = #tpu.dot_dimension_numbers<[1], [1], [0], [0], [0, 0, 1, 0], [], []>} : vector<8x128xf32>, vector<8x128xf32>, vector<8x8xf32> -> vector<8x8xf32>
    %cst_53 = arith.constant 0.0883883461 : f32
    %82 = vector.broadcast %cst_53 : f32 to vector<8x8xf32>
    %83 = arith.mulf %81, %82 : vector<8x8xf32>
    %84 = arith.addf %83, %5 : vector<8x8xf32>
    %cst_54 = arith.constant dense<0xFF800000> : vector<8xf32>
    %85 = vector.multi_reduction <maximumf>, %84, %cst_54 [1] : vector<8x8xf32> to vector<8xf32>
    %86 = vector.shape_cast %85 : vector<8xf32> to vector<8x1xf32>
    %87 = vector.broadcast %86 : vector<8x1xf32> to vector<8x8xf32>
    %88 = arith.subf %84, %87 : vector<8x8xf32>
    %89 = math.exp %88 : vector<8x8xf32>
    %cst_55 = arith.constant dense<0.000000e+00> : vector<8xf32>
    %90 = vector.multi_reduction <add>, %89, %cst_55 [1] : vector<8x8xf32> to vector<8xf32>
    %91 = vector.shape_cast %90 : vector<8xf32> to vector<8x1xf32>
    %92 = tpu.reciprocal %91 {approx = true} : vector<8x1xf32> -> vector<8x1xf32>
    %93 = vector.broadcast %92 : vector<8x1xf32> to vector<8x8xf32>
    %94 = arith.mulf %89, %93 : vector<8x8xf32>
    %cst_56 = arith.constant dense<0.000000e+00> : vector<8x128xf32>
    %95 = tpu.matmul %94, %80, %cst_56 {dimension_numbers = #tpu.dot_dimension_numbers<[1], [0], [0], [1], [0, 0, 1, 1], [], []>} : vector<8x8xf32>, vector<8x128xf32>, vector<8x128xf32> -> vector<8x128xf32>
    %96 = vector.extract_strided_slice %12 {offsets = [256, 0], sizes = [128, 384], strides = [1, 1]} : vector<384x384xf32> to vector<128x384xf32>
    %cst_57 = arith.constant dense<0.000000e+00> : vector<8x384xf32>
    %97 = tpu.matmul %95, %96, %cst_57 {dimension_numbers = #tpu.dot_dimension_numbers<[1], [0], [0], [1], [0, 0, 1, 1], [], []>} : vector<8x128xf32>, vector<128x384xf32>, vector<8x384xf32> -> vector<8x384xf32>
    %98 = arith.addf %77, %97 : vector<8x384xf32>
    %99 = vector.extract_strided_slice %33 {offsets = [8, 0], sizes = [8, 1152], strides = [1, 1]} : vector<16x1152xf32> to vector<8x1152xf32>
    %cst_58 = arith.constant 0.000000e+00 : f32
    %100 = vector.broadcast %cst_58 : f32 to vector<8x384xf32>
    %101 = vector.extract_strided_slice %99 {offsets = [0, 0], sizes = [8, 128], strides = [1, 1]} : vector<8x1152xf32> to vector<8x128xf32>
    %102 = vector.extract_strided_slice %99 {offsets = [0, 384], sizes = [8, 128], strides = [1, 1]} : vector<8x1152xf32> to vector<8x128xf32>
    %103 = vector.extract_strided_slice %99 {offsets = [0, 768], sizes = [8, 128], strides = [1, 1]} : vector<8x1152xf32> to vector<8x128xf32>
    %cst_59 = arith.constant dense<0.000000e+00> : vector<8x8xf32>
    %104 = tpu.matmul %101, %102, %cst_59 {dimension_numbers = #tpu.dot_dimension_numbers<[1], [1], [0], [0], [0, 0, 1, 0], [], []>} : vector<8x128xf32>, vector<8x128xf32>, vector<8x8xf32> -> vector<8x8xf32>
    %cst_60 = arith.constant 0.0883883461 : f32
    %105 = vector.broadcast %cst_60 : f32 to vector<8x8xf32>
    %106 = arith.mulf %104, %105 : vector<8x8xf32>
    %107 = arith.addf %106, %5 : vector<8x8xf32>
    %cst_61 = arith.constant dense<0xFF800000> : vector<8xf32>
    %108 = vector.multi_reduction <maximumf>, %107, %cst_61 [1] : vector<8x8xf32> to vector<8xf32>
    %109 = vector.shape_cast %108 : vector<8xf32> to vector<8x1xf32>
    %110 = vector.broadcast %109 : vector<8x1xf32> to vector<8x8xf32>
    %111 = arith.subf %107, %110 : vector<8x8xf32>
    %112 = math.exp %111 : vector<8x8xf32>
    %cst_62 = arith.constant dense<0.000000e+00> : vector<8xf32>
    %113 = vector.multi_reduction <add>, %112, %cst_62 [1] : vector<8x8xf32> to vector<8xf32>
    %114 = vector.shape_cast %113 : vector<8xf32> to vector<8x1xf32>
    %115 = tpu.reciprocal %114 {approx = true} : vector<8x1xf32> -> vector<8x1xf32>
    %116 = vector.broadcast %115 : vector<8x1xf32> to vector<8x8xf32>
    %117 = arith.mulf %112, %116 : vector<8x8xf32>
    %cst_63 = arith.constant dense<0.000000e+00> : vector<8x128xf32>
    %118 = tpu.matmul %117, %103, %cst_63 {dimension_numbers = #tpu.dot_dimension_numbers<[1], [0], [0], [1], [0, 0, 1, 1], [], []>} : vector<8x8xf32>, vector<8x128xf32>, vector<8x128xf32> -> vector<8x128xf32>
    %119 = vector.extract_strided_slice %12 {offsets = [0, 0], sizes = [128, 384], strides = [1, 1]} : vector<384x384xf32> to vector<128x384xf32>
    %cst_64 = arith.constant dense<0.000000e+00> : vector<8x384xf32>
    %120 = tpu.matmul %118, %119, %cst_64 {dimension_numbers = #tpu.dot_dimension_numbers<[1], [0], [0], [1], [0, 0, 1, 1], [], []>} : vector<8x128xf32>, vector<128x384xf32>, vector<8x384xf32> -> vector<8x384xf32>
    %121 = arith.addf %100, %120 : vector<8x384xf32>
    %122 = vector.extract_strided_slice %99 {offsets = [0, 128], sizes = [8, 128], strides = [1, 1]} : vector<8x1152xf32> to vector<8x128xf32>
    %123 = vector.extract_strided_slice %99 {offsets = [0, 512], sizes = [8, 128], strides = [1, 1]} : vector<8x1152xf32> to vector<8x128xf32>
    %124 = vector.extract_strided_slice %99 {offsets = [0, 896], sizes = [8, 128], strides = [1, 1]} : vector<8x1152xf32> to vector<8x128xf32>
    %cst_65 = arith.constant dense<0.000000e+00> : vector<8x8xf32>
    %125 = tpu.matmul %122, %123, %cst_65 {dimension_numbers = #tpu.dot_dimension_numbers<[1], [1], [0], [0], [0, 0, 1, 0], [], []>} : vector<8x128xf32>, vector<8x128xf32>, vector<8x8xf32> -> vector<8x8xf32>
    %cst_66 = arith.constant 0.0883883461 : f32
    %126 = vector.broadcast %cst_66 : f32 to vector<8x8xf32>
    %127 = arith.mulf %125, %126 : vector<8x8xf32>
    %128 = arith.addf %127, %5 : vector<8x8xf32>
    %cst_67 = arith.constant dense<0xFF800000> : vector<8xf32>
    %129 = vector.multi_reduction <maximumf>, %128, %cst_67 [1] : vector<8x8xf32> to vector<8xf32>
    %130 = vector.shape_cast %129 : vector<8xf32> to vector<8x1xf32>
    %131 = vector.broadcast %130 : vector<8x1xf32> to vector<8x8xf32>
    %132 = arith.subf %128, %131 : vector<8x8xf32>
    %133 = math.exp %132 : vector<8x8xf32>
    %cst_68 = arith.constant dense<0.000000e+00> : vector<8xf32>
    %134 = vector.multi_reduction <add>, %133, %cst_68 [1] : vector<8x8xf32> to vector<8xf32>
    %135 = vector.shape_cast %134 : vector<8xf32> to vector<8x1xf32>
    %136 = tpu.reciprocal %135 {approx = true} : vector<8x1xf32> -> vector<8x1xf32>
    %137 = vector.broadcast %136 : vector<8x1xf32> to vector<8x8xf32>
    %138 = arith.mulf %133, %137 : vector<8x8xf32>
    %cst_69 = arith.constant dense<0.000000e+00> : vector<8x128xf32>
    %139 = tpu.matmul %138, %124, %cst_69 {dimension_numbers = #tpu.dot_dimension_numbers<[1], [0], [0], [1], [0, 0, 1, 1], [], []>} : vector<8x8xf32>, vector<8x128xf32>, vector<8x128xf32> -> vector<8x128xf32>
    %140 = vector.extract_strided_slice %12 {offsets = [128, 0], sizes = [128, 384], strides = [1, 1]} : vector<384x384xf32> to vector<128x384xf32>
    %cst_70 = arith.constant dense<0.000000e+00> : vector<8x384xf32>
    %141 = tpu.matmul %139, %140, %cst_70 {dimension_numbers = #tpu.dot_dimension_numbers<[1], [0], [0], [1], [0, 0, 1, 1], [], []>} : vector<8x128xf32>, vector<128x384xf32>, vector<8x384xf32> -> vector<8x384xf32>
    %142 = arith.addf %121, %141 : vector<8x384xf32>
    %143 = vector.extract_strided_slice %99 {offsets = [0, 256], sizes = [8, 128], strides = [1, 1]} : vector<8x1152xf32> to vector<8x128xf32>
    %144 = vector.extract_strided_slice %99 {offsets = [0, 640], sizes = [8, 128], strides = [1, 1]} : vector<8x1152xf32> to vector<8x128xf32>
    %145 = vector.extract_strided_slice %99 {offsets = [0, 1024], sizes = [8, 128], strides = [1, 1]} : vector<8x1152xf32> to vector<8x128xf32>
    %cst_71 = arith.constant dense<0.000000e+00> : vector<8x8xf32>
    %146 = tpu.matmul %143, %144, %cst_71 {dimension_numbers = #tpu.dot_dimension_numbers<[1], [1], [0], [0], [0, 0, 1, 0], [], []>} : vector<8x128xf32>, vector<8x128xf32>, vector<8x8xf32> -> vector<8x8xf32>
    %cst_72 = arith.constant 0.0883883461 : f32
    %147 = vector.broadcast %cst_72 : f32 to vector<8x8xf32>
    %148 = arith.mulf %146, %147 : vector<8x8xf32>
    %149 = arith.addf %148, %5 : vector<8x8xf32>
    %cst_73 = arith.constant dense<0xFF800000> : vector<8xf32>
    %150 = vector.multi_reduction <maximumf>, %149, %cst_73 [1] : vector<8x8xf32> to vector<8xf32>
    %151 = vector.shape_cast %150 : vector<8xf32> to vector<8x1xf32>
    %152 = vector.broadcast %151 : vector<8x1xf32> to vector<8x8xf32>
    %153 = arith.subf %149, %152 : vector<8x8xf32>
    %154 = math.exp %153 : vector<8x8xf32>
    %cst_74 = arith.constant dense<0.000000e+00> : vector<8xf32>
    %155 = vector.multi_reduction <add>, %154, %cst_74 [1] : vector<8x8xf32> to vector<8xf32>
    %156 = vector.shape_cast %155 : vector<8xf32> to vector<8x1xf32>
    %157 = tpu.reciprocal %156 {approx = true} : vector<8x1xf32> -> vector<8x1xf32>
    %158 = vector.broadcast %157 : vector<8x1xf32> to vector<8x8xf32>
    %159 = arith.mulf %154, %158 : vector<8x8xf32>
    %cst_75 = arith.constant dense<0.000000e+00> : vector<8x128xf32>
    %160 = tpu.matmul %159, %145, %cst_75 {dimension_numbers = #tpu.dot_dimension_numbers<[1], [0], [0], [1], [0, 0, 1, 1], [], []>} : vector<8x8xf32>, vector<8x128xf32>, vector<8x128xf32> -> vector<8x128xf32>
    %161 = vector.extract_strided_slice %12 {offsets = [256, 0], sizes = [128, 384], strides = [1, 1]} : vector<384x384xf32> to vector<128x384xf32>
    %cst_76 = arith.constant dense<0.000000e+00> : vector<8x384xf32>
    %162 = tpu.matmul %160, %161, %cst_76 {dimension_numbers = #tpu.dot_dimension_numbers<[1], [0], [0], [1], [0, 0, 1, 1], [], []>} : vector<8x128xf32>, vector<128x384xf32>, vector<8x384xf32> -> vector<8x384xf32>
    %163 = arith.addf %142, %162 : vector<8x384xf32>
    %164 = tpu.concatenate %98, %163 in 0 : vector<8x384xf32>, vector<8x384xf32> -> vector<16x384xf32>
    %165 = vector.broadcast %14 : vector<1x384xf32> to vector<16x384xf32>
    %166 = arith.addf %164, %165 : vector<16x384xf32>
    %167 = arith.addf %6, %166 : vector<16x384xf32>
    %cst_77 = arith.constant dense<0.000000e+00> : vector<16xf32>
    %168 = vector.multi_reduction <add>, %167, %cst_77 [1] : vector<16x384xf32> to vector<16xf32>
    %169 = vector.shape_cast %168 : vector<16xf32> to vector<16x1xf32>
    %cst_78 = arith.constant 3.840000e+02 : f32
    %170 = vector.broadcast %cst_78 : f32 to vector<16x1xf32>
    %171 = arith.divf %169, %170 : vector<16x1xf32>
    %172 = vector.broadcast %171 : vector<16x1xf32> to vector<16x384xf32>
    %173 = arith.subf %167, %172 : vector<16x384xf32>
    %174 = arith.mulf %173, %173 : vector<16x384xf32>
    %cst_79 = arith.constant dense<0.000000e+00> : vector<16xf32>
    %175 = vector.multi_reduction <add>, %174, %cst_79 [1] : vector<16x384xf32> to vector<16xf32>
    %176 = vector.shape_cast %175 : vector<16xf32> to vector<16x1xf32>
    %cst_80 = arith.constant 3.840000e+02 : f32
    %177 = vector.broadcast %cst_80 : f32 to vector<16x1xf32>
    %178 = arith.divf %176, %177 : vector<16x1xf32>
    %cst_81 = arith.constant 9.99999974E-6 : f32
    %179 = vector.broadcast %cst_81 : f32 to vector<16x1xf32>
    %180 = arith.addf %178, %179 : vector<16x1xf32>
    %181 = math.rsqrt %180 : vector<16x1xf32>
    %182 = vector.broadcast %181 : vector<16x1xf32> to vector<16x384xf32>
    %183 = arith.mulf %173, %182 : vector<16x384xf32>
    %184 = vector.broadcast %16 : vector<1x384xf32> to vector<16x384xf32>
    %185 = arith.mulf %183, %184 : vector<16x384xf32>
    %186 = vector.broadcast %18 : vector<1x384xf32> to vector<16x384xf32>
    %187 = arith.addf %185, %186 : vector<16x384xf32>
    %cst_82 = arith.constant dense<0.000000e+00> : vector<16x128xf32>
    %188 = tpu.matmul %187, %20, %cst_82 {dimension_numbers = #tpu.dot_dimension_numbers<[1], [0], [0], [1], [0, 0, 1, 1], [], []>} : vector<16x384xf32>, vector<384x128xf32>, vector<16x128xf32> -> vector<16x128xf32>
    %189 = vector.broadcast %22 : vector<1x128xf32> to vector<16x128xf32>
    %190 = arith.addf %188, %189 : vector<16x128xf32>
    %cst_83 = arith.constant 0.000000e+00 : f32
    %191 = vector.broadcast %cst_83 : f32 to vector<16x128xf32>
    %192 = arith.maximumf %190, %191 : vector<16x128xf32>
    %cst_84 = arith.constant dense<0.000000e+00> : vector<16x384xf32>
    %193 = tpu.matmul %192, %24, %cst_84 {dimension_numbers = #tpu.dot_dimension_numbers<[1], [0], [0], [1], [0, 0, 1, 1], [], []>} : vector<16x128xf32>, vector<128x384xf32>, vector<16x384xf32> -> vector<16x384xf32>
    %194 = vector.broadcast %26 : vector<1x384xf32> to vector<16x384xf32>
    %195 = arith.addf %193, %194 : vector<16x384xf32>
    %196 = arith.addf %187, %195 : vector<16x384xf32>
    %cst_85 = arith.constant dense<0.000000e+00> : vector<16xf32>
    %197 = vector.multi_reduction <add>, %196, %cst_85 [1] : vector<16x384xf32> to vector<16xf32>
    %198 = vector.shape_cast %197 : vector<16xf32> to vector<16x1xf32>
    %cst_86 = arith.constant 3.840000e+02 : f32
    %199 = vector.broadcast %cst_86 : f32 to vector<16x1xf32>
    %200 = arith.divf %198, %199 : vector<16x1xf32>
    %201 = vector.broadcast %200 : vector<16x1xf32> to vector<16x384xf32>
    %202 = arith.subf %196, %201 : vector<16x384xf32>
    %203 = arith.mulf %202, %202 : vector<16x384xf32>
    %cst_87 = arith.constant dense<0.000000e+00> : vector<16xf32>
    %204 = vector.multi_reduction <add>, %203, %cst_87 [1] : vector<16x384xf32> to vector<16xf32>
    %205 = vector.shape_cast %204 : vector<16xf32> to vector<16x1xf32>
    %cst_88 = arith.constant 3.840000e+02 : f32
    %206 = vector.broadcast %cst_88 : f32 to vector<16x1xf32>
    %207 = arith.divf %205, %206 : vector<16x1xf32>
    %cst_89 = arith.constant 9.99999974E-6 : f32
    %208 = vector.broadcast %cst_89 : f32 to vector<16x1xf32>
    %209 = arith.addf %207, %208 : vector<16x1xf32>
    %210 = math.rsqrt %209 : vector<16x1xf32>
    %211 = vector.broadcast %210 : vector<16x1xf32> to vector<16x384xf32>
    %212 = arith.mulf %202, %211 : vector<16x384xf32>
    %213 = vector.broadcast %28 : vector<1x384xf32> to vector<16x384xf32>
    %214 = arith.mulf %212, %213 : vector<16x384xf32>
    %215 = vector.broadcast %30 : vector<1x384xf32> to vector<16x384xf32>
    %216 = arith.addf %214, %215 : vector<16x384xf32>
    %217 = arith.addf %216, %6 : vector<16x384xf32>
    %c1 = arith.constant 1 : index
    %c0_90 = arith.constant 0 : index
    %c0_91 = arith.constant 0 : index
    %218 = vector.load %arg2[%c1, %c0_90, %c0_91] : memref<2x384x1152xf32, #tpu.memory_space<vmem>>, vector<1x384x1152xf32>
    %219 = vector.shape_cast %218 : vector<1x384x1152xf32> to vector<384x1152xf32>
    %c1_92 = arith.constant 1 : index
    %c0_93 = arith.constant 0 : index
    %c0_94 = arith.constant 0 : index
    %220 = vector.load %arg3[%c1_92, %c0_93, %c0_94] : memref<2x1x1152xf32, #tpu.memory_space<vmem>>, vector<1x1x1152xf32>
    %221 = vector.shape_cast %220 : vector<1x1x1152xf32> to vector<1x1152xf32>
    %c1_95 = arith.constant 1 : index
    %c0_96 = arith.constant 0 : index
    %c0_97 = arith.constant 0 : index
    %222 = vector.load %arg4[%c1_95, %c0_96, %c0_97] : memref<2x384x384xf32, #tpu.memory_space<vmem>>, vector<1x384x384xf32>
    %223 = vector.shape_cast %222 : vector<1x384x384xf32> to vector<384x384xf32>
    %c1_98 = arith.constant 1 : index
    %c0_99 = arith.constant 0 : index
    %c0_100 = arith.constant 0 : index
    %224 = vector.load %arg5[%c1_98, %c0_99, %c0_100] : memref<2x1x384xf32, #tpu.memory_space<vmem>>, vector<1x1x384xf32>
    %225 = vector.shape_cast %224 : vector<1x1x384xf32> to vector<1x384xf32>
    %c1_101 = arith.constant 1 : index
    %c0_102 = arith.constant 0 : index
    %c0_103 = arith.constant 0 : index
    %226 = vector.load %arg6[%c1_101, %c0_102, %c0_103] : memref<2x1x384xf32, #tpu.memory_space<vmem>>, vector<1x1x384xf32>
    %227 = vector.shape_cast %226 : vector<1x1x384xf32> to vector<1x384xf32>
    %c1_104 = arith.constant 1 : index
    %c0_105 = arith.constant 0 : index
    %c0_106 = arith.constant 0 : index
    %228 = vector.load %arg7[%c1_104, %c0_105, %c0_106] : memref<2x1x384xf32, #tpu.memory_space<vmem>>, vector<1x1x384xf32>
    %229 = vector.shape_cast %228 : vector<1x1x384xf32> to vector<1x384xf32>
    %c1_107 = arith.constant 1 : index
    %c0_108 = arith.constant 0 : index
    %c0_109 = arith.constant 0 : index
    %230 = vector.load %arg8[%c1_107, %c0_108, %c0_109] : memref<2x384x128xf32, #tpu.memory_space<vmem>>, vector<1x384x128xf32>
    %231 = vector.shape_cast %230 : vector<1x384x128xf32> to vector<384x128xf32>
    %c1_110 = arith.constant 1 : index
    %c0_111 = arith.constant 0 : index
    %c0_112 = arith.constant 0 : index
    %232 = vector.load %arg9[%c1_110, %c0_111, %c0_112] : memref<2x1x128xf32, #tpu.memory_space<vmem>>, vector<1x1x128xf32>
    %233 = vector.shape_cast %232 : vector<1x1x128xf32> to vector<1x128xf32>
    %c1_113 = arith.constant 1 : index
    %c0_114 = arith.constant 0 : index
    %c0_115 = arith.constant 0 : index
    %234 = vector.load %arg10[%c1_113, %c0_114, %c0_115] : memref<2x128x384xf32, #tpu.memory_space<vmem>>, vector<1x128x384xf32>
    %235 = vector.shape_cast %234 : vector<1x128x384xf32> to vector<128x384xf32>
    %c1_116 = arith.constant 1 : index
    %c0_117 = arith.constant 0 : index
    %c0_118 = arith.constant 0 : index
    %236 = vector.load %arg11[%c1_116, %c0_117, %c0_118] : memref<2x1x384xf32, #tpu.memory_space<vmem>>, vector<1x1x384xf32>
    %237 = vector.shape_cast %236 : vector<1x1x384xf32> to vector<1x384xf32>
    %c1_119 = arith.constant 1 : index
    %c0_120 = arith.constant 0 : index
    %c0_121 = arith.constant 0 : index
    %238 = vector.load %arg12[%c1_119, %c0_120, %c0_121] : memref<2x1x384xf32, #tpu.memory_space<vmem>>, vector<1x1x384xf32>
    %239 = vector.shape_cast %238 : vector<1x1x384xf32> to vector<1x384xf32>
    %c1_122 = arith.constant 1 : index
    %c0_123 = arith.constant 0 : index
    %c0_124 = arith.constant 0 : index
    %240 = vector.load %arg13[%c1_122, %c0_123, %c0_124] : memref<2x1x384xf32, #tpu.memory_space<vmem>>, vector<1x1x384xf32>
    %241 = vector.shape_cast %240 : vector<1x1x384xf32> to vector<1x384xf32>
    %cst_125 = arith.constant dense<0.000000e+00> : vector<16x1152xf32>
    %242 = tpu.matmul %217, %219, %cst_125 {dimension_numbers = #tpu.dot_dimension_numbers<[1], [0], [0], [1], [0, 0, 1, 1], [], []>} : vector<16x384xf32>, vector<384x1152xf32>, vector<16x1152xf32> -> vector<16x1152xf32>
    %243 = vector.broadcast %221 : vector<1x1152xf32> to vector<16x1152xf32>
    %244 = arith.addf %242, %243 : vector<16x1152xf32>
    %245 = vector.extract_strided_slice %244 {offsets = [0, 0], sizes = [8, 1152], strides = [1, 1]} : vector<16x1152xf32> to vector<8x1152xf32>
    %cst_126 = arith.constant 0.000000e+00 : f32
    %246 = vector.broadcast %cst_126 : f32 to vector<8x384xf32>
    %247 = vector.extract_strided_slice %245 {offsets = [0, 0], sizes = [8, 128], strides = [1, 1]} : vector<8x1152xf32> to vector<8x128xf32>
    %248 = vector.extract_strided_slice %245 {offsets = [0, 384], sizes = [8, 128], strides = [1, 1]} : vector<8x1152xf32> to vector<8x128xf32>
    %249 = vector.extract_strided_slice %245 {offsets = [0, 768], sizes = [8, 128], strides = [1, 1]} : vector<8x1152xf32> to vector<8x128xf32>
    %cst_127 = arith.constant dense<0.000000e+00> : vector<8x8xf32>
    %250 = tpu.matmul %247, %248, %cst_127 {dimension_numbers = #tpu.dot_dimension_numbers<[1], [1], [0], [0], [0, 0, 1, 0], [], []>} : vector<8x128xf32>, vector<8x128xf32>, vector<8x8xf32> -> vector<8x8xf32>
    %cst_128 = arith.constant 0.0883883461 : f32
    %251 = vector.broadcast %cst_128 : f32 to vector<8x8xf32>
    %252 = arith.mulf %250, %251 : vector<8x8xf32>
    %253 = arith.addf %252, %5 : vector<8x8xf32>
    %cst_129 = arith.constant dense<0xFF800000> : vector<8xf32>
    %254 = vector.multi_reduction <maximumf>, %253, %cst_129 [1] : vector<8x8xf32> to vector<8xf32>
    %255 = vector.shape_cast %254 : vector<8xf32> to vector<8x1xf32>
    %256 = vector.broadcast %255 : vector<8x1xf32> to vector<8x8xf32>
    %257 = arith.subf %253, %256 : vector<8x8xf32>
    %258 = math.exp %257 : vector<8x8xf32>
    %cst_130 = arith.constant dense<0.000000e+00> : vector<8xf32>
    %259 = vector.multi_reduction <add>, %258, %cst_130 [1] : vector<8x8xf32> to vector<8xf32>
    %260 = vector.shape_cast %259 : vector<8xf32> to vector<8x1xf32>
    %261 = tpu.reciprocal %260 {approx = true} : vector<8x1xf32> -> vector<8x1xf32>
    %262 = vector.broadcast %261 : vector<8x1xf32> to vector<8x8xf32>
    %263 = arith.mulf %258, %262 : vector<8x8xf32>
    %cst_131 = arith.constant dense<0.000000e+00> : vector<8x128xf32>
    %264 = tpu.matmul %263, %249, %cst_131 {dimension_numbers = #tpu.dot_dimension_numbers<[1], [0], [0], [1], [0, 0, 1, 1], [], []>} : vector<8x8xf32>, vector<8x128xf32>, vector<8x128xf32> -> vector<8x128xf32>
    %265 = vector.extract_strided_slice %223 {offsets = [0, 0], sizes = [128, 384], strides = [1, 1]} : vector<384x384xf32> to vector<128x384xf32>
    %cst_132 = arith.constant dense<0.000000e+00> : vector<8x384xf32>
    %266 = tpu.matmul %264, %265, %cst_132 {dimension_numbers = #tpu.dot_dimension_numbers<[1], [0], [0], [1], [0, 0, 1, 1], [], []>} : vector<8x128xf32>, vector<128x384xf32>, vector<8x384xf32> -> vector<8x384xf32>
    %267 = arith.addf %246, %266 : vector<8x384xf32>
    %268 = vector.extract_strided_slice %245 {offsets = [0, 128], sizes = [8, 128], strides = [1, 1]} : vector<8x1152xf32> to vector<8x128xf32>
    %269 = vector.extract_strided_slice %245 {offsets = [0, 512], sizes = [8, 128], strides = [1, 1]} : vector<8x1152xf32> to vector<8x128xf32>
    %270 = vector.extract_strided_slice %245 {offsets = [0, 896], sizes = [8, 128], strides = [1, 1]} : vector<8x1152xf32> to vector<8x128xf32>
    %cst_133 = arith.constant dense<0.000000e+00> : vector<8x8xf32>
    %271 = tpu.matmul %268, %269, %cst_133 {dimension_numbers = #tpu.dot_dimension_numbers<[1], [1], [0], [0], [0, 0, 1, 0], [], []>} : vector<8x128xf32>, vector<8x128xf32>, vector<8x8xf32> -> vector<8x8xf32>
    %cst_134 = arith.constant 0.0883883461 : f32
    %272 = vector.broadcast %cst_134 : f32 to vector<8x8xf32>
    %273 = arith.mulf %271, %272 : vector<8x8xf32>
    %274 = arith.addf %273, %5 : vector<8x8xf32>
    %cst_135 = arith.constant dense<0xFF800000> : vector<8xf32>
    %275 = vector.multi_reduction <maximumf>, %274, %cst_135 [1] : vector<8x8xf32> to vector<8xf32>
    %276 = vector.shape_cast %275 : vector<8xf32> to vector<8x1xf32>
    %277 = vector.broadcast %276 : vector<8x1xf32> to vector<8x8xf32>
    %278 = arith.subf %274, %277 : vector<8x8xf32>
    %279 = math.exp %278 : vector<8x8xf32>
    %cst_136 = arith.constant dense<0.000000e+00> : vector<8xf32>
    %280 = vector.multi_reduction <add>, %279, %cst_136 [1] : vector<8x8xf32> to vector<8xf32>
    %281 = vector.shape_cast %280 : vector<8xf32> to vector<8x1xf32>
    %282 = tpu.reciprocal %281 {approx = true} : vector<8x1xf32> -> vector<8x1xf32>
    %283 = vector.broadcast %282 : vector<8x1xf32> to vector<8x8xf32>
    %284 = arith.mulf %279, %283 : vector<8x8xf32>
    %cst_137 = arith.constant dense<0.000000e+00> : vector<8x128xf32>
    %285 = tpu.matmul %284, %270, %cst_137 {dimension_numbers = #tpu.dot_dimension_numbers<[1], [0], [0], [1], [0, 0, 1, 1], [], []>} : vector<8x8xf32>, vector<8x128xf32>, vector<8x128xf32> -> vector<8x128xf32>
    %286 = vector.extract_strided_slice %223 {offsets = [128, 0], sizes = [128, 384], strides = [1, 1]} : vector<384x384xf32> to vector<128x384xf32>
    %cst_138 = arith.constant dense<0.000000e+00> : vector<8x384xf32>
    %287 = tpu.matmul %285, %286, %cst_138 {dimension_numbers = #tpu.dot_dimension_numbers<[1], [0], [0], [1], [0, 0, 1, 1], [], []>} : vector<8x128xf32>, vector<128x384xf32>, vector<8x384xf32> -> vector<8x384xf32>
    %288 = arith.addf %267, %287 : vector<8x384xf32>
    %289 = vector.extract_strided_slice %245 {offsets = [0, 256], sizes = [8, 128], strides = [1, 1]} : vector<8x1152xf32> to vector<8x128xf32>
    %290 = vector.extract_strided_slice %245 {offsets = [0, 640], sizes = [8, 128], strides = [1, 1]} : vector<8x1152xf32> to vector<8x128xf32>
    %291 = vector.extract_strided_slice %245 {offsets = [0, 1024], sizes = [8, 128], strides = [1, 1]} : vector<8x1152xf32> to vector<8x128xf32>
    %cst_139 = arith.constant dense<0.000000e+00> : vector<8x8xf32>
    %292 = tpu.matmul %289, %290, %cst_139 {dimension_numbers = #tpu.dot_dimension_numbers<[1], [1], [0], [0], [0, 0, 1, 0], [], []>} : vector<8x128xf32>, vector<8x128xf32>, vector<8x8xf32> -> vector<8x8xf32>
    %cst_140 = arith.constant 0.0883883461 : f32
    %293 = vector.broadcast %cst_140 : f32 to vector<8x8xf32>
    %294 = arith.mulf %292, %293 : vector<8x8xf32>
    %295 = arith.addf %294, %5 : vector<8x8xf32>
    %cst_141 = arith.constant dense<0xFF800000> : vector<8xf32>
    %296 = vector.multi_reduction <maximumf>, %295, %cst_141 [1] : vector<8x8xf32> to vector<8xf32>
    %297 = vector.shape_cast %296 : vector<8xf32> to vector<8x1xf32>
    %298 = vector.broadcast %297 : vector<8x1xf32> to vector<8x8xf32>
    %299 = arith.subf %295, %298 : vector<8x8xf32>
    %300 = math.exp %299 : vector<8x8xf32>
    %cst_142 = arith.constant dense<0.000000e+00> : vector<8xf32>
    %301 = vector.multi_reduction <add>, %300, %cst_142 [1] : vector<8x8xf32> to vector<8xf32>
    %302 = vector.shape_cast %301 : vector<8xf32> to vector<8x1xf32>
    %303 = tpu.reciprocal %302 {approx = true} : vector<8x1xf32> -> vector<8x1xf32>
    %304 = vector.broadcast %303 : vector<8x1xf32> to vector<8x8xf32>
    %305 = arith.mulf %300, %304 : vector<8x8xf32>
    %cst_143 = arith.constant dense<0.000000e+00> : vector<8x128xf32>
    %306 = tpu.matmul %305, %291, %cst_143 {dimension_numbers = #tpu.dot_dimension_numbers<[1], [0], [0], [1], [0, 0, 1, 1], [], []>} : vector<8x8xf32>, vector<8x128xf32>, vector<8x128xf32> -> vector<8x128xf32>
    %307 = vector.extract_strided_slice %223 {offsets = [256, 0], sizes = [128, 384], strides = [1, 1]} : vector<384x384xf32> to vector<128x384xf32>
    %cst_144 = arith.constant dense<0.000000e+00> : vector<8x384xf32>
    %308 = tpu.matmul %306, %307, %cst_144 {dimension_numbers = #tpu.dot_dimension_numbers<[1], [0], [0], [1], [0, 0, 1, 1], [], []>} : vector<8x128xf32>, vector<128x384xf32>, vector<8x384xf32> -> vector<8x384xf32>
    %309 = arith.addf %288, %308 : vector<8x384xf32>
    %310 = vector.extract_strided_slice %244 {offsets = [8, 0], sizes = [8, 1152], strides = [1, 1]} : vector<16x1152xf32> to vector<8x1152xf32>
    %cst_145 = arith.constant 0.000000e+00 : f32
    %311 = vector.broadcast %cst_145 : f32 to vector<8x384xf32>
    %312 = vector.extract_strided_slice %310 {offsets = [0, 0], sizes = [8, 128], strides = [1, 1]} : vector<8x1152xf32> to vector<8x128xf32>
    %313 = vector.extract_strided_slice %310 {offsets = [0, 384], sizes = [8, 128], strides = [1, 1]} : vector<8x1152xf32> to vector<8x128xf32>
    %314 = vector.extract_strided_slice %310 {offsets = [0, 768], sizes = [8, 128], strides = [1, 1]} : vector<8x1152xf32> to vector<8x128xf32>
    %cst_146 = arith.constant dense<0.000000e+00> : vector<8x8xf32>
    %315 = tpu.matmul %312, %313, %cst_146 {dimension_numbers = #tpu.dot_dimension_numbers<[1], [1], [0], [0], [0, 0, 1, 0], [], []>} : vector<8x128xf32>, vector<8x128xf32>, vector<8x8xf32> -> vector<8x8xf32>
    %cst_147 = arith.constant 0.0883883461 : f32
    %316 = vector.broadcast %cst_147 : f32 to vector<8x8xf32>
    %317 = arith.mulf %315, %316 : vector<8x8xf32>
    %318 = arith.addf %317, %5 : vector<8x8xf32>
    %cst_148 = arith.constant dense<0xFF800000> : vector<8xf32>
    %319 = vector.multi_reduction <maximumf>, %318, %cst_148 [1] : vector<8x8xf32> to vector<8xf32>
    %320 = vector.shape_cast %319 : vector<8xf32> to vector<8x1xf32>
    %321 = vector.broadcast %320 : vector<8x1xf32> to vector<8x8xf32>
    %322 = arith.subf %318, %321 : vector<8x8xf32>
    %323 = math.exp %322 : vector<8x8xf32>
    %cst_149 = arith.constant dense<0.000000e+00> : vector<8xf32>
    %324 = vector.multi_reduction <add>, %323, %cst_149 [1] : vector<8x8xf32> to vector<8xf32>
    %325 = vector.shape_cast %324 : vector<8xf32> to vector<8x1xf32>
    %326 = tpu.reciprocal %325 {approx = true} : vector<8x1xf32> -> vector<8x1xf32>
    %327 = vector.broadcast %326 : vector<8x1xf32> to vector<8x8xf32>
    %328 = arith.mulf %323, %327 : vector<8x8xf32>
    %cst_150 = arith.constant dense<0.000000e+00> : vector<8x128xf32>
    %329 = tpu.matmul %328, %314, %cst_150 {dimension_numbers = #tpu.dot_dimension_numbers<[1], [0], [0], [1], [0, 0, 1, 1], [], []>} : vector<8x8xf32>, vector<8x128xf32>, vector<8x128xf32> -> vector<8x128xf32>
    %330 = vector.extract_strided_slice %223 {offsets = [0, 0], sizes = [128, 384], strides = [1, 1]} : vector<384x384xf32> to vector<128x384xf32>
    %cst_151 = arith.constant dense<0.000000e+00> : vector<8x384xf32>
    %331 = tpu.matmul %329, %330, %cst_151 {dimension_numbers = #tpu.dot_dimension_numbers<[1], [0], [0], [1], [0, 0, 1, 1], [], []>} : vector<8x128xf32>, vector<128x384xf32>, vector<8x384xf32> -> vector<8x384xf32>
    %332 = arith.addf %311, %331 : vector<8x384xf32>
    %333 = vector.extract_strided_slice %310 {offsets = [0, 128], sizes = [8, 128], strides = [1, 1]} : vector<8x1152xf32> to vector<8x128xf32>
    %334 = vector.extract_strided_slice %310 {offsets = [0, 512], sizes = [8, 128], strides = [1, 1]} : vector<8x1152xf32> to vector<8x128xf32>
    %335 = vector.extract_strided_slice %310 {offsets = [0, 896], sizes = [8, 128], strides = [1, 1]} : vector<8x1152xf32> to vector<8x128xf32>
    %cst_152 = arith.constant dense<0.000000e+00> : vector<8x8xf32>
    %336 = tpu.matmul %333, %334, %cst_152 {dimension_numbers = #tpu.dot_dimension_numbers<[1], [1], [0], [0], [0, 0, 1, 0], [], []>} : vector<8x128xf32>, vector<8x128xf32>, vector<8x8xf32> -> vector<8x8xf32>
    %cst_153 = arith.constant 0.0883883461 : f32
    %337 = vector.broadcast %cst_153 : f32 to vector<8x8xf32>
    %338 = arith.mulf %336, %337 : vector<8x8xf32>
    %339 = arith.addf %338, %5 : vector<8x8xf32>
    %cst_154 = arith.constant dense<0xFF800000> : vector<8xf32>
    %340 = vector.multi_reduction <maximumf>, %339, %cst_154 [1] : vector<8x8xf32> to vector<8xf32>
    %341 = vector.shape_cast %340 : vector<8xf32> to vector<8x1xf32>
    %342 = vector.broadcast %341 : vector<8x1xf32> to vector<8x8xf32>
    %343 = arith.subf %339, %342 : vector<8x8xf32>
    %344 = math.exp %343 : vector<8x8xf32>
    %cst_155 = arith.constant dense<0.000000e+00> : vector<8xf32>
    %345 = vector.multi_reduction <add>, %344, %cst_155 [1] : vector<8x8xf32> to vector<8xf32>
    %346 = vector.shape_cast %345 : vector<8xf32> to vector<8x1xf32>
    %347 = tpu.reciprocal %346 {approx = true} : vector<8x1xf32> -> vector<8x1xf32>
    %348 = vector.broadcast %347 : vector<8x1xf32> to vector<8x8xf32>
    %349 = arith.mulf %344, %348 : vector<8x8xf32>
    %cst_156 = arith.constant dense<0.000000e+00> : vector<8x128xf32>
    %350 = tpu.matmul %349, %335, %cst_156 {dimension_numbers = #tpu.dot_dimension_numbers<[1], [0], [0], [1], [0, 0, 1, 1], [], []>} : vector<8x8xf32>, vector<8x128xf32>, vector<8x128xf32> -> vector<8x128xf32>
    %351 = vector.extract_strided_slice %223 {offsets = [128, 0], sizes = [128, 384], strides = [1, 1]} : vector<384x384xf32> to vector<128x384xf32>
    %cst_157 = arith.constant dense<0.000000e+00> : vector<8x384xf32>
    %352 = tpu.matmul %350, %351, %cst_157 {dimension_numbers = #tpu.dot_dimension_numbers<[1], [0], [0], [1], [0, 0, 1, 1], [], []>} : vector<8x128xf32>, vector<128x384xf32>, vector<8x384xf32> -> vector<8x384xf32>
    %353 = arith.addf %332, %352 : vector<8x384xf32>
    %354 = vector.extract_strided_slice %310 {offsets = [0, 256], sizes = [8, 128], strides = [1, 1]} : vector<8x1152xf32> to vector<8x128xf32>
    %355 = vector.extract_strided_slice %310 {offsets = [0, 640], sizes = [8, 128], strides = [1, 1]} : vector<8x1152xf32> to vector<8x128xf32>
    %356 = vector.extract_strided_slice %310 {offsets = [0, 1024], sizes = [8, 128], strides = [1, 1]} : vector<8x1152xf32> to vector<8x128xf32>
    %cst_158 = arith.constant dense<0.000000e+00> : vector<8x8xf32>
    %357 = tpu.matmul %354, %355, %cst_158 {dimension_numbers = #tpu.dot_dimension_numbers<[1], [1], [0], [0], [0, 0, 1, 0], [], []>} : vector<8x128xf32>, vector<8x128xf32>, vector<8x8xf32> -> vector<8x8xf32>
    %cst_159 = arith.constant 0.0883883461 : f32
    %358 = vector.broadcast %cst_159 : f32 to vector<8x8xf32>
    %359 = arith.mulf %357, %358 : vector<8x8xf32>
    %360 = arith.addf %359, %5 : vector<8x8xf32>
    %cst_160 = arith.constant dense<0xFF800000> : vector<8xf32>
    %361 = vector.multi_reduction <maximumf>, %360, %cst_160 [1] : vector<8x8xf32> to vector<8xf32>
    %362 = vector.shape_cast %361 : vector<8xf32> to vector<8x1xf32>
    %363 = vector.broadcast %362 : vector<8x1xf32> to vector<8x8xf32>
    %364 = arith.subf %360, %363 : vector<8x8xf32>
    %365 = math.exp %364 : vector<8x8xf32>
    %cst_161 = arith.constant dense<0.000000e+00> : vector<8xf32>
    %366 = vector.multi_reduction <add>, %365, %cst_161 [1] : vector<8x8xf32> to vector<8xf32>
    %367 = vector.shape_cast %366 : vector<8xf32> to vector<8x1xf32>
    %368 = tpu.reciprocal %367 {approx = true} : vector<8x1xf32> -> vector<8x1xf32>
    %369 = vector.broadcast %368 : vector<8x1xf32> to vector<8x8xf32>
    %370 = arith.mulf %365, %369 : vector<8x8xf32>
    %cst_162 = arith.constant dense<0.000000e+00> : vector<8x128xf32>
    %371 = tpu.matmul %370, %356, %cst_162 {dimension_numbers = #tpu.dot_dimension_numbers<[1], [0], [0], [1], [0, 0, 1, 1], [], []>} : vector<8x8xf32>, vector<8x128xf32>, vector<8x128xf32> -> vector<8x128xf32>
    %372 = vector.extract_strided_slice %223 {offsets = [256, 0], sizes = [128, 384], strides = [1, 1]} : vector<384x384xf32> to vector<128x384xf32>
    %cst_163 = arith.constant dense<0.000000e+00> : vector<8x384xf32>
    %373 = tpu.matmul %371, %372, %cst_163 {dimension_numbers = #tpu.dot_dimension_numbers<[1], [0], [0], [1], [0, 0, 1, 1], [], []>} : vector<8x128xf32>, vector<128x384xf32>, vector<8x384xf32> -> vector<8x384xf32>
    %374 = arith.addf %353, %373 : vector<8x384xf32>
    %375 = tpu.concatenate %309, %374 in 0 : vector<8x384xf32>, vector<8x384xf32> -> vector<16x384xf32>
    %376 = vector.broadcast %225 : vector<1x384xf32> to vector<16x384xf32>
    %377 = arith.addf %375, %376 : vector<16x384xf32>
    %378 = arith.addf %217, %377 : vector<16x384xf32>
    %cst_164 = arith.constant dense<0.000000e+00> : vector<16xf32>
    %379 = vector.multi_reduction <add>, %378, %cst_164 [1] : vector<16x384xf32> to vector<16xf32>
    %380 = vector.shape_cast %379 : vector<16xf32> to vector<16x1xf32>
    %cst_165 = arith.constant 3.840000e+02 : f32
    %381 = vector.broadcast %cst_165 : f32 to vector<16x1xf32>
    %382 = arith.divf %380, %381 : vector<16x1xf32>
    %383 = vector.broadcast %382 : vector<16x1xf32> to vector<16x384xf32>
    %384 = arith.subf %378, %383 : vector<16x384xf32>
    %385 = arith.mulf %384, %384 : vector<16x384xf32>
    %cst_166 = arith.constant dense<0.000000e+00> : vector<16xf32>
    %386 = vector.multi_reduction <add>, %385, %cst_166 [1] : vector<16x384xf32> to vector<16xf32>
    %387 = vector.shape_cast %386 : vector<16xf32> to vector<16x1xf32>
    %cst_167 = arith.constant 3.840000e+02 : f32
    %388 = vector.broadcast %cst_167 : f32 to vector<16x1xf32>
    %389 = arith.divf %387, %388 : vector<16x1xf32>
    %cst_168 = arith.constant 9.99999974E-6 : f32
    %390 = vector.broadcast %cst_168 : f32 to vector<16x1xf32>
    %391 = arith.addf %389, %390 : vector<16x1xf32>
    %392 = math.rsqrt %391 : vector<16x1xf32>
    %393 = vector.broadcast %392 : vector<16x1xf32> to vector<16x384xf32>
    %394 = arith.mulf %384, %393 : vector<16x384xf32>
    %395 = vector.broadcast %227 : vector<1x384xf32> to vector<16x384xf32>
    %396 = arith.mulf %394, %395 : vector<16x384xf32>
    %397 = vector.broadcast %229 : vector<1x384xf32> to vector<16x384xf32>
    %398 = arith.addf %396, %397 : vector<16x384xf32>
    %cst_169 = arith.constant dense<0.000000e+00> : vector<16x128xf32>
    %399 = tpu.matmul %398, %231, %cst_169 {dimension_numbers = #tpu.dot_dimension_numbers<[1], [0], [0], [1], [0, 0, 1, 1], [], []>} : vector<16x384xf32>, vector<384x128xf32>, vector<16x128xf32> -> vector<16x128xf32>
    %400 = vector.broadcast %233 : vector<1x128xf32> to vector<16x128xf32>
    %401 = arith.addf %399, %400 : vector<16x128xf32>
    %cst_170 = arith.constant 0.000000e+00 : f32
    %402 = vector.broadcast %cst_170 : f32 to vector<16x128xf32>
    %403 = arith.maximumf %401, %402 : vector<16x128xf32>
    %cst_171 = arith.constant dense<0.000000e+00> : vector<16x384xf32>
    %404 = tpu.matmul %403, %235, %cst_171 {dimension_numbers = #tpu.dot_dimension_numbers<[1], [0], [0], [1], [0, 0, 1, 1], [], []>} : vector<16x128xf32>, vector<128x384xf32>, vector<16x384xf32> -> vector<16x384xf32>
    %405 = vector.broadcast %237 : vector<1x384xf32> to vector<16x384xf32>
    %406 = arith.addf %404, %405 : vector<16x384xf32>
    %407 = arith.addf %398, %406 : vector<16x384xf32>
    %cst_172 = arith.constant dense<0.000000e+00> : vector<16xf32>
    %408 = vector.multi_reduction <add>, %407, %cst_172 [1] : vector<16x384xf32> to vector<16xf32>
    %409 = vector.shape_cast %408 : vector<16xf32> to vector<16x1xf32>
    %cst_173 = arith.constant 3.840000e+02 : f32
    %410 = vector.broadcast %cst_173 : f32 to vector<16x1xf32>
    %411 = arith.divf %409, %410 : vector<16x1xf32>
    %412 = vector.broadcast %411 : vector<16x1xf32> to vector<16x384xf32>
    %413 = arith.subf %407, %412 : vector<16x384xf32>
    %414 = arith.mulf %413, %413 : vector<16x384xf32>
    %cst_174 = arith.constant dense<0.000000e+00> : vector<16xf32>
    %415 = vector.multi_reduction <add>, %414, %cst_174 [1] : vector<16x384xf32> to vector<16xf32>
    %416 = vector.shape_cast %415 : vector<16xf32> to vector<16x1xf32>
    %cst_175 = arith.constant 3.840000e+02 : f32
    %417 = vector.broadcast %cst_175 : f32 to vector<16x1xf32>
    %418 = arith.divf %416, %417 : vector<16x1xf32>
    %cst_176 = arith.constant 9.99999974E-6 : f32
    %419 = vector.broadcast %cst_176 : f32 to vector<16x1xf32>
    %420 = arith.addf %418, %419 : vector<16x1xf32>
    %421 = math.rsqrt %420 : vector<16x1xf32>
    %422 = vector.broadcast %421 : vector<16x1xf32> to vector<16x384xf32>
    %423 = arith.mulf %413, %422 : vector<16x384xf32>
    %424 = vector.broadcast %239 : vector<1x384xf32> to vector<16x384xf32>
    %425 = arith.mulf %423, %424 : vector<16x384xf32>
    %426 = vector.broadcast %241 : vector<1x384xf32> to vector<16x384xf32>
    %427 = arith.addf %425, %426 : vector<16x384xf32>
    %428 = arith.addf %427, %217 : vector<16x384xf32>
    %429 = vector.extract_strided_slice %428 {offsets = [0, 0], sizes = [16, 64], strides = [1, 1]} : vector<16x384xf32> to vector<16x64xf32>
    %430 = tpu.iota {dimensions = array<i32: 0>} : vector<12x16xi32>
    %c0_177 = arith.constant 0 : index
    %c0_178 = arith.constant 0 : index
    %431 = vector.load %arg1[%c0_177, %c0_178] : memref<1x16xi32, #tpu.memory_space<vmem>>, vector<1x16xi32>
    %432 = vector.broadcast %431 : vector<1x16xi32> to vector<12x16xi32>
    %433 = arith.cmpi eq, %432, %430 : vector<12x16xi32>
    %434 = arith.extui %433 : vector<12x16xi1> to vector<12x16xi32>
    %435 = arith.sitofp %434 : vector<12x16xi32> to vector<12x16xf32>
    %cst_179 = arith.constant dense<0.000000e+00> : vector<12x64xf32>
    %436 = tpu.matmul %435, %429, %cst_179 {dimension_numbers = #tpu.dot_dimension_numbers<[1], [0], [0], [1], [0, 0, 1, 1], [], []>} : vector<12x16xf32>, vector<16x64xf32>, vector<12x64xf32> -> vector<12x64xf32>
    %cst_180 = arith.constant dense<0.000000e+00> : vector<12xf32>
    %437 = vector.multi_reduction <add>, %435, %cst_180 [1] : vector<12x16xf32> to vector<12xf32>
    %438 = vector.shape_cast %437 : vector<12xf32> to vector<12x1xf32>
    %cst_181 = arith.constant 0.000000e+00 : f32
    %439 = vector.broadcast %cst_181 : f32 to vector<12x1xf32>
    %440 = arith.cmpf ogt, %438, %439 : vector<12x1xf32>
    %cst_182 = arith.constant 1.000000e+00 : f32
    %441 = vector.broadcast %cst_182 : f32 to vector<12x1xf32>
    %442 = arith.maximumf %438, %441 : vector<12x1xf32>
    %443 = vector.broadcast %442 : vector<12x1xf32> to vector<12x64xf32>
    %444 = arith.divf %436, %443 : vector<12x64xf32>
    %cst_183 = arith.constant 0.000000e+00 : f32
    %445 = vector.shape_cast %440 : vector<12x1xi1> to vector<12x1xi1>
    %446 = vector.broadcast %445 : vector<12x1xi1> to vector<12x64xi1>
    %447 = vector.broadcast %cst_183 : f32 to vector<12x64xf32>
    %448 = arith.select %446, %444, %447 : vector<12x64xi1>, vector<12x64xf32>
    %c0_184 = arith.constant 0 : index
    %c0_185 = arith.constant 0 : index
    %449 = vector.load %arg14[%c0_184, %c0_185] : memref<12x64xf32, #tpu.memory_space<vmem>>, vector<12x64xf32>
    tpu.vector_store %arg14[%c0_184, %c0_185], %448 {strides = array<i32>} : memref<12x64xf32, #tpu.memory_space<vmem>>, vector<12x64xf32>,
    return
  }
}

</mosaic_0001>

<llo_original>
// kernel: tpu_custom_call.1
$region0: #{tpu_custom_call.1}
  #allocation0 [shape = 'u32[]', space=smem, size = 0x4, offset = 0x4, fixed_abs, tag = 'smem constant byte address 0x4 - core index']
  #allocation1 [shape = 'u32[144,128]{1,0:T(1,128)}', space=vmem, size = 0x12000, scoped, tag = 'internal scratch']
  %s0 = inlined_call_operand.hbm [shape: f32[16,384], index: 0, kind: input, shape index: {}]
  %s1 = inlined_call_operand.hbm [shape: s32[1,16], index: 1, kind: input, shape index: {}]
  %s2 = inlined_call_operand.hbm [shape: f32[2,384,1152], index: 2, kind: input, shape index: {}]
  %s3 = inlined_call_operand.hbm [shape: f32[2,1,1152], index: 3, kind: input, shape index: {}]
  %s4 = inlined_call_operand.hbm [shape: f32[2,384,384], index: 4, kind: input, shape index: {}]
  %s5 = inlined_call_operand.hbm [shape: f32[2,1,384], index: 5, kind: input, shape index: {}]
  %s6 = inlined_call_operand.hbm [shape: f32[2,1,384], index: 6, kind: input, shape index: {}]
  %s7 = inlined_call_operand.hbm [shape: f32[2,1,384], index: 7, kind: input, shape index: {}]
  %s8 = inlined_call_operand.hbm [shape: f32[2,384,128], index: 8, kind: input, shape index: {}]
  %s9 = inlined_call_operand.hbm [shape: f32[2,1,128], index: 9, kind: input, shape index: {}]
  %s10 = inlined_call_operand.hbm [shape: f32[2,128,384], index: 10, kind: input, shape index: {}]
  %s11 = inlined_call_operand.hbm [shape: f32[2,1,384], index: 11, kind: input, shape index: {}]
  %s12 = inlined_call_operand.hbm [shape: f32[2,1,384], index: 12, kind: input, shape index: {}]
  %s13 = inlined_call_operand.hbm [shape: f32[2,1,384], index: 13, kind: input, shape index: {}]
  %s14 = inlined_call_operand.hbm [shape: f32[12,64], index: 14, kind: output, shape index: {}]
  %s15 = sld [smem:[#allocation0]]
  $region122: #{tpu_custom_call.1} parent=0
    _
  %s17 = ssub.s32 1, %s15
  %s18 = scalar_select 0, %s17, %s15
  $region1: #{tpu_custom_call.1} parent=0
    #allocation2 [shape = 'u8[24576]{0}', space=vmem, size = 0x6000, scoped, tag = 'input window, operand 0, single buffered']
    #allocation3 [shape = 's32[1]{0}', space=sflag, size = 0x4, scoped, tag = 'scoped memory for tpu_custom_call.1']
    #allocation4 [shape = 's32[1]{0}', space=sflag, size = 0x4, scoped, tag = 'scoped memory for tpu_custom_call.1']
    #allocation5 [shape = 'u8[512]{0}', space=vmem, size = 0x400, scoped, tag = 'input window, operand 1, single buffered']
    #allocation6 [shape = 's32[1]{0}', space=sflag, size = 0x4, scoped, tag = 'scoped memory for tpu_custom_call.1']
    #allocation7 [shape = 'u8[3538944]{0}', space=vmem, size = 0x360000, scoped, tag = 'input window, operand 2, single buffered']
    #allocation8 [shape = 'u8[9216]{0}', space=vmem, size = 0x2400, scoped, tag = 'input window, operand 3, single buffered']
    #allocation9 [shape = 's32[1]{0}', space=sflag, size = 0x4, scoped, tag = 'scoped memory for tpu_custom_call.1']
    #allocation10 [shape = 'u8[1179648]{0}', space=vmem, size = 0x120000, scoped, tag = 'input window, operand 4, single buffered']
    #allocation11 [shape = 'u8[3072]{0}', space=vmem, size = 0xc00, scoped, tag = 'input window, operand 5, single buffered']
    #allocation12 [shape = 's32[1]{0}', space=sflag, size = 0x4, scoped, tag = 'scoped memory for tpu_custom_call.1']
    #allocation13 [shape = 'u8[3072]{0}', space=vmem, size = 0xc00, scoped, tag = 'input window, operand 6, single buffered']
    #allocation14 [shape = 'u8[3072]{0}', space=vmem, size = 0xc00, scoped, tag = 'input window, operand 7, single buffered']
    #allocation15 [shape = 's32[1]{0}', space=sflag, size = 0x4, scoped, tag = 'scoped memory for tpu_custom_call.1']
    #allocation16 [shape = 'u8[393216]{0}', space=vmem, size = 0x60000, scoped, tag = 'input window, operand 8, single buffered']
    #allocation17 [shape = 'u8[1024]{0}', space=vmem, size = 0x400, scoped, tag = 'input window, operand 9, single buffered']
    #allocation18 [shape = 's32[1]{0}', space=sflag, size = 0x4, scoped, tag = 'scoped memory for tpu_custom_call.1']
    #allocation19 [shape = 'u8[393216]{0}', space=vmem, size = 0x60000, scoped, tag = 'input window, operand 10, single buffered']
    #allocation20 [shape = 'u8[3072]{0}', space=vmem, size = 0xc00, scoped, tag = 'input window, operand 11, single buffered']
    #allocation21 [shape = 's32[1]{0}', space=sflag, size = 0x4, scoped, tag = 'scoped memory for tpu_custom_call.1']
    #allocation22 [shape = 'u8[3072]{0}', space=vmem, size = 0xc00, scoped, tag = 'input window, operand 12, single buffered']
    #allocation23 [shape = 'u8[3072]{0}', space=vmem, size = 0xc00, scoped, tag = 'input window, operand 13, single buffered']
    #allocation24 [shape = 's32[1]{0}', space=sflag, size = 0x4, scoped, tag = 'scoped memory for tpu_custom_call.1']
    #allocation25 [shape = 'u8[8192]{0}', space=vmem, size = 0x2000, scoped, tag = 'output window, operand 0, single buffered']
    %19 = vsyncpa [#allocation3], 0
    %20 = vsyncpa [#allocation6], 0
    %21 = vsyncpa [#allocation9], 0
    %22 = vsyncpa [#allocation12], 0
    %23 = vsyncpa [#allocation15], 0
    %24 = vsyncpa [#allocation18], 0
    %25 = vsyncpa [#allocation21], 0
    %26 = vsyncpa [#allocation24], 0
    %27 = vsyncpa [#allocation4], 0
    // Predicated region
    $region2: #{tpu_custom_call.1} parent=1 // pred_check
      _
    $region3: #{tpu_custom_call.1} parent=1 // pred_check_branch
      %29 = sbr.rel (0) target = $region5
    $region4: #{tpu_custom_call.1} parent=1 // pred_region
      %s31 = ssub.s32 768, 768
      %32 = vsyncadd [#allocation3], %s31
      %s33 = sshll.u32 [#allocation2], 4
      %s34 = int_to_ptr.vmem [resolvable:$true] %s33
      %39 = dma.hbm_to_vmem [thread:$0]  %s0, 768, %s34, [#allocation3], 384, 384, 24
    $region5: #{tpu_custom_call.1} parent=1 // pred_fallthru
      _
    // Predicated region
    $region6: #{tpu_custom_call.1} parent=1 // pred_check
      _
    $region7: #{tpu_custom_call.1} parent=1 // pred_check_branch
      %41 = sbr.rel (0) target = $region9
    $region8: #{tpu_custom_call.1} parent=1 // pred_region
      %s43 = ssub.s32 16, 16
      %44 = vsyncadd [#allocation6], %s43
      %s46 = sshll.u32 [#allocation5], 4
      %s47 = int_to_ptr.vmem [resolvable:$true] %s46
      %49 = dma.hbm_to_vmem [thread:$0]  %s1, 16, %s47, [#allocation6]
    $region9: #{tpu_custom_call.1} parent=1 // pred_fallthru
      _
    // Predicated region
    $region10: #{tpu_custom_call.1} parent=1 // pred_check
      _
    $region11: #{tpu_custom_call.1} parent=1 // pred_check_branch
      %51 = sbr.rel (0) target = $region13
    $region12: #{tpu_custom_call.1} parent=1 // pred_region
      %s53 = ssub.s32 110592, 110592
      %54 = vsyncadd [#allocation6], %s53
      %s55 = sshll.u32 [#allocation7], 4
      %s56 = int_to_ptr.vmem [resolvable:$true] %s55
      %61 = dma.hbm_to_vmem [thread:$0]  %s2, 110592, %s56, [#allocation6], 1152, 1152, 72
    $region13: #{tpu_custom_call.1} parent=1 // pred_fallthru
      _
    // Predicated region
    $region14: #{tpu_custom_call.1} parent=1 // pred_check
      _
    $region15: #{tpu_custom_call.1} parent=1 // pred_check_branch
      %63 = sbr.rel (0) target = $region17
    $region16: #{tpu_custom_call.1} parent=1 // pred_region
      %s65 = ssub.s32 288, 288
      %66 = vsyncadd [#allocation9], %s65
      %s67 = sshll.u32 [#allocation8], 4
      %s68 = int_to_ptr.vmem [resolvable:$true] %s67
      %73 = dma.hbm_to_vmem [thread:$0]  %s3, 288, %s68, [#allocation9], 144, 144, 9
    $region17: #{tpu_custom_call.1} parent=1 // pred_fallthru
      _
    // Predicated region
    $region18: #{tpu_custom_call.1} parent=1 // pred_check
      _
    $region19: #{tpu_custom_call.1} parent=1 // pred_check_branch
      %75 = sbr.rel (0) target = $region21
    $region20: #{tpu_custom_call.1} parent=1 // pred_region
      %s77 = ssub.s32 36864, 36864
      %78 = vsyncadd [#allocation9], %s77
      %s79 = sshll.u32 [#allocation10], 4
      %s80 = int_to_ptr.vmem [resolvable:$true] %s79
      %85 = dma.hbm_to_vmem [thread:$0]  %s4, 36864, %s80, [#allocation9], 384, 384, 24
    $region21: #{tpu_custom_call.1} parent=1 // pred_fallthru
      _
    // Predicated region
    $region22: #{tpu_custom_call.1} parent=1 // pred_check
      _
    $region23: #{tpu_custom_call.1} parent=1 // pred_check_branch
      %87 = sbr.rel (0) target = $region25
    $region24: #{tpu_custom_call.1} parent=1 // pred_region
      %s89 = ssub.s32 96, 96
      %90 = vsyncadd [#allocation12], %s89
      %s91 = sshll.u32 [#allocation11], 4
      %s92 = int_to_ptr.vmem [resolvable:$true] %s91
      %97 = dma.hbm_to_vmem [thread:$0]  %s5, 96, %s92, [#allocation12], 48, 48, 3
    $region25: #{tpu_custom_call.1} parent=1 // pred_fallthru
      _
    // Predicated region
    $region26: #{tpu_custom_call.1} parent=1 // pred_check
      _
    $region27: #{tpu_custom_call.1} parent=1 // pred_check_branch
      %99 = sbr.rel (0) target = $region29
    $region28: #{tpu_custom_call.1} parent=1 // pred_region
      %s101 = ssub.s32 96, 96
      %102 = vsyncadd [#allocation12], %s101
      %s103 = sshll.u32 [#allocation13], 4
      %s104 = int_to_ptr.vmem [resolvable:$true] %s103
      %109 = dma.hbm_to_vmem [thread:$0]  %s6, 96, %s104, [#allocation12], 48, 48, 3
    $region29: #{tpu_custom_call.1} parent=1 // pred_fallthru
      _
    // Predicated region
    $region30: #{tpu_custom_call.1} parent=1 // pred_check
      _
    $region31: #{tpu_custom_call.1} parent=1 // pred_check_branch
      %111 = sbr.rel (0) target = $region33
    $region32: #{tpu_custom_call.1} parent=1 // pred_region
      %s113 = ssub.s32 96, 96
      %114 = vsyncadd [#allocation15], %s113
      %s115 = sshll.u32 [#allocation14], 4
      %s116 = int_to_ptr.vmem [resolvable:$true] %s115
      %121 = dma.hbm_to_vmem [thread:$0]  %s7, 96, %s116, [#allocation15], 48, 48, 3
    $region33: #{tpu_custom_call.1} parent=1 // pred_fallthru
      _
    // Predicated region
    $region34: #{tpu_custom_call.1} parent=1 // pred_check
      _
    $region35: #{tpu_custom_call.1} parent=1 // pred_check_branch
      %123 = sbr.rel (0) target = $region37
    $region36: #{tpu_custom_call.1} parent=1 // pred_region
      %s125 = ssub.s32 12288, 12288
      %126 = vsyncadd [#allocation15], %s125
      %s127 = sshll.u32 [#allocation16], 4
      %s128 = int_to_ptr.vmem [resolvable:$true] %s127
      %133 = dma.hbm_to_vmem [thread:$0]  %s8, 12288, %s128, [#allocation15], 128, 128, 8
    $region37: #{tpu_custom_call.1} parent=1 // pred_fallthru
      _
    // Predicated region
    $region38: #{tpu_custom_call.1} parent=1 // pred_check
      _
    $region39: #{tpu_custom_call.1} parent=1 // pred_check_branch
      %135 = sbr.rel (0) target = $region41
    $region40: #{tpu_custom_call.1} parent=1 // pred_region
      %s137 = ssub.s32 32, 32
      %138 = vsyncadd [#allocation18], %s137
      %s139 = sshll.u32 [#allocation17], 4
      %s140 = int_to_ptr.vmem [resolvable:$true] %s139
      %145 = dma.hbm_to_vmem [thread:$0]  %s9, 32, %s140, [#allocation18], 16, 16, 1
    $region41: #{tpu_custom_call.1} parent=1 // pred_fallthru
      _
    // Predicated region
    $region42: #{tpu_custom_call.1} parent=1 // pred_check
      _
    $region43: #{tpu_custom_call.1} parent=1 // pred_check_branch
      %147 = sbr.rel (0) target = $region45
    $region44: #{tpu_custom_call.1} parent=1 // pred_region
      %s149 = ssub.s32 12288, 12288
      %150 = vsyncadd [#allocation18], %s149
      %s151 = sshll.u32 [#allocation19], 4
      %s152 = int_to_ptr.vmem [resolvable:$true] %s151
      %157 = dma.hbm_to_vmem [thread:$0]  %s10, 12288, %s152, [#allocation18], 384, 384, 24
    $region45: #{tpu_custom_call.1} parent=1 // pred_fallthru
      _
    // Predicated region
    $region46: #{tpu_custom_call.1} parent=1 // pred_check
      _
    $region47: #{tpu_custom_call.1} parent=1 // pred_check_branch
      %159 = sbr.rel (0) target = $region49
    $region48: #{tpu_custom_call.1} parent=1 // pred_region
      %s161 = ssub.s32 96, 96
      %162 = vsyncadd [#allocation21], %s161
      %s163 = sshll.u32 [#allocation20], 4
      %s164 = int_to_ptr.vmem [resolvable:$true] %s163
      %169 = dma.hbm_to_vmem [thread:$0]  %s11, 96, %s164, [#allocation21], 48, 48, 3
    $region49: #{tpu_custom_call.1} parent=1 // pred_fallthru
      _
    // Predicated region
    $region50: #{tpu_custom_call.1} parent=1 // pred_check
      _
    $region51: #{tpu_custom_call.1} parent=1 // pred_check_branch
      %171 = sbr.rel (0) target = $region53
    $region52: #{tpu_custom_call.1} parent=1 // pred_region
      %s173 = ssub.s32 96, 96
      %174 = vsyncadd [#allocation21], %s173
      %s175 = sshll.u32 [#allocation22], 4
      %s176 = int_to_ptr.vmem [resolvable:$true] %s175
      %181 = dma.hbm_to_vmem [thread:$0]  %s12, 96, %s176, [#allocation21], 48, 48, 3
    $region53: #{tpu_custom_call.1} parent=1 // pred_fallthru
      _
    // Predicated region
    $region54: #{tpu_custom_call.1} parent=1 // pred_check
      _
    $region55: #{tpu_custom_call.1} parent=1 // pred_check_branch
      %183 = sbr.rel (0) target = $region57
    $region56: #{tpu_custom_call.1} parent=1 // pred_region
      %s185 = ssub.s32 96, 96
      %186 = vsyncadd [#allocation24], %s185
      %s187 = sshll.u32 [#allocation23], 4
      %s188 = int_to_ptr.vmem [resolvable:$true] %s187
      %193 = dma.hbm_to_vmem [thread:$0]  %s13, 96, %s188, [#allocation24], 48, 48, 3
    $region57: #{tpu_custom_call.1} parent=1 // pred_fallthru
      _
    // Predicated region
    $region58: #{tpu_custom_call.1} parent=1 // pred_check
      _
    $region59: #{tpu_custom_call.1} parent=1 // pred_check_branch
      %195 = sbr.rel (0) target = $region61
    $region60: #{tpu_custom_call.1} parent=1 // pred_region
      %196 = dma.done [#allocation3], 768
    $region61: #{tpu_custom_call.1} parent=1 // pred_fallthru
      _
    // Predicated region
    $region62: #{tpu_custom_call.1} parent=1 // pred_check
      _
    $region63: #{tpu_custom_call.1} parent=1 // pred_check_branch
      %198 = sbr.rel (0) target = $region65
    $region64: #{tpu_custom_call.1} parent=1 // pred_region
      %199 = dma.done [#allocation6], 16
    $region65: #{tpu_custom_call.1} parent=1 // pred_fallthru
      _
    // Predicated region
    $region66: #{tpu_custom_call.1} parent=1 // pred_check
      _
    $region67: #{tpu_custom_call.1} parent=1 // pred_check_branch
      %201 = sbr.rel (0) target = $region69
    $region68: #{tpu_custom_call.1} parent=1 // pred_region
      %202 = dma.done [#allocation6], 110592
    $region69: #{tpu_custom_call.1} parent=1 // pred_fallthru
      _
    // Predicated region
    $region70: #{tpu_custom_call.1} parent=1 // pred_check
      _
    $region71: #{tpu_custom_call.1} parent=1 // pred_check_branch
      %204 = sbr.rel (0) target = $region73
    $region72: #{tpu_custom_call.1} parent=1 // pred_region
      %205 = dma.done [#allocation9], 288
    $region73: #{tpu_custom_call.1} parent=1 // pred_fallthru
      _
    // Predicated region
    $region74: #{tpu_custom_call.1} parent=1 // pred_check
      _
    $region75: #{tpu_custom_call.1} parent=1 // pred_check_branch
      %207 = sbr.rel (0) target = $region77
    $region76: #{tpu_custom_call.1} parent=1 // pred_region
      %208 = dma.done [#allocation9], 36864
    $region77: #{tpu_custom_call.1} parent=1 // pred_fallthru
      _
    // Predicated region
    $region78: #{tpu_custom_call.1} parent=1 // pred_check
      _
    $region79: #{tpu_custom_call.1} parent=1 // pred_check_branch
      %210 = sbr.rel (0) target = $region81
    $region80: #{tpu_custom_call.1} parent=1 // pred_region
      %211 = dma.done [#allocation12], 96
    $region81: #{tpu_custom_call.1} parent=1 // pred_fallthru
      _
    // Predicated region
    $region82: #{tpu_custom_call.1} parent=1 // pred_check
      _
    $region83: #{tpu_custom_call.1} parent=1 // pred_check_branch
      %213 = sbr.rel (0) target = $region85
    $region84: #{tpu_custom_call.1} parent=1 // pred_region
      %214 = dma.done [#allocation12], 96
    $region85: #{tpu_custom_call.1} parent=1 // pred_fallthru
      _
    // Predicated region
    $region86: #{tpu_custom_call.1} parent=1 // pred_check
      _
    $region87: #{tpu_custom_call.1} parent=1 // pred_check_branch
      %216 = sbr.rel (0) target = $region89
    $region88: #{tpu_custom_call.1} parent=1 // pred_region
      %217 = dma.done [#allocation15], 96
    $region89: #{tpu_custom_call.1} parent=1 // pred_fallthru
      _
    // Predicated region
    $region90: #{tpu_custom_call.1} parent=1 // pred_check
      _
    $region91: #{tpu_custom_call.1} parent=1 // pred_check_branch
      %219 = sbr.rel (0) target = $region93
    $region92: #{tpu_custom_call.1} parent=1 // pred_region
      %220 = dma.done [#allocation15], 12288
    $region93: #{tpu_custom_call.1} parent=1 // pred_fallthru
      _
    // Predicated region
    $region94: #{tpu_custom_call.1} parent=1 // pred_check
      _
    $region95: #{tpu_custom_call.1} parent=1 // pred_check_branch
      %222 = sbr.rel (0) target = $region97
    $region96: #{tpu_custom_call.1} parent=1 // pred_region
      %223 = dma.done [#allocation18], 32
    $region97: #{tpu_custom_call.1} parent=1 // pred_fallthru
      _
    // Predicated region
    $region98: #{tpu_custom_call.1} parent=1 // pred_check
      _
    $region99: #{tpu_custom_call.1} parent=1 // pred_check_branch
      %225 = sbr.rel (0) target = $region101
    $region100: #{tpu_custom_call.1} parent=1 // pred_region
      %226 = dma.done [#allocation18], 12288
    $region101: #{tpu_custom_call.1} parent=1 // pred_fallthru
      _
    // Predicated region
    $region102: #{tpu_custom_call.1} parent=1 // pred_check
      _
    $region103: #{tpu_custom_call.1} parent=1 // pred_check_branch
      %228 = sbr.rel (0) target = $region105
    $region104: #{tpu_custom_call.1} parent=1 // pred_region
      %229 = dma.done [#allocation21], 96
    $region105: #{tpu_custom_call.1} parent=1 // pred_fallthru
      _
    // Predicated region
    $region106: #{tpu_custom_call.1} parent=1 // pred_check
      _
    $region107: #{tpu_custom_call.1} parent=1 // pred_check_branch
      %231 = sbr.rel (0) target = $region109
    $region108: #{tpu_custom_call.1} parent=1 // pred_region
      %232 = dma.done [#allocation21], 96
    $region109: #{tpu_custom_call.1} parent=1 // pred_fallthru
      _
    // Predicated region
    $region110: #{tpu_custom_call.1} parent=1 // pred_check
      _
    $region111: #{tpu_custom_call.1} parent=1 // pred_check_branch
      %234 = sbr.rel (0) target = $region113
    $region112: #{tpu_custom_call.1} parent=1 // pred_region
      %235 = dma.done [#allocation24], 96
    $region113: #{tpu_custom_call.1} parent=1 // pred_fallthru
      _
    %v236 = vlaneseq
    %v237 = vshrl.u32 %v236, 7
    %v238 = vlaneseq
    %v239 = vand.u32 %v238, 127
    %vm240 = vcmp.gt.s32.totalorder %v239, %v237
    %v241 = vsel %vm240, -1e+30, 0.0
    %v242 = vld [vmem:[#allocation2] sm:$0xff]
    %v243 = vld [vmem:[#allocation2 + $0x8] sm:$0xff]
    %v244 = vld [vmem:[#allocation2 + $0x10] sm:$0xff]
    %v245 = vld [vmem:[#allocation2 + $0x18] sm:$0xff]
    %v246 = vld [vmem:[#allocation2 + $0x20] sm:$0xff]
    %v247 = vld [vmem:[#allocation2 + $0x28] sm:$0xff]
    %v248 = vld [vmem:[#allocation7] sm:$0xff]
    %v249 = vld [vmem:[#allocation7 + $0x8] sm:$0xff]
    %v250 = vld [vmem:[#allocation7 + $0x10] sm:$0xff]
    %v251 = vld [vmem:[#allocation7 + $0x18] sm:$0xff]
    %v252 = vld [vmem:[#allocation7 + $0x20] sm:$0xff]
    %v253 = vld [vmem:[#allocation7 + $0x28] sm:$0xff]
    %v254 = vld [vmem:[#allocation7 + $0x30] sm:$0xff]
    %v255 = vld [vmem:[#allocation7 + $0x38] sm:$0xff]
    %v256 = vld [vmem:[#allocation7 + $0x40] sm:$0xff]
    %v257 = vld [vmem:[#allocation7 + $0x48] sm:$0xff]
    %v258 = vld [vmem:[#allocation7 + $0x50] sm:$0xff]
    %v259 = vld [vmem:[#allocation7 + $0x58] sm:$0xff]
    %v260 = vld [vmem:[#allocation7 + $0x60] sm:$0xff]
    %v261 = vld [vmem:[#allocation7 + $0x68] sm:$0xff]
    %v262 = vld [vmem:[#allocation7 + $0x70] sm:$0xff]
    %v263 = vld [vmem:[#allocation7 + $0x78] sm:$0xff]
    %v264 = vld [vmem:[#allocation7 + $0x80] sm:$0xff]
    %v265 = vld [vmem:[#allocation7 + $0x88] sm:$0xff]
    %v266 = vld [vmem:[#allocation7 + $0x90] sm:$0xff]
    %v267 = vld [vmem:[#allocation7 + $0x98] sm:$0xff]
    %v268 = vld [vmem:[#allocation7 + $0xa0] sm:$0xff]
    %v269 = vld [vmem:[#allocation7 + $0xa8] sm:$0xff]
    %v270 = vld [vmem:[#allocation7 + $0xb0] sm:$0xff]
    %v271 = vld [vmem:[#allocation7 + $0xb8] sm:$0xff]
    %v272 = vld [vmem:[#allocation7 + $0xc0] sm:$0xff]
    %v273 = vld [vmem:[#allocation7 + $0xc8] sm:$0xff]
    %v274 = vld [vmem:[#allocation7 + $0xd0] sm:$0xff]
    %v275 = vld [vmem:[#allocation7 + $0xd8] sm:$0xff]
    %v276 = vld [vmem:[#allocation7 + $0xe0] sm:$0xff]
    %v277 = vld [vmem:[#allocation7 + $0xe8] sm:$0xff]
    %v278 = vld [vmem:[#allocation7 + $0xf0] sm:$0xff]
    %v279 = vld [vmem:[#allocation7 + $0xf8] sm:$0xff]
    %v280 = vld [vmem:[#allocation7 + $0x100] sm:$0xff]
    %v281 = vld [vmem:[#allocation7 + $0x108] sm:$0xff]
    %v282 = vld [vmem:[#allocation7 + $0x110] sm:$0xff]
    %v283 = vld [vmem:[#allocation7 + $0x118] sm:$0xff]
    %v284 = vld [vmem:[#allocation7 + $0x120] sm:$0xff]
    %v285 = vld [vmem:[#allocation7 + $0x128] sm:$0xff]
    %v286 = vld [vmem:[#allocation7 + $0x130] sm:$0xff]
    %v287 = vld [vmem:[#allocation7 + $0x138] sm:$0xff]
    %v288 = vld [vmem:[#allocation7 + $0x140] sm:$0xff]
    %v289 = vld [vmem:[#allocation7 + $0x148] sm:$0xff]
    %v290 = vld [vmem:[#allocation7 + $0x150] sm:$0xff]
    %v291 = vld [vmem:[#allocation7 + $0x158] sm:$0xff]
    %v292 = vld [vmem:[#allocation7 + $0x160] sm:$0xff]
    %v293 = vld [vmem:[#allocation7 + $0x168] sm:$0xff]
    %v294 = vld [vmem:[#allocation7 + $0x170] sm:$0xff]
    %v295 = vld [vmem:[#allocation7 + $0x178] sm:$0xff]
    %v296 = vld [vmem:[#allocation7 + $0x180] sm:$0xff]
    %v297 = vld [vmem:[#allocation7 + $0x188] sm:$0xff]
    %v298 = vld [vmem:[#allocation7 + $0x190] sm:$0xff]
    %v299 = vld [vmem:[#allocation7 + $0x198] sm:$0xff]
    %v300 = vld [vmem:[#allocation7 + $0x1a0] sm:$0xff]
    %v301 = vld [vmem:[#allocation7 + $0x1a8] sm:$0xff]
    %v302 = vld [vmem:[#allocation7 + $0x1b0] sm:$0xff]
    %v303 = vld [vmem:[#allocation7 + $0x1b8] sm:$0xff]
    %v304 = vld [vmem:[#allocation7 + $0x1c0] sm:$0xff]
    %v305 = vld [vmem:[#allocation7 + $0x1c8] sm:$0xff]
    %v306 = vld [vmem:[#allocation7 + $0x1d0] sm:$0xff]
    %v307 = vld [vmem:[#allocation7 + $0x1d8] sm:$0xff]
    %v308 = vld [vmem:[#allocation7 + $0x1e0] sm:$0xff]
    %v309 = vld [vmem:[#allocation7 + $0x1e8] sm:$0xff]
    %v310 = vld [vmem:[#allocation7 + $0x1f0] sm:$0xff]
    %v311 = vld [vmem:[#allocation7 + $0x1f8] sm:$0xff]
    %v312 = vld [vmem:[#allocation7 + $0x200] sm:$0xff]
    %v313 = vld [vmem:[#allocation7 + $0x208] sm:$0xff]
    %v314 = vld [vmem:[#allocation7 + $0x210] sm:$0xff]
    %v315 = vld [vmem:[#allocation7 + $0x218] sm:$0xff]
    %v316 = vld [vmem:[#allocation7 + $0x220] sm:$0xff]
    %v317 = vld [vmem:[#allocation7 + $0x228] sm:$0xff]
    %v318 = vld [vmem:[#allocation7 + $0x230] sm:$0xff]
    %v319 = vld [vmem:[#allocation7 + $0x238] sm:$0xff]
    %v320 = vld [vmem:[#allocation7 + $0x240] sm:$0xff]
    %v321 = vld [vmem:[#allocation7 + $0x248] sm:$0xff]
    %v322 = vld [vmem:[#allocation7 + $0x250] sm:$0xff]
    %v323 = vld [vmem:[#allocation7 + $0x258] sm:$0xff]
    %v324 = vld [vmem:[#allocation7 + $0x260] sm:$0xff]
    %v325 = vld [vmem:[#allocation7 + $0x268] sm:$0xff]
    %v326 = vld [vmem:[#allocation7 + $0x270] sm:$0xff]
    %v327 = vld [vmem:[#allocation7 + $0x278] sm:$0xff]
    %v328 = vld [vmem:[#allocation7 + $0x280] sm:$0xff]
    %v329 = vld [vmem:[#allocation7 + $0x288] sm:$0xff]
    %v330 = vld [vmem:[#allocation7 + $0x290] sm:$0xff]
    %v331 = vld [vmem:[#allocation7 + $0x298] sm:$0xff]
    %v332 = vld [vmem:[#allocation7 + $0x2a0] sm:$0xff]
    %v333 = vld [vmem:[#allocation7 + $0x2a8] sm:$0xff]
    %v334 = vld [vmem:[#allocation7 + $0x2b0] sm:$0xff]
    %v335 = vld [vmem:[#allocation7 + $0x2b8] sm:$0xff]
    %v336 = vld [vmem:[#allocation7 + $0x2c0] sm:$0xff]
    %v337 = vld [vmem:[#allocation7 + $0x2c8] sm:$0xff]
    %v338 = vld [vmem:[#allocation7 + $0x2d0] sm:$0xff]
    %v339 = vld [vmem:[#allocation7 + $0x2d8] sm:$0xff]
    %v340 = vld [vmem:[#allocation7 + $0x2e0] sm:$0xff]
    %v341 = vld [vmem:[#allocation7 + $0x2e8] sm:$0xff]
    %v342 = vld [vmem:[#allocation7 + $0x2f0] sm:$0xff]
    %v343 = vld [vmem:[#allocation7 + $0x2f8] sm:$0xff]
    %v344 = vld [vmem:[#allocation7 + $0x300] sm:$0xff]
    %v345 = vld [vmem:[#allocation7 + $0x308] sm:$0xff]
    %v346 = vld [vmem:[#allocation7 + $0x310] sm:$0xff]
    %v347 = vld [vmem:[#allocation7 + $0x318] sm:$0xff]
    %v348 = vld [vmem:[#allocation7 + $0x320] sm:$0xff]
    %v349 = vld [vmem:[#allocation7 + $0x328] sm:$0xff]
    %v350 = vld [vmem:[#allocation7 + $0x330] sm:$0xff]
    %v351 = vld [vmem:[#allocation7 + $0x338] sm:$0xff]
    %v352 = vld [vmem:[#allocation7 + $0x340] sm:$0xff]
    %v353 = vld [vmem:[#allocation7 + $0x348] sm:$0xff]
    %v354 = vld [vmem:[#allocation7 + $0x350] sm:$0xff]
    %v355 = vld [vmem:[#allocation7 + $0x358] sm:$0xff]
    %v356 = vld [vmem:[#allocation7 + $0x360] sm:$0xff]
    %v357 = vld [vmem:[#allocation7 + $0x368] sm:$0xff]
    %v358 = vld [vmem:[#allocation7 + $0x370] sm:$0xff]
    %v359 = vld [vmem:[#allocation7 + $0x378] sm:$0xff]
    %v360 = vld [vmem:[#allocation7 + $0x380] sm:$0xff]
    %v361 = vld [vmem:[#allocation7 + $0x388] sm:$0xff]
    %v362 = vld [vmem:[#allocation7 + $0x390] sm:$0xff]
    %v363 = vld [vmem:[#allocation7 + $0x398] sm:$0xff]
    %v364 = vld [vmem:[#allocation7 + $0x3a0] sm:$0xff]
    %v365 = vld [vmem:[#allocation7 + $0x3a8] sm:$0xff]
    %v366 = vld [vmem:[#allocation7 + $0x3b0] sm:$0xff]
    %v367 = vld [vmem:[#allocation7 + $0x3b8] sm:$0xff]
    %v368 = vld [vmem:[#allocation7 + $0x3c0] sm:$0xff]
    %v369 = vld [vmem:[#allocation7 + $0x3c8] sm:$0xff]
    %v370 = vld [vmem:[#allocation7 + $0x3d0] sm:$0xff]
    %v371 = vld [vmem:[#allocation7 + $0x3d8] sm:$0xff]
    %v372 = vld [vmem:[#allocation7 + $0x3e0] sm:$0xff]
    %v373 = vld [vmem:[#allocation7 + $0x3e8] sm:$0xff]
    %v374 = vld [vmem:[#allocation7 + $0x3f0] sm:$0xff]
    %v375 = vld [vmem:[#allocation7 + $0x3f8] sm:$0xff]
    %v376 = vld [vmem:[#allocation7 + $0x400] sm:$0xff]
    %v377 = vld [vmem:[#allocation7 + $0x408] sm:$0xff]
    %v378 = vld [vmem:[#allocation7 + $0x410] sm:$0xff]
    %v379 = vld [vmem:[#allocation7 + $0x418] sm:$0xff]
    %v380 = vld [vmem:[#allocation7 + $0x420] sm:$0xff]
    %v381 = vld [vmem:[#allocation7 + $0x428] sm:$0xff]
    %v382 = vld [vmem:[#allocation7 + $0x430] sm:$0xff]
    %v383 = vld [vmem:[#allocation7 + $0x438] sm:$0xff]
    %v384 = vld [vmem:[#allocation7 + $0x440] sm:$0xff]
    %v385 = vld [vmem:[#allocation7 + $0x448] sm:$0xff]
    %v386 = vld [vmem:[#allocation7 + $0x450] sm:$0xff]
    %v387 = vld [vmem:[#allocation7 + $0x458] sm:$0xff]
    %v388 = vld [vmem:[#allocation7 + $0x460] sm:$0xff]
    %v389 = vld [vmem:[#allocation7 + $0x468] sm:$0xff]
    %v390 = vld [vmem:[#allocation7 + $0x470] sm:$0xff]
    %v391 = vld [vmem:[#allocation7 + $0x478] sm:$0xff]
    %v392 = vld [vmem:[#allocation7 + $0x480] sm:$0xff]
    %v393 = vld [vmem:[#allocation7 + $0x488] sm:$0xff]
    %v394 = vld [vmem:[#allocation7 + $0x490] sm:$0xff]
    %v395 = vld [vmem:[#allocation7 + $0x498] sm:$0xff]
    %v396 = vld [vmem:[#allocation7 + $0x4a0] sm:$0xff]
    %v397 = vld [vmem:[#allocation7 + $0x4a8] sm:$0xff]
    %v398 = vld [vmem:[#allocation7 + $0x4b0] sm:$0xff]
    %v399 = vld [vmem:[#allocation7 + $0x4b8] sm:$0xff]
    %v400 = vld [vmem:[#allocation7 + $0x4c0] sm:$0xff]
    %v401 = vld [vmem:[#allocation7 + $0x4c8] sm:$0xff]
    %v402 = vld [vmem:[#allocation7 + $0x4d0] sm:$0xff]
    %v403 = vld [vmem:[#allocation7 + $0x4d8] sm:$0xff]
    %v404 = vld [vmem:[#allocation7 + $0x4e0] sm:$0xff]
    %v405 = vld [vmem:[#allocation7 + $0x4e8] sm:$0xff]
    %v406 = vld [vmem:[#allocation7 + $0x4f0] sm:$0xff]
    %v407 = vld [vmem:[#allocation7 + $0x4f8] sm:$0xff]
    %v408 = vld [vmem:[#allocation7 + $0x500] sm:$0xff]
    %v409 = vld [vmem:[#allocation7 + $0x508] sm:$0xff]
    %v410 = vld [vmem:[#allocation7 + $0x510] sm:$0xff]
    %v411 = vld [vmem:[#allocation7 + $0x518] sm:$0xff]
    %v412 = vld [vmem:[#allocation7 + $0x520] sm:$0xff]
    %v413 = vld [vmem:[#allocation7 + $0x528] sm:$0xff]
    %v414 = vld [vmem:[#allocation7 + $0x530] sm:$0xff]
    %v415 = vld [vmem:[#allocation7 + $0x538] sm:$0xff]
    %v416 = vld [vmem:[#allocation7 + $0x540] sm:$0xff]
    %v417 = vld [vmem:[#allocation7 + $0x548] sm:$0xff]
    %v418 = vld [vmem:[#allocation7 + $0x550] sm:$0xff]
    %v419 = vld [vmem:[#allocation7 + $0x558] sm:$0xff]
    %v420 = vld [vmem:[#allocation7 + $0x560] sm:$0xff]
    %v421 = vld [vmem:[#allocation7 + $0x568] sm:$0xff]
    %v422 = vld [vmem:[#allocation7 + $0x570] sm:$0xff]
    %v423 = vld [vmem:[#allocation7 + $0x578] sm:$0xff]
    %v424 = vld [vmem:[#allocation7 + $0x580] sm:$0xff]
    %v425 = vld [vmem:[#allocation7 + $0x588] sm:$0xff]
    %v426 = vld [vmem:[#allocation7 + $0x590] sm:$0xff]
    %v427 = vld [vmem:[#allocation7 + $0x598] sm:$0xff]
    %v428 = vld [vmem:[#allocation7 + $0x5a0] sm:$0xff]
    %v429 = vld [vmem:[#allocation7 + $0x5a8] sm:$0xff]
    %v430 = vld [vmem:[#allocation7 + $0x5b0] sm:$0xff]
    %v431 = vld [vmem:[#allocation7 + $0x5b8] sm:$0xff]
    %v432 = vld [vmem:[#allocation7 + $0x5c0] sm:$0xff]
    %v433 = vld [vmem:[#allocation7 + $0x5c8] sm:$0xff]
    %v434 = vld [vmem:[#allocation7 + $0x5d0] sm:$0xff]
    %v435 = vld [vmem:[#allocation7 + $0x5d8] sm:$0xff]
    %v436 = vld [vmem:[#allocation7 + $0x5e0] sm:$0xff]
    %v437 = vld [vmem:[#allocation7 + $0x5e8] sm:$0xff]
    %v438 = vld [vmem:[#allocation7 + $0x5f0] sm:$0xff]
    %v439 = vld [vmem:[#allocation7 + $0x5f8] sm:$0xff]
    %v440 = vld [vmem:[#allocation7 + $0x600] sm:$0xff]
    %v441 = vld [vmem:[#allocation7 + $0x608] sm:$0xff]
    %v442 = vld [vmem:[#allocation7 + $0x610] sm:$0xff]
    %v443 = vld [vmem:[#allocation7 + $0x618] sm:$0xff]
    %v444 = vld [vmem:[#allocation7 + $0x620] sm:$0xff]
    %v445 = vld [vmem:[#allocation7 + $0x628] sm:$0xff]
    %v446 = vld [vmem:[#allocation7 + $0x630] sm:$0xff]
    %v447 = vld [vmem:[#allocation7 + $0x638] sm:$0xff]
    %v448 = vld [vmem:[#allocation7 + $0x640] sm:$0xff]
    %v449 = vld [vmem:[#allocation7 + $0x648] sm:$0xff]
    %v450 = vld [vmem:[#allocation7 + $0x650] sm:$0xff]
    %v451 = vld [vmem:[#allocation7 + $0x658] sm:$0xff]
    %v452 = vld [vmem:[#allocation7 + $0x660] sm:$0xff]
    %v453 = vld [vmem:[#allocation7 + $0x668] sm:$0xff]
    %v454 = vld [vmem:[#allocation7 + $0x670] sm:$0xff]
    %v455 = vld [vmem:[#allocation7 + $0x678] sm:$0xff]
    %v456 = vld [vmem:[#allocation7 + $0x680] sm:$0xff]
    %v457 = vld [vmem:[#allocation7 + $0x688] sm:$0xff]
    %v458 = vld [vmem:[#allocation7 + $0x690] sm:$0xff]
    %v459 = vld [vmem:[#allocation7 + $0x698] sm:$0xff]
    %v460 = vld [vmem:[#allocation7 + $0x6a0] sm:$0xff]
    %v461 = vld [vmem:[#allocation7 + $0x6a8] sm:$0xff]
    %v462 = vld [vmem:[#allocation7 + $0x6b0] sm:$0xff]
    %v463 = vld [vmem:[#allocation7 + $0x6b8] sm:$0xff]
    %v464 = vld [vmem:[#allocation7 + $0x6c0] sm:$0xff]
    %v465 = vld [vmem:[#allocation7 + $0x6c8] sm:$0xff]
    %v466 = vld [vmem:[#allocation7 + $0x6d0] sm:$0xff]
    %v467 = vld [vmem:[#allocation7 + $0x6d8] sm:$0xff]
    %v468 = vld [vmem:[#allocation7 + $0x6e0] sm:$0xff]
    %v469 = vld [vmem:[#allocation7 + $0x6e8] sm:$0xff]
    %v470 = vld [vmem:[#allocation7 + $0x6f0] sm:$0xff]
    %v471 = vld [vmem:[#allocation7 + $0x6f8] sm:$0xff]
    %v472 = vld [vmem:[#allocation7 + $0x700] sm:$0xff]
    %v473 = vld [vmem:[#allocation7 + $0x708] sm:$0xff]
    %v474 = vld [vmem:[#allocation7 + $0x710] sm:$0xff]
    %v475 = vld [vmem:[#allocation7 + $0x718] sm:$0xff]
    %v476 = vld [vmem:[#allocation7 + $0x720] sm:$0xff]
    %v477 = vld [vmem:[#allocation7 + $0x728] sm:$0xff]
    %v478 = vld [vmem:[#allocation7 + $0x730] sm:$0xff]
    %v479 = vld [vmem:[#allocation7 + $0x738] sm:$0xff]
    %v480 = vld [vmem:[#allocation7 + $0x740] sm:$0xff]
    %v481 = vld [vmem:[#allocation7 + $0x748] sm:$0xff]
    %v482 = vld [vmem:[#allocation7 + $0x750] sm:$0xff]
    %v483 = vld [vmem:[#allocation7 + $0x758] sm:$0xff]
    %v484 = vld [vmem:[#allocation7 + $0x760] sm:$0xff]
    %v485 = vld [vmem:[#allocation7 + $0x768] sm:$0xff]
    %v486 = vld [vmem:[#allocation7 + $0x770] sm:$0xff]
    %v487 = vld [vmem:[#allocation7 + $0x778] sm:$0xff]
    %v488 = vld [vmem:[#allocation7 + $0x780] sm:$0xff]
    %v489 = vld [vmem:[#allocation7 + $0x788] sm:$0xff]
    %v490 = vld [vmem:[#allocation7 + $0x790] sm:$0xff]
    %v491 = vld [vmem:[#allocation7 + $0x798] sm:$0xff]
    %v492 = vld [vmem:[#allocation7 + $0x7a0] sm:$0xff]
    %v493 = vld [vmem:[#allocation7 + $0x7a8] sm:$0xff]
    %v494 = vld [vmem:[#allocation7 + $0x7b0] sm:$0xff]
    %v495 = vld [vmem:[#allocation7 + $0x7b8] sm:$0xff]
    %v496 = vld [vmem:[#allocation7 + $0x7c0] sm:$0xff]
    %v497 = vld [vmem:[#allocation7 + $0x7c8] sm:$0xff]
    %v498 = vld [vmem:[#allocation7 + $0x7d0] sm:$0xff]
    %v499 = vld [vmem:[#allocation7 + $0x7d8] sm:$0xff]
    %v500 = vld [vmem:[#allocation7 + $0x7e0] sm:$0xff]
    %v501 = vld [vmem:[#allocation7 + $0x7e8] sm:$0xff]
    %v502 = vld [vmem:[#allocation7 + $0x7f0] sm:$0xff]
    %v503 = vld [vmem:[#allocation7 + $0x7f8] sm:$0xff]
    %v504 = vld [vmem:[#allocation7 + $0x800] sm:$0xff]
    %v505 = vld [vmem:[#allocation7 + $0x808] sm:$0xff]
    %v506 = vld [vmem:[#allocation7 + $0x810] sm:$0xff]
    %v507 = vld [vmem:[#allocation7 + $0x818] sm:$0xff]
    %v508 = vld [vmem:[#allocation7 + $0x820] sm:$0xff]
    %v509 = vld [vmem:[#allocation7 + $0x828] sm:$0xff]
    %v510 = vld [vmem:[#allocation7 + $0x830] sm:$0xff]
    %v511 = vld [vmem:[#allocation7 + $0x838] sm:$0xff]
    %v512 = vld [vmem:[#allocation7 + $0x840] sm:$0xff]
    %v513 = vld [vmem:[#allocation7 + $0x848] sm:$0xff]
    %v514 = vld [vmem:[#allocation7 + $0x850] sm:$0xff]
    %v515 = vld [vmem:[#allocation7 + $0x858] sm:$0xff]
    %v516 = vld [vmem:[#allocation7 + $0x860] sm:$0xff]
    %v517 = vld [vmem:[#allocation7 + $0x868] sm:$0xff]
    %v518 = vld [vmem:[#allocation7 + $0x870] sm:$0xff]
    %v519 = vld [vmem:[#allocation7 + $0x878] sm:$0xff]
    %v520 = vld [vmem:[#allocation7 + $0x880] sm:$0xff]
    %v521 = vld [vmem:[#allocation7 + $0x888] sm:$0xff]
    %v522 = vld [vmem:[#allocation7 + $0x890] sm:$0xff]
    %v523 = vld [vmem:[#allocation7 + $0x898] sm:$0xff]
    %v524 = vld [vmem:[#allocation7 + $0x8a0] sm:$0xff]
    %v525 = vld [vmem:[#allocation7 + $0x8a8] sm:$0xff]
    %v526 = vld [vmem:[#allocation7 + $0x8b0] sm:$0xff]
    %v527 = vld [vmem:[#allocation7 + $0x8b8] sm:$0xff]
    %v528 = vld [vmem:[#allocation7 + $0x8c0] sm:$0xff]
    %v529 = vld [vmem:[#allocation7 + $0x8c8] sm:$0xff]
    %v530 = vld [vmem:[#allocation7 + $0x8d0] sm:$0xff]
    %v531 = vld [vmem:[#allocation7 + $0x8d8] sm:$0xff]
    %v532 = vld [vmem:[#allocation7 + $0x8e0] sm:$0xff]
    %v533 = vld [vmem:[#allocation7 + $0x8e8] sm:$0xff]
    %v534 = vld [vmem:[#allocation7 + $0x8f0] sm:$0xff]
    %v535 = vld [vmem:[#allocation7 + $0x8f8] sm:$0xff]
    %v536 = vld [vmem:[#allocation7 + $0x900] sm:$0xff]
    %v537 = vld [vmem:[#allocation7 + $0x908] sm:$0xff]
    %v538 = vld [vmem:[#allocation7 + $0x910] sm:$0xff]
    %v539 = vld [vmem:[#allocation7 + $0x918] sm:$0xff]
    %v540 = vld [vmem:[#allocation7 + $0x920] sm:$0xff]
    %v541 = vld [vmem:[#allocation7 + $0x928] sm:$0xff]
    %v542 = vld [vmem:[#allocation7 + $0x930] sm:$0xff]
    %v543 = vld [vmem:[#allocation7 + $0x938] sm:$0xff]
    %v544 = vld [vmem:[#allocation7 + $0x940] sm:$0xff]
    %v545 = vld [vmem:[#allocation7 + $0x948] sm:$0xff]
    %v546 = vld [vmem:[#allocation7 + $0x950] sm:$0xff]
    %v547 = vld [vmem:[#allocation7 + $0x958] sm:$0xff]
    %v548 = vld [vmem:[#allocation7 + $0x960] sm:$0xff]
    %v549 = vld [vmem:[#allocation7 + $0x968] sm:$0xff]
    %v550 = vld [vmem:[#allocation7 + $0x970] sm:$0xff]
    %v551 = vld [vmem:[#allocation7 + $0x978] sm:$0xff]
    %v552 = vld [vmem:[#allocation7 + $0x980] sm:$0xff]
    %v553 = vld [vmem:[#allocation7 + $0x988] sm:$0xff]
    %v554 = vld [vmem:[#allocation7 + $0x990] sm:$0xff]
    %v555 = vld [vmem:[#allocation7 + $0x998] sm:$0xff]
    %v556 = vld [vmem:[#allocation7 + $0x9a0] sm:$0xff]
    %v557 = vld [vmem:[#allocation7 + $0x9a8] sm:$0xff]
    %v558 = vld [vmem:[#allocation7 + $0x9b0] sm:$0xff]
    %v559 = vld [vmem:[#allocation7 + $0x9b8] sm:$0xff]
    %v560 = vld [vmem:[#allocation7 + $0x9c0] sm:$0xff]
    %v561 = vld [vmem:[#allocation7 + $0x9c8] sm:$0xff]
    %v562 = vld [vmem:[#allocation7 + $0x9d0] sm:$0xff]
    %v563 = vld [vmem:[#allocation7 + $0x9d8] sm:$0xff]
    %v564 = vld [vmem:[#allocation7 + $0x9e0] sm:$0xff]
    %v565 = vld [vmem:[#allocation7 + $0x9e8] sm:$0xff]
    %v566 = vld [vmem:[#allocation7 + $0x9f0] sm:$0xff]
    %v567 = vld [vmem:[#allocation7 + $0x9f8] sm:$0xff]
    %v568 = vld [vmem:[#allocation7 + $0xa00] sm:$0xff]
    %v569 = vld [vmem:[#allocation7 + $0xa08] sm:$0xff]
    %v570 = vld [vmem:[#allocation7 + $0xa10] sm:$0xff]
    %v571 = vld [vmem:[#allocation7 + $0xa18] sm:$0xff]
    %v572 = vld [vmem:[#allocation7 + $0xa20] sm:$0xff]
    %v573 = vld [vmem:[#allocation7 + $0xa28] sm:$0xff]
    %v574 = vld [vmem:[#allocation7 + $0xa30] sm:$0xff]
    %v575 = vld [vmem:[#allocation7 + $0xa38] sm:$0xff]
    %v576 = vld [vmem:[#allocation7 + $0xa40] sm:$0xff]
    %v577 = vld [vmem:[#allocation7 + $0xa48] sm:$0xff]
    %v578 = vld [vmem:[#allocation7 + $0xa50] sm:$0xff]
    %v579 = vld [vmem:[#allocation7 + $0xa58] sm:$0xff]
    %v580 = vld [vmem:[#allocation7 + $0xa60] sm:$0xff]
    %v581 = vld [vmem:[#allocation7 + $0xa68] sm:$0xff]
    %v582 = vld [vmem:[#allocation7 + $0xa70] sm:$0xff]
    %v583 = vld [vmem:[#allocation7 + $0xa78] sm:$0xff]
    %v584 = vld [vmem:[#allocation7 + $0xa80] sm:$0xff]
    %v585 = vld [vmem:[#allocation7 + $0xa88] sm:$0xff]
    %v586 = vld [vmem:[#allocation7 + $0xa90] sm:$0xff]
    %v587 = vld [vmem:[#allocation7 + $0xa98] sm:$0xff]
    %v588 = vld [vmem:[#allocation7 + $0xaa0] sm:$0xff]
    %v589 = vld [vmem:[#allocation7 + $0xaa8] sm:$0xff]
    %v590 = vld [vmem:[#allocation7 + $0xab0] sm:$0xff]
    %v591 = vld [vmem:[#allocation7 + $0xab8] sm:$0xff]
    %v592 = vld [vmem:[#allocation7 + $0xac0] sm:$0xff]
    %v593 = vld [vmem:[#allocation7 + $0xac8] sm:$0xff]
    %v594 = vld [vmem:[#allocation7 + $0xad0] sm:$0xff]
    %v595 = vld [vmem:[#allocation7 + $0xad8] sm:$0xff]
    %v596 = vld [vmem:[#allocation7 + $0xae0] sm:$0xff]
    %v597 = vld [vmem:[#allocation7 + $0xae8] sm:$0xff]
    %v598 = vld [vmem:[#allocation7 + $0xaf0] sm:$0xff]
    %v599 = vld [vmem:[#allocation7 + $0xaf8] sm:$0xff]
    %v600 = vld [vmem:[#allocation7 + $0xb00] sm:$0xff]
    %v601 = vld [vmem:[#allocation7 + $0xb08] sm:$0xff]
    %v602 = vld [vmem:[#allocation7 + $0xb10] sm:$0xff]
    %v603 = vld [vmem:[#allocation7 + $0xb18] sm:$0xff]
    %v604 = vld [vmem:[#allocation7 + $0xb20] sm:$0xff]
    %v605 = vld [vmem:[#allocation7 + $0xb28] sm:$0xff]
    %v606 = vld [vmem:[#allocation7 + $0xb30] sm:$0xff]
    %v607 = vld [vmem:[#allocation7 + $0xb38] sm:$0xff]
    %v608 = vld [vmem:[#allocation7 + $0xb40] sm:$0xff]
    %v609 = vld [vmem:[#allocation7 + $0xb48] sm:$0xff]
    %v610 = vld [vmem:[#allocation7 + $0xb50] sm:$0xff]
    %v611 = vld [vmem:[#allocation7 + $0xb58] sm:$0xff]
    %v612 = vld [vmem:[#allocation7 + $0xb60] sm:$0xff]
    %v613 = vld [vmem:[#allocation7 + $0xb68] sm:$0xff]
    %v614 = vld [vmem:[#allocation7 + $0xb70] sm:$0xff]
    %v615 = vld [vmem:[#allocation7 + $0xb78] sm:$0xff]
    %v616 = vld [vmem:[#allocation7 + $0xb80] sm:$0xff]
    %v617 = vld [vmem:[#allocation7 + $0xb88] sm:$0xff]
    %v618 = vld [vmem:[#allocation7 + $0xb90] sm:$0xff]
    %v619 = vld [vmem:[#allocation7 + $0xb98] sm:$0xff]
    %v620 = vld [vmem:[#allocation7 + $0xba0] sm:$0xff]
    %v621 = vld [vmem:[#allocation7 + $0xba8] sm:$0xff]
    %v622 = vld [vmem:[#allocation7 + $0xbb0] sm:$0xff]
    %v623 = vld [vmem:[#allocation7 + $0xbb8] sm:$0xff]
    %v624 = vld [vmem:[#allocation7 + $0xbc0] sm:$0xff]
    %v625 = vld [vmem:[#allocation7 + $0xbc8] sm:$0xff]
    %v626 = vld [vmem:[#allocation7 + $0xbd0] sm:$0xff]
    %v627 = vld [vmem:[#allocation7 + $0xbd8] sm:$0xff]
    %v628 = vld [vmem:[#allocation7 + $0xbe0] sm:$0xff]
    %v629 = vld [vmem:[#allocation7 + $0xbe8] sm:$0xff]
    %v630 = vld [vmem:[#allocation7 + $0xbf0] sm:$0xff]
    %v631 = vld [vmem:[#allocation7 + $0xbf8] sm:$0xff]
    %v632 = vld [vmem:[#allocation7 + $0xc00] sm:$0xff]
    %v633 = vld [vmem:[#allocation7 + $0xc08] sm:$0xff]
    %v634 = vld [vmem:[#allocation7 + $0xc10] sm:$0xff]
    %v635 = vld [vmem:[#allocation7 + $0xc18] sm:$0xff]
    %v636 = vld [vmem:[#allocation7 + $0xc20] sm:$0xff]
    %v637 = vld [vmem:[#allocation7 + $0xc28] sm:$0xff]
    %v638 = vld [vmem:[#allocation7 + $0xc30] sm:$0xff]
    %v639 = vld [vmem:[#allocation7 + $0xc38] sm:$0xff]
    %v640 = vld [vmem:[#allocation7 + $0xc40] sm:$0xff]
    %v641 = vld [vmem:[#allocation7 + $0xc48] sm:$0xff]
    %v642 = vld [vmem:[#allocation7 + $0xc50] sm:$0xff]
    %v643 = vld [vmem:[#allocation7 + $0xc58] sm:$0xff]
    %v644 = vld [vmem:[#allocation7 + $0xc60] sm:$0xff]
    %v645 = vld [vmem:[#allocation7 + $0xc68] sm:$0xff]
    %v646 = vld [vmem:[#allocation7 + $0xc70] sm:$0xff]
    %v647 = vld [vmem:[#allocation7 + $0xc78] sm:$0xff]
    %v648 = vld [vmem:[#allocation7 + $0xc80] sm:$0xff]
    %v649 = vld [vmem:[#allocation7 + $0xc88] sm:$0xff]
    %v650 = vld [vmem:[#allocation7 + $0xc90] sm:$0xff]
    %v651 = vld [vmem:[#allocation7 + $0xc98] sm:$0xff]
    %v652 = vld [vmem:[#allocation7 + $0xca0] sm:$0xff]
    %v653 = vld [vmem:[#allocation7 + $0xca8] sm:$0xff]
    %v654 = vld [vmem:[#allocation7 + $0xcb0] sm:$0xff]
    %v655 = vld [vmem:[#allocation7 + $0xcb8] sm:$0xff]
    %v656 = vld [vmem:[#allocation7 + $0xcc0] sm:$0xff]
    %v657 = vld [vmem:[#allocation7 + $0xcc8] sm:$0xff]
    %v658 = vld [vmem:[#allocation7 + $0xcd0] sm:$0xff]
    %v659 = vld [vmem:[#allocation7 + $0xcd8] sm:$0xff]
    %v660 = vld [vmem:[#allocation7 + $0xce0] sm:$0xff]
    %v661 = vld [vmem:[#allocation7 + $0xce8] sm:$0xff]
    %v662 = vld [vmem:[#allocation7 + $0xcf0] sm:$0xff]
    %v663 = vld [vmem:[#allocation7 + $0xcf8] sm:$0xff]
    %v664 = vld [vmem:[#allocation7 + $0xd00] sm:$0xff]
    %v665 = vld [vmem:[#allocation7 + $0xd08] sm:$0xff]
    %v666 = vld [vmem:[#allocation7 + $0xd10] sm:$0xff]
    %v667 = vld [vmem:[#allocation7 + $0xd18] sm:$0xff]
    %v668 = vld [vmem:[#allocation7 + $0xd20] sm:$0xff]
    %v669 = vld [vmem:[#allocation7 + $0xd28] sm:$0xff]
    %v670 = vld [vmem:[#allocation7 + $0xd30] sm:$0xff]
    %v671 = vld [vmem:[#allocation7 + $0xd38] sm:$0xff]
    %v672 = vld [vmem:[#allocation7 + $0xd40] sm:$0xff]
    %v673 = vld [vmem:[#allocation7 + $0xd48] sm:$0xff]
    %v674 = vld [vmem:[#allocation7 + $0xd50] sm:$0xff]
    %v675 = vld [vmem:[#allocation7 + $0xd58] sm:$0xff]
    %v676 = vld [vmem:[#allocation7 + $0xd60] sm:$0xff]
    %v677 = vld [vmem:[#allocation7 + $0xd68] sm:$0xff]
    %v678 = vld [vmem:[#allocation7 + $0xd70] sm:$0xff]
    %v679 = vld [vmem:[#allocation7 + $0xd78] sm:$0xff]
    %v680 = vld [vmem:[#allocation8] sm:$0xff]
    %v681 = vld [vmem:[#allocation8 + $0x8] sm:$0x1]
    %v682 = vld [vmem:[#allocation10] sm:$0xff]
    %v683 = vld [vmem:[#allocation10 + $0x8] sm:$0xff]
    %v684 = vld [vmem:[#allocation10 + $0x10] sm:$0xff]
    %v685 = vld [vmem:[#allocation10 + $0x18] sm:$0xff]
    %v686 = vld [vmem:[#allocation10 + $0x20] sm:$0xff]
    %v687 = vld [vmem:[#allocation10 + $0x28] sm:$0xff]
    %v688 = vld [vmem:[#allocation10 + $0x30] sm:$0xff]
    %v689 = vld [vmem:[#allocation10 + $0x38] sm:$0xff]
    %v690 = vld [vmem:[#allocation10 + $0x40] sm:$0xff]
    %v691 = vld [vmem:[#allocation10 + $0x48] sm:$0xff]
    %v692 = vld [vmem:[#allocation10 + $0x50] sm:$0xff]
    %v693 = vld [vmem:[#allocation10 + $0x58] sm:$0xff]
    %v694 = vld [vmem:[#allocation10 + $0x60] sm:$0xff]
    %v695 = vld [vmem:[#allocation10 + $0x68] sm:$0xff]
    %v696 = vld [vmem:[#allocation10 + $0x70] sm:$0xff]
    %v697 = vld [vmem:[#allocation10 + $0x78] sm:$0xff]
    %v698 = vld [vmem:[#allocation10 + $0x80] sm:$0xff]
    %v699 = vld [vmem:[#allocation10 + $0x88] sm:$0xff]
    %v700 = vld [vmem:[#allocation10 + $0x90] sm:$0xff]
    %v701 = vld [vmem:[#allocation10 + $0x98] sm:$0xff]
    %v702 = vld [vmem:[#allocation10 + $0xa0] sm:$0xff]
    %v703 = vld [vmem:[#allocation10 + $0xa8] sm:$0xff]
    %v704 = vld [vmem:[#allocation10 + $0xb0] sm:$0xff]
    %v705 = vld [vmem:[#allocation10 + $0xb8] sm:$0xff]
    %v706 = vld [vmem:[#allocation10 + $0xc0] sm:$0xff]
    %v707 = vld [vmem:[#allocation10 + $0xc8] sm:$0xff]
    %v708 = vld [vmem:[#allocation10 + $0xd0] sm:$0xff]
    %v709 = vld [vmem:[#allocation10 + $0xd8] sm:$0xff]
    %v710 = vld [vmem:[#allocation10 + $0xe0] sm:$0xff]
    %v711 = vld [vmem:[#allocation10 + $0xe8] sm:$0xff]
    %v712 = vld [vmem:[#allocation10 + $0xf0] sm:$0xff]
    %v713 = vld [vmem:[#allocation10 + $0xf8] sm:$0xff]
    %v714 = vld [vmem:[#allocation10 + $0x100] sm:$0xff]
    %v715 = vld [vmem:[#allocation10 + $0x108] sm:$0xff]
    %v716 = vld [vmem:[#allocation10 + $0x110] sm:$0xff]
    %v717 = vld [vmem:[#allocation10 + $0x118] sm:$0xff]
    %v718 = vld [vmem:[#allocation10 + $0x120] sm:$0xff]
    %v719 = vld [vmem:[#allocation10 + $0x128] sm:$0xff]
    %v720 = vld [vmem:[#allocation10 + $0x130] sm:$0xff]
    %v721 = vld [vmem:[#allocation10 + $0x138] sm:$0xff]
    %v722 = vld [vmem:[#allocation10 + $0x140] sm:$0xff]
    %v723 = vld [vmem:[#allocation10 + $0x148] sm:$0xff]
    %v724 = vld [vmem:[#allocation10 + $0x150] sm:$0xff]
    %v725 = vld [vmem:[#allocation10 + $0x158] sm:$0xff]
    %v726 = vld [vmem:[#allocation10 + $0x160] sm:$0xff]
    %v727 = vld [vmem:[#allocation10 + $0x168] sm:$0xff]
    %v728 = vld [vmem:[#allocation10 + $0x170] sm:$0xff]
    %v729 = vld [vmem:[#allocation10 + $0x178] sm:$0xff]
    %v730 = vld [vmem:[#allocation10 + $0x180] sm:$0xff]
    %v731 = vld [vmem:[#allocation10 + $0x188] sm:$0xff]
    %v732 = vld [vmem:[#allocation10 + $0x190] sm:$0xff]
    %v733 = vld [vmem:[#allocation10 + $0x198] sm:$0xff]
    %v734 = vld [vmem:[#allocation10 + $0x1a0] sm:$0xff]
    %v735 = vld [vmem:[#allocation10 + $0x1a8] sm:$0xff]
    %v736 = vld [vmem:[#allocation10 + $0x1b0] sm:$0xff]
    %v737 = vld [vmem:[#allocation10 + $0x1b8] sm:$0xff]
    %v738 = vld [vmem:[#allocation10 + $0x1c0] sm:$0xff]
    %v739 = vld [vmem:[#allocation10 + $0x1c8] sm:$0xff]
    %v740 = vld [vmem:[#allocation10 + $0x1d0] sm:$0xff]
    %v741 = vld [vmem:[#allocation10 + $0x1d8] sm:$0xff]
    %v742 = vld [vmem:[#allocation10 + $0x1e0] sm:$0xff]
    %v743 = vld [vmem:[#allocation10 + $0x1e8] sm:$0xff]
    %v744 = vld [vmem:[#allocation10 + $0x1f0] sm:$0xff]
    %v745 = vld [vmem:[#allocation10 + $0x1f8] sm:$0xff]
    %v746 = vld [vmem:[#allocation10 + $0x200] sm:$0xff]
    %v747 = vld [vmem:[#allocation10 + $0x208] sm:$0xff]
    %v748 = vld [vmem:[#allocation10 + $0x210] sm:$0xff]
    %v749 = vld [vmem:[#allocation10 + $0x218] sm:$0xff]
    %v750 = vld [vmem:[#allocation10 + $0x220] sm:$0xff]
    %v751 = vld [vmem:[#allocation10 + $0x228] sm:$0xff]
    %v752 = vld [vmem:[#allocation10 + $0x230] sm:$0xff]
    %v753 = vld [vmem:[#allocation10 + $0x238] sm:$0xff]
    %v754 = vld [vmem:[#allocation10 + $0x240] sm:$0xff]
    %v755 = vld [vmem:[#allocation10 + $0x248] sm:$0xff]
    %v756 = vld [vmem:[#allocation10 + $0x250] sm:$0xff]
    %v757 = vld [vmem:[#allocation10 + $0x258] sm:$0xff]
    %v758 = vld [vmem:[#allocation10 + $0x260] sm:$0xff]
    %v759 = vld [vmem:[#allocation10 + $0x268] sm:$0xff]
    %v760 = vld [vmem:[#allocation10 + $0x270] sm:$0xff]
    %v761 = vld [vmem:[#allocation10 + $0x278] sm:$0xff]
    %v762 = vld [vmem:[#allocation10 + $0x280] sm:$0xff]
    %v763 = vld [vmem:[#allocation10 + $0x288] sm:$0xff]
    %v764 = vld [vmem:[#allocation10 + $0x290] sm:$0xff]
    %v765 = vld [vmem:[#allocation10 + $0x298] sm:$0xff]
    %v766 = vld [vmem:[#allocation10 + $0x2a0] sm:$0xff]
    %v767 = vld [vmem:[#allocation10 + $0x2a8] sm:$0xff]
    %v768 = vld [vmem:[#allocation10 + $0x2b0] sm:$0xff]
    %v769 = vld [vmem:[#allocation10 + $0x2b8] sm:$0xff]
    %v770 = vld [vmem:[#allocation10 + $0x2c0] sm:$0xff]
    %v771 = vld [vmem:[#allocation10 + $0x2c8] sm:$0xff]
    %v772 = vld [vmem:[#allocation10 + $0x2d0] sm:$0xff]
    %v773 = vld [vmem:[#allocation10 + $0x2d8] sm:$0xff]
    %v774 = vld [vmem:[#allocation10 + $0x2e0] sm:$0xff]
    %v775 = vld [vmem:[#allocation10 + $0x2e8] sm:$0xff]
    %v776 = vld [vmem:[#allocation10 + $0x2f0] sm:$0xff]
    %v777 = vld [vmem:[#allocation10 + $0x2f8] sm:$0xff]
    %v778 = vld [vmem:[#allocation10 + $0x300] sm:$0xff]
    %v779 = vld [vmem:[#allocation10 + $0x308] sm:$0xff]
    %v780 = vld [vmem:[#allocation10 + $0x310] sm:$0xff]
    %v781 = vld [vmem:[#allocation10 + $0x318] sm:$0xff]
    %v782 = vld [vmem:[#allocation10 + $0x320] sm:$0xff]
    %v783 = vld [vmem:[#allocation10 + $0x328] sm:$0xff]
    %v784 = vld [vmem:[#allocation10 + $0x330] sm:$0xff]
    %v785 = vld [vmem:[#allocation10 + $0x338] sm:$0xff]
    %v786 = vld [vmem:[#allocation10 + $0x340] sm:$0xff]
    %v787 = vld [vmem:[#allocation10 + $0x348] sm:$0xff]
    %v788 = vld [vmem:[#allocation10 + $0x350] sm:$0xff]
    %v789 = vld [vmem:[#allocation10 + $0x358] sm:$0xff]
    %v790 = vld [vmem:[#allocation10 + $0x360] sm:$0xff]
    %v791 = vld [vmem:[#allocation10 + $0x368] sm:$0xff]
    %v792 = vld [vmem:[#allocation10 + $0x370] sm:$0xff]
    %v793 = vld [vmem:[#allocation10 + $0x378] sm:$0xff]
    %v794 = vld [vmem:[#allocation10 + $0x380] sm:$0xff]
    %v795 = vld [vmem:[#allocation10 + $0x388] sm:$0xff]
    %v796 = vld [vmem:[#allocation10 + $0x390] sm:$0xff]
    %v797 = vld [vmem:[#allocation10 + $0x398] sm:$0xff]
    %v798 = vld [vmem:[#allocation10 + $0x3a0] sm:$0xff]
    %v799 = vld [vmem:[#allocation10 + $0x3a8] sm:$0xff]
    %v800 = vld [vmem:[#allocation10 + $0x3b0] sm:$0xff]
    %v801 = vld [vmem:[#allocation10 + $0x3b8] sm:$0xff]
    %v802 = vld [vmem:[#allocation10 + $0x3c0] sm:$0xff]
    %v803 = vld [vmem:[#allocation10 + $0x3c8] sm:$0xff]
    %v804 = vld [vmem:[#allocation10 + $0x3d0] sm:$0xff]
    %v805 = vld [vmem:[#allocation10 + $0x3d8] sm:$0xff]
    %v806 = vld [vmem:[#allocation10 + $0x3e0] sm:$0xff]
    %v807 = vld [vmem:[#allocation10 + $0x3e8] sm:$0xff]
    %v808 = vld [vmem:[#allocation10 + $0x3f0] sm:$0xff]
    %v809 = vld [vmem:[#allocation10 + $0x3f8] sm:$0xff]
    %v810 = vld [vmem:[#allocation10 + $0x400] sm:$0xff]
    %v811 = vld [vmem:[#allocation10 + $0x408] sm:$0xff]
    %v812 = vld [vmem:[#allocation10 + $0x410] sm:$0xff]
    %v813 = vld [vmem:[#allocation10 + $0x418] sm:$0xff]
    %v814 = vld [vmem:[#allocation10 + $0x420] sm:$0xff]
    %v815 = vld [vmem:[#allocation10 + $0x428] sm:$0xff]
    %v816 = vld [vmem:[#allocation10 + $0x430] sm:$0xff]
    %v817 = vld [vmem:[#allocation10 + $0x438] sm:$0xff]
    %v818 = vld [vmem:[#allocation10 + $0x440] sm:$0xff]
    %v819 = vld [vmem:[#allocation10 + $0x448] sm:$0xff]
    %v820 = vld [vmem:[#allocation10 + $0x450] sm:$0xff]
    %v821 = vld [vmem:[#allocation10 + $0x458] sm:$0xff]
    %v822 = vld [vmem:[#allocation10 + $0x460] sm:$0xff]
    %v823 = vld [vmem:[#allocation10 + $0x468] sm:$0xff]
    %v824 = vld [vmem:[#allocation10 + $0x470] sm:$0xff]
    %v825 = vld [vmem:[#allocation10 + $0x478] sm:$0xff]
    %v826 = vld [vmem:[#allocation11] sm:$0x7]
    %v827 = vld [vmem:[#allocation13] sm:$0x7]
    %v828 = vld [vmem:[#allocation14] sm:$0x7]
    %v829 = vld [vmem:[#allocation16] sm:$0xff]
    %v830 = vld [vmem:[#allocation16 + $0x8] sm:$0xff]
    %v831 = vld [vmem:[#allocation16 + $0x10] sm:$0xff]
    %v832 = vld [vmem:[#allocation16 + $0x18] sm:$0xff]
    %v833 = vld [vmem:[#allocation16 + $0x20] sm:$0xff]
    %v834 = vld [vmem:[#allocation16 + $0x28] sm:$0xff]
    %v835 = vld [vmem:[#allocation16 + $0x30] sm:$0xff]
    %v836 = vld [vmem:[#allocation16 + $0x38] sm:$0xff]
    %v837 = vld [vmem:[#allocation16 + $0x40] sm:$0xff]
    %v838 = vld [vmem:[#allocation16 + $0x48] sm:$0xff]
    %v839 = vld [vmem:[#allocation16 + $0x50] sm:$0xff]
    %v840 = vld [vmem:[#allocation16 + $0x58] sm:$0xff]
    %v841 = vld [vmem:[#allocation16 + $0x60] sm:$0xff]
    %v842 = vld [vmem:[#allocation16 + $0x68] sm:$0xff]
    %v843 = vld [vmem:[#allocation16 + $0x70] sm:$0xff]
    %v844 = vld [vmem:[#allocation16 + $0x78] sm:$0xff]
    %v845 = vld [vmem:[#allocation16 + $0x80] sm:$0xff]
    %v846 = vld [vmem:[#allocation16 + $0x88] sm:$0xff]
    %v847 = vld [vmem:[#allocation16 + $0x90] sm:$0xff]
    %v848 = vld [vmem:[#allocation16 + $0x98] sm:$0xff]
    %v849 = vld [vmem:[#allocation16 + $0xa0] sm:$0xff]
    %v850 = vld [vmem:[#allocation16 + $0xa8] sm:$0xff]
    %v851 = vld [vmem:[#allocation16 + $0xb0] sm:$0xff]
    %v852 = vld [vmem:[#allocation16 + $0xb8] sm:$0xff]
    %v853 = vld [vmem:[#allocation16 + $0xc0] sm:$0xff]
    %v854 = vld [vmem:[#allocation16 + $0xc8] sm:$0xff]
    %v855 = vld [vmem:[#allocation16 + $0xd0] sm:$0xff]
    %v856 = vld [vmem:[#allocation16 + $0xd8] sm:$0xff]
    %v857 = vld [vmem:[#allocation16 + $0xe0] sm:$0xff]
    %v858 = vld [vmem:[#allocation16 + $0xe8] sm:$0xff]
    %v859 = vld [vmem:[#allocation16 + $0xf0] sm:$0xff]
    %v860 = vld [vmem:[#allocation16 + $0xf8] sm:$0xff]
    %v861 = vld [vmem:[#allocation16 + $0x100] sm:$0xff]
    %v862 = vld [vmem:[#allocation16 + $0x108] sm:$0xff]
    %v863 = vld [vmem:[#allocation16 + $0x110] sm:$0xff]
    %v864 = vld [vmem:[#allocation16 + $0x118] sm:$0xff]
    %v865 = vld [vmem:[#allocation16 + $0x120] sm:$0xff]
    %v866 = vld [vmem:[#allocation16 + $0x128] sm:$0xff]
    %v867 = vld [vmem:[#allocation16 + $0x130] sm:$0xff]
    %v868 = vld [vmem:[#allocation16 + $0x138] sm:$0xff]
    %v869 = vld [vmem:[#allocation16 + $0x140] sm:$0xff]
    %v870 = vld [vmem:[#allocation16 + $0x148] sm:$0xff]
    %v871 = vld [vmem:[#allocation16 + $0x150] sm:$0xff]
    %v872 = vld [vmem:[#allocation16 + $0x158] sm:$0xff]
    %v873 = vld [vmem:[#allocation16 + $0x160] sm:$0xff]
    %v874 = vld [vmem:[#allocation16 + $0x168] sm:$0xff]
    %v875 = vld [vmem:[#allocation16 + $0x170] sm:$0xff]
    %v876 = vld [vmem:[#allocation16 + $0x178] sm:$0xff]
    %v877 = vld [vmem:[#allocation17] sm:$0x1]
    %v878 = vld [vmem:[#allocation19] sm:$0xff]
    %v879 = vld [vmem:[#allocation19 + $0x8] sm:$0xff]
    %v880 = vld [vmem:[#allocation19 + $0x10] sm:$0xff]
    %v881 = vld [vmem:[#allocation19 + $0x18] sm:$0xff]
    %v882 = vld [vmem:[#allocation19 + $0x20] sm:$0xff]
    %v883 = vld [vmem:[#allocation19 + $0x28] sm:$0xff]
    %v884 = vld [vmem:[#allocation19 + $0x30] sm:$0xff]
    %v885 = vld [vmem:[#allocation19 + $0x38] sm:$0xff]
    %v886 = vld [vmem:[#allocation19 + $0x40] sm:$0xff]
    %v887 = vld [vmem:[#allocation19 + $0x48] sm:$0xff]
    %v888 = vld [vmem:[#allocation19 + $0x50] sm:$0xff]
    %v889 = vld [vmem:[#allocation19 + $0x58] sm:$0xff]
    %v890 = vld [vmem:[#allocation19 + $0x60] sm:$0xff]
    %v891 = vld [vmem:[#allocation19 + $0x68] sm:$0xff]
    %v892 = vld [vmem:[#allocation19 + $0x70] sm:$0xff]
    %v893 = vld [vmem:[#allocation19 + $0x78] sm:$0xff]
    %v894 = vld [vmem:[#allocation19 + $0x80] sm:$0xff]
    %v895 = vld [vmem:[#allocation19 + $0x88] sm:$0xff]
    %v896 = vld [vmem:[#allocation19 + $0x90] sm:$0xff]
    %v897 = vld [vmem:[#allocation19 + $0x98] sm:$0xff]
    %v898 = vld [vmem:[#allocation19 + $0xa0] sm:$0xff]
    %v899 = vld [vmem:[#allocation19 + $0xa8] sm:$0xff]
    %v900 = vld [vmem:[#allocation19 + $0xb0] sm:$0xff]
    %v901 = vld [vmem:[#allocation19 + $0xb8] sm:$0xff]
    %v902 = vld [vmem:[#allocation19 + $0xc0] sm:$0xff]
    %v903 = vld [vmem:[#allocation19 + $0xc8] sm:$0xff]
    %v904 = vld [vmem:[#allocation19 + $0xd0] sm:$0xff]
    %v905 = vld [vmem:[#allocation19 + $0xd8] sm:$0xff]
    %v906 = vld [vmem:[#allocation19 + $0xe0] sm:$0xff]
    %v907 = vld [vmem:[#allocation19 + $0xe8] sm:$0xff]
    %v908 = vld [vmem:[#allocation19 + $0xf0] sm:$0xff]
    %v909 = vld [vmem:[#allocation19 + $0xf8] sm:$0xff]
    %v910 = vld [vmem:[#allocation19 + $0x100] sm:$0xff]
    %v911 = vld [vmem:[#allocation19 + $0x108] sm:$0xff]
    %v912 = vld [vmem:[#allocation19 + $0x110] sm:$0xff]
    %v913 = vld [vmem:[#allocation19 + $0x118] sm:$0xff]
    %v914 = vld [vmem:[#allocation19 + $0x120] sm:$0xff]
    %v915 = vld [vmem:[#allocation19 + $0x128] sm:$0xff]
    %v916 = vld [vmem:[#allocation19 + $0x130] sm:$0xff]
    %v917 = vld [vmem:[#allocation19 + $0x138] sm:$0xff]
    %v918 = vld [vmem:[#allocation19 + $0x140] sm:$0xff]
    %v919 = vld [vmem:[#allocation19 + $0x148] sm:$0xff]
    %v920 = vld [vmem:[#allocation19 + $0x150] sm:$0xff]
    %v921 = vld [vmem:[#allocation19 + $0x158] sm:$0xff]
    %v922 = vld [vmem:[#allocation19 + $0x160] sm:$0xff]
    %v923 = vld [vmem:[#allocation19 + $0x168] sm:$0xff]
    %v924 = vld [vmem:[#allocation19 + $0x170] sm:$0xff]
    %v925 = vld [vmem:[#allocation19 + $0x178] sm:$0xff]
    %v926 = vld [vmem:[#allocation20] sm:$0x7]
    %v927 = vld [vmem:[#allocation22] sm:$0x7]
    %v928 = vld [vmem:[#allocation23] sm:$0x7]
    %v931 = vlaneseq
    %v932 = vshrl.u32 %v931, 7
    %v933 = vsub.s32 0, %v932
    %v934 = vrot.slane %v680, %v933
    %v935 = vlaneseq
    %v936 = vshrl.u32 %v935, 7
    %v937 = vsub.s32 1, %v936
    %v938 = vrot.slane %v680, %v937
    %v939 = vlaneseq
    %v940 = vshrl.u32 %v939, 7
    %v941 = vsub.s32 2, %v940
    %v942 = vrot.slane %v680, %v941
    %v943 = vlaneseq
    %v944 = vshrl.u32 %v943, 7
    %v945 = vsub.s32 3, %v944
    %v946 = vrot.slane %v680, %v945
    %v947 = vlaneseq
    %v948 = vshrl.u32 %v947, 7
    %v949 = vsub.s32 4, %v948
    %v950 = vrot.slane %v680, %v949
    %v951 = vlaneseq
    %v952 = vshrl.u32 %v951, 7
    %v953 = vsub.s32 5, %v952
    %v954 = vrot.slane %v680, %v953
    %v955 = vlaneseq
    %v956 = vshrl.u32 %v955, 7
    %v957 = vsub.s32 6, %v956
    %v958 = vrot.slane %v680, %v957
    %v959 = vlaneseq
    %v960 = vshrl.u32 %v959, 7
    %v961 = vsub.s32 7, %v960
    %v962 = vrot.slane %v680, %v961
    %v963 = vlaneseq
    %v964 = vshrl.u32 %v963, 7
    %v965 = vsub.s32 0, %v964
    %v966 = vrot.slane %v681, %v965
    %976 = vmatprep.subr.mxu0 %v249
    %977 = vmatpush1.msra.mxu0 %v248
    %978 = vmatprep.subr.mxu0 %v258
    %979 = vmatpush1.msra.mxu0 %v257
    %980 = vmatprep.subr.mxu0 %v267
    %981 = vmatpush1.msra.mxu0 %v266
    %982 = vmatprep.subr.mxu0 %v276
    %983 = vmatpush1.msra.mxu0 %v275
    %984 = vmatprep.subr.mxu0 %v285
    %985 = vmatpush1.msra.mxu0 %v284
    %986 = vmatprep.subr.mxu0 %v294
    %987 = vmatpush1.msra.mxu0 %v293
    %988 = vmatprep.subr.mxu0 %v303
    %989 = vmatpush1.msra.mxu0 %v302
    %990 = vmatprep.subr.mxu0 %v312
    %991 = vmatpush1.msra.mxu0 %v311
    %992 = vmatprep.subr.mxu0 %v321
    %993 = vmatpush1.msra.mxu0 %v320
    %994 = vmatprep.subr.mxu0 %v330
    %995 = vmatpush1.msra.mxu0 %v329
    %996 = vmatprep.subr.mxu0 %v339
    %997 = vmatpush1.msra.mxu0 %v338
    %998 = vmatprep.subr.mxu0 %v348
    %999 = vmatpush1.msra.mxu0 %v347
    %1000 = vmatprep.subr.mxu0 %v357
    %1001 = vmatpush1.msra.mxu0 %v356
    %1002 = vmatprep.subr.mxu0 %v366
    %1003 = vmatpush1.msra.mxu0 %v365
    %1004 = vmatprep.subr.mxu0 %v375
    %1005 = vmatpush1.msra.mxu0 %v374
    %1006 = vmatprep.subr.mxu0 %v384
    %1007 = vmatpush1.msra.mxu0 %v383
    %1008 = vmatprep.subr.mxu0 %v393
    %1009 = vmatpush1.msra.mxu0 %v392
    %1010 = vmatprep.subr.mxu0 %v402
    %1011 = vmatpush1.msra.mxu0 %v401
    %1012 = vmatprep.subr.mxu0 %v411
    %1013 = vmatpush1.msra.mxu0 %v410
    %1014 = vmatprep.subr.mxu0 %v420
    %1015 = vmatpush1.msra.mxu0 %v419
    %1016 = vmatprep.subr.mxu0 %v429
    %1017 = vmatpush1.msra.mxu0 %v428
    %1018 = vmatprep.subr.mxu0 %v438
    %1019 = vmatpush1.msra.mxu0 %v437
    %1020 = vmatprep.subr.mxu0 %v447
    %1021 = vmatpush1.msra.mxu0 %v446
    %1022 = vmatprep.subr.mxu0 %v456
    %1023 = vmatpush1.msra.mxu0 %v455
    %1024 = vmatprep.subr.mxu0 %v465
    %1025 = vmatpush1.msra.mxu0 %v464
    %1026 = vmatprep.subr.mxu0 %v474
    %1027 = vmatpush1.msra.mxu0 %v473
    %1028 = vmatprep.subr.mxu0 %v483
    %1029 = vmatpush1.msra.mxu0 %v482
    %1030 = vmatprep.subr.mxu0 %v492
    %1031 = vmatpush1.msra.mxu0 %v491
    %1032 = vmatprep.subr.mxu0 %v501
    %1033 = vmatpush1.msra.mxu0 %v500
    %1034 = vmatprep.subr.mxu0 %v510
    %1035 = vmatpush1.msra.mxu0 %v509
    %1036 = vmatprep.subr.mxu0 %v519
    %1037 = vmatpush1.msra.mxu0 %v518
    %1038 = vmatprep.subr.mxu0 %v528
    %1039 = vmatpush1.msra.mxu0 %v527
    %1040 = vmatprep.mubr.f32.mxu0 %v243
    %1041 = vmatmul.mubr.f32.gmra.mrb[0].mxu0 %v242
    %v1042 = vpop.f32.mrb[0].mxu0
    %v1043 = vadd.f32 %v934, %v1042
    %v1044 = vpop.f32.mrb[0].mxu0
    %v1045 = vadd.f32 %v938, %v1044
    %1046 = vmatprep.mubr.f32.mxu0 %v246
    %1047 = vmatmul.mubr.f32.gmra.mrb[0].mxu0 %v245
    %v1048 = vpop.f32.mrb[0].mxu0
    %v1049 = vadd.f32 %v934, %v1048
    %v1050 = vpop.f32.mrb[0].mxu0
    %v1051 = vadd.f32 %v938, %v1050
    %1052 = vdwg.mxu0
    %1053 = vmatprep.subr.mxu0 %v537
    %1054 = vmatpush1.msra.mxu0 %v536
    %1055 = vmatprep.subr.mxu0 %v546
    %1056 = vmatpush1.msra.mxu0 %v545
    %1057 = vmatprep.subr.mxu0 %v555
    %1058 = vmatpush1.msra.mxu0 %v554
    %1059 = vmatprep.subr.mxu0 %v564
    %1060 = vmatpush1.msra.mxu0 %v563
    %1061 = vmatprep.subr.mxu0 %v573
    %1062 = vmatpush1.msra.mxu0 %v572
    %1063 = vmatprep.subr.mxu0 %v582
    %1064 = vmatpush1.msra.mxu0 %v581
    %1065 = vmatprep.subr.mxu0 %v591
    %1066 = vmatpush1.msra.mxu0 %v590
    %1067 = vmatprep.subr.mxu0 %v600
    %1068 = vmatpush1.msra.mxu0 %v599
    %1069 = vmatprep.subr.mxu0 %v609
    %1070 = vmatpush1.msra.mxu0 %v608
    %1071 = vmatprep.subr.mxu0 %v618
    %1072 = vmatpush1.msra.mxu0 %v617
    %1073 = vmatprep.subr.mxu0 %v627
    %1074 = vmatpush1.msra.mxu0 %v626
    %1075 = vmatprep.subr.mxu0 %v636
    %1076 = vmatpush1.msra.mxu0 %v635
    %1077 = vmatprep.subr.mxu0 %v645
    %1078 = vmatpush1.msra.mxu0 %v644
    %1079 = vmatprep.subr.mxu0 %v654
    %1080 = vmatpush1.msra.mxu0 %v653
    %1081 = vmatprep.subr.mxu0 %v663
    %1082 = vmatpush1.msra.mxu0 %v662
    %1083 = vmatprep.subr.mxu0 %v672
    %1084 = vmatpush1.msra.mxu0 %v671
    %1085 = vmatprep.subr.mxu0 0.0
    %1086 = vmatpush1.msra.mxu0 0.0
    %1087 = vmatprep.subr.mxu0 0.0
    %1088 = vmatpush1.msra.mxu0 0.0
    %1089 = vmatprep.subr.mxu0 0.0
    %1090 = vmatpush1.msra.mxu0 0.0
    %1091 = vmatprep.subr.mxu0 0.0
    %1092 = vmatpush1.msra.mxu0 0.0
    %1093 = vmatprep.subr.mxu0 0.0
    %1094 = vmatpush1.msra.mxu0 0.0
    %1095 = vmatprep.subr.mxu0 0.0
    %1096 = vmatpush1.msra.mxu0 0.0
    %1097 = vmatprep.subr.mxu0 0.0
    %1098 = vmatpush1.msra.mxu0 0.0
    %1099 = vmatprep.subr.mxu0 0.0
    %1100 = vmatpush1.msra.mxu0 0.0
    %1101 = vmatprep.subr.mxu0 0.0
    %1102 = vmatpush1.msra.mxu0 0.0
    %1103 = vmatprep.subr.mxu0 0.0
    %1104 = vmatpush1.msra.mxu0 0.0
    %1105 = vmatprep.subr.mxu0 0.0
    %1106 = vmatpush1.msra.mxu0 0.0
    %1107 = vmatprep.subr.mxu0 0.0
    %1108 = vmatpush1.msra.mxu0 0.0
    %1109 = vmatprep.subr.mxu0 0.0
    %1110 = vmatpush1.msra.mxu0 0.0
    %1111 = vmatprep.subr.mxu0 0.0
    %1112 = vmatpush1.msra.mxu0 0.0
    %1113 = vmatprep.subr.mxu0 0.0
    %1114 = vmatpush1.msra.mxu0 0.0
    %1115 = vmatprep.subr.mxu0 0.0
    %1116 = vmatpush1.msra.mxu0 0.0
    %1117 = vmatprep.mubr.f32.mxu0 0.0
    %1118 = vmatmul.mubr.f32.gmra.mrb[0].mxu0 %v244
    %v1119 = vpop.f32.mrb[0].mxu0
    %v1120 = vadd.f32 %v1043, %v1119
    %v1121 = vpop.f32.mrb[0].mxu0
    %v1122 = vadd.f32 %v1045, %v1121
    %1123 = vmatprep.mubr.f32.mxu0 0.0
    %1124 = vmatmul.mubr.f32.gmra.mrb[0].mxu0 %v247
    %v1125 = vpop.f32.mrb[0].mxu0
    %v1126 = vadd.f32 %v1049, %v1125
    %v1127 = vpop.f32.mrb[0].mxu0
    %v1128 = vadd.f32 %v1051, %v1127
    %1129 = vdwg.mxu0
    %1130 = vmatprep.subr.mxu0 %v251
    %1131 = vmatpush1.msra.mxu0 %v250
    %1132 = vmatprep.subr.mxu0 %v260
    %1133 = vmatpush1.msra.mxu0 %v259
    %1134 = vmatprep.subr.mxu0 %v269
    %1135 = vmatpush1.msra.mxu0 %v268
    %1136 = vmatprep.subr.mxu0 %v278
    %1137 = vmatpush1.msra.mxu0 %v277
    %1138 = vmatprep.subr.mxu0 %v287
    %1139 = vmatpush1.msra.mxu0 %v286
    %1140 = vmatprep.subr.mxu0 %v296
    %1141 = vmatpush1.msra.mxu0 %v295
    %1142 = vmatprep.subr.mxu0 %v305
    %1143 = vmatpush1.msra.mxu0 %v304
    %1144 = vmatprep.subr.mxu0 %v314
    %1145 = vmatpush1.msra.mxu0 %v313
    %1146 = vmatprep.subr.mxu0 %v323
    %1147 = vmatpush1.msra.mxu0 %v322
    %1148 = vmatprep.subr.mxu0 %v332
    %1149 = vmatpush1.msra.mxu0 %v331
    %1150 = vmatprep.subr.mxu0 %v341
    %1151 = vmatpush1.msra.mxu0 %v340
    %1152 = vmatprep.subr.mxu0 %v350
    %1153 = vmatpush1.msra.mxu0 %v349
    %1154 = vmatprep.subr.mxu0 %v359
    %1155 = vmatpush1.msra.mxu0 %v358
    %1156 = vmatprep.subr.mxu0 %v368
    %1157 = vmatpush1.msra.mxu0 %v367
    %1158 = vmatprep.subr.mxu0 %v377
    %1159 = vmatpush1.msra.mxu0 %v376
    %1160 = vmatprep.subr.mxu0 %v386
    %1161 = vmatpush1.msra.mxu0 %v385
    %1162 = vmatprep.subr.mxu0 %v395
    %1163 = vmatpush1.msra.mxu0 %v394
    %1164 = vmatprep.subr.mxu0 %v404
    %1165 = vmatpush1.msra.mxu0 %v403
    %1166 = vmatprep.subr.mxu0 %v413
    %1167 = vmatpush1.msra.mxu0 %v412
    %1168 = vmatprep.subr.mxu0 %v422
    %1169 = vmatpush1.msra.mxu0 %v421
    %1170 = vmatprep.subr.mxu0 %v431
    %1171 = vmatpush1.msra.mxu0 %v430
    %1172 = vmatprep.subr.mxu0 %v440
    %1173 = vmatpush1.msra.mxu0 %v439
    %1174 = vmatprep.subr.mxu0 %v449
    %1175 = vmatpush1.msra.mxu0 %v448
    %1176 = vmatprep.subr.mxu0 %v458
    %1177 = vmatpush1.msra.mxu0 %v457
    %1178 = vmatprep.subr.mxu0 %v467
    %1179 = vmatpush1.msra.mxu0 %v466
    %1180 = vmatprep.subr.mxu0 %v476
    %1181 = vmatpush1.msra.mxu0 %v475
    %1182 = vmatprep.subr.mxu0 %v485
    %1183 = vmatpush1.msra.mxu0 %v484
    %1184 = vmatprep.subr.mxu0 %v494
    %1185 = vmatpush1.msra.mxu0 %v493
    %1186 = vmatprep.subr.mxu0 %v503
    %1187 = vmatpush1.msra.mxu0 %v502
    %1188 = vmatprep.subr.mxu0 %v512
    %1189 = vmatpush1.msra.mxu0 %v511
    %1190 = vmatprep.subr.mxu0 %v521
    %1191 = vmatpush1.msra.mxu0 %v520
    %1192 = vmatprep.subr.mxu0 %v530
    %1193 = vmatpush1.msra.mxu0 %v529
    %1194 = vmatprep.mubr.f32.mxu0 %v243
    %1195 = vmatmul.mubr.f32.gmra.mrb[0].mxu0 %v242
    %v1196 = vpop.f32.mrb[0].mxu0
    %v1197 = vadd.f32 %v942, %v1196
    %v1198 = vpop.f32.mrb[0].mxu0
    %v1199 = vadd.f32 %v946, %v1198
    %1200 = vmatprep.mubr.f32.mxu0 %v246
    %1201 = vmatmul.mubr.f32.gmra.mrb[0].mxu0 %v245
    %v1202 = vpop.f32.mrb[0].mxu0
    %v1203 = vadd.f32 %v942, %v1202
    %v1204 = vpop.f32.mrb[0].mxu0
    %v1205 = vadd.f32 %v946, %v1204
    %1206 = vdwg.mxu0
    %1207 = vmatprep.subr.mxu0 %v539
    %1208 = vmatpush1.msra.mxu0 %v538
    %1209 = vmatprep.subr.mxu0 %v548
    %1210 = vmatpush1.msra.mxu0 %v547
    %1211 = vmatprep.subr.mxu0 %v557
    %1212 = vmatpush1.msra.mxu0 %v556
    %1213 = vmatprep.subr.mxu0 %v566
    %1214 = vmatpush1.msra.mxu0 %v565
    %1215 = vmatprep.subr.mxu0 %v575
    %1216 = vmatpush1.msra.mxu0 %v574
    %1217 = vmatprep.subr.mxu0 %v584
    %1218 = vmatpush1.msra.mxu0 %v583
    %1219 = vmatprep.subr.mxu0 %v593
    %1220 = vmatpush1.msra.mxu0 %v592
    %1221 = vmatprep.subr.mxu0 %v602
    %1222 = vmatpush1.msra.mxu0 %v601
    %1223 = vmatprep.subr.mxu0 %v611
    %1224 = vmatpush1.msra.mxu0 %v610
    %1225 = vmatprep.subr.mxu0 %v620
    %1226 = vmatpush1.msra.mxu0 %v619
    %1227 = vmatprep.subr.mxu0 %v629
    %1228 = vmatpush1.msra.mxu0 %v628
    %1229 = vmatprep.subr.mxu0 %v638
    %1230 = vmatpush1.msra.mxu0 %v637
    %1231 = vmatprep.subr.mxu0 %v647
    %1232 = vmatpush1.msra.mxu0 %v646
    %1233 = vmatprep.subr.mxu0 %v656
    %1234 = vmatpush1.msra.mxu0 %v655
    %1235 = vmatprep.subr.mxu0 %v665
    %1236 = vmatpush1.msra.mxu0 %v664
    %1237 = vmatprep.subr.mxu0 %v674
    %1238 = vmatpush1.msra.mxu0 %v673
    %1239 = vmatprep.subr.mxu0 0.0
    %1240 = vmatpush1.msra.mxu0 0.0
    %1241 = vmatprep.subr.mxu0 0.0
    %1242 = vmatpush1.msra.mxu0 0.0
    %1243 = vmatprep.subr.mxu0 0.0
    %1244 = vmatpush1.msra.mxu0 0.0
    %1245 = vmatprep.subr.mxu0 0.0
    %1246 = vmatpush1.msra.mxu0 0.0
    %1247 = vmatprep.subr.mxu0 0.0
    %1248 = vmatpush1.msra.mxu0 0.0
    %1249 = vmatprep.subr.mxu0 0.0
    %1250 = vmatpush1.msra.mxu0 0.0
    %1251 = vmatprep.subr.mxu0 0.0
    %1252 = vmatpush1.msra.mxu0 0.0
    %1253 = vmatprep.subr.mxu0 0.0
    %1254 = vmatpush1.msra.mxu0 0.0
    %1255 = vmatprep.subr.mxu0 0.0
    %1256 = vmatpush1.msra.mxu0 0.0
    %1257 = vmatprep.subr.mxu0 0.0
    %1258 = vmatpush1.msra.mxu0 0.0
    %1259 = vmatprep.subr.mxu0 0.0
    %1260 = vmatpush1.msra.mxu0 0.0
    %1261 = vmatprep.subr.mxu0 0.0
    %1262 = vmatpush1.msra.mxu0 0.0
    %1263 = vmatprep.subr.mxu0 0.0
    %1264 = vmatpush1.msra.mxu0 0.0
    %1265 = vmatprep.subr.mxu0 0.0
    %1266 = vmatpush1.msra.mxu0 0.0
    %1267 = vmatprep.subr.mxu0 0.0
    %1268 = vmatpush1.msra.mxu0 0.0
    %1269 = vmatprep.subr.mxu0 0.0
    %1270 = vmatpush1.msra.mxu0 0.0
    %1271 = vmatprep.mubr.f32.mxu0 0.0
    %1272 = vmatmul.mubr.f32.gmra.mrb[0].mxu0 %v244
    %v1273 = vpop.f32.mrb[0].mxu0
    %v1274 = vadd.f32 %v1197, %v1273
    %v1275 = vpop.f32.mrb[0].mxu0
    %v1276 = vadd.f32 %v1199, %v1275
    %1277 = vmatprep.mubr.f32.mxu0 0.0
    %1278 = vmatmul.mubr.f32.gmra.mrb[0].mxu0 %v247
    %v1279 = vpop.f32.mrb[0].mxu0
    %v1280 = vadd.f32 %v1203, %v1279
    %v1281 = vpop.f32.mrb[0].mxu0
    %v1282 = vadd.f32 %v1205, %v1281
    %1283 = vdwg.mxu0
    %1284 = vmatprep.subr.mxu0 %v253
    %1285 = vmatpush1.msra.mxu0 %v252
    %1286 = vmatprep.subr.mxu0 %v262
    %1287 = vmatpush1.msra.mxu0 %v261
    %1288 = vmatprep.subr.mxu0 %v271
    %1289 = vmatpush1.msra.mxu0 %v270
    %1290 = vmatprep.subr.mxu0 %v280
    %1291 = vmatpush1.msra.mxu0 %v279
    %1292 = vmatprep.subr.mxu0 %v289
    %1293 = vmatpush1.msra.mxu0 %v288
    %1294 = vmatprep.subr.mxu0 %v298
    %1295 = vmatpush1.msra.mxu0 %v297
    %1296 = vmatprep.subr.mxu0 %v307
    %1297 = vmatpush1.msra.mxu0 %v306
    %1298 = vmatprep.subr.mxu0 %v316
    %1299 = vmatpush1.msra.mxu0 %v315
    %1300 = vmatprep.subr.mxu0 %v325
    %1301 = vmatpush1.msra.mxu0 %v324
    %1302 = vmatprep.subr.mxu0 %v334
    %1303 = vmatpush1.msra.mxu0 %v333
    %1304 = vmatprep.subr.mxu0 %v343
    %1305 = vmatpush1.msra.mxu0 %v342
    %1306 = vmatprep.subr.mxu0 %v352
    %1307 = vmatpush1.msra.mxu0 %v351
    %1308 = vmatprep.subr.mxu0 %v361
    %1309 = vmatpush1.msra.mxu0 %v360
    %1310 = vmatprep.subr.mxu0 %v370
    %1311 = vmatpush1.msra.mxu0 %v369
    %1312 = vmatprep.subr.mxu0 %v379
    %1313 = vmatpush1.msra.mxu0 %v378
    %1314 = vmatprep.subr.mxu0 %v388
    %1315 = vmatpush1.msra.mxu0 %v387
    %1316 = vmatprep.subr.mxu0 %v397
    %1317 = vmatpush1.msra.mxu0 %v396
    %1318 = vmatprep.subr.mxu0 %v406
    %1319 = vmatpush1.msra.mxu0 %v405
    %1320 = vmatprep.subr.mxu0 %v415
    %1321 = vmatpush1.msra.mxu0 %v414
    %1322 = vmatprep.subr.mxu0 %v424
    %1323 = vmatpush1.msra.mxu0 %v423
    %1324 = vmatprep.subr.mxu0 %v433
    %1325 = vmatpush1.msra.mxu0 %v432
    %1326 = vmatprep.subr.mxu0 %v442
    %1327 = vmatpush1.msra.mxu0 %v441
    %1328 = vmatprep.subr.mxu0 %v451
    %1329 = vmatpush1.msra.mxu0 %v450
    %1330 = vmatprep.subr.mxu0 %v460
    %1331 = vmatpush1.msra.mxu0 %v459
    %1332 = vmatprep.subr.mxu0 %v469
    %1333 = vmatpush1.msra.mxu0 %v468
    %1334 = vmatprep.subr.mxu0 %v478
    %1335 = vmatpush1.msra.mxu0 %v477
    %1336 = vmatprep.subr.mxu0 %v487
    %1337 = vmatpush1.msra.mxu0 %v486
    %1338 = vmatprep.subr.mxu0 %v496
    %1339 = vmatpush1.msra.mxu0 %v495
    %1340 = vmatprep.subr.mxu0 %v505
    %1341 = vmatpush1.msra.mxu0 %v504
    %1342 = vmatprep.subr.mxu0 %v514
    %1343 = vmatpush1.msra.mxu0 %v513
    %1344 = vmatprep.subr.mxu0 %v523
    %1345 = vmatpush1.msra.mxu0 %v522
    %1346 = vmatprep.subr.mxu0 %v532
    %1347 = vmatpush1.msra.mxu0 %v531
    %1348 = vmatprep.mubr.f32.mxu0 %v243
    %1349 = vmatmul.mubr.f32.gmra.mrb[0].mxu0 %v242
    %v1350 = vpop.f32.mrb[0].mxu0
    %v1351 = vadd.f32 %v950, %v1350
    %v1352 = vpop.f32.mrb[0].mxu0
    %v1353 = vadd.f32 %v954, %v1352
    %1354 = vmatprep.mubr.f32.mxu0 %v246
    %1355 = vmatmul.mubr.f32.gmra.mrb[0].mxu0 %v245
    %v1356 = vpop.f32.mrb[0].mxu0
    %v1357 = vadd.f32 %v950, %v1356
    %v1358 = vpop.f32.mrb[0].mxu0
    %v1359 = vadd.f32 %v954, %v1358
    %1360 = vdwg.mxu0
    %1361 = vmatprep.subr.mxu0 %v541
    %1362 = vmatpush1.msra.mxu0 %v540
    %1363 = vmatprep.subr.mxu0 %v550
    %1364 = vmatpush1.msra.mxu0 %v549
    %1365 = vmatprep.subr.mxu0 %v559
    %1366 = vmatpush1.msra.mxu0 %v558
    %1367 = vmatprep.subr.mxu0 %v568
    %1368 = vmatpush1.msra.mxu0 %v567
    %1369 = vmatprep.subr.mxu0 %v577
    %1370 = vmatpush1.msra.mxu0 %v576
    %1371 = vmatprep.subr.mxu0 %v586
    %1372 = vmatpush1.msra.mxu0 %v585
    %1373 = vmatprep.subr.mxu0 %v595
    %1374 = vmatpush1.msra.mxu0 %v594
    %1375 = vmatprep.subr.mxu0 %v604
    %1376 = vmatpush1.msra.mxu0 %v603
    %1377 = vmatprep.subr.mxu0 %v613
    %1378 = vmatpush1.msra.mxu0 %v612
    %1379 = vmatprep.subr.mxu0 %v622
    %1380 = vmatpush1.msra.mxu0 %v621
    %1381 = vmatprep.subr.mxu0 %v631
    %1382 = vmatpush1.msra.mxu0 %v630
    %1383 = vmatprep.subr.mxu0 %v640
    %1384 = vmatpush1.msra.mxu0 %v639
    %1385 = vmatprep.subr.mxu0 %v649
    %1386 = vmatpush1.msra.mxu0 %v648
    %1387 = vmatprep.subr.mxu0 %v658
    %1388 = vmatpush1.msra.mxu0 %v657
    %1389 = vmatprep.subr.mxu0 %v667
    %1390 = vmatpush1.msra.mxu0 %v666
    %1391 = vmatprep.subr.mxu0 %v676
    %1392 = vmatpush1.msra.mxu0 %v675
    %1393 = vmatprep.subr.mxu0 0.0
    %1394 = vmatpush1.msra.mxu0 0.0
    %1395 = vmatprep.subr.mxu0 0.0
    %1396 = vmatpush1.msra.mxu0 0.0
    %1397 = vmatprep.subr.mxu0 0.0
    %1398 = vmatpush1.msra.mxu0 0.0
    %1399 = vmatprep.subr.mxu0 0.0
    %1400 = vmatpush1.msra.mxu0 0.0
    %1401 = vmatprep.subr.mxu0 0.0
    %1402 = vmatpush1.msra.mxu0 0.0
    %1403 = vmatprep.subr.mxu0 0.0
    %1404 = vmatpush1.msra.mxu0 0.0
    %1405 = vmatprep.subr.mxu0 0.0
    %1406 = vmatpush1.msra.mxu0 0.0
    %1407 = vmatprep.subr.mxu0 0.0
    %1408 = vmatpush1.msra.mxu0 0.0
    %1409 = vmatprep.subr.mxu0 0.0
    %1410 = vmatpush1.msra.mxu0 0.0
    %1411 = vmatprep.subr.mxu0 0.0
    %1412 = vmatpush1.msra.mxu0 0.0
    %1413 = vmatprep.subr.mxu0 0.0
    %1414 = vmatpush1.msra.mxu0 0.0
    %1415 = vmatprep.subr.mxu0 0.0
    %1416 = vmatpush1.msra.mxu0 0.0
    %1417 = vmatprep.subr.mxu0 0.0
    %1418 = vmatpush1.msra.mxu0 0.0
    %1419 = vmatprep.subr.mxu0 0.0
    %1420 = vmatpush1.msra.mxu0 0.0
    %1421 = vmatprep.subr.mxu0 0.0
    %1422 = vmatpush1.msra.mxu0 0.0
    %1423 = vmatprep.subr.mxu0 0.0
    %1424 = vmatpush1.msra.mxu0 0.0
    %1425 = vmatprep.mubr.f32.mxu0 0.0
    %1426 = vmatmul.mubr.f32.gmra.mrb[0].mxu0 %v244
    %v1427 = vpop.f32.mrb[0].mxu0
    %v1428 = vadd.f32 %v1351, %v1427
    %v1429 = vpop.f32.mrb[0].mxu0
    %v1430 = vadd.f32 %v1353, %v1429
    %1431 = vmatprep.mubr.f32.mxu0 0.0
    %1432 = vmatmul.mubr.f32.gmra.mrb[0].mxu0 %v247
    %v1433 = vpop.f32.mrb[0].mxu0
    %v1434 = vadd.f32 %v1357, %v1433
    %v1435 = vpop.f32.mrb[0].mxu0
    %v1436 = vadd.f32 %v1359, %v1435
    %1437 = vdwg.mxu0
    %1438 = vmatprep.subr.mxu0 %v255
    %1439 = vmatpush1.msra.mxu0 %v254
    %1440 = vmatprep.subr.mxu0 %v264
    %1441 = vmatpush1.msra.mxu0 %v263
    %1442 = vmatprep.subr.mxu0 %v273
    %1443 = vmatpush1.msra.mxu0 %v272
    %1444 = vmatprep.subr.mxu0 %v282
    %1445 = vmatpush1.msra.mxu0 %v281
    %1446 = vmatprep.subr.mxu0 %v291
    %1447 = vmatpush1.msra.mxu0 %v290
    %1448 = vmatprep.subr.mxu0 %v300
    %1449 = vmatpush1.msra.mxu0 %v299
    %1450 = vmatprep.subr.mxu0 %v309
    %1451 = vmatpush1.msra.mxu0 %v308
    %1452 = vmatprep.subr.mxu0 %v318
    %1453 = vmatpush1.msra.mxu0 %v317
    %1454 = vmatprep.subr.mxu0 %v327
    %1455 = vmatpush1.msra.mxu0 %v326
    %1456 = vmatprep.subr.mxu0 %v336
    %1457 = vmatpush1.msra.mxu0 %v335
    %1458 = vmatprep.subr.mxu0 %v345
    %1459 = vmatpush1.msra.mxu0 %v344
    %1460 = vmatprep.subr.mxu0 %v354
    %1461 = vmatpush1.msra.mxu0 %v353
    %1462 = vmatprep.subr.mxu0 %v363
    %1463 = vmatpush1.msra.mxu0 %v362
    %1464 = vmatprep.subr.mxu0 %v372
    %1465 = vmatpush1.msra.mxu0 %v371
    %1466 = vmatprep.subr.mxu0 %v381
    %1467 = vmatpush1.msra.mxu0 %v380
    %1468 = vmatprep.subr.mxu0 %v390
    %1469 = vmatpush1.msra.mxu0 %v389
    %1470 = vmatprep.subr.mxu0 %v399
    %1471 = vmatpush1.msra.mxu0 %v398
    %1472 = vmatprep.subr.mxu0 %v408
    %1473 = vmatpush1.msra.mxu0 %v407
    %1474 = vmatprep.subr.mxu0 %v417
    %1475 = vmatpush1.msra.mxu0 %v416
    %1476 = vmatprep.subr.mxu0 %v426
    %1477 = vmatpush1.msra.mxu0 %v425
    %1478 = vmatprep.subr.mxu0 %v435
    %1479 = vmatpush1.msra.mxu0 %v434
    %1480 = vmatprep.subr.mxu0 %v444
    %1481 = vmatpush1.msra.mxu0 %v443
    %1482 = vmatprep.subr.mxu0 %v453
    %1483 = vmatpush1.msra.mxu0 %v452
    %1484 = vmatprep.subr.mxu0 %v462
    %1485 = vmatpush1.msra.mxu0 %v461
    %1486 = vmatprep.subr.mxu0 %v471
    %1487 = vmatpush1.msra.mxu0 %v470
    %1488 = vmatprep.subr.mxu0 %v480
    %1489 = vmatpush1.msra.mxu0 %v479
    %1490 = vmatprep.subr.mxu0 %v489
    %1491 = vmatpush1.msra.mxu0 %v488
    %1492 = vmatprep.subr.mxu0 %v498
    %1493 = vmatpush1.msra.mxu0 %v497
    %1494 = vmatprep.subr.mxu0 %v507
    %1495 = vmatpush1.msra.mxu0 %v506
    %1496 = vmatprep.subr.mxu0 %v516
    %1497 = vmatpush1.msra.mxu0 %v515
    %1498 = vmatprep.subr.mxu0 %v525
    %1499 = vmatpush1.msra.mxu0 %v524
    %1500 = vmatprep.subr.mxu0 %v534
    %1501 = vmatpush1.msra.mxu0 %v533
    %1502 = vmatprep.mubr.f32.mxu0 %v243
    %1503 = vmatmul.mubr.f32.gmra.mrb[0].mxu0 %v242
    %v1504 = vpop.f32.mrb[0].mxu0
    %v1505 = vadd.f32 %v958, %v1504
    %v1506 = vpop.f32.mrb[0].mxu0
    %v1507 = vadd.f32 %v962, %v1506
    %1508 = vmatprep.mubr.f32.mxu0 %v246
    %1509 = vmatmul.mubr.f32.gmra.mrb[0].mxu0 %v245
    %v1510 = vpop.f32.mrb[0].mxu0
    %v1511 = vadd.f32 %v958, %v1510
    %v1512 = vpop.f32.mrb[0].mxu0
    %v1513 = vadd.f32 %v962, %v1512
    %1514 = vdwg.mxu0
    %1515 = vmatprep.subr.mxu0 %v543
    %1516 = vmatpush1.msra.mxu0 %v542
    %1517 = vmatprep.subr.mxu0 %v552
    %1518 = vmatpush1.msra.mxu0 %v551
    %1519 = vmatprep.subr.mxu0 %v561
    %1520 = vmatpush1.msra.mxu0 %v560
    %1521 = vmatprep.subr.mxu0 %v570
    %1522 = vmatpush1.msra.mxu0 %v569
    %1523 = vmatprep.subr.mxu0 %v579
    %1524 = vmatpush1.msra.mxu0 %v578
    %1525 = vmatprep.subr.mxu0 %v588
    %1526 = vmatpush1.msra.mxu0 %v587
    %1527 = vmatprep.subr.mxu0 %v597
    %1528 = vmatpush1.msra.mxu0 %v596
    %1529 = vmatprep.subr.mxu0 %v606
    %1530 = vmatpush1.msra.mxu0 %v605
    %1531 = vmatprep.subr.mxu0 %v615
    %1532 = vmatpush1.msra.mxu0 %v614
    %1533 = vmatprep.subr.mxu0 %v624
    %1534 = vmatpush1.msra.mxu0 %v623
    %1535 = vmatprep.subr.mxu0 %v633
    %1536 = vmatpush1.msra.mxu0 %v632
    %1537 = vmatprep.subr.mxu0 %v642
    %1538 = vmatpush1.msra.mxu0 %v641
    %1539 = vmatprep.subr.mxu0 %v651
    %1540 = vmatpush1.msra.mxu0 %v650
    %1541 = vmatprep.subr.mxu0 %v660
    %1542 = vmatpush1.msra.mxu0 %v659
    %1543 = vmatprep.subr.mxu0 %v669
    %1544 = vmatpush1.msra.mxu0 %v668
    %1545 = vmatprep.subr.mxu0 %v678
    %1546 = vmatpush1.msra.mxu0 %v677
    %1547 = vmatprep.subr.mxu0 0.0
    %1548 = vmatpush1.msra.mxu0 0.0
    %1549 = vmatprep.subr.mxu0 0.0
    %1550 = vmatpush1.msra.mxu0 0.0
    %1551 = vmatprep.subr.mxu0 0.0
    %1552 = vmatpush1.msra.mxu0 0.0
    %1553 = vmatprep.subr.mxu0 0.0
    %1554 = vmatpush1.msra.mxu0 0.0
    %1555 = vmatprep.subr.mxu0 0.0
    %1556 = vmatpush1.msra.mxu0 0.0
    %1557 = vmatprep.subr.mxu0 0.0
    %1558 = vmatpush1.msra.mxu0 0.0
    %1559 = vmatprep.subr.mxu0 0.0
    %1560 = vmatpush1.msra.mxu0 0.0
    %1561 = vmatprep.subr.mxu0 0.0
    %1562 = vmatpush1.msra.mxu0 0.0
    %1563 = vmatprep.subr.mxu0 0.0
    %1564 = vmatpush1.msra.mxu0 0.0
    %1565 = vmatprep.subr.mxu0 0.0
    %1566 = vmatpush1.msra.mxu0 0.0
    %1567 = vmatprep.subr.mxu0 0.0
    %1568 = vmatpush1.msra.mxu0 0.0
    %1569 = vmatprep.subr.mxu0 0.0
    %1570 = vmatpush1.msra.mxu0 0.0
    %1571 = vmatprep.subr.mxu0 0.0
    %1572 = vmatpush1.msra.mxu0 0.0
    %1573 = vmatprep.subr.mxu0 0.0
    %1574 = vmatpush1.msra.mxu0 0.0
    %1575 = vmatprep.subr.mxu0 0.0
    %1576 = vmatpush1.msra.mxu0 0.0
    %1577 = vmatprep.subr.mxu0 0.0
    %1578 = vmatpush1.msra.mxu0 0.0
    %1579 = vmatprep.mubr.f32.mxu0 0.0
    %1580 = vmatmul.mubr.f32.gmra.mrb[0].mxu0 %v244
    %v1581 = vpop.f32.mrb[0].mxu0
    %v1582 = vadd.f32 %v1505, %v1581
    %v1583 = vpop.f32.mrb[0].mxu0
    %v1584 = vadd.f32 %v1507, %v1583
    %1585 = vmatprep.mubr.f32.mxu0 0.0
    %1586 = vmatmul.mubr.f32.gmra.mrb[0].mxu0 %v247
    %v1587 = vpop.f32.mrb[0].mxu0
    %v1588 = vadd.f32 %v1511, %v1587
    %v1589 = vpop.f32.mrb[0].mxu0
    %v1590 = vadd.f32 %v1513, %v1589
    %1591 = vdwg.mxu0
    %1592 = vmatprep.subr.mxu0 0.0
    %1593 = vmatpush1.msra.mxu0 %v256
    %1594 = vmatprep.subr.mxu0 0.0
    %1595 = vmatpush1.msra.mxu0 %v265
    %1596 = vmatprep.subr.mxu0 0.0
    %1597 = vmatpush1.msra.mxu0 %v274
    %1598 = vmatprep.subr.mxu0 0.0
    %1599 = vmatpush1.msra.mxu0 %v283
    %1600 = vmatprep.subr.mxu0 0.0
    %1601 = vmatpush1.msra.mxu0 %v292
    %1602 = vmatprep.subr.mxu0 0.0
    %1603 = vmatpush1.msra.mxu0 %v301
    %1604 = vmatprep.subr.mxu0 0.0
    %1605 = vmatpush1.msra.mxu0 %v310
    %1606 = vmatprep.subr.mxu0 0.0
    %1607 = vmatpush1.msra.mxu0 %v319
    %1608 = vmatprep.subr.mxu0 0.0
    %1609 = vmatpush1.msra.mxu0 %v328
    %1610 = vmatprep.subr.mxu0 0.0
    %1611 = vmatpush1.msra.mxu0 %v337
    %1612 = vmatprep.subr.mxu0 0.0
    %1613 = vmatpush1.msra.mxu0 %v346
    %1614 = vmatprep.subr.mxu0 0.0
    %1615 = vmatpush1.msra.mxu0 %v355
    %1616 = vmatprep.subr.mxu0 0.0
    %1617 = vmatpush1.msra.mxu0 %v364
    %1618 = vmatprep.subr.mxu0 0.0
    %1619 = vmatpush1.msra.mxu0 %v373
    %1620 = vmatprep.subr.mxu0 0.0
    %1621 = vmatpush1.msra.mxu0 %v382
    %1622 = vmatprep.subr.mxu0 0.0
    %1623 = vmatpush1.msra.mxu0 %v391
    %1624 = vmatprep.subr.mxu0 0.0
    %1625 = vmatpush1.msra.mxu0 %v400
    %1626 = vmatprep.subr.mxu0 0.0
    %1627 = vmatpush1.msra.mxu0 %v409
    %1628 = vmatprep.subr.mxu0 0.0
    %1629 = vmatpush1.msra.mxu0 %v418
    %1630 = vmatprep.subr.mxu0 0.0
    %1631 = vmatpush1.msra.mxu0 %v427
    %1632 = vmatprep.subr.mxu0 0.0
    %1633 = vmatpush1.msra.mxu0 %v436
    %1634 = vmatprep.subr.mxu0 0.0
    %1635 = vmatpush1.msra.mxu0 %v445
    %1636 = vmatprep.subr.mxu0 0.0
    %1637 = vmatpush1.msra.mxu0 %v454
    %1638 = vmatprep.subr.mxu0 0.0
    %1639 = vmatpush1.msra.mxu0 %v463
    %1640 = vmatprep.subr.mxu0 0.0
    %1641 = vmatpush1.msra.mxu0 %v472
    %1642 = vmatprep.subr.mxu0 0.0
    %1643 = vmatpush1.msra.mxu0 %v481
    %1644 = vmatprep.subr.mxu0 0.0
    %1645 = vmatpush1.msra.mxu0 %v490
    %1646 = vmatprep.subr.mxu0 0.0
    %1647 = vmatpush1.msra.mxu0 %v499
    %1648 = vmatprep.subr.mxu0 0.0
    %1649 = vmatpush1.msra.mxu0 %v508
    %1650 = vmatprep.subr.mxu0 0.0
    %1651 = vmatpush1.msra.mxu0 %v517
    %1652 = vmatprep.subr.mxu0 0.0
    %1653 = vmatpush1.msra.mxu0 %v526
    %1654 = vmatprep.subr.mxu0 0.0
    %1655 = vmatpush1.msra.mxu0 %v535
    %1656 = vmatprep.mubr.f32.mxu0 %v243
    %1657 = vmatmul.mubr.f32.gmra.mrb[0].mxu0 %v242
    %v1658 = vpop.f32.mrb[0].mxu0
    %v1659 = vadd.f32 %v966, %v1658
    %v1660 = vpop.f32.mrb[0].mxu0
    %1661 = vmatprep.mubr.f32.mxu0 %v246
    %1662 = vmatmul.mubr.f32.gmra.mrb[0].mxu0 %v245
    %v1663 = vpop.f32.mrb[0].mxu0
    %v1664 = vadd.f32 %v966, %v1663
    %v1665 = vpop.f32.mrb[0].mxu0
    %1666 = vdwg.mxu0
    %1667 = vmatprep.subr.mxu0 0.0
    %1668 = vmatpush1.msra.mxu0 %v544
    %1669 = vmatprep.subr.mxu0 0.0
    %1670 = vmatpush1.msra.mxu0 %v553
    %1671 = vmatprep.subr.mxu0 0.0
    %1672 = vmatpush1.msra.mxu0 %v562
    %1673 = vmatprep.subr.mxu0 0.0
    %1674 = vmatpush1.msra.mxu0 %v571
    %1675 = vmatprep.subr.mxu0 0.0
    %1676 = vmatpush1.msra.mxu0 %v580
    %1677 = vmatprep.subr.mxu0 0.0
    %1678 = vmatpush1.msra.mxu0 %v589
    %1679 = vmatprep.subr.mxu0 0.0
    %1680 = vmatpush1.msra.mxu0 %v598
    %1681 = vmatprep.subr.mxu0 0.0
    %1682 = vmatpush1.msra.mxu0 %v607
    %1683 = vmatprep.subr.mxu0 0.0
    %1684 = vmatpush1.msra.mxu0 %v616
    %1685 = vmatprep.subr.mxu0 0.0
    %1686 = vmatpush1.msra.mxu0 %v625
    %1687 = vmatprep.subr.mxu0 0.0
    %1688 = vmatpush1.msra.mxu0 %v634
    %1689 = vmatprep.subr.mxu0 0.0
    %1690 = vmatpush1.msra.mxu0 %v643
    %1691 = vmatprep.subr.mxu0 0.0
    %1692 = vmatpush1.msra.mxu0 %v652
    %1693 = vmatprep.subr.mxu0 0.0
    %1694 = vmatpush1.msra.mxu0 %v661
    %1695 = vmatprep.subr.mxu0 0.0
    %1696 = vmatpush1.msra.mxu0 %v670
    %1697 = vmatprep.subr.mxu0 0.0
    %1698 = vmatpush1.msra.mxu0 %v679
    %1699 = vmatprep.subr.mxu0 0.0
    %1700 = vmatpush1.msra.mxu0 0.0
    %1701 = vmatprep.subr.mxu0 0.0
    %1702 = vmatpush1.msra.mxu0 0.0
    %1703 = vmatprep.subr.mxu0 0.0
    %1704 = vmatpush1.msra.mxu0 0.0
    %1705 = vmatprep.subr.mxu0 0.0
    %1706 = vmatpush1.msra.mxu0 0.0
    %1707 = vmatprep.subr.mxu0 0.0
    %1708 = vmatpush1.msra.mxu0 0.0
    %1709 = vmatprep.subr.mxu0 0.0
    %1710 = vmatpush1.msra.mxu0 0.0
    %1711 = vmatprep.subr.mxu0 0.0
    %1712 = vmatpush1.msra.mxu0 0.0
    %1713 = vmatprep.subr.mxu0 0.0
    %1714 = vmatpush1.msra.mxu0 0.0
    %1715 = vmatprep.subr.mxu0 0.0
    %1716 = vmatpush1.msra.mxu0 0.0
    %1717 = vmatprep.subr.mxu0 0.0
    %1718 = vmatpush1.msra.mxu0 0.0
    %1719 = vmatprep.subr.mxu0 0.0
    %1720 = vmatpush1.msra.mxu0 0.0
    %1721 = vmatprep.subr.mxu0 0.0
    %1722 = vmatpush1.msra.mxu0 0.0
    %1723 = vmatprep.subr.mxu0 0.0
    %1724 = vmatpush1.msra.mxu0 0.0
    %1725 = vmatprep.subr.mxu0 0.0
    %1726 = vmatpush1.msra.mxu0 0.0
    %1727 = vmatprep.subr.mxu0 0.0
    %1728 = vmatpush1.msra.mxu0 0.0
    %1729 = vmatprep.subr.mxu0 0.0
    %1730 = vmatpush1.msra.mxu0 0.0
    %1731 = vmatprep.mubr.f32.mxu0 0.0
    %1732 = vmatmul.mubr.f32.gmra.mrb[0].mxu0 %v244
    %v1733 = vpop.f32.mrb[0].mxu0
    %v1734 = vadd.f32 %v1659, %v1733
    %v1735 = vpop.f32.mrb[0].mxu0
    %1736 = vmatprep.mubr.f32.mxu0 0.0
    %1737 = vmatmul.mubr.f32.gmra.mrb[0].mxu0 %v247
    %v1738 = vpop.f32.mrb[0].mxu0
    %v1739 = vadd.f32 %v1664, %v1738
    %v1740 = vpop.f32.mrb[0].mxu0
    %1741 = vdwg.mxu0
    %1742 = vmatprep.subr.mxu0 0.0
    %1743 = vmatpush1.xpose.msra.mxu0 %v1276
    %1744 = vmatprep.subr.mxu0 0.0
    %1745 = vmatpush1.xpose.msra.mxu0 0.0
    %1746 = vmatprep.subr.mxu0 0.0
    %1747 = vmatpush1.xpose.msra.mxu0 0.0
    %1748 = vmatprep.subr.mxu0 0.0
    %1749 = vmatpush1.xpose.msra.mxu0 0.0
    %1750 = vmatprep.subr.mxu0 0.0
    %1751 = vmatpush1.xpose.msra.mxu0 0.0
    %1752 = vmatprep.subr.mxu0 0.0
    %1753 = vmatpush1.xpose.msra.mxu0 0.0
    %1754 = vmatprep.subr.mxu0 0.0
    %1755 = vmatpush1.xpose.msra.mxu0 0.0
    %1756 = vmatprep.subr.mxu0 0.0
    %1757 = vmatpush1.xpose.msra.mxu0 0.0
    %1758 = vmatprep.subr.mxu0 0.0
    %1759 = vmatpush1.xpose.msra.mxu0 0.0
    %1760 = vmatprep.subr.mxu0 0.0
    %1761 = vmatpush1.xpose.msra.mxu0 0.0
    %1762 = vmatprep.subr.mxu0 0.0
    %1763 = vmatpush1.xpose.msra.mxu0 0.0
    %1764 = vmatprep.subr.mxu0 0.0
    %1765 = vmatpush1.xpose.msra.mxu0 0.0
    %1766 = vmatprep.subr.mxu0 0.0
    %1767 = vmatpush1.xpose.msra.mxu0 0.0
    %1768 = vmatprep.subr.mxu0 0.0
    %1769 = vmatpush1.xpose.msra.mxu0 0.0
    %1770 = vmatprep.subr.mxu0 0.0
    %1771 = vmatpush1.xpose.msra.mxu0 0.0
    %1772 = vmatprep.subr.mxu0 0.0
    %1773 = vmatpush1.xpose.msra.mxu0 0.0
    %1774 = vmatprep.subr.mxu0 0.0
    %1775 = vmatpush1.xpose.msra.mxu0 0.0
    %1776 = vmatprep.subr.mxu0 0.0
    %1777 = vmatpush1.xpose.msra.mxu0 0.0
    %1778 = vmatprep.subr.mxu0 0.0
    %1779 = vmatpush1.xpose.msra.mxu0 0.0
    %1780 = vmatprep.subr.mxu0 0.0
    %1781 = vmatpush1.xpose.msra.mxu0 0.0
    %1782 = vmatprep.subr.mxu0 0.0
    %1783 = vmatpush1.xpose.msra.mxu0 0.0
    %1784 = vmatprep.subr.mxu0 0.0
    %1785 = vmatpush1.xpose.msra.mxu0 0.0
    %1786 = vmatprep.subr.mxu0 0.0
    %1787 = vmatpush1.xpose.msra.mxu0 0.0
    %1788 = vmatprep.subr.mxu0 0.0
    %1789 = vmatpush1.xpose.msra.mxu0 0.0
    %1790 = vmatprep.subr.mxu0 0.0
    %1791 = vmatpush1.xpose.msra.mxu0 0.0
    %1792 = vmatprep.subr.mxu0 0.0
    %1793 = vmatpush1.xpose.msra.mxu0 0.0
    %1794 = vmatprep.subr.mxu0 0.0
    %1795 = vmatpush1.xpose.msra.mxu0 0.0
    %1796 = vmatprep.subr.mxu0 0.0
    %1797 = vmatpush1.xpose.msra.mxu0 0.0
    %1798 = vmatprep.subr.mxu0 0.0
    %1799 = vmatpush1.xpose.msra.mxu0 0.0
    %1800 = vmatprep.subr.mxu0 0.0
    %1801 = vmatpush1.xpose.msra.mxu0 0.0
    %1802 = vmatprep.subr.mxu0 0.0
    %1803 = vmatpush1.xpose.msra.mxu0 0.0
    %1804 = vmatprep.subr.mxu0 0.0
    %1805 = vmatpush1.xpose.msra.mxu0 0.0
    %1806 = vmatprep.mubr.f32.mxu0 0.0
    %1807 = vmatmul.mubr.f32.gmra.mrb[0].mxu0 %v1120
    %v1808 = vpop.f32.mrb[0].mxu0
    %v1809 = vadd.f32 0.0, %v1808
    %v1810 = vpop.f32.mrb[0].mxu0
    %1811 = vdwg.mxu0
    %v1812 = vmul.f32 %v1809, 0.088388346
    %v1813 = vadd.f32 %v1812, %v241
    %vm1814 = vcmask 64512
    %v1815 = vsel %vm1814, %v1813, -inf
    %1816 = vmax.xlane.f32.xlu0 %v1815
    %v1817 = vpop.xlane.xlu0 %1816
    %v1818 = vsub.f32 %v1813, %v1817
    %v1819 = vmul.f32 %v1818, 1.442695
    %v1820 = vpow.pop %v1819
    %v1821 = vsel %vm1814, %v1820, 0.0
    %1822 = vadd.xlane.f32.xlu0 %v1821
    %v1823 = vpop.xlane.xlu0 %1822
    %v1824 = vrcp.pop %v1823
    %v1825 = vmul.f32 %v1820, %v1824
    %v1827 = vsel %vm1814, %v1825, 0
    %1829 = vmatprep.subr.mxu0 0.0
    %1830 = vmatpush1.msra.mxu0 %v1582
    %1831 = vmatprep.subr.mxu0 0.0
    %1832 = vmatpush1.msra.mxu0 0.0
    %1833 = vmatprep.subr.mxu0 0.0
    %1834 = vmatpush1.msra.mxu0 0.0
    %1835 = vmatprep.subr.mxu0 0.0
    %1836 = vmatpush1.msra.mxu0 0.0
    %1837 = vmatprep.subr.mxu0 0.0
    %1838 = vmatpush1.msra.mxu0 0.0
    %1839 = vmatprep.subr.mxu0 0.0
    %1840 = vmatpush1.msra.mxu0 0.0
    %1841 = vmatprep.subr.mxu0 0.0
    %1842 = vmatpush1.msra.mxu0 0.0
    %1843 = vmatprep.subr.mxu0 0.0
    %1844 = vmatpush1.msra.mxu0 0.0
    %1845 = vmatprep.subr.mxu0 0.0
    %1846 = vmatpush1.msra.mxu0 0.0
    %1847 = vmatprep.subr.mxu0 0.0
    %1848 = vmatpush1.msra.mxu0 0.0
    %1849 = vmatprep.subr.mxu0 0.0
    %1850 = vmatpush1.msra.mxu0 0.0
    %1851 = vmatprep.subr.mxu0 0.0
    %1852 = vmatpush1.msra.mxu0 0.0
    %1853 = vmatprep.subr.mxu0 0.0
    %1854 = vmatpush1.msra.mxu0 0.0
    %1855 = vmatprep.subr.mxu0 0.0
    %1856 = vmatpush1.msra.mxu0 0.0
    %1857 = vmatprep.subr.mxu0 0.0
    %1858 = vmatpush1.msra.mxu0 0.0
    %1859 = vmatprep.subr.mxu0 0.0
    %1860 = vmatpush1.msra.mxu0 0.0
    %1861 = vmatprep.subr.mxu0 0.0
    %1862 = vmatpush1.msra.mxu0 0.0
    %1863 = vmatprep.subr.mxu0 0.0
    %1864 = vmatpush1.msra.mxu0 0.0
    %1865 = vmatprep.subr.mxu0 0.0
    %1866 = vmatpush1.msra.mxu0 0.0
    %1867 = vmatprep.subr.mxu0 0.0
    %1868 = vmatpush1.msra.mxu0 0.0
    %1869 = vmatprep.subr.mxu0 0.0
    %1870 = vmatpush1.msra.mxu0 0.0
    %1871 = vmatprep.subr.mxu0 0.0
    %1872 = vmatpush1.msra.mxu0 0.0
    %1873 = vmatprep.subr.mxu0 0.0
    %1874 = vmatpush1.msra.mxu0 0.0
    %1875 = vmatprep.subr.mxu0 0.0
    %1876 = vmatpush1.msra.mxu0 0.0
    %1877 = vmatprep.subr.mxu0 0.0
    %1878 = vmatpush1.msra.mxu0 0.0
    %1879 = vmatprep.subr.mxu0 0.0
    %1880 = vmatpush1.msra.mxu0 0.0
    %1881 = vmatprep.subr.mxu0 0.0
    %1882 = vmatpush1.msra.mxu0 0.0
    %1883 = vmatprep.subr.mxu0 0.0
    %1884 = vmatpush1.msra.mxu0 0.0
    %1885 = vmatprep.subr.mxu0 0.0
    %1886 = vmatpush1.msra.mxu0 0.0
    %1887 = vmatprep.subr.mxu0 0.0
    %1888 = vmatpush1.msra.mxu0 0.0
    %1889 = vmatprep.subr.mxu0 0.0
    %1890 = vmatpush1.msra.mxu0 0.0
    %1891 = vmatprep.subr.mxu0 0.0
    %1892 = vmatpush1.msra.mxu0 0.0
    %1893 = vmatprep.mubr.f32.mxu0 0.0
    %1894 = vmatmul.mubr.f32.gmra.mrb[0].mxu0 %v1827
    %v1895 = vpop.f32.mrb[0].mxu0
    %v1896 = vadd.f32 0.0, %v1895
    %v1897 = vpop.f32.mrb[0].mxu0
    %1898 = vdwg.mxu0
    %1899 = vmatprep.subr.mxu0 0.0
    %1900 = vmatpush1.xpose.msra.mxu0 %v1428
    %1901 = vmatprep.subr.mxu0 0.0
    %1902 = vmatpush1.xpose.msra.mxu0 0.0
    %1903 = vmatprep.subr.mxu0 0.0
    %1904 = vmatpush1.xpose.msra.mxu0 0.0
    %1905 = vmatprep.subr.mxu0 0.0
    %1906 = vmatpush1.xpose.msra.mxu0 0.0
    %1907 = vmatprep.subr.mxu0 0.0
    %1908 = vmatpush1.xpose.msra.mxu0 0.0
    %1909 = vmatprep.subr.mxu0 0.0
    %1910 = vmatpush1.xpose.msra.mxu0 0.0
    %1911 = vmatprep.subr.mxu0 0.0
    %1912 = vmatpush1.xpose.msra.mxu0 0.0
    %1913 = vmatprep.subr.mxu0 0.0
    %1914 = vmatpush1.xpose.msra.mxu0 0.0
    %1915 = vmatprep.subr.mxu0 0.0
    %1916 = vmatpush1.xpose.msra.mxu0 0.0
    %1917 = vmatprep.subr.mxu0 0.0
    %1918 = vmatpush1.xpose.msra.mxu0 0.0
    %1919 = vmatprep.subr.mxu0 0.0
    %1920 = vmatpush1.xpose.msra.mxu0 0.0
    %1921 = vmatprep.subr.mxu0 0.0
    %1922 = vmatpush1.xpose.msra.mxu0 0.0
    %1923 = vmatprep.subr.mxu0 0.0
    %1924 = vmatpush1.xpose.msra.mxu0 0.0
    %1925 = vmatprep.subr.mxu0 0.0
    %1926 = vmatpush1.xpose.msra.mxu0 0.0
    %1927 = vmatprep.subr.mxu0 0.0
    %1928 = vmatpush1.xpose.msra.mxu0 0.0
    %1929 = vmatprep.subr.mxu0 0.0
    %1930 = vmatpush1.xpose.msra.mxu0 0.0
    %1931 = vmatprep.subr.mxu0 0.0
    %1932 = vmatpush1.xpose.msra.mxu0 0.0
    %1933 = vmatprep.subr.mxu0 0.0
    %1934 = vmatpush1.xpose.msra.mxu0 0.0
    %1935 = vmatprep.subr.mxu0 0.0
    %1936 = vmatpush1.xpose.msra.mxu0 0.0
    %1937 = vmatprep.subr.mxu0 0.0
    %1938 = vmatpush1.xpose.msra.mxu0 0.0
    %1939 = vmatprep.subr.mxu0 0.0
    %1940 = vmatpush1.xpose.msra.mxu0 0.0
    %1941 = vmatprep.subr.mxu0 0.0
    %1942 = vmatpush1.xpose.msra.mxu0 0.0
    %1943 = vmatprep.subr.mxu0 0.0
    %1944 = vmatpush1.xpose.msra.mxu0 0.0
    %1945 = vmatprep.subr.mxu0 0.0
    %1946 = vmatpush1.xpose.msra.mxu0 0.0
    %1947 = vmatprep.subr.mxu0 0.0
    %1948 = vmatpush1.xpose.msra.mxu0 0.0
    %1949 = vmatprep.subr.mxu0 0.0
    %1950 = vmatpush1.xpose.msra.mxu0 0.0
    %1951 = vmatprep.subr.mxu0 0.0
    %1952 = vmatpush1.xpose.msra.mxu0 0.0
    %1953 = vmatprep.subr.mxu0 0.0
    %1954 = vmatpush1.xpose.msra.mxu0 0.0
    %1955 = vmatprep.subr.mxu0 0.0
    %1956 = vmatpush1.xpose.msra.mxu0 0.0
    %1957 = vmatprep.subr.mxu0 0.0
    %1958 = vmatpush1.xpose.msra.mxu0 0.0
    %1959 = vmatprep.subr.mxu0 0.0
    %1960 = vmatpush1.xpose.msra.mxu0 0.0
    %1961 = vmatprep.subr.mxu0 0.0
    %1962 = vmatpush1.xpose.msra.mxu0 0.0
    %1963 = vmatprep.mubr.f32.mxu0 0.0
    %1964 = vmatmul.mubr.f32.gmra.mrb[0].mxu0 %v1122
    %v1965 = vpop.f32.mrb[0].mxu0
    %v1966 = vadd.f32 0.0, %v1965
    %v1967 = vpop.f32.mrb[0].mxu0
    %1968 = vdwg.mxu0
    %v1969 = vmul.f32 %v1966, 0.088388346
    %v1970 = vadd.f32 %v1969, %v241
    %v1971 = vsel %vm1814, %v1970, -inf
    %1972 = vmax.xlane.f32.xlu0 %v1971
    %v1973 = vpop.xlane.xlu0 %1972
    %v1974 = vsub.f32 %v1970, %v1973
    %v1975 = vmul.f32 %v1974, 1.442695
    %v1976 = vpow.pop %v1975
    %v1977 = vsel %vm1814, %v1976, 0.0
    %1978 = vadd.xlane.f32.xlu0 %v1977
    %v1979 = vpop.xlane.xlu0 %1978
    %v1980 = vrcp.pop %v1979
    %v1981 = vmul.f32 %v1976, %v1980
    %v1983 = vsel %vm1814, %v1981, 0
    %1985 = vmatprep.subr.mxu0 0.0
    %1986 = vmatpush1.msra.mxu0 %v1584
    %1987 = vmatprep.subr.mxu0 0.0
    %1988 = vmatpush1.msra.mxu0 0.0
    %1989 = vmatprep.subr.mxu0 0.0
    %1990 = vmatpush1.msra.mxu0 0.0
    %1991 = vmatprep.subr.mxu0 0.0
    %1992 = vmatpush1.msra.mxu0 0.0
    %1993 = vmatprep.subr.mxu0 0.0
    %1994 = vmatpush1.msra.mxu0 0.0
    %1995 = vmatprep.subr.mxu0 0.0
    %1996 = vmatpush1.msra.mxu0 0.0
    %1997 = vmatprep.subr.mxu0 0.0
    %1998 = vmatpush1.msra.mxu0 0.0
    %1999 = vmatprep.subr.mxu0 0.0
    %2000 = vmatpush1.msra.mxu0 0.0
    %2001 = vmatprep.subr.mxu0 0.0
    %2002 = vmatpush1.msra.mxu0 0.0
    %2003 = vmatprep.subr.mxu0 0.0
    %2004 = vmatpush1.msra.mxu0 0.0
    %2005 = vmatprep.subr.mxu0 0.0
    %2006 = vmatpush1.msra.mxu0 0.0
    %2007 = vmatprep.subr.mxu0 0.0
    %2008 = vmatpush1.msra.mxu0 0.0
    %2009 = vmatprep.subr.mxu0 0.0
    %2010 = vmatpush1.msra.mxu0 0.0
    %2011 = vmatprep.subr.mxu0 0.0
    %2012 = vmatpush1.msra.mxu0 0.0
    %2013 = vmatprep.subr.mxu0 0.0
    %2014 = vmatpush1.msra.mxu0 0.0
    %2015 = vmatprep.subr.mxu0 0.0
    %2016 = vmatpush1.msra.mxu0 0.0
    %2017 = vmatprep.subr.mxu0 0.0
    %2018 = vmatpush1.msra.mxu0 0.0
    %2019 = vmatprep.subr.mxu0 0.0
    %2020 = vmatpush1.msra.mxu0 0.0
    %2021 = vmatprep.subr.mxu0 0.0
    %2022 = vmatpush1.msra.mxu0 0.0
    %2023 = vmatprep.subr.mxu0 0.0
    %2024 = vmatpush1.msra.mxu0 0.0
    %2025 = vmatprep.subr.mxu0 0.0
    %2026 = vmatpush1.msra.mxu0 0.0
    %2027 = vmatprep.subr.mxu0 0.0
    %2028 = vmatpush1.msra.mxu0 0.0
    %2029 = vmatprep.subr.mxu0 0.0
    %2030 = vmatpush1.msra.mxu0 0.0
    %2031 = vmatprep.subr.mxu0 0.0
    %2032 = vmatpush1.msra.mxu0 0.0
    %2033 = vmatprep.subr.mxu0 0.0
    %2034 = vmatpush1.msra.mxu0 0.0
    %2035 = vmatprep.subr.mxu0 0.0
    %2036 = vmatpush1.msra.mxu0 0.0
    %2037 = vmatprep.subr.mxu0 0.0
    %2038 = vmatpush1.msra.mxu0 0.0
    %2039 = vmatprep.subr.mxu0 0.0
    %2040 = vmatpush1.msra.mxu0 0.0
    %2041 = vmatprep.subr.mxu0 0.0
    %2042 = vmatpush1.msra.mxu0 0.0
    %2043 = vmatprep.subr.mxu0 0.0
    %2044 = vmatpush1.msra.mxu0 0.0
    %2045 = vmatprep.subr.mxu0 0.0
    %2046 = vmatpush1.msra.mxu0 0.0
    %2047 = vmatprep.subr.mxu0 0.0
    %2048 = vmatpush1.msra.mxu0 0.0
    %2049 = vmatprep.mubr.f32.mxu0 0.0
    %2050 = vmatmul.mubr.f32.gmra.mrb[0].mxu0 %v1983
    %v2051 = vpop.f32.mrb[0].mxu0
    %v2052 = vadd.f32 0.0, %v2051
    %v2053 = vpop.f32.mrb[0].mxu0
    %2054 = vdwg.mxu0
    %2055 = vmatprep.subr.mxu0 %v731
    %2056 = vmatpush1.msra.mxu0 %v730
    %2057 = vmatprep.subr.mxu0 %v734
    %2058 = vmatpush1.msra.mxu0 %v733
    %2059 = vmatprep.subr.mxu0 %v737
    %2060 = vmatpush1.msra.mxu0 %v736
    %2061 = vmatprep.subr.mxu0 %v740
    %2062 = vmatpush1.msra.mxu0 %v739
    %2063 = vmatprep.subr.mxu0 %v743
    %2064 = vmatpush1.msra.mxu0 %v742
    %2065 = vmatprep.subr.mxu0 %v746
    %2066 = vmatpush1.msra.mxu0 %v745
    %2067 = vmatprep.subr.mxu0 %v749
    %2068 = vmatpush1.msra.mxu0 %v748
    %2069 = vmatprep.subr.mxu0 %v752
    %2070 = vmatpush1.msra.mxu0 %v751
    %2071 = vmatprep.subr.mxu0 %v755
    %2072 = vmatpush1.msra.mxu0 %v754
    %2073 = vmatprep.subr.mxu0 %v758
    %2074 = vmatpush1.msra.mxu0 %v757
    %2075 = vmatprep.subr.mxu0 %v761
    %2076 = vmatpush1.msra.mxu0 %v760
    %2077 = vmatprep.subr.mxu0 %v764
    %2078 = vmatpush1.msra.mxu0 %v763
    %2079 = vmatprep.subr.mxu0 %v767
    %2080 = vmatpush1.msra.mxu0 %v766
    %2081 = vmatprep.subr.mxu0 %v770
    %2082 = vmatpush1.msra.mxu0 %v769
    %2083 = vmatprep.subr.mxu0 %v773
    %2084 = vmatpush1.msra.mxu0 %v772
    %2085 = vmatprep.subr.mxu0 %v776
    %2086 = vmatpush1.msra.mxu0 %v775
    %2087 = vmatprep.subr.mxu0 0.0
    %2088 = vmatpush1.msra.mxu0 0.0
    %2089 = vmatprep.subr.mxu0 0.0
    %2090 = vmatpush1.msra.mxu0 0.0
    %2091 = vmatprep.subr.mxu0 0.0
    %2092 = vmatpush1.msra.mxu0 0.0
    %2093 = vmatprep.subr.mxu0 0.0
    %2094 = vmatpush1.msra.mxu0 0.0
    %2095 = vmatprep.subr.mxu0 0.0
    %2096 = vmatpush1.msra.mxu0 0.0
    %2097 = vmatprep.subr.mxu0 0.0
    %2098 = vmatpush1.msra.mxu0 0.0
    %2099 = vmatprep.subr.mxu0 0.0
    %2100 = vmatpush1.msra.mxu0 0.0
    %2101 = vmatprep.subr.mxu0 0.0
    %2102 = vmatpush1.msra.mxu0 0.0
    %2103 = vmatprep.subr.mxu0 0.0
    %2104 = vmatpush1.msra.mxu0 0.0
    %2105 = vmatprep.subr.mxu0 0.0
    %2106 = vmatpush1.msra.mxu0 0.0
    %2107 = vmatprep.subr.mxu0 0.0
    %2108 = vmatpush1.msra.mxu0 0.0
    %2109 = vmatprep.subr.mxu0 0.0
    %2110 = vmatpush1.msra.mxu0 0.0
    %2111 = vmatprep.subr.mxu0 0.0
    %2112 = vmatpush1.msra.mxu0 0.0
    %2113 = vmatprep.subr.mxu0 0.0
    %2114 = vmatpush1.msra.mxu0 0.0
    %2115 = vmatprep.subr.mxu0 0.0
    %2116 = vmatpush1.msra.mxu0 0.0
    %2117 = vmatprep.subr.mxu0 0.0
    %2118 = vmatpush1.msra.mxu0 0.0
    %2119 = vmatprep.mubr.f32.mxu0 0.0
    %2120 = vmatmul.mubr.f32.gmra.mrb[0].mxu0 %v2052
    %v2121 = vpop.f32.mrb[0].mxu0
    %v2122 = vadd.f32 0.0, %v2121
    %v2123 = vpop.f32.mrb[0].mxu0
    %v2124 = vadd.f32 0.0, %v2123
    %2125 = vdwg.mxu0
    %2126 = vmatprep.subr.mxu0 0.0
    %2127 = vmatpush1.msra.mxu0 %v732
    %2128 = vmatprep.subr.mxu0 0.0
    %2129 = vmatpush1.msra.mxu0 %v735
    %2130 = vmatprep.subr.mxu0 0.0
    %2131 = vmatpush1.msra.mxu0 %v738
    %2132 = vmatprep.subr.mxu0 0.0
    %2133 = vmatpush1.msra.mxu0 %v741
    %2134 = vmatprep.subr.mxu0 0.0
    %2135 = vmatpush1.msra.mxu0 %v744
    %2136 = vmatprep.subr.mxu0 0.0
    %2137 = vmatpush1.msra.mxu0 %v747
    %2138 = vmatprep.subr.mxu0 0.0
    %2139 = vmatpush1.msra.mxu0 %v750
    %2140 = vmatprep.subr.mxu0 0.0
    %2141 = vmatpush1.msra.mxu0 %v753
    %2142 = vmatprep.subr.mxu0 0.0
    %2143 = vmatpush1.msra.mxu0 %v756
    %2144 = vmatprep.subr.mxu0 0.0
    %2145 = vmatpush1.msra.mxu0 %v759
    %2146 = vmatprep.subr.mxu0 0.0
    %2147 = vmatpush1.msra.mxu0 %v762
    %2148 = vmatprep.subr.mxu0 0.0
    %2149 = vmatpush1.msra.mxu0 %v765
    %2150 = vmatprep.subr.mxu0 0.0
    %2151 = vmatpush1.msra.mxu0 %v768
    %2152 = vmatprep.subr.mxu0 0.0
    %2153 = vmatpush1.msra.mxu0 %v771
    %2154 = vmatprep.subr.mxu0 0.0
    %2155 = vmatpush1.msra.mxu0 %v774
    %2156 = vmatprep.subr.mxu0 0.0
    %2157 = vmatpush1.msra.mxu0 %v777
    %2158 = vmatprep.subr.mxu0 0.0
    %2159 = vmatpush1.msra.mxu0 0.0
    %2160 = vmatprep.subr.mxu0 0.0
    %2161 = vmatpush1.msra.mxu0 0.0
    %2162 = vmatprep.subr.mxu0 0.0
    %2163 = vmatpush1.msra.mxu0 0.0
    %2164 = vmatprep.subr.mxu0 0.0
    %2165 = vmatpush1.msra.mxu0 0.0
    %2166 = vmatprep.subr.mxu0 0.0
    %2167 = vmatpush1.msra.mxu0 0.0
    %2168 = vmatprep.subr.mxu0 0.0
    %2169 = vmatpush1.msra.mxu0 0.0
    %2170 = vmatprep.subr.mxu0 0.0
    %2171 = vmatpush1.msra.mxu0 0.0
    %2172 = vmatprep.subr.mxu0 0.0
    %2173 = vmatpush1.msra.mxu0 0.0
    %2174 = vmatprep.subr.mxu0 0.0
    %2175 = vmatpush1.msra.mxu0 0.0
    %2176 = vmatprep.subr.mxu0 0.0
    %2177 = vmatpush1.msra.mxu0 0.0
    %2178 = vmatprep.subr.mxu0 0.0
    %2179 = vmatpush1.msra.mxu0 0.0
    %2180 = vmatprep.subr.mxu0 0.0
    %2181 = vmatpush1.msra.mxu0 0.0
    %2182 = vmatprep.subr.mxu0 0.0
    %2183 = vmatpush1.msra.mxu0 0.0
    %2184 = vmatprep.subr.mxu0 0.0
    %2185 = vmatpush1.msra.mxu0 0.0
    %2186 = vmatprep.subr.mxu0 0.0
    %2187 = vmatpush1.msra.mxu0 0.0
    %2188 = vmatprep.subr.mxu0 0.0
    %2189 = vmatpush1.msra.mxu0 0.0
    %2190 = vmatprep.mubr.f32.mxu0 0.0
    %2191 = vmatmul.mubr.f32.gmra.mrb[0].mxu0 %v2052
    %v2192 = vpop.f32.mrb[0].mxu0
    %v2193 = vadd.f32 0.0, %v2192
    %v2194 = vpop.f32.mrb[0].mxu0
    %2195 = vdwg.mxu0
    %2196 = vmatprep.subr.mxu0 %v683
    %2197 = vmatpush1.msra.mxu0 %v682
    %2198 = vmatprep.subr.mxu0 %v686
    %2199 = vmatpush1.msra.mxu0 %v685
    %2200 = vmatprep.subr.mxu0 %v689
    %2201 = vmatpush1.msra.mxu0 %v688
    %2202 = vmatprep.subr.mxu0 %v692
    %2203 = vmatpush1.msra.mxu0 %v691
    %2204 = vmatprep.subr.mxu0 %v695
    %2205 = vmatpush1.msra.mxu0 %v694
    %2206 = vmatprep.subr.mxu0 %v698
    %2207 = vmatpush1.msra.mxu0 %v697
    %2208 = vmatprep.subr.mxu0 %v701
    %2209 = vmatpush1.msra.mxu0 %v700
    %2210 = vmatprep.subr.mxu0 %v704
    %2211 = vmatpush1.msra.mxu0 %v703
    %2212 = vmatprep.subr.mxu0 %v707
    %2213 = vmatpush1.msra.mxu0 %v706
    %2214 = vmatprep.subr.mxu0 %v710
    %2215 = vmatpush1.msra.mxu0 %v709
    %2216 = vmatprep.subr.mxu0 %v713
    %2217 = vmatpush1.msra.mxu0 %v712
    %2218 = vmatprep.subr.mxu0 %v716
    %2219 = vmatpush1.msra.mxu0 %v715
    %2220 = vmatprep.subr.mxu0 %v719
    %2221 = vmatpush1.msra.mxu0 %v718
    %2222 = vmatprep.subr.mxu0 %v722
    %2223 = vmatpush1.msra.mxu0 %v721
    %2224 = vmatprep.subr.mxu0 %v725
    %2225 = vmatpush1.msra.mxu0 %v724
    %2226 = vmatprep.subr.mxu0 %v728
    %2227 = vmatpush1.msra.mxu0 %v727
    %2228 = vmatprep.subr.mxu0 0.0
    %2229 = vmatpush1.msra.mxu0 0.0
    %2230 = vmatprep.subr.mxu0 0.0
    %2231 = vmatpush1.msra.mxu0 0.0
    %2232 = vmatprep.subr.mxu0 0.0
    %2233 = vmatpush1.msra.mxu0 0.0
    %2234 = vmatprep.subr.mxu0 0.0
    %2235 = vmatpush1.msra.mxu0 0.0
    %2236 = vmatprep.subr.mxu0 0.0
    %2237 = vmatpush1.msra.mxu0 0.0
    %2238 = vmatprep.subr.mxu0 0.0
    %2239 = vmatpush1.msra.mxu0 0.0
    %2240 = vmatprep.subr.mxu0 0.0
    %2241 = vmatpush1.msra.mxu0 0.0
    %2242 = vmatprep.subr.mxu0 0.0
    %2243 = vmatpush1.msra.mxu0 0.0
    %2244 = vmatprep.subr.mxu0 0.0
    %2245 = vmatpush1.msra.mxu0 0.0
    %2246 = vmatprep.subr.mxu0 0.0
    %2247 = vmatpush1.msra.mxu0 0.0
    %2248 = vmatprep.subr.mxu0 0.0
    %2249 = vmatpush1.msra.mxu0 0.0
    %2250 = vmatprep.subr.mxu0 0.0
    %2251 = vmatpush1.msra.mxu0 0.0
    %2252 = vmatprep.subr.mxu0 0.0
    %2253 = vmatpush1.msra.mxu0 0.0
    %2254 = vmatprep.subr.mxu0 0.0
    %2255 = vmatpush1.msra.mxu0 0.0
    %2256 = vmatprep.subr.mxu0 0.0
    %2257 = vmatpush1.msra.mxu0 0.0
    %2258 = vmatprep.subr.mxu0 0.0
    %2259 = vmatpush1.msra.mxu0 0.0
    %2260 = vmatprep.mubr.f32.mxu0 0.0
    %2261 = vmatmul.mubr.f32.gmra.mrb[0].mxu0 %v1896
    %v2262 = vpop.f32.mrb[0].mxu0
    %v2263 = vadd.f32 %v2122, %v2262
    %v2264 = vpop.f32.mrb[0].mxu0
    %v2265 = vadd.f32 %v2124, %v2264
    %2266 = vdwg.mxu0
    %2267 = vmatprep.subr.mxu0 0.0
    %2268 = vmatpush1.msra.mxu0 %v684
    %2269 = vmatprep.subr.mxu0 0.0
    %2270 = vmatpush1.msra.mxu0 %v687
    %2271 = vmatprep.subr.mxu0 0.0
    %2272 = vmatpush1.msra.mxu0 %v690
    %2273 = vmatprep.subr.mxu0 0.0
    %2274 = vmatpush1.msra.mxu0 %v693
    %2275 = vmatprep.subr.mxu0 0.0
    %2276 = vmatpush1.msra.mxu0 %v696
    %2277 = vmatprep.subr.mxu0 0.0
    %2278 = vmatpush1.msra.mxu0 %v699
    %2279 = vmatprep.subr.mxu0 0.0
    %2280 = vmatpush1.msra.mxu0 %v702
    %2281 = vmatprep.subr.mxu0 0.0
    %2282 = vmatpush1.msra.mxu0 %v705
    %2283 = vmatprep.subr.mxu0 0.0
    %2284 = vmatpush1.msra.mxu0 %v708
    %2285 = vmatprep.subr.mxu0 0.0
    %2286 = vmatpush1.msra.mxu0 %v711
    %2287 = vmatprep.subr.mxu0 0.0
    %2288 = vmatpush1.msra.mxu0 %v714
    %2289 = vmatprep.subr.mxu0 0.0
    %2290 = vmatpush1.msra.mxu0 %v717
    %2291 = vmatprep.subr.mxu0 0.0
    %2292 = vmatpush1.msra.mxu0 %v720
    %2293 = vmatprep.subr.mxu0 0.0
    %2294 = vmatpush1.msra.mxu0 %v723
    %2295 = vmatprep.subr.mxu0 0.0
    %2296 = vmatpush1.msra.mxu0 %v726
    %2297 = vmatprep.subr.mxu0 0.0
    %2298 = vmatpush1.msra.mxu0 %v729
    %2299 = vmatprep.subr.mxu0 0.0
    %2300 = vmatpush1.msra.mxu0 0.0
    %2301 = vmatprep.subr.mxu0 0.0
    %2302 = vmatpush1.msra.mxu0 0.0
    %2303 = vmatprep.subr.mxu0 0.0
    %2304 = vmatpush1.msra.mxu0 0.0
    %2305 = vmatprep.subr.mxu0 0.0
    %2306 = vmatpush1.msra.mxu0 0.0
    %2307 = vmatprep.subr.mxu0 0.0
    %2308 = vmatpush1.msra.mxu0 0.0
    %2309 = vmatprep.subr.mxu0 0.0
    %2310 = vmatpush1.msra.mxu0 0.0
    %2311 = vmatprep.subr.mxu0 0.0
    %2312 = vmatpush1.msra.mxu0 0.0
    %2313 = vmatprep.subr.mxu0 0.0
    %2314 = vmatpush1.msra.mxu0 0.0
    %2315 = vmatprep.subr.mxu0 0.0
    %2316 = vmatpush1.msra.mxu0 0.0
    %2317 = vmatprep.subr.mxu0 0.0
    %2318 = vmatpush1.msra.mxu0 0.0
    %2319 = vmatprep.subr.mxu0 0.0
    %2320 = vmatpush1.msra.mxu0 0.0
    %2321 = vmatprep.subr.mxu0 0.0
    %2322 = vmatpush1.msra.mxu0 0.0
    %2323 = vmatprep.subr.mxu0 0.0
    %2324 = vmatpush1.msra.mxu0 0.0
    %2325 = vmatprep.subr.mxu0 0.0
    %2326 = vmatpush1.msra.mxu0 0.0
    %2327 = vmatprep.subr.mxu0 0.0
    %2328 = vmatpush1.msra.mxu0 0.0
    %2329 = vmatprep.subr.mxu0 0.0
    %2330 = vmatpush1.msra.mxu0 0.0
    %2331 = vmatprep.mubr.f32.mxu0 0.0
    %2332 = vmatmul.mubr.f32.gmra.mrb[0].mxu0 %v1896
    %v2333 = vpop.f32.mrb[0].mxu0
    %v2334 = vadd.f32 %v2193, %v2333
    %v2335 = vpop.f32.mrb[0].mxu0
    %2336 = vdwg.mxu0
    %2337 = vmatprep.subr.mxu0 0.0
    %2338 = vmatpush1.xpose.msra.mxu0 %v1430
    %2339 = vmatprep.subr.mxu0 0.0
    %2340 = vmatpush1.xpose.msra.mxu0 0.0
    %2341 = vmatprep.subr.mxu0 0.0
    %2342 = vmatpush1.xpose.msra.mxu0 0.0
    %2343 = vmatprep.subr.mxu0 0.0
    %2344 = vmatpush1.xpose.msra.mxu0 0.0
    %2345 = vmatprep.subr.mxu0 0.0
    %2346 = vmatpush1.xpose.msra.mxu0 0.0
    %2347 = vmatprep.subr.mxu0 0.0
    %2348 = vmatpush1.xpose.msra.mxu0 0.0
    %2349 = vmatprep.subr.mxu0 0.0
    %2350 = vmatpush1.xpose.msra.mxu0 0.0
    %2351 = vmatprep.subr.mxu0 0.0
    %2352 = vmatpush1.xpose.msra.mxu0 0.0
    %2353 = vmatprep.subr.mxu0 0.0
    %2354 = vmatpush1.xpose.msra.mxu0 0.0
    %2355 = vmatprep.subr.mxu0 0.0
    %2356 = vmatpush1.xpose.msra.mxu0 0.0
    %2357 = vmatprep.subr.mxu0 0.0
    %2358 = vmatpush1.xpose.msra.mxu0 0.0
    %2359 = vmatprep.subr.mxu0 0.0
    %2360 = vmatpush1.xpose.msra.mxu0 0.0
    %2361 = vmatprep.subr.mxu0 0.0
    %2362 = vmatpush1.xpose.msra.mxu0 0.0
    %2363 = vmatprep.subr.mxu0 0.0
    %2364 = vmatpush1.xpose.msra.mxu0 0.0
    %2365 = vmatprep.subr.mxu0 0.0
    %2366 = vmatpush1.xpose.msra.mxu0 0.0
    %2367 = vmatprep.subr.mxu0 0.0
    %2368 = vmatpush1.xpose.msra.mxu0 0.0
    %2369 = vmatprep.subr.mxu0 0.0
    %2370 = vmatpush1.xpose.msra.mxu0 0.0
    %2371 = vmatprep.subr.mxu0 0.0
    %2372 = vmatpush1.xpose.msra.mxu0 0.0
    %2373 = vmatprep.subr.mxu0 0.0
    %2374 = vmatpush1.xpose.msra.mxu0 0.0
    %2375 = vmatprep.subr.mxu0 0.0
    %2376 = vmatpush1.xpose.msra.mxu0 0.0
    %2377 = vmatprep.subr.mxu0 0.0
    %2378 = vmatpush1.xpose.msra.mxu0 0.0
    %2379 = vmatprep.subr.mxu0 0.0
    %2380 = vmatpush1.xpose.msra.mxu0 0.0
    %2381 = vmatprep.subr.mxu0 0.0
    %2382 = vmatpush1.xpose.msra.mxu0 0.0
    %2383 = vmatprep.subr.mxu0 0.0
    %2384 = vmatpush1.xpose.msra.mxu0 0.0
    %2385 = vmatprep.subr.mxu0 0.0
    %2386 = vmatpush1.xpose.msra.mxu0 0.0
    %2387 = vmatprep.subr.mxu0 0.0
    %2388 = vmatpush1.xpose.msra.mxu0 0.0
    %2389 = vmatprep.subr.mxu0 0.0
    %2390 = vmatpush1.xpose.msra.mxu0 0.0
    %2391 = vmatprep.subr.mxu0 0.0
    %2392 = vmatpush1.xpose.msra.mxu0 0.0
    %2393 = vmatprep.subr.mxu0 0.0
    %2394 = vmatpush1.xpose.msra.mxu0 0.0
    %2395 = vmatprep.subr.mxu0 0.0
    %2396 = vmatpush1.xpose.msra.mxu0 0.0
    %2397 = vmatprep.subr.mxu0 0.0
    %2398 = vmatpush1.xpose.msra.mxu0 0.0
    %2399 = vmatprep.subr.mxu0 0.0
    %2400 = vmatpush1.xpose.msra.mxu0 0.0
    %2401 = vmatprep.mubr.f32.mxu0 0.0
    %2402 = vmatmul.mubr.f32.gmra.mrb[0].mxu0 %v1274
    %v2403 = vpop.f32.mrb[0].mxu0
    %v2404 = vadd.f32 0.0, %v2403
    %v2405 = vpop.f32.mrb[0].mxu0
    %2406 = vdwg.mxu0
    %v2407 = vmul.f32 %v2404, 0.088388346
    %v2408 = vadd.f32 %v2407, %v241
    %v2409 = vsel %vm1814, %v2408, -inf
    %2410 = vmax.xlane.f32.xlu0 %v2409
    %v2411 = vpop.xlane.xlu0 %2410
    %v2412 = vsub.f32 %v2408, %v2411
    %v2413 = vmul.f32 %v2412, 1.442695
    %v2414 = vpow.pop %v2413
    %v2415 = vsel %vm1814, %v2414, 0.0
    %2416 = vadd.xlane.f32.xlu0 %v2415
    %v2417 = vpop.xlane.xlu0 %2416
    %v2418 = vrcp.pop %v2417
    %v2419 = vmul.f32 %v2414, %v2418
    %v2421 = vsel %vm1814, %v2419, 0
    %2423 = vmatprep.subr.mxu0 0.0
    %2424 = vmatpush1.msra.mxu0 %v1734
    %2425 = vmatprep.subr.mxu0 0.0
    %2426 = vmatpush1.msra.mxu0 0.0
    %2427 = vmatprep.subr.mxu0 0.0
    %2428 = vmatpush1.msra.mxu0 0.0
    %2429 = vmatprep.subr.mxu0 0.0
    %2430 = vmatpush1.msra.mxu0 0.0
    %2431 = vmatprep.subr.mxu0 0.0
    %2432 = vmatpush1.msra.mxu0 0.0
    %2433 = vmatprep.subr.mxu0 0.0
    %2434 = vmatpush1.msra.mxu0 0.0
    %2435 = vmatprep.subr.mxu0 0.0
    %2436 = vmatpush1.msra.mxu0 0.0
    %2437 = vmatprep.subr.mxu0 0.0
    %2438 = vmatpush1.msra.mxu0 0.0
    %2439 = vmatprep.subr.mxu0 0.0
    %2440 = vmatpush1.msra.mxu0 0.0
    %2441 = vmatprep.subr.mxu0 0.0
    %2442 = vmatpush1.msra.mxu0 0.0
    %2443 = vmatprep.subr.mxu0 0.0
    %2444 = vmatpush1.msra.mxu0 0.0
    %2445 = vmatprep.subr.mxu0 0.0
    %2446 = vmatpush1.msra.mxu0 0.0
    %2447 = vmatprep.subr.mxu0 0.0
    %2448 = vmatpush1.msra.mxu0 0.0
    %2449 = vmatprep.subr.mxu0 0.0
    %2450 = vmatpush1.msra.mxu0 0.0
    %2451 = vmatprep.subr.mxu0 0.0
    %2452 = vmatpush1.msra.mxu0 0.0
    %2453 = vmatprep.subr.mxu0 0.0
    %2454 = vmatpush1.msra.mxu0 0.0
    %2455 = vmatprep.subr.mxu0 0.0
    %2456 = vmatpush1.msra.mxu0 0.0
    %2457 = vmatprep.subr.mxu0 0.0
    %2458 = vmatpush1.msra.mxu0 0.0
    %2459 = vmatprep.subr.mxu0 0.0
    %2460 = vmatpush1.msra.mxu0 0.0
    %2461 = vmatprep.subr.mxu0 0.0
    %2462 = vmatpush1.msra.mxu0 0.0
    %2463 = vmatprep.subr.mxu0 0.0
    %2464 = vmatpush1.msra.mxu0 0.0
    %2465 = vmatprep.subr.mxu0 0.0
    %2466 = vmatpush1.msra.mxu0 0.0
    %2467 = vmatprep.subr.mxu0 0.0
    %2468 = vmatpush1.msra.mxu0 0.0
    %2469 = vmatprep.subr.mxu0 0.0
    %2470 = vmatpush1.msra.mxu0 0.0
    %2471 = vmatprep.subr.mxu0 0.0
    %2472 = vmatpush1.msra.mxu0 0.0
    %2473 = vmatprep.subr.mxu0 0.0
    %2474 = vmatpush1.msra.mxu0 0.0
    %2475 = vmatprep.subr.mxu0 0.0
    %2476 = vmatpush1.msra.mxu0 0.0
    %2477 = vmatprep.subr.mxu0 0.0
    %2478 = vmatpush1.msra.mxu0 0.0
    %2479 = vmatprep.subr.mxu0 0.0
    %2480 = vmatpush1.msra.mxu0 0.0
    %2481 = vmatprep.subr.mxu0 0.0
    %2482 = vmatpush1.msra.mxu0 0.0
    %2483 = vmatprep.subr.mxu0 0.0
    %2484 = vmatpush1.msra.mxu0 0.0
    %2485 = vmatprep.subr.mxu0 0.0
    %2486 = vmatpush1.msra.mxu0 0.0
    %2487 = vmatprep.mubr.f32.mxu0 0.0
    %2488 = vmatmul.mubr.f32.gmra.mrb[0].mxu0 %v2421
    %v2489 = vpop.f32.mrb[0].mxu0
    %v2490 = vadd.f32 0.0, %v2489
    %v2491 = vpop.f32.mrb[0].mxu0
    %2492 = vdwg.mxu0
    %2493 = vmatprep.subr.mxu0 %v779
    %2494 = vmatpush1.msra.mxu0 %v778
    %2495 = vmatprep.subr.mxu0 %v782
    %2496 = vmatpush1.msra.mxu0 %v781
    %2497 = vmatprep.subr.mxu0 %v785
    %2498 = vmatpush1.msra.mxu0 %v784
    %2499 = vmatprep.subr.mxu0 %v788
    %2500 = vmatpush1.msra.mxu0 %v787
    %2501 = vmatprep.subr.mxu0 %v791
    %2502 = vmatpush1.msra.mxu0 %v790
    %2503 = vmatprep.subr.mxu0 %v794
    %2504 = vmatpush1.msra.mxu0 %v793
    %2505 = vmatprep.subr.mxu0 %v797
    %2506 = vmatpush1.msra.mxu0 %v796
    %2507 = vmatprep.subr.mxu0 %v800
    %2508 = vmatpush1.msra.mxu0 %v799
    %2509 = vmatprep.subr.mxu0 %v803
    %2510 = vmatpush1.msra.mxu0 %v802
    %2511 = vmatprep.subr.mxu0 %v806
    %2512 = vmatpush1.msra.mxu0 %v805
    %2513 = vmatprep.subr.mxu0 %v809
    %2514 = vmatpush1.msra.mxu0 %v808
    %2515 = vmatprep.subr.mxu0 %v812
    %2516 = vmatpush1.msra.mxu0 %v811
    %2517 = vmatprep.subr.mxu0 %v815
    %2518 = vmatpush1.msra.mxu0 %v814
    %2519 = vmatprep.subr.mxu0 %v818
    %2520 = vmatpush1.msra.mxu0 %v817
    %2521 = vmatprep.subr.mxu0 %v821
    %2522 = vmatpush1.msra.mxu0 %v820
    %2523 = vmatprep.subr.mxu0 %v824
    %2524 = vmatpush1.msra.mxu0 %v823
    %2525 = vmatprep.subr.mxu0 0.0
    %2526 = vmatpush1.msra.mxu0 0.0
    %2527 = vmatprep.subr.mxu0 0.0
    %2528 = vmatpush1.msra.mxu0 0.0
    %2529 = vmatprep.subr.mxu0 0.0
    %2530 = vmatpush1.msra.mxu0 0.0
    %2531 = vmatprep.subr.mxu0 0.0
    %2532 = vmatpush1.msra.mxu0 0.0
    %2533 = vmatprep.subr.mxu0 0.0
    %2534 = vmatpush1.msra.mxu0 0.0
    %2535 = vmatprep.subr.mxu0 0.0
    %2536 = vmatpush1.msra.mxu0 0.0
    %2537 = vmatprep.subr.mxu0 0.0
    %2538 = vmatpush1.msra.mxu0 0.0
    %2539 = vmatprep.subr.mxu0 0.0
    %2540 = vmatpush1.msra.mxu0 0.0
    %2541 = vmatprep.subr.mxu0 0.0
    %2542 = vmatpush1.msra.mxu0 0.0
    %2543 = vmatprep.subr.mxu0 0.0
    %2544 = vmatpush1.msra.mxu0 0.0
    %2545 = vmatprep.subr.mxu0 0.0
    %2546 = vmatpush1.msra.mxu0 0.0
    %2547 = vmatprep.subr.mxu0 0.0
    %2548 = vmatpush1.msra.mxu0 0.0
    %2549 = vmatprep.subr.mxu0 0.0
    %2550 = vmatpush1.msra.mxu0 0.0
    %2551 = vmatprep.subr.mxu0 0.0
    %2552 = vmatpush1.msra.mxu0 0.0
    %2553 = vmatprep.subr.mxu0 0.0
    %2554 = vmatpush1.msra.mxu0 0.0
    %2555 = vmatprep.subr.mxu0 0.0
    %2556 = vmatpush1.msra.mxu0 0.0
    %2557 = vmatprep.mubr.f32.mxu0 0.0
    %2558 = vmatmul.mubr.f32.gmra.mrb[0].mxu0 %v2490
    %v2559 = vpop.f32.mrb[0].mxu0
    %v2560 = vadd.f32 0.0, %v2559
    %v2561 = vpop.f32.mrb[0].mxu0
    %v2562 = vadd.f32 0.0, %v2561
    %2563 = vdwg.mxu0
    %2564 = vmatprep.subr.mxu0 0.0
    %2565 = vmatpush1.msra.mxu0 %v780
    %2566 = vmatprep.subr.mxu0 0.0
    %2567 = vmatpush1.msra.mxu0 %v783
    %2568 = vmatprep.subr.mxu0 0.0
    %2569 = vmatpush1.msra.mxu0 %v786
    %2570 = vmatprep.subr.mxu0 0.0
    %2571 = vmatpush1.msra.mxu0 %v789
    %2572 = vmatprep.subr.mxu0 0.0
    %2573 = vmatpush1.msra.mxu0 %v792
    %2574 = vmatprep.subr.mxu0 0.0
    %2575 = vmatpush1.msra.mxu0 %v795
    %2576 = vmatprep.subr.mxu0 0.0
    %2577 = vmatpush1.msra.mxu0 %v798
    %2578 = vmatprep.subr.mxu0 0.0
    %2579 = vmatpush1.msra.mxu0 %v801
    %2580 = vmatprep.subr.mxu0 0.0
    %2581 = vmatpush1.msra.mxu0 %v804
    %2582 = vmatprep.subr.mxu0 0.0
    %2583 = vmatpush1.msra.mxu0 %v807
    %2584 = vmatprep.subr.mxu0 0.0
    %2585 = vmatpush1.msra.mxu0 %v810
    %2586 = vmatprep.subr.mxu0 0.0
    %2587 = vmatpush1.msra.mxu0 %v813
    %2588 = vmatprep.subr.mxu0 0.0
    %2589 = vmatpush1.msra.mxu0 %v816
    %2590 = vmatprep.subr.mxu0 0.0
    %2591 = vmatpush1.msra.mxu0 %v819
    %2592 = vmatprep.subr.mxu0 0.0
    %2593 = vmatpush1.msra.mxu0 %v822
    %2594 = vmatprep.subr.mxu0 0.0
    %2595 = vmatpush1.msra.mxu0 %v825
    %2596 = vmatprep.subr.mxu0 0.0
    %2597 = vmatpush1.msra.mxu0 0.0
    %2598 = vmatprep.subr.mxu0 0.0
    %2599 = vmatpush1.msra.mxu0 0.0
    %2600 = vmatprep.subr.mxu0 0.0
    %2601 = vmatpush1.msra.mxu0 0.0
    %2602 = vmatprep.subr.mxu0 0.0
    %2603 = vmatpush1.msra.mxu0 0.0
    %2604 = vmatprep.subr.mxu0 0.0
    %2605 = vmatpush1.msra.mxu0 0.0
    %2606 = vmatprep.subr.mxu0 0.0
    %2607 = vmatpush1.msra.mxu0 0.0
    %2608 = vmatprep.subr.mxu0 0.0
    %2609 = vmatpush1.msra.mxu0 0.0
    %2610 = vmatprep.subr.mxu0 0.0
    %2611 = vmatpush1.msra.mxu0 0.0
    %2612 = vmatprep.subr.mxu0 0.0
    %2613 = vmatpush1.msra.mxu0 0.0
    %2614 = vmatprep.subr.mxu0 0.0
    %2615 = vmatpush1.msra.mxu0 0.0
    %2616 = vmatprep.subr.mxu0 0.0
    %2617 = vmatpush1.msra.mxu0 0.0
    %2618 = vmatprep.subr.mxu0 0.0
    %2619 = vmatpush1.msra.mxu0 0.0
    %2620 = vmatprep.subr.mxu0 0.0
    %2621 = vmatpush1.msra.mxu0 0.0
    %2622 = vmatprep.subr.mxu0 0.0
    %2623 = vmatpush1.msra.mxu0 0.0
    %2624 = vmatprep.subr.mxu0 0.0
    %2625 = vmatpush1.msra.mxu0 0.0
    %2626 = vmatprep.subr.mxu0 0.0
    %2627 = vmatpush1.msra.mxu0 0.0
    %2628 = vmatprep.mubr.f32.mxu0 0.0
    %2629 = vmatmul.mubr.f32.gmra.mrb[0].mxu0 %v2490
    %v2630 = vpop.f32.mrb[0].mxu0
    %v2631 = vadd.f32 0.0, %v2630
    %v2632 = vpop.f32.mrb[0].mxu0
    %2633 = vdwg.mxu0
    %v2634 = vadd.f32 %v2263, %v2560
    %v2635 = vadd.f32 %v2265, %v2562
    %v2636 = vadd.f32 %v2334, %v2631
    %2637 = vmatprep.subr.mxu0 0.0
    %2638 = vmatpush1.xpose.msra.mxu0 %v1282
    %2639 = vmatprep.subr.mxu0 0.0
    %2640 = vmatpush1.xpose.msra.mxu0 0.0
    %2641 = vmatprep.subr.mxu0 0.0
    %2642 = vmatpush1.xpose.msra.mxu0 0.0
    %2643 = vmatprep.subr.mxu0 0.0
    %2644 = vmatpush1.xpose.msra.mxu0 0.0
    %2645 = vmatprep.subr.mxu0 0.0
    %2646 = vmatpush1.xpose.msra.mxu0 0.0
    %2647 = vmatprep.subr.mxu0 0.0
    %2648 = vmatpush1.xpose.msra.mxu0 0.0
    %2649 = vmatprep.subr.mxu0 0.0
    %2650 = vmatpush1.xpose.msra.mxu0 0.0
    %2651 = vmatprep.subr.mxu0 0.0
    %2652 = vmatpush1.xpose.msra.mxu0 0.0
    %2653 = vmatprep.subr.mxu0 0.0
    %2654 = vmatpush1.xpose.msra.mxu0 0.0
    %2655 = vmatprep.subr.mxu0 0.0
    %2656 = vmatpush1.xpose.msra.mxu0 0.0
    %2657 = vmatprep.subr.mxu0 0.0
    %2658 = vmatpush1.xpose.msra.mxu0 0.0
    %2659 = vmatprep.subr.mxu0 0.0
    %2660 = vmatpush1.xpose.msra.mxu0 0.0
    %2661 = vmatprep.subr.mxu0 0.0
    %2662 = vmatpush1.xpose.msra.mxu0 0.0
    %2663 = vmatprep.subr.mxu0 0.0
    %2664 = vmatpush1.xpose.msra.mxu0 0.0
    %2665 = vmatprep.subr.mxu0 0.0
    %2666 = vmatpush1.xpose.msra.mxu0 0.0
    %2667 = vmatprep.subr.mxu0 0.0
    %2668 = vmatpush1.xpose.msra.mxu0 0.0
    %2669 = vmatprep.subr.mxu0 0.0
    %2670 = vmatpush1.xpose.msra.mxu0 0.0
    %2671 = vmatprep.subr.mxu0 0.0
    %2672 = vmatpush1.xpose.msra.mxu0 0.0
    %2673 = vmatprep.subr.mxu0 0.0
    %2674 = vmatpush1.xpose.msra.mxu0 0.0
    %2675 = vmatprep.subr.mxu0 0.0
    %2676 = vmatpush1.xpose.msra.mxu0 0.0
    %2677 = vmatprep.subr.mxu0 0.0
    %2678 = vmatpush1.xpose.msra.mxu0 0.0
    %2679 = vmatprep.subr.mxu0 0.0
    %2680 = vmatpush1.xpose.msra.mxu0 0.0
    %2681 = vmatprep.subr.mxu0 0.0
    %2682 = vmatpush1.xpose.msra.mxu0 0.0
    %2683 = vmatprep.subr.mxu0 0.0
    %2684 = vmatpush1.xpose.msra.mxu0 0.0
    %2685 = vmatprep.subr.mxu0 0.0
    %2686 = vmatpush1.xpose.msra.mxu0 0.0
    %2687 = vmatprep.subr.mxu0 0.0
    %2688 = vmatpush1.xpose.msra.mxu0 0.0
    %2689 = vmatprep.subr.mxu0 0.0
    %2690 = vmatpush1.xpose.msra.mxu0 0.0
    %2691 = vmatprep.subr.mxu0 0.0
    %2692 = vmatpush1.xpose.msra.mxu0 0.0
    %2693 = vmatprep.subr.mxu0 0.0
    %2694 = vmatpush1.xpose.msra.mxu0 0.0
    %2695 = vmatprep.subr.mxu0 0.0
    %2696 = vmatpush1.xpose.msra.mxu0 0.0
    %2697 = vmatprep.subr.mxu0 0.0
    %2698 = vmatpush1.xpose.msra.mxu0 0.0
    %2699 = vmatprep.subr.mxu0 0.0
    %2700 = vmatpush1.xpose.msra.mxu0 0.0
    %2701 = vmatprep.mubr.f32.mxu0 0.0
    %2702 = vmatmul.mubr.f32.gmra.mrb[0].mxu0 %v1126
    %v2703 = vpop.f32.mrb[0].mxu0
    %v2704 = vadd.f32 0.0, %v2703
    %v2705 = vpop.f32.mrb[0].mxu0
    %2706 = vdwg.mxu0
    %v2707 = vmul.f32 %v2704, 0.088388346
    %v2708 = vadd.f32 %v2707, %v241
    %v2709 = vsel %vm1814, %v2708, -inf
    %2710 = vmax.xlane.f32.xlu0 %v2709
    %v2711 = vpop.xlane.xlu0 %2710
    %v2712 = vsub.f32 %v2708, %v2711
    %v2713 = vmul.f32 %v2712, 1.442695
    %v2714 = vpow.pop %v2713
    %v2715 = vsel %vm1814, %v2714, 0.0
    %2716 = vadd.xlane.f32.xlu0 %v2715
    %v2717 = vpop.xlane.xlu0 %2716
    %v2718 = vrcp.pop %v2717
    %v2719 = vmul.f32 %v2714, %v2718
    %v2721 = vsel %vm1814, %v2719, 0
    %2723 = vmatprep.subr.mxu0 0.0
    %2724 = vmatpush1.msra.mxu0 %v1588
    %2725 = vmatprep.subr.mxu0 0.0
    %2726 = vmatpush1.msra.mxu0 0.0
    %2727 = vmatprep.subr.mxu0 0.0
    %2728 = vmatpush1.msra.mxu0 0.0
    %2729 = vmatprep.subr.mxu0 0.0
    %2730 = vmatpush1.msra.mxu0 0.0
    %2731 = vmatprep.subr.mxu0 0.0
    %2732 = vmatpush1.msra.mxu0 0.0
    %2733 = vmatprep.subr.mxu0 0.0
    %2734 = vmatpush1.msra.mxu0 0.0
    %2735 = vmatprep.subr.mxu0 0.0
    %2736 = vmatpush1.msra.mxu0 0.0
    %2737 = vmatprep.subr.mxu0 0.0
    %2738 = vmatpush1.msra.mxu0 0.0
    %2739 = vmatprep.subr.mxu0 0.0
    %2740 = vmatpush1.msra.mxu0 0.0
    %2741 = vmatprep.subr.mxu0 0.0
    %2742 = vmatpush1.msra.mxu0 0.0
    %2743 = vmatprep.subr.mxu0 0.0
    %2744 = vmatpush1.msra.mxu0 0.0
    %2745 = vmatprep.subr.mxu0 0.0
    %2746 = vmatpush1.msra.mxu0 0.0
    %2747 = vmatprep.subr.mxu0 0.0
    %2748 = vmatpush1.msra.mxu0 0.0
    %2749 = vmatprep.subr.mxu0 0.0
    %2750 = vmatpush1.msra.mxu0 0.0
    %2751 = vmatprep.subr.mxu0 0.0
    %2752 = vmatpush1.msra.mxu0 0.0
    %2753 = vmatprep.subr.mxu0 0.0
    %2754 = vmatpush1.msra.mxu0 0.0
    %2755 = vmatprep.subr.mxu0 0.0
    %2756 = vmatpush1.msra.mxu0 0.0
    %2757 = vmatprep.subr.mxu0 0.0
    %2758 = vmatpush1.msra.mxu0 0.0
    %2759 = vmatprep.subr.mxu0 0.0
    %2760 = vmatpush1.msra.mxu0 0.0
    %2761 = vmatprep.subr.mxu0 0.0
    %2762 = vmatpush1.msra.mxu0 0.0
    %2763 = vmatprep.subr.mxu0 0.0
    %2764 = vmatpush1.msra.mxu0 0.0
    %2765 = vmatprep.subr.mxu0 0.0
    %2766 = vmatpush1.msra.mxu0 0.0
    %2767 = vmatprep.subr.mxu0 0.0
    %2768 = vmatpush1.msra.mxu0 0.0
    %2769 = vmatprep.subr.mxu0 0.0
    %2770 = vmatpush1.msra.mxu0 0.0
    %2771 = vmatprep.subr.mxu0 0.0
    %2772 = vmatpush1.msra.mxu0 0.0
    %2773 = vmatprep.subr.mxu0 0.0
    %2774 = vmatpush1.msra.mxu0 0.0
    %2775 = vmatprep.subr.mxu0 0.0
    %2776 = vmatpush1.msra.mxu0 0.0
    %2777 = vmatprep.subr.mxu0 0.0
    %2778 = vmatpush1.msra.mxu0 0.0
    %2779 = vmatprep.subr.mxu0 0.0
    %2780 = vmatpush1.msra.mxu0 0.0
    %2781 = vmatprep.subr.mxu0 0.0
    %2782 = vmatpush1.msra.mxu0 0.0
    %2783 = vmatprep.subr.mxu0 0.0
    %2784 = vmatpush1.msra.mxu0 0.0
    %2785 = vmatprep.subr.mxu0 0.0
    %2786 = vmatpush1.msra.mxu0 0.0
    %2787 = vmatprep.mubr.f32.mxu0 0.0
    %2788 = vmatmul.mubr.f32.gmra.mrb[0].mxu0 %v2721
    %v2789 = vpop.f32.mrb[0].mxu0
    %v2790 = vadd.f32 0.0, %v2789
    %v2791 = vpop.f32.mrb[0].mxu0
    %2792 = vdwg.mxu0
    %2793 = vmatprep.subr.mxu0 0.0
    %2794 = vmatpush1.xpose.msra.mxu0 %v1434
    %2795 = vmatprep.subr.mxu0 0.0
    %2796 = vmatpush1.xpose.msra.mxu0 0.0
    %2797 = vmatprep.subr.mxu0 0.0
    %2798 = vmatpush1.xpose.msra.mxu0 0.0
    %2799 = vmatprep.subr.mxu0 0.0
    %2800 = vmatpush1.xpose.msra.mxu0 0.0
    %2801 = vmatprep.subr.mxu0 0.0
    %2802 = vmatpush1.xpose.msra.mxu0 0.0
    %2803 = vmatprep.subr.mxu0 0.0
    %2804 = vmatpush1.xpose.msra.mxu0 0.0
    %2805 = vmatprep.subr.mxu0 0.0
    %2806 = vmatpush1.xpose.msra.mxu0 0.0
    %2807 = vmatprep.subr.mxu0 0.0
    %2808 = vmatpush1.xpose.msra.mxu0 0.0
    %2809 = vmatprep.subr.mxu0 0.0
    %2810 = vmatpush1.xpose.msra.mxu0 0.0
    %2811 = vmatprep.subr.mxu0 0.0
    %2812 = vmatpush1.xpose.msra.mxu0 0.0
    %2813 = vmatprep.subr.mxu0 0.0
    %2814 = vmatpush1.xpose.msra.mxu0 0.0
    %2815 = vmatprep.subr.mxu0 0.0
    %2816 = vmatpush1.xpose.msra.mxu0 0.0
    %2817 = vmatprep.subr.mxu0 0.0
    %2818 = vmatpush1.xpose.msra.mxu0 0.0
    %2819 = vmatprep.subr.mxu0 0.0
    %2820 = vmatpush1.xpose.msra.mxu0 0.0
    %2821 = vmatprep.subr.mxu0 0.0
    %2822 = vmatpush1.xpose.msra.mxu0 0.0
    %2823 = vmatprep.subr.mxu0 0.0
    %2824 = vmatpush1.xpose.msra.mxu0 0.0
    %2825 = vmatprep.subr.mxu0 0.0
    %2826 = vmatpush1.xpose.msra.mxu0 0.0
    %2827 = vmatprep.subr.mxu0 0.0
    %2828 = vmatpush1.xpose.msra.mxu0 0.0
    %2829 = vmatprep.subr.mxu0 0.0
    %2830 = vmatpush1.xpose.msra.mxu0 0.0
    %2831 = vmatprep.subr.mxu0 0.0
    %2832 = vmatpush1.xpose.msra.mxu0 0.0
    %2833 = vmatprep.subr.mxu0 0.0
    %2834 = vmatpush1.xpose.msra.mxu0 0.0
    %2835 = vmatprep.subr.mxu0 0.0
    %2836 = vmatpush1.xpose.msra.mxu0 0.0
    %2837 = vmatprep.subr.mxu0 0.0
    %2838 = vmatpush1.xpose.msra.mxu0 0.0
    %2839 = vmatprep.subr.mxu0 0.0
    %2840 = vmatpush1.xpose.msra.mxu0 0.0
    %2841 = vmatprep.subr.mxu0 0.0
    %2842 = vmatpush1.xpose.msra.mxu0 0.0
    %2843 = vmatprep.subr.mxu0 0.0
    %2844 = vmatpush1.xpose.msra.mxu0 0.0
    %2845 = vmatprep.subr.mxu0 0.0
    %2846 = vmatpush1.xpose.msra.mxu0 0.0
    %2847 = vmatprep.subr.mxu0 0.0
    %2848 = vmatpush1.xpose.msra.mxu0 0.0
    %2849 = vmatprep.subr.mxu0 0.0
    %2850 = vmatpush1.xpose.msra.mxu0 0.0
    %2851 = vmatprep.subr.mxu0 0.0
    %2852 = vmatpush1.xpose.msra.mxu0 0.0
    %2853 = vmatprep.subr.mxu0 0.0
    %2854 = vmatpush1.xpose.msra.mxu0 0.0
    %2855 = vmatprep.subr.mxu0 0.0
    %2856 = vmatpush1.xpose.msra.mxu0 0.0
    %2857 = vmatprep.mubr.f32.mxu0 0.0
    %2858 = vmatmul.mubr.f32.gmra.mrb[0].mxu0 %v1128
    %v2859 = vpop.f32.mrb[0].mxu0
    %v2860 = vadd.f32 0.0, %v2859
    %v2861 = vpop.f32.mrb[0].mxu0
    %2862 = vdwg.mxu0
    %v2863 = vmul.f32 %v2860, 0.088388346
    %v2864 = vadd.f32 %v2863, %v241
    %v2865 = vsel %vm1814, %v2864, -inf
    %2866 = vmax.xlane.f32.xlu0 %v2865
    %v2867 = vpop.xlane.xlu0 %2866
    %v2868 = vsub.f32 %v2864, %v2867
    %v2869 = vmul.f32 %v2868, 1.442695
    %v2870 = vpow.pop %v2869
    %v2871 = vsel %vm1814, %v2870, 0.0
    %2872 = vadd.xlane.f32.xlu0 %v2871
    %v2873 = vpop.xlane.xlu0 %2872
    %v2874 = vrcp.pop %v2873
    %v2875 = vmul.f32 %v2870, %v2874
    %v2877 = vsel %vm1814, %v2875, 0
    %2879 = vmatprep.subr.mxu0 0.0
    %2880 = vmatpush1.msra.mxu0 %v1590
    %2881 = vmatprep.subr.mxu0 0.0
    %2882 = vmatpush1.msra.mxu0 0.0
    %2883 = vmatprep.subr.mxu0 0.0
    %2884 = vmatpush1.msra.mxu0 0.0
    %2885 = vmatprep.subr.mxu0 0.0
    %2886 = vmatpush1.msra.mxu0 0.0
    %2887 = vmatprep.subr.mxu0 0.0
    %2888 = vmatpush1.msra.mxu0 0.0
    %2889 = vmatprep.subr.mxu0 0.0
    %2890 = vmatpush1.msra.mxu0 0.0
    %2891 = vmatprep.subr.mxu0 0.0
    %2892 = vmatpush1.msra.mxu0 0.0
    %2893 = vmatprep.subr.mxu0 0.0
    %2894 = vmatpush1.msra.mxu0 0.0
    %2895 = vmatprep.subr.mxu0 0.0
    %2896 = vmatpush1.msra.mxu0 0.0
    %2897 = vmatprep.subr.mxu0 0.0
    %2898 = vmatpush1.msra.mxu0 0.0
    %2899 = vmatprep.subr.mxu0 0.0
    %2900 = vmatpush1.msra.mxu0 0.0
    %2901 = vmatprep.subr.mxu0 0.0
    %2902 = vmatpush1.msra.mxu0 0.0
    %2903 = vmatprep.subr.mxu0 0.0
    %2904 = vmatpush1.msra.mxu0 0.0
    %2905 = vmatprep.subr.mxu0 0.0
    %2906 = vmatpush1.msra.mxu0 0.0
    %2907 = vmatprep.subr.mxu0 0.0
    %2908 = vmatpush1.msra.mxu0 0.0
    %2909 = vmatprep.subr.mxu0 0.0
    %2910 = vmatpush1.msra.mxu0 0.0
    %2911 = vmatprep.subr.mxu0 0.0
    %2912 = vmatpush1.msra.mxu0 0.0
    %2913 = vmatprep.subr.mxu0 0.0
    %2914 = vmatpush1.msra.mxu0 0.0
    %2915 = vmatprep.subr.mxu0 0.0
    %2916 = vmatpush1.msra.mxu0 0.0
    %2917 = vmatprep.subr.mxu0 0.0
    %2918 = vmatpush1.msra.mxu0 0.0
    %2919 = vmatprep.subr.mxu0 0.0
    %2920 = vmatpush1.msra.mxu0 0.0
    %2921 = vmatprep.subr.mxu0 0.0
    %2922 = vmatpush1.msra.mxu0 0.0
    %2923 = vmatprep.subr.mxu0 0.0
    %2924 = vmatpush1.msra.mxu0 0.0
    %2925 = vmatprep.subr.mxu0 0.0
    %2926 = vmatpush1.msra.mxu0 0.0
    %2927 = vmatprep.subr.mxu0 0.0
    %2928 = vmatpush1.msra.mxu0 0.0
    %2929 = vmatprep.subr.mxu0 0.0
    %2930 = vmatpush1.msra.mxu0 0.0
    %2931 = vmatprep.subr.mxu0 0.0
    %2932 = vmatpush1.msra.mxu0 0.0
    %2933 = vmatprep.subr.mxu0 0.0
    %2934 = vmatpush1.msra.mxu0 0.0
    %2935 = vmatprep.subr.mxu0 0.0
    %2936 = vmatpush1.msra.mxu0 0.0
    %2937 = vmatprep.subr.mxu0 0.0
    %2938 = vmatpush1.msra.mxu0 0.0
    %2939 = vmatprep.subr.mxu0 0.0
    %2940 = vmatpush1.msra.mxu0 0.0
    %2941 = vmatprep.subr.mxu0 0.0
    %2942 = vmatpush1.msra.mxu0 0.0
    %2943 = vmatprep.mubr.f32.mxu0 0.0
    %2944 = vmatmul.mubr.f32.gmra.mrb[0].mxu0 %v2877
    %v2945 = vpop.f32.mrb[0].mxu0
    %v2946 = vadd.f32 0.0, %v2945
    %v2947 = vpop.f32.mrb[0].mxu0
    %2948 = vdwg.mxu0
    %2949 = vmatprep.subr.mxu0 %v731
    %2950 = vmatpush1.msra.mxu0 %v730
    %2951 = vmatprep.subr.mxu0 %v734
    %2952 = vmatpush1.msra.mxu0 %v733
    %2953 = vmatprep.subr.mxu0 %v737
    %2954 = vmatpush1.msra.mxu0 %v736
    %2955 = vmatprep.subr.mxu0 %v740
    %2956 = vmatpush1.msra.mxu0 %v739
    %2957 = vmatprep.subr.mxu0 %v743
    %2958 = vmatpush1.msra.mxu0 %v742
    %2959 = vmatprep.subr.mxu0 %v746
    %2960 = vmatpush1.msra.mxu0 %v745
    %2961 = vmatprep.subr.mxu0 %v749
    %2962 = vmatpush1.msra.mxu0 %v748
    %2963 = vmatprep.subr.mxu0 %v752
    %2964 = vmatpush1.msra.mxu0 %v751
    %2965 = vmatprep.subr.mxu0 %v755
    %2966 = vmatpush1.msra.mxu0 %v754
    %2967 = vmatprep.subr.mxu0 %v758
    %2968 = vmatpush1.msra.mxu0 %v757
    %2969 = vmatprep.subr.mxu0 %v761
    %2970 = vmatpush1.msra.mxu0 %v760
    %2971 = vmatprep.subr.mxu0 %v764
    %2972 = vmatpush1.msra.mxu0 %v763
    %2973 = vmatprep.subr.mxu0 %v767
    %2974 = vmatpush1.msra.mxu0 %v766
    %2975 = vmatprep.subr.mxu0 %v770
    %2976 = vmatpush1.msra.mxu0 %v769
    %2977 = vmatprep.subr.mxu0 %v773
    %2978 = vmatpush1.msra.mxu0 %v772
    %2979 = vmatprep.subr.mxu0 %v776
    %2980 = vmatpush1.msra.mxu0 %v775
    %2981 = vmatprep.subr.mxu0 0.0
    %2982 = vmatpush1.msra.mxu0 0.0
    %2983 = vmatprep.subr.mxu0 0.0
    %2984 = vmatpush1.msra.mxu0 0.0
    %2985 = vmatprep.subr.mxu0 0.0
    %2986 = vmatpush1.msra.mxu0 0.0
    %2987 = vmatprep.subr.mxu0 0.0
    %2988 = vmatpush1.msra.mxu0 0.0
    %2989 = vmatprep.subr.mxu0 0.0
    %2990 = vmatpush1.msra.mxu0 0.0
    %2991 = vmatprep.subr.mxu0 0.0
    %2992 = vmatpush1.msra.mxu0 0.0
    %2993 = vmatprep.subr.mxu0 0.0
    %2994 = vmatpush1.msra.mxu0 0.0
    %2995 = vmatprep.subr.mxu0 0.0
    %2996 = vmatpush1.msra.mxu0 0.0
    %2997 = vmatprep.subr.mxu0 0.0
    %2998 = vmatpush1.msra.mxu0 0.0
    %2999 = vmatprep.subr.mxu0 0.0
    %3000 = vmatpush1.msra.mxu0 0.0
    %3001 = vmatprep.subr.mxu0 0.0
    %3002 = vmatpush1.msra.mxu0 0.0
    %3003 = vmatprep.subr.mxu0 0.0
    %3004 = vmatpush1.msra.mxu0 0.0
    %3005 = vmatprep.subr.mxu0 0.0
    %3006 = vmatpush1.msra.mxu0 0.0
    %3007 = vmatprep.subr.mxu0 0.0
    %3008 = vmatpush1.msra.mxu0 0.0
    %3009 = vmatprep.subr.mxu0 0.0
    %3010 = vmatpush1.msra.mxu0 0.0
    %3011 = vmatprep.subr.mxu0 0.0
    %3012 = vmatpush1.msra.mxu0 0.0
    %3013 = vmatprep.mubr.f32.mxu0 0.0
    %3014 = vmatmul.mubr.f32.gmra.mrb[0].mxu0 %v2946
    %v3015 = vpop.f32.mrb[0].mxu0
    %v3016 = vadd.f32 0.0, %v3015
    %v3017 = vpop.f32.mrb[0].mxu0
    %v3018 = vadd.f32 0.0, %v3017
    %3019 = vdwg.mxu0
    %3020 = vmatprep.subr.mxu0 0.0
    %3021 = vmatpush1.msra.mxu0 %v732
    %3022 = vmatprep.subr.mxu0 0.0
    %3023 = vmatpush1.msra.mxu0 %v735
    %3024 = vmatprep.subr.mxu0 0.0
    %3025 = vmatpush1.msra.mxu0 %v738
    %3026 = vmatprep.subr.mxu0 0.0
    %3027 = vmatpush1.msra.mxu0 %v741
    %3028 = vmatprep.subr.mxu0 0.0
    %3029 = vmatpush1.msra.mxu0 %v744
    %3030 = vmatprep.subr.mxu0 0.0
    %3031 = vmatpush1.msra.mxu0 %v747
    %3032 = vmatprep.subr.mxu0 0.0
    %3033 = vmatpush1.msra.mxu0 %v750
    %3034 = vmatprep.subr.mxu0 0.0
    %3035 = vmatpush1.msra.mxu0 %v753
    %3036 = vmatprep.subr.mxu0 0.0
    %3037 = vmatpush1.msra.mxu0 %v756
    %3038 = vmatprep.subr.mxu0 0.0
    %3039 = vmatpush1.msra.mxu0 %v759
    %3040 = vmatprep.subr.mxu0 0.0
    %3041 = vmatpush1.msra.mxu0 %v762
    %3042 = vmatprep.subr.mxu0 0.0
    %3043 = vmatpush1.msra.mxu0 %v765
    %3044 = vmatprep.subr.mxu0 0.0
    %3045 = vmatpush1.msra.mxu0 %v768
    %3046 = vmatprep.subr.mxu0 0.0
    %3047 = vmatpush1.msra.mxu0 %v771
    %3048 = vmatprep.subr.mxu0 0.0
    %3049 = vmatpush1.msra.mxu0 %v774
    %3050 = vmatprep.subr.mxu0 0.0
    %3051 = vmatpush1.msra.mxu0 %v777
    %3052 = vmatprep.subr.mxu0 0.0
    %3053 = vmatpush1.msra.mxu0 0.0
    %3054 = vmatprep.subr.mxu0 0.0
    %3055 = vmatpush1.msra.mxu0 0.0
    %3056 = vmatprep.subr.mxu0 0.0
    %3057 = vmatpush1.msra.mxu0 0.0
    %3058 = vmatprep.subr.mxu0 0.0
    %3059 = vmatpush1.msra.mxu0 0.0
    %3060 = vmatprep.subr.mxu0 0.0
    %3061 = vmatpush1.msra.mxu0 0.0
    %3062 = vmatprep.subr.mxu0 0.0
    %3063 = vmatpush1.msra.mxu0 0.0
    %3064 = vmatprep.subr.mxu0 0.0
    %3065 = vmatpush1.msra.mxu0 0.0
    %3066 = vmatprep.subr.mxu0 0.0
    %3067 = vmatpush1.msra.mxu0 0.0
    %3068 = vmatprep.subr.mxu0 0.0
    %3069 = vmatpush1.msra.mxu0 0.0
    %3070 = vmatprep.subr.mxu0 0.0
    %3071 = vmatpush1.msra.mxu0 0.0
    %3072 = vmatprep.subr.mxu0 0.0
    %3073 = vmatpush1.msra.mxu0 0.0
    %3074 = vmatprep.subr.mxu0 0.0
    %3075 = vmatpush1.msra.mxu0 0.0
    %3076 = vmatprep.subr.mxu0 0.0
    %3077 = vmatpush1.msra.mxu0 0.0
    %3078 = vmatprep.subr.mxu0 0.0
    %3079 = vmatpush1.msra.mxu0 0.0
    %3080 = vmatprep.subr.mxu0 0.0
    %3081 = vmatpush1.msra.mxu0 0.0
    %3082 = vmatprep.subr.mxu0 0.0
    %3083 = vmatpush1.msra.mxu0 0.0
    %3084 = vmatprep.mubr.f32.mxu0 0.0
    %3085 = vmatmul.mubr.f32.gmra.mrb[0].mxu0 %v2946
    %v3086 = vpop.f32.mrb[0].mxu0
    %v3087 = vadd.f32 0.0, %v3086
    %v3088 = vpop.f32.mrb[0].mxu0
    %3089 = vdwg.mxu0
    %3090 = vmatprep.subr.mxu0 %v683
    %3091 = vmatpush1.msra.mxu0 %v682
    %3092 = vmatprep.subr.mxu0 %v686
    %3093 = vmatpush1.msra.mxu0 %v685
    %3094 = vmatprep.subr.mxu0 %v689
    %3095 = vmatpush1.msra.mxu0 %v688
    %3096 = vmatprep.subr.mxu0 %v692
    %3097 = vmatpush1.msra.mxu0 %v691
    %3098 = vmatprep.subr.mxu0 %v695
    %3099 = vmatpush1.msra.mxu0 %v694
    %3100 = vmatprep.subr.mxu0 %v698
    %3101 = vmatpush1.msra.mxu0 %v697
    %3102 = vmatprep.subr.mxu0 %v701
    %3103 = vmatpush1.msra.mxu0 %v700
    %3104 = vmatprep.subr.mxu0 %v704
    %3105 = vmatpush1.msra.mxu0 %v703
    %3106 = vmatprep.subr.mxu0 %v707
    %3107 = vmatpush1.msra.mxu0 %v706
    %3108 = vmatprep.subr.mxu0 %v710
    %3109 = vmatpush1.msra.mxu0 %v709
    %3110 = vmatprep.subr.mxu0 %v713
    %3111 = vmatpush1.msra.mxu0 %v712
    %3112 = vmatprep.subr.mxu0 %v716
    %3113 = vmatpush1.msra.mxu0 %v715
    %3114 = vmatprep.subr.mxu0 %v719
    %3115 = vmatpush1.msra.mxu0 %v718
    %3116 = vmatprep.subr.mxu0 %v722
    %3117 = vmatpush1.msra.mxu0 %v721
    %3118 = vmatprep.subr.mxu0 %v725
    %3119 = vmatpush1.msra.mxu0 %v724
    %3120 = vmatprep.subr.mxu0 %v728
    %3121 = vmatpush1.msra.mxu0 %v727
    %3122 = vmatprep.subr.mxu0 0.0
    %3123 = vmatpush1.msra.mxu0 0.0
    %3124 = vmatprep.subr.mxu0 0.0
    %3125 = vmatpush1.msra.mxu0 0.0
    %3126 = vmatprep.subr.mxu0 0.0
    %3127 = vmatpush1.msra.mxu0 0.0
    %3128 = vmatprep.subr.mxu0 0.0
    %3129 = vmatpush1.msra.mxu0 0.0
    %3130 = vmatprep.subr.mxu0 0.0
    %3131 = vmatpush1.msra.mxu0 0.0
    %3132 = vmatprep.subr.mxu0 0.0
    %3133 = vmatpush1.msra.mxu0 0.0
    %3134 = vmatprep.subr.mxu0 0.0
    %3135 = vmatpush1.msra.mxu0 0.0
    %3136 = vmatprep.subr.mxu0 0.0
    %3137 = vmatpush1.msra.mxu0 0.0
    %3138 = vmatprep.subr.mxu0 0.0
    %3139 = vmatpush1.msra.mxu0 0.0
    %3140 = vmatprep.subr.mxu0 0.0
    %3141 = vmatpush1.msra.mxu0 0.0
    %3142 = vmatprep.subr.mxu0 0.0
    %3143 = vmatpush1.msra.mxu0 0.0
    %3144 = vmatprep.subr.mxu0 0.0
    %3145 = vmatpush1.msra.mxu0 0.0
    %3146 = vmatprep.subr.mxu0 0.0
    %3147 = vmatpush1.msra.mxu0 0.0
    %3148 = vmatprep.subr.mxu0 0.0
    %3149 = vmatpush1.msra.mxu0 0.0
    %3150 = vmatprep.subr.mxu0 0.0
    %3151 = vmatpush1.msra.mxu0 0.0
    %3152 = vmatprep.subr.mxu0 0.0
    %3153 = vmatpush1.msra.mxu0 0.0
    %3154 = vmatprep.mubr.f32.mxu0 0.0
    %3155 = vmatmul.mubr.f32.gmra.mrb[0].mxu0 %v2790
    %v3156 = vpop.f32.mrb[0].mxu0
    %v3157 = vadd.f32 %v3016, %v3156
    %v3158 = vpop.f32.mrb[0].mxu0
    %v3159 = vadd.f32 %v3018, %v3158
    %3160 = vdwg.mxu0
    %3161 = vmatprep.subr.mxu0 0.0
    %3162 = vmatpush1.msra.mxu0 %v684
    %3163 = vmatprep.subr.mxu0 0.0
    %3164 = vmatpush1.msra.mxu0 %v687
    %3165 = vmatprep.subr.mxu0 0.0
    %3166 = vmatpush1.msra.mxu0 %v690
    %3167 = vmatprep.subr.mxu0 0.0
    %3168 = vmatpush1.msra.mxu0 %v693
    %3169 = vmatprep.subr.mxu0 0.0
    %3170 = vmatpush1.msra.mxu0 %v696
    %3171 = vmatprep.subr.mxu0 0.0
    %3172 = vmatpush1.msra.mxu0 %v699
    %3173 = vmatprep.subr.mxu0 0.0
    %3174 = vmatpush1.msra.mxu0 %v702
    %3175 = vmatprep.subr.mxu0 0.0
    %3176 = vmatpush1.msra.mxu0 %v705
    %3177 = vmatprep.subr.mxu0 0.0
    %3178 = vmatpush1.msra.mxu0 %v708
    %3179 = vmatprep.subr.mxu0 0.0
    %3180 = vmatpush1.msra.mxu0 %v711
    %3181 = vmatprep.subr.mxu0 0.0
    %3182 = vmatpush1.msra.mxu0 %v714
    %3183 = vmatprep.subr.mxu0 0.0
    %3184 = vmatpush1.msra.mxu0 %v717
    %3185 = vmatprep.subr.mxu0 0.0
    %3186 = vmatpush1.msra.mxu0 %v720
    %3187 = vmatprep.subr.mxu0 0.0
    %3188 = vmatpush1.msra.mxu0 %v723
    %3189 = vmatprep.subr.mxu0 0.0
    %3190 = vmatpush1.msra.mxu0 %v726
    %3191 = vmatprep.subr.mxu0 0.0
    %3192 = vmatpush1.msra.mxu0 %v729
    %3193 = vmatprep.subr.mxu0 0.0
    %3194 = vmatpush1.msra.mxu0 0.0
    %3195 = vmatprep.subr.mxu0 0.0
    %3196 = vmatpush1.msra.mxu0 0.0
    %3197 = vmatprep.subr.mxu0 0.0
    %3198 = vmatpush1.msra.mxu0 0.0
    %3199 = vmatprep.subr.mxu0 0.0
    %3200 = vmatpush1.msra.mxu0 0.0
    %3201 = vmatprep.subr.mxu0 0.0
    %3202 = vmatpush1.msra.mxu0 0.0
    %3203 = vmatprep.subr.mxu0 0.0
    %3204 = vmatpush1.msra.mxu0 0.0
    %3205 = vmatprep.subr.mxu0 0.0
    %3206 = vmatpush1.msra.mxu0 0.0
    %3207 = vmatprep.subr.mxu0 0.0
    %3208 = vmatpush1.msra.mxu0 0.0
    %3209 = vmatprep.subr.mxu0 0.0
    %3210 = vmatpush1.msra.mxu0 0.0
    %3211 = vmatprep.subr.mxu0 0.0
    %3212 = vmatpush1.msra.mxu0 0.0
    %3213 = vmatprep.subr.mxu0 0.0
    %3214 = vmatpush1.msra.mxu0 0.0
    %3215 = vmatprep.subr.mxu0 0.0
    %3216 = vmatpush1.msra.mxu0 0.0
    %3217 = vmatprep.subr.mxu0 0.0
    %3218 = vmatpush1.msra.mxu0 0.0
    %3219 = vmatprep.subr.mxu0 0.0
    %3220 = vmatpush1.msra.mxu0 0.0
    %3221 = vmatprep.subr.mxu0 0.0
    %3222 = vmatpush1.msra.mxu0 0.0
    %3223 = vmatprep.subr.mxu0 0.0
    %3224 = vmatpush1.msra.mxu0 0.0
    %3225 = vmatprep.mubr.f32.mxu0 0.0
    %3226 = vmatmul.mubr.f32.gmra.mrb[0].mxu0 %v2790
    %v3227 = vpop.f32.mrb[0].mxu0
    %v3228 = vadd.f32 %v3087, %v3227
    %v3229 = vpop.f32.mrb[0].mxu0
    %3230 = vdwg.mxu0
    %3231 = vmatprep.subr.mxu0 0.0
    %3232 = vmatpush1.xpose.msra.mxu0 %v1436
    %3233 = vmatprep.subr.mxu0 0.0
    %3234 = vmatpush1.xpose.msra.mxu0 0.0
    %3235 = vmatprep.subr.mxu0 0.0
    %3236 = vmatpush1.xpose.msra.mxu0 0.0
    %3237 = vmatprep.subr.mxu0 0.0
    %3238 = vmatpush1.xpose.msra.mxu0 0.0
    %3239 = vmatprep.subr.mxu0 0.0
    %3240 = vmatpush1.xpose.msra.mxu0 0.0
    %3241 = vmatprep.subr.mxu0 0.0
    %3242 = vmatpush1.xpose.msra.mxu0 0.0
    %3243 = vmatprep.subr.mxu0 0.0
    %3244 = vmatpush1.xpose.msra.mxu0 0.0
    %3245 = vmatprep.subr.mxu0 0.0
    %3246 = vmatpush1.xpose.msra.mxu0 0.0
    %3247 = vmatprep.subr.mxu0 0.0
    %3248 = vmatpush1.xpose.msra.mxu0 0.0
    %3249 = vmatprep.subr.mxu0 0.0
    %3250 = vmatpush1.xpose.msra.mxu0 0.0
    %3251 = vmatprep.subr.mxu0 0.0
    %3252 = vmatpush1.xpose.msra.mxu0 0.0
    %3253 = vmatprep.subr.mxu0 0.0
    %3254 = vmatpush1.xpose.msra.mxu0 0.0
    %3255 = vmatprep.subr.mxu0 0.0
    %3256 = vmatpush1.xpose.msra.mxu0 0.0
    %3257 = vmatprep.subr.mxu0 0.0
    %3258 = vmatpush1.xpose.msra.mxu0 0.0
    %3259 = vmatprep.subr.mxu0 0.0
    %3260 = vmatpush1.xpose.msra.mxu0 0.0
    %3261 = vmatprep.subr.mxu0 0.0
    %3262 = vmatpush1.xpose.msra.mxu0 0.0
    %3263 = vmatprep.subr.mxu0 0.0
    %3264 = vmatpush1.xpose.msra.mxu0 0.0
    %3265 = vmatprep.subr.mxu0 0.0
    %3266 = vmatpush1.xpose.msra.mxu0 0.0
    %3267 = vmatprep.subr.mxu0 0.0
    %3268 = vmatpush1.xpose.msra.mxu0 0.0
    %3269 = vmatprep.subr.mxu0 0.0
    %3270 = vmatpush1.xpose.msra.mxu0 0.0
    %3271 = vmatprep.subr.mxu0 0.0
    %3272 = vmatpush1.xpose.msra.mxu0 0.0
    %3273 = vmatprep.subr.mxu0 0.0
    %3274 = vmatpush1.xpose.msra.mxu0 0.0
    %3275 = vmatprep.subr.mxu0 0.0
    %3276 = vmatpush1.xpose.msra.mxu0 0.0
    %3277 = vmatprep.subr.mxu0 0.0
    %3278 = vmatpush1.xpose.msra.mxu0 0.0
    %3279 = vmatprep.subr.mxu0 0.0
    %3280 = vmatpush1.xpose.msra.mxu0 0.0
    %3281 = vmatprep.subr.mxu0 0.0
    %3282 = vmatpush1.xpose.msra.mxu0 0.0
    %3283 = vmatprep.subr.mxu0 0.0
    %3284 = vmatpush1.xpose.msra.mxu0 0.0
    %3285 = vmatprep.subr.mxu0 0.0
    %3286 = vmatpush1.xpose.msra.mxu0 0.0
    %3287 = vmatprep.subr.mxu0 0.0
    %3288 = vmatpush1.xpose.msra.mxu0 0.0
    %3289 = vmatprep.subr.mxu0 0.0
    %3290 = vmatpush1.xpose.msra.mxu0 0.0
    %3291 = vmatprep.subr.mxu0 0.0
    %3292 = vmatpush1.xpose.msra.mxu0 0.0
    %3293 = vmatprep.subr.mxu0 0.0
    %3294 = vmatpush1.xpose.msra.mxu0 0.0
    %3295 = vmatprep.mubr.f32.mxu0 0.0
    %3296 = vmatmul.mubr.f32.gmra.mrb[0].mxu0 %v1280
    %v3297 = vpop.f32.mrb[0].mxu0
    %v3298 = vadd.f32 0.0, %v3297
    %v3299 = vpop.f32.mrb[0].mxu0
    %3300 = vdwg.mxu0
    %v3301 = vmul.f32 %v3298, 0.088388346
    %v3302 = vadd.f32 %v3301, %v241
    %v3303 = vsel %vm1814, %v3302, -inf
    %3304 = vmax.xlane.f32.xlu0 %v3303
    %v3305 = vpop.xlane.xlu0 %3304
    %v3306 = vsub.f32 %v3302, %v3305
    %v3307 = vmul.f32 %v3306, 1.442695
    %v3308 = vpow.pop %v3307
    %v3309 = vsel %vm1814, %v3308, 0.0
    %3310 = vadd.xlane.f32.xlu0 %v3309
    %v3311 = vpop.xlane.xlu0 %3310
    %v3312 = vrcp.pop %v3311
    %v3313 = vmul.f32 %v3308, %v3312
    %v3315 = vsel %vm1814, %v3313, 0
    %3317 = vmatprep.subr.mxu0 0.0
    %3318 = vmatpush1.msra.mxu0 %v1739
    %3319 = vmatprep.subr.mxu0 0.0
    %3320 = vmatpush1.msra.mxu0 0.0
    %3321 = vmatprep.subr.mxu0 0.0
    %3322 = vmatpush1.msra.mxu0 0.0
    %3323 = vmatprep.subr.mxu0 0.0
    %3324 = vmatpush1.msra.mxu0 0.0
    %3325 = vmatprep.subr.mxu0 0.0
    %3326 = vmatpush1.msra.mxu0 0.0
    %3327 = vmatprep.subr.mxu0 0.0
    %3328 = vmatpush1.msra.mxu0 0.0
    %3329 = vmatprep.subr.mxu0 0.0
    %3330 = vmatpush1.msra.mxu0 0.0
    %3331 = vmatprep.subr.mxu0 0.0
    %3332 = vmatpush1.msra.mxu0 0.0
    %3333 = vmatprep.subr.mxu0 0.0
    %3334 = vmatpush1.msra.mxu0 0.0
    %3335 = vmatprep.subr.mxu0 0.0
    %3336 = vmatpush1.msra.mxu0 0.0
    %3337 = vmatprep.subr.mxu0 0.0
    %3338 = vmatpush1.msra.mxu0 0.0
    %3339 = vmatprep.subr.mxu0 0.0
    %3340 = vmatpush1.msra.mxu0 0.0
    %3341 = vmatprep.subr.mxu0 0.0
    %3342 = vmatpush1.msra.mxu0 0.0
    %3343 = vmatprep.subr.mxu0 0.0
    %3344 = vmatpush1.msra.mxu0 0.0
    %3345 = vmatprep.subr.mxu0 0.0
    %3346 = vmatpush1.msra.mxu0 0.0
    %3347 = vmatprep.subr.mxu0 0.0
    %3348 = vmatpush1.msra.mxu0 0.0
    %3349 = vmatprep.subr.mxu0 0.0
    %3350 = vmatpush1.msra.mxu0 0.0
    %3351 = vmatprep.subr.mxu0 0.0
    %3352 = vmatpush1.msra.mxu0 0.0
    %3353 = vmatprep.subr.mxu0 0.0
    %3354 = vmatpush1.msra.mxu0 0.0
    %3355 = vmatprep.subr.mxu0 0.0
    %3356 = vmatpush1.msra.mxu0 0.0
    %3357 = vmatprep.subr.mxu0 0.0
    %3358 = vmatpush1.msra.mxu0 0.0
    %3359 = vmatprep.subr.mxu0 0.0
    %3360 = vmatpush1.msra.mxu0 0.0
    %3361 = vmatprep.subr.mxu0 0.0
    %3362 = vmatpush1.msra.mxu0 0.0
    %3363 = vmatprep.subr.mxu0 0.0
    %3364 = vmatpush1.msra.mxu0 0.0
    %3365 = vmatprep.subr.mxu0 0.0
    %3366 = vmatpush1.msra.mxu0 0.0
    %3367 = vmatprep.subr.mxu0 0.0
    %3368 = vmatpush1.msra.mxu0 0.0
    %3369 = vmatprep.subr.mxu0 0.0
    %3370 = vmatpush1.msra.mxu0 0.0
    %3371 = vmatprep.subr.mxu0 0.0
    %3372 = vmatpush1.msra.mxu0 0.0
    %3373 = vmatprep.subr.mxu0 0.0
    %3374 = vmatpush1.msra.mxu0 0.0
    %3375 = vmatprep.subr.mxu0 0.0
    %3376 = vmatpush1.msra.mxu0 0.0
    %3377 = vmatprep.subr.mxu0 0.0
    %3378 = vmatpush1.msra.mxu0 0.0
    %3379 = vmatprep.subr.mxu0 0.0
    %3380 = vmatpush1.msra.mxu0 0.0
    %3381 = vmatprep.mubr.f32.mxu0 0.0
    %3382 = vmatmul.mubr.f32.gmra.mrb[0].mxu0 %v3315
    %v3383 = vpop.f32.mrb[0].mxu0
    %v3384 = vadd.f32 0.0, %v3383
    %v3385 = vpop.f32.mrb[0].mxu0
    %3386 = vdwg.mxu0
    %3387 = vmatprep.subr.mxu0 %v779
    %3388 = vmatpush1.msra.mxu0 %v778
    %3389 = vmatprep.subr.mxu0 %v782
    %3390 = vmatpush1.msra.mxu0 %v781
    %3391 = vmatprep.subr.mxu0 %v785
    %3392 = vmatpush1.msra.mxu0 %v784
    %3393 = vmatprep.subr.mxu0 %v788
    %3394 = vmatpush1.msra.mxu0 %v787
    %3395 = vmatprep.subr.mxu0 %v791
    %3396 = vmatpush1.msra.mxu0 %v790
    %3397 = vmatprep.subr.mxu0 %v794
    %3398 = vmatpush1.msra.mxu0 %v793
    %3399 = vmatprep.subr.mxu0 %v797
    %3400 = vmatpush1.msra.mxu0 %v796
    %3401 = vmatprep.subr.mxu0 %v800
    %3402 = vmatpush1.msra.mxu0 %v799
    %3403 = vmatprep.subr.mxu0 %v803
    %3404 = vmatpush1.msra.mxu0 %v802
    %3405 = vmatprep.subr.mxu0 %v806
    %3406 = vmatpush1.msra.mxu0 %v805
    %3407 = vmatprep.subr.mxu0 %v809
    %3408 = vmatpush1.msra.mxu0 %v808
    %3409 = vmatprep.subr.mxu0 %v812
    %3410 = vmatpush1.msra.mxu0 %v811
    %3411 = vmatprep.subr.mxu0 %v815
    %3412 = vmatpush1.msra.mxu0 %v814
    %3413 = vmatprep.subr.mxu0 %v818
    %3414 = vmatpush1.msra.mxu0 %v817
    %3415 = vmatprep.subr.mxu0 %v821
    %3416 = vmatpush1.msra.mxu0 %v820
    %3417 = vmatprep.subr.mxu0 %v824
    %3418 = vmatpush1.msra.mxu0 %v823
    %3419 = vmatprep.subr.mxu0 0.0
    %3420 = vmatpush1.msra.mxu0 0.0
    %3421 = vmatprep.subr.mxu0 0.0
    %3422 = vmatpush1.msra.mxu0 0.0
    %3423 = vmatprep.subr.mxu0 0.0
    %3424 = vmatpush1.msra.mxu0 0.0
    %3425 = vmatprep.subr.mxu0 0.0
    %3426 = vmatpush1.msra.mxu0 0.0
    %3427 = vmatprep.subr.mxu0 0.0
    %3428 = vmatpush1.msra.mxu0 0.0
    %3429 = vmatprep.subr.mxu0 0.0
    %3430 = vmatpush1.msra.mxu0 0.0
    %3431 = vmatprep.subr.mxu0 0.0
    %3432 = vmatpush1.msra.mxu0 0.0
    %3433 = vmatprep.subr.mxu0 0.0
    %3434 = vmatpush1.msra.mxu0 0.0
    %3435 = vmatprep.subr.mxu0 0.0
    %3436 = vmatpush1.msra.mxu0 0.0
    %3437 = vmatprep.subr.mxu0 0.0
    %3438 = vmatpush1.msra.mxu0 0.0
    %3439 = vmatprep.subr.mxu0 0.0
    %3440 = vmatpush1.msra.mxu0 0.0
    %3441 = vmatprep.subr.mxu0 0.0
    %3442 = vmatpush1.msra.mxu0 0.0
    %3443 = vmatprep.subr.mxu0 0.0
    %3444 = vmatpush1.msra.mxu0 0.0
    %3445 = vmatprep.subr.mxu0 0.0
    %3446 = vmatpush1.msra.mxu0 0.0
    %3447 = vmatprep.subr.mxu0 0.0
    %3448 = vmatpush1.msra.mxu0 0.0
    %3449 = vmatprep.subr.mxu0 0.0
    %3450 = vmatpush1.msra.mxu0 0.0
    %3451 = vmatprep.mubr.f32.mxu0 0.0
    %3452 = vmatmul.mubr.f32.gmra.mrb[0].mxu0 %v3384
    %v3453 = vpop.f32.mrb[0].mxu0
    %v3454 = vadd.f32 0.0, %v3453
    %v3455 = vpop.f32.mrb[0].mxu0
    %v3456 = vadd.f32 0.0, %v3455
    %3457 = vdwg.mxu0
    %3458 = vmatprep.subr.mxu0 0.0
    %3459 = vmatpush1.msra.mxu0 %v780
    %3460 = vmatprep.subr.mxu0 0.0
    %3461 = vmatpush1.msra.mxu0 %v783
    %3462 = vmatprep.subr.mxu0 0.0
    %3463 = vmatpush1.msra.mxu0 %v786
    %3464 = vmatprep.subr.mxu0 0.0
    %3465 = vmatpush1.msra.mxu0 %v789
    %3466 = vmatprep.subr.mxu0 0.0
    %3467 = vmatpush1.msra.mxu0 %v792
    %3468 = vmatprep.subr.mxu0 0.0
    %3469 = vmatpush1.msra.mxu0 %v795
    %3470 = vmatprep.subr.mxu0 0.0
    %3471 = vmatpush1.msra.mxu0 %v798
    %3472 = vmatprep.subr.mxu0 0.0
    %3473 = vmatpush1.msra.mxu0 %v801
    %3474 = vmatprep.subr.mxu0 0.0
    %3475 = vmatpush1.msra.mxu0 %v804
    %3476 = vmatprep.subr.mxu0 0.0
    %3477 = vmatpush1.msra.mxu0 %v807
    %3478 = vmatprep.subr.mxu0 0.0
    %3479 = vmatpush1.msra.mxu0 %v810
    %3480 = vmatprep.subr.mxu0 0.0
    %3481 = vmatpush1.msra.mxu0 %v813
    %3482 = vmatprep.subr.mxu0 0.0
    %3483 = vmatpush1.msra.mxu0 %v816
    %3484 = vmatprep.subr.mxu0 0.0
    %3485 = vmatpush1.msra.mxu0 %v819
    %3486 = vmatprep.subr.mxu0 0.0
    %3487 = vmatpush1.msra.mxu0 %v822
    %3488 = vmatprep.subr.mxu0 0.0
    %3489 = vmatpush1.msra.mxu0 %v825
    %3490 = vmatprep.subr.mxu0 0.0
    %3491 = vmatpush1.msra.mxu0 0.0
    %3492 = vmatprep.subr.mxu0 0.0
    %3493 = vmatpush1.msra.mxu0 0.0
    %3494 = vmatprep.subr.mxu0 0.0
    %3495 = vmatpush1.msra.mxu0 0.0
    %3496 = vmatprep.subr.mxu0 0.0
    %3497 = vmatpush1.msra.mxu0 0.0
    %3498 = vmatprep.subr.mxu0 0.0
    %3499 = vmatpush1.msra.mxu0 0.0
    %3500 = vmatprep.subr.mxu0 0.0
    %3501 = vmatpush1.msra.mxu0 0.0
    %3502 = vmatprep.subr.mxu0 0.0
    %3503 = vmatpush1.msra.mxu0 0.0
    %3504 = vmatprep.subr.mxu0 0.0
    %3505 = vmatpush1.msra.mxu0 0.0
    %3506 = vmatprep.subr.mxu0 0.0
    %3507 = vmatpush1.msra.mxu0 0.0
    %3508 = vmatprep.subr.mxu0 0.0
    %3509 = vmatpush1.msra.mxu0 0.0
    %3510 = vmatprep.subr.mxu0 0.0
    %3511 = vmatpush1.msra.mxu0 0.0
    %3512 = vmatprep.subr.mxu0 0.0
    %3513 = vmatpush1.msra.mxu0 0.0
    %3514 = vmatprep.subr.mxu0 0.0
    %3515 = vmatpush1.msra.mxu0 0.0
    %3516 = vmatprep.subr.mxu0 0.0
    %3517 = vmatpush1.msra.mxu0 0.0
    %3518 = vmatprep.subr.mxu0 0.0
    %3519 = vmatpush1.msra.mxu0 0.0
    %3520 = vmatprep.subr.mxu0 0.0
    %3521 = vmatpush1.msra.mxu0 0.0
    %3522 = vmatprep.mubr.f32.mxu0 0.0
    %3523 = vmatmul.mubr.f32.gmra.mrb[0].mxu0 %v3384
    %v3524 = vpop.f32.mrb[0].mxu0
    %v3525 = vadd.f32 0.0, %v3524
    %v3526 = vpop.f32.mrb[0].mxu0
    %3527 = vdwg.mxu0
    %v3528 = vadd.f32 %v3157, %v3454
    %v3529 = vadd.f32 %v3159, %v3456
    %v3530 = vadd.f32 %v3228, %v3525
    %v3532 = vlaneseq
    %v3533 = vshrl.u32 %v3532, 7
    %v3534 = vsub.s32 0, %v3533
    %v3535 = vrot.slane %v826, %v3534
    %v3536 = vlaneseq
    %v3537 = vshrl.u32 %v3536, 7
    %v3538 = vsub.s32 1, %v3537
    %v3539 = vrot.slane %v826, %v3538
    %v3540 = vlaneseq
    %v3541 = vshrl.u32 %v3540, 7
    %v3542 = vsub.s32 2, %v3541
    %v3543 = vrot.slane %v826, %v3542
    %v3547 = vadd.f32 %v2634, %v3535
    %v3548 = vadd.f32 %v2635, %v3539
    %v3549 = vadd.f32 %v2636, %v3543
    %v3550 = vadd.f32 %v3528, %v3535
    %v3551 = vadd.f32 %v3529, %v3539
    %v3552 = vadd.f32 %v3530, %v3543
    %v3553 = vadd.f32 %v242, %v3547
    %v3554 = vadd.f32 %v243, %v3548
    %v3555 = vadd.f32 %v244, %v3549
    %v3556 = vadd.f32 %v245, %v3550
    %v3557 = vadd.f32 %v246, %v3551
    %v3558 = vadd.f32 %v247, %v3552
    %v3559 = vadd.f32 %v3553, %v3554
    %v3560 = vadd.f32 %v3559, %v3555
    %3561 = vadd.xlane.f32.xlu0 %v3560
    %v3562 = vpop.xlane.xlu0 %3561
    %v3563 = vadd.f32 %v3556, %v3557
    %v3564 = vadd.f32 %v3563, %v3558
    %3565 = vadd.xlane.f32.xlu0 %v3564
    %v3566 = vpop.xlane.xlu0 %3565
    %v3567 = vrcp.pop 384.0
    %v3568 = vmul.f32 %v3562, %v3567
    %v3569 = vmul.f32 %v3566, %v3567
    %v3570 = vsub.f32 %v3553, %v3568
    %v3571 = vsub.f32 %v3554, %v3568
    %v3572 = vsub.f32 %v3555, %v3568
    %v3573 = vsub.f32 %v3556, %v3569
    %v3574 = vsub.f32 %v3557, %v3569
    %v3575 = vsub.f32 %v3558, %v3569
    %v3576 = vmul.f32 %v3570, %v3570
    %v3577 = vmul.f32 %v3571, %v3571
    %v3578 = vmul.f32 %v3572, %v3572
    %v3579 = vmul.f32 %v3573, %v3573
    %v3580 = vmul.f32 %v3574, %v3574
    %v3581 = vmul.f32 %v3575, %v3575
    %v3582 = vadd.f32 %v3576, %v3577
    %v3583 = vadd.f32 %v3582, %v3578
    %3584 = vadd.xlane.f32.xlu0 %v3583
    %v3585 = vpop.xlane.xlu0 %3584
    %v3586 = vadd.f32 %v3579, %v3580
    %v3587 = vadd.f32 %v3586, %v3581
    %3588 = vadd.xlane.f32.xlu0 %v3587
    %v3589 = vpop.xlane.xlu0 %3588
    %v3590 = vmul.f32 %v3585, %v3567
    %v3591 = vmul.f32 %v3589, %v3567
    %v3592 = vadd.f32 %v3590, 1e-05
    %v3593 = vadd.f32 %v3591, 1e-05
    %v3594 = vrsqrt.pop %v3592
    %v3595 = vrsqrt.pop %v3593
    %v3596 = vmul.f32 %v3570, %v3594
    %v3597 = vmul.f32 %v3571, %v3594
    %v3598 = vmul.f32 %v3572, %v3594
    %v3599 = vmul.f32 %v3573, %v3595
    %v3600 = vmul.f32 %v3574, %v3595
    %v3601 = vmul.f32 %v3575, %v3595
    %v3603 = vlaneseq
    %v3604 = vshrl.u32 %v3603, 7
    %v3605 = vsub.s32 0, %v3604
    %v3606 = vrot.slane %v827, %v3605
    %v3607 = vlaneseq
    %v3608 = vshrl.u32 %v3607, 7
    %v3609 = vsub.s32 1, %v3608
    %v3610 = vrot.slane %v827, %v3609
    %v3611 = vlaneseq
    %v3612 = vshrl.u32 %v3611, 7
    %v3613 = vsub.s32 2, %v3612
    %v3614 = vrot.slane %v827, %v3613
    %v3618 = vmul.f32 %v3596, %v3606
    %v3619 = vmul.f32 %v3597, %v3610
    %v3620 = vmul.f32 %v3598, %v3614
    %v3621 = vmul.f32 %v3599, %v3606
    %v3622 = vmul.f32 %v3600, %v3610
    %v3623 = vmul.f32 %v3601, %v3614
    %v3625 = vlaneseq
    %v3626 = vshrl.u32 %v3625, 7
    %v3627 = vsub.s32 0, %v3626
    %v3628 = vrot.slane %v828, %v3627
    %v3629 = vlaneseq
    %v3630 = vshrl.u32 %v3629, 7
    %v3631 = vsub.s32 1, %v3630
    %v3632 = vrot.slane %v828, %v3631
    %v3633 = vlaneseq
    %v3634 = vshrl.u32 %v3633, 7
    %v3635 = vsub.s32 2, %v3634
    %v3636 = vrot.slane %v828, %v3635
    %v3640 = vadd.f32 %v3618, %v3628
    %v3641 = vadd.f32 %v3619, %v3632
    %v3642 = vadd.f32 %v3620, %v3636
    %v3643 = vadd.f32 %v3621, %v3628
    %v3644 = vadd.f32 %v3622, %v3632
    %v3645 = vadd.f32 %v3623, %v3636
    %v3647 = vlaneseq
    %v3648 = vshrl.u32 %v3647, 7
    %v3649 = vsub.s32 0, %v3648
    %v3650 = vrot.slane %v877, %v3649
    %3652 = vmatprep.subr.mxu0 0.0
    %3653 = vmatpush1.msra.mxu0 %v829
    %3654 = vmatprep.subr.mxu0 0.0
    %3655 = vmatpush1.msra.mxu0 %v830
    %3656 = vmatprep.subr.mxu0 0.0
    %3657 = vmatpush1.msra.mxu0 %v831
    %3658 = vmatprep.subr.mxu0 0.0
    %3659 = vmatpush1.msra.mxu0 %v832
    %3660 = vmatprep.subr.mxu0 0.0
    %3661 = vmatpush1.msra.mxu0 %v833
    %3662 = vmatprep.subr.mxu0 0.0
    %3663 = vmatpush1.msra.mxu0 %v834
    %3664 = vmatprep.subr.mxu0 0.0
    %3665 = vmatpush1.msra.mxu0 %v835
    %3666 = vmatprep.subr.mxu0 0.0
    %3667 = vmatpush1.msra.mxu0 %v836
    %3668 = vmatprep.subr.mxu0 0.0
    %3669 = vmatpush1.msra.mxu0 %v837
    %3670 = vmatprep.subr.mxu0 0.0
    %3671 = vmatpush1.msra.mxu0 %v838
    %3672 = vmatprep.subr.mxu0 0.0
    %3673 = vmatpush1.msra.mxu0 %v839
    %3674 = vmatprep.subr.mxu0 0.0
    %3675 = vmatpush1.msra.mxu0 %v840
    %3676 = vmatprep.subr.mxu0 0.0
    %3677 = vmatpush1.msra.mxu0 %v841
    %3678 = vmatprep.subr.mxu0 0.0
    %3679 = vmatpush1.msra.mxu0 %v842
    %3680 = vmatprep.subr.mxu0 0.0
    %3681 = vmatpush1.msra.mxu0 %v843
    %3682 = vmatprep.subr.mxu0 0.0
    %3683 = vmatpush1.msra.mxu0 %v844
    %3684 = vmatprep.subr.mxu0 0.0
    %3685 = vmatpush1.msra.mxu0 %v845
    %3686 = vmatprep.subr.mxu0 0.0
    %3687 = vmatpush1.msra.mxu0 %v846
    %3688 = vmatprep.subr.mxu0 0.0
    %3689 = vmatpush1.msra.mxu0 %v847
    %3690 = vmatprep.subr.mxu0 0.0
    %3691 = vmatpush1.msra.mxu0 %v848
    %3692 = vmatprep.subr.mxu0 0.0
    %3693 = vmatpush1.msra.mxu0 %v849
    %3694 = vmatprep.subr.mxu0 0.0
    %3695 = vmatpush1.msra.mxu0 %v850
    %3696 = vmatprep.subr.mxu0 0.0
    %3697 = vmatpush1.msra.mxu0 %v851
    %3698 = vmatprep.subr.mxu0 0.0
    %3699 = vmatpush1.msra.mxu0 %v852
    %3700 = vmatprep.subr.mxu0 0.0
    %3701 = vmatpush1.msra.mxu0 %v853
    %3702 = vmatprep.subr.mxu0 0.0
    %3703 = vmatpush1.msra.mxu0 %v854
    %3704 = vmatprep.subr.mxu0 0.0
    %3705 = vmatpush1.msra.mxu0 %v855
    %3706 = vmatprep.subr.mxu0 0.0
    %3707 = vmatpush1.msra.mxu0 %v856
    %3708 = vmatprep.subr.mxu0 0.0
    %3709 = vmatpush1.msra.mxu0 %v857
    %3710 = vmatprep.subr.mxu0 0.0
    %3711 = vmatpush1.msra.mxu0 %v858
    %3712 = vmatprep.subr.mxu0 0.0
    %3713 = vmatpush1.msra.mxu0 %v859
    %3714 = vmatprep.subr.mxu0 0.0
    %3715 = vmatpush1.msra.mxu0 %v860
    %3716 = vmatprep.mubr.f32.mxu0 %v3641
    %3717 = vmatmul.mubr.f32.gmra.mrb[0].mxu0 %v3640
    %v3718 = vpop.f32.mrb[0].mxu0
    %v3719 = vadd.f32 %v3650, %v3718
    %v3720 = vpop.f32.mrb[0].mxu0
    %3721 = vmatprep.mubr.f32.mxu0 %v3644
    %3722 = vmatmul.mubr.f32.gmra.mrb[0].mxu0 %v3643
    %v3723 = vpop.f32.mrb[0].mxu0
    %v3724 = vadd.f32 %v3650, %v3723
    %v3725 = vpop.f32.mrb[0].mxu0
    %3726 = vdwg.mxu0
    %3727 = vmatprep.subr.mxu0 0.0
    %3728 = vmatpush1.msra.mxu0 %v861
    %3729 = vmatprep.subr.mxu0 0.0
    %3730 = vmatpush1.msra.mxu0 %v862
    %3731 = vmatprep.subr.mxu0 0.0
    %3732 = vmatpush1.msra.mxu0 %v863
    %3733 = vmatprep.subr.mxu0 0.0
    %3734 = vmatpush1.msra.mxu0 %v864
    %3735 = vmatprep.subr.mxu0 0.0
    %3736 = vmatpush1.msra.mxu0 %v865
    %3737 = vmatprep.subr.mxu0 0.0
    %3738 = vmatpush1.msra.mxu0 %v866
    %3739 = vmatprep.subr.mxu0 0.0
    %3740 = vmatpush1.msra.mxu0 %v867
    %3741 = vmatprep.subr.mxu0 0.0
    %3742 = vmatpush1.msra.mxu0 %v868
    %3743 = vmatprep.subr.mxu0 0.0
    %3744 = vmatpush1.msra.mxu0 %v869
    %3745 = vmatprep.subr.mxu0 0.0
    %3746 = vmatpush1.msra.mxu0 %v870
    %3747 = vmatprep.subr.mxu0 0.0
    %3748 = vmatpush1.msra.mxu0 %v871
    %3749 = vmatprep.subr.mxu0 0.0
    %3750 = vmatpush1.msra.mxu0 %v872
    %3751 = vmatprep.subr.mxu0 0.0
    %3752 = vmatpush1.msra.mxu0 %v873
    %3753 = vmatprep.subr.mxu0 0.0
    %3754 = vmatpush1.msra.mxu0 %v874
    %3755 = vmatprep.subr.mxu0 0.0
    %3756 = vmatpush1.msra.mxu0 %v875
    %3757 = vmatprep.subr.mxu0 0.0
    %3758 = vmatpush1.msra.mxu0 %v876
    %3759 = vmatprep.subr.mxu0 0.0
    %3760 = vmatpush1.msra.mxu0 0.0
    %3761 = vmatprep.subr.mxu0 0.0
    %3762 = vmatpush1.msra.mxu0 0.0
    %3763 = vmatprep.subr.mxu0 0.0
    %3764 = vmatpush1.msra.mxu0 0.0
    %3765 = vmatprep.subr.mxu0 0.0
    %3766 = vmatpush1.msra.mxu0 0.0
    %3767 = vmatprep.subr.mxu0 0.0
    %3768 = vmatpush1.msra.mxu0 0.0
    %3769 = vmatprep.subr.mxu0 0.0
    %3770 = vmatpush1.msra.mxu0 0.0
    %3771 = vmatprep.subr.mxu0 0.0
    %3772 = vmatpush1.msra.mxu0 0.0
    %3773 = vmatprep.subr.mxu0 0.0
    %3774 = vmatpush1.msra.mxu0 0.0
    %3775 = vmatprep.subr.mxu0 0.0
    %3776 = vmatpush1.msra.mxu0 0.0
    %3777 = vmatprep.subr.mxu0 0.0
    %3778 = vmatpush1.msra.mxu0 0.0
    %3779 = vmatprep.subr.mxu0 0.0
    %3780 = vmatpush1.msra.mxu0 0.0
    %3781 = vmatprep.subr.mxu0 0.0
    %3782 = vmatpush1.msra.mxu0 0.0
    %3783 = vmatprep.subr.mxu0 0.0
    %3784 = vmatpush1.msra.mxu0 0.0
    %3785 = vmatprep.subr.mxu0 0.0
    %3786 = vmatpush1.msra.mxu0 0.0
    %3787 = vmatprep.subr.mxu0 0.0
    %3788 = vmatpush1.msra.mxu0 0.0
    %3789 = vmatprep.subr.mxu0 0.0
    %3790 = vmatpush1.msra.mxu0 0.0
    %3791 = vmatprep.mubr.f32.mxu0 0.0
    %3792 = vmatmul.mubr.f32.gmra.mrb[0].mxu0 %v3642
    %v3793 = vpop.f32.mrb[0].mxu0
    %v3794 = vadd.f32 %v3719, %v3793
    %v3795 = vpop.f32.mrb[0].mxu0
    %3796 = vmatprep.mubr.f32.mxu0 0.0
    %3797 = vmatmul.mubr.f32.gmra.mrb[0].mxu0 %v3645
    %v3798 = vpop.f32.mrb[0].mxu0
    %v3799 = vadd.f32 %v3724, %v3798
    %v3800 = vpop.f32.mrb[0].mxu0
    %3801 = vdwg.mxu0
    %v3802 = vmax.f32 %v3794, 0.0
    %v3803 = vmax.f32 %v3799, 0.0
    %v3805 = vlaneseq
    %v3806 = vshrl.u32 %v3805, 7
    %v3807 = vsub.s32 0, %v3806
    %v3808 = vrot.slane %v926, %v3807
    %v3809 = vlaneseq
    %v3810 = vshrl.u32 %v3809, 7
    %v3811 = vsub.s32 1, %v3810
    %v3812 = vrot.slane %v926, %v3811
    %v3813 = vlaneseq
    %v3814 = vshrl.u32 %v3813, 7
    %v3815 = vsub.s32 2, %v3814
    %v3816 = vrot.slane %v926, %v3815
    %3820 = vmatprep.subr.mxu0 %v879
    %3821 = vmatpush1.msra.mxu0 %v878
    %3822 = vmatprep.subr.mxu0 %v882
    %3823 = vmatpush1.msra.mxu0 %v881
    %3824 = vmatprep.subr.mxu0 %v885
    %3825 = vmatpush1.msra.mxu0 %v884
    %3826 = vmatprep.subr.mxu0 %v888
    %3827 = vmatpush1.msra.mxu0 %v887
    %3828 = vmatprep.subr.mxu0 %v891
    %3829 = vmatpush1.msra.mxu0 %v890
    %3830 = vmatprep.subr.mxu0 %v894
    %3831 = vmatpush1.msra.mxu0 %v893
    %3832 = vmatprep.subr.mxu0 %v897
    %3833 = vmatpush1.msra.mxu0 %v896
    %3834 = vmatprep.subr.mxu0 %v900
    %3835 = vmatpush1.msra.mxu0 %v899
    %3836 = vmatprep.subr.mxu0 %v903
    %3837 = vmatpush1.msra.mxu0 %v902
    %3838 = vmatprep.subr.mxu0 %v906
    %3839 = vmatpush1.msra.mxu0 %v905
    %3840 = vmatprep.subr.mxu0 %v909
    %3841 = vmatpush1.msra.mxu0 %v908
    %3842 = vmatprep.subr.mxu0 %v912
    %3843 = vmatpush1.msra.mxu0 %v911
    %3844 = vmatprep.subr.mxu0 %v915
    %3845 = vmatpush1.msra.mxu0 %v914
    %3846 = vmatprep.subr.mxu0 %v918
    %3847 = vmatpush1.msra.mxu0 %v917
    %3848 = vmatprep.subr.mxu0 %v921
    %3849 = vmatpush1.msra.mxu0 %v920
    %3850 = vmatprep.subr.mxu0 %v924
    %3851 = vmatpush1.msra.mxu0 %v923
    %3852 = vmatprep.subr.mxu0 0.0
    %3853 = vmatpush1.msra.mxu0 0.0
    %3854 = vmatprep.subr.mxu0 0.0
    %3855 = vmatpush1.msra.mxu0 0.0
    %3856 = vmatprep.subr.mxu0 0.0
    %3857 = vmatpush1.msra.mxu0 0.0
    %3858 = vmatprep.subr.mxu0 0.0
    %3859 = vmatpush1.msra.mxu0 0.0
    %3860 = vmatprep.subr.mxu0 0.0
    %3861 = vmatpush1.msra.mxu0 0.0
    %3862 = vmatprep.subr.mxu0 0.0
    %3863 = vmatpush1.msra.mxu0 0.0
    %3864 = vmatprep.subr.mxu0 0.0
    %3865 = vmatpush1.msra.mxu0 0.0
    %3866 = vmatprep.subr.mxu0 0.0
    %3867 = vmatpush1.msra.mxu0 0.0
    %3868 = vmatprep.subr.mxu0 0.0
    %3869 = vmatpush1.msra.mxu0 0.0
    %3870 = vmatprep.subr.mxu0 0.0
    %3871 = vmatpush1.msra.mxu0 0.0
    %3872 = vmatprep.subr.mxu0 0.0
    %3873 = vmatpush1.msra.mxu0 0.0
    %3874 = vmatprep.subr.mxu0 0.0
    %3875 = vmatpush1.msra.mxu0 0.0
    %3876 = vmatprep.subr.mxu0 0.0
    %3877 = vmatpush1.msra.mxu0 0.0
    %3878 = vmatprep.subr.mxu0 0.0
    %3879 = vmatpush1.msra.mxu0 0.0
    %3880 = vmatprep.subr.mxu0 0.0
    %3881 = vmatpush1.msra.mxu0 0.0
    %3882 = vmatprep.subr.mxu0 0.0
    %3883 = vmatpush1.msra.mxu0 0.0
    %3884 = vmatprep.mubr.f32.mxu0 0.0
    %3885 = vmatmul.mubr.f32.gmra.mrb[0].mxu0 %v3802
    %v3886 = vpop.f32.mrb[0].mxu0
    %v3887 = vadd.f32 %v3808, %v3886
    %v3888 = vpop.f32.mrb[0].mxu0
    %v3889 = vadd.f32 %v3812, %v3888
    %3890 = vmatprep.mubr.f32.mxu0 0.0
    %3891 = vmatmul.mubr.f32.gmra.mrb[0].mxu0 %v3803
    %v3892 = vpop.f32.mrb[0].mxu0
    %v3893 = vadd.f32 %v3808, %v3892
    %v3894 = vpop.f32.mrb[0].mxu0
    %v3895 = vadd.f32 %v3812, %v3894
    %3896 = vdwg.mxu0
    %3897 = vmatprep.subr.mxu0 0.0
    %3898 = vmatpush1.msra.mxu0 %v880
    %3899 = vmatprep.subr.mxu0 0.0
    %3900 = vmatpush1.msra.mxu0 %v883
    %3901 = vmatprep.subr.mxu0 0.0
    %3902 = vmatpush1.msra.mxu0 %v886
    %3903 = vmatprep.subr.mxu0 0.0
    %3904 = vmatpush1.msra.mxu0 %v889
    %3905 = vmatprep.subr.mxu0 0.0
    %3906 = vmatpush1.msra.mxu0 %v892
    %3907 = vmatprep.subr.mxu0 0.0
    %3908 = vmatpush1.msra.mxu0 %v895
    %3909 = vmatprep.subr.mxu0 0.0
    %3910 = vmatpush1.msra.mxu0 %v898
    %3911 = vmatprep.subr.mxu0 0.0
    %3912 = vmatpush1.msra.mxu0 %v901
    %3913 = vmatprep.subr.mxu0 0.0
    %3914 = vmatpush1.msra.mxu0 %v904
    %3915 = vmatprep.subr.mxu0 0.0
    %3916 = vmatpush1.msra.mxu0 %v907
    %3917 = vmatprep.subr.mxu0 0.0
    %3918 = vmatpush1.msra.mxu0 %v910
    %3919 = vmatprep.subr.mxu0 0.0
    %3920 = vmatpush1.msra.mxu0 %v913
    %3921 = vmatprep.subr.mxu0 0.0
    %3922 = vmatpush1.msra.mxu0 %v916
    %3923 = vmatprep.subr.mxu0 0.0
    %3924 = vmatpush1.msra.mxu0 %v919
    %3925 = vmatprep.subr.mxu0 0.0
    %3926 = vmatpush1.msra.mxu0 %v922
    %3927 = vmatprep.subr.mxu0 0.0
    %3928 = vmatpush1.msra.mxu0 %v925
    %3929 = vmatprep.subr.mxu0 0.0
    %3930 = vmatpush1.msra.mxu0 0.0
    %3931 = vmatprep.subr.mxu0 0.0
    %3932 = vmatpush1.msra.mxu0 0.0
    %3933 = vmatprep.subr.mxu0 0.0
    %3934 = vmatpush1.msra.mxu0 0.0
    %3935 = vmatprep.subr.mxu0 0.0
    %3936 = vmatpush1.msra.mxu0 0.0
    %3937 = vmatprep.subr.mxu0 0.0
    %3938 = vmatpush1.msra.mxu0 0.0
    %3939 = vmatprep.subr.mxu0 0.0
    %3940 = vmatpush1.msra.mxu0 0.0
    %3941 = vmatprep.subr.mxu0 0.0
    %3942 = vmatpush1.msra.mxu0 0.0
    %3943 = vmatprep.subr.mxu0 0.0
    %3944 = vmatpush1.msra.mxu0 0.0
    %3945 = vmatprep.subr.mxu0 0.0
    %3946 = vmatpush1.msra.mxu0 0.0
    %3947 = vmatprep.subr.mxu0 0.0
    %3948 = vmatpush1.msra.mxu0 0.0
    %3949 = vmatprep.subr.mxu0 0.0
    %3950 = vmatpush1.msra.mxu0 0.0
    %3951 = vmatprep.subr.mxu0 0.0
    %3952 = vmatpush1.msra.mxu0 0.0
    %3953 = vmatprep.subr.mxu0 0.0
    %3954 = vmatpush1.msra.mxu0 0.0
    %3955 = vmatprep.subr.mxu0 0.0
    %3956 = vmatpush1.msra.mxu0 0.0
    %3957 = vmatprep.subr.mxu0 0.0
    %3958 = vmatpush1.msra.mxu0 0.0
    %3959 = vmatprep.subr.mxu0 0.0
    %3960 = vmatpush1.msra.mxu0 0.0
    %3961 = vmatprep.mubr.f32.mxu0 0.0
    %3962 = vmatmul.mubr.f32.gmra.mrb[0].mxu0 %v3802
    %v3963 = vpop.f32.mrb[0].mxu0
    %v3964 = vadd.f32 %v3816, %v3963
    %v3965 = vpop.f32.mrb[0].mxu0
    %3966 = vmatprep.mubr.f32.mxu0 0.0
    %3967 = vmatmul.mubr.f32.gmra.mrb[0].mxu0 %v3803
    %v3968 = vpop.f32.mrb[0].mxu0
    %v3969 = vadd.f32 %v3816, %v3968
    %v3970 = vpop.f32.mrb[0].mxu0
    %3971 = vdwg.mxu0
    %v3972 = vadd.f32 %v3640, %v3887
    %v3973 = vadd.f32 %v3641, %v3889
    %v3974 = vadd.f32 %v3642, %v3964
    %v3975 = vadd.f32 %v3643, %v3893
    %v3976 = vadd.f32 %v3644, %v3895
    %v3977 = vadd.f32 %v3645, %v3969
    %v3978 = vadd.f32 %v3972, %v3973
    %v3979 = vadd.f32 %v3978, %v3974
    %3980 = vadd.xlane.f32.xlu0 %v3979
    %v3981 = vpop.xlane.xlu0 %3980
    %v3982 = vadd.f32 %v3975, %v3976
    %v3983 = vadd.f32 %v3982, %v3977
    %3984 = vadd.xlane.f32.xlu0 %v3983
    %v3985 = vpop.xlane.xlu0 %3984
    %v3986 = vmul.f32 %v3981, %v3567
    %v3987 = vmul.f32 %v3985, %v3567
    %v3988 = vsub.f32 %v3972, %v3986
    %v3989 = vsub.f32 %v3973, %v3986
    %v3990 = vsub.f32 %v3974, %v3986
    %v3991 = vsub.f32 %v3975, %v3987
    %v3992 = vsub.f32 %v3976, %v3987
    %v3993 = vsub.f32 %v3977, %v3987
    %v3994 = vmul.f32 %v3988, %v3988
    %v3995 = vmul.f32 %v3989, %v3989
    %v3996 = vmul.f32 %v3990, %v3990
    %v3997 = vmul.f32 %v3991, %v3991
    %v3998 = vmul.f32 %v3992, %v3992
    %v3999 = vmul.f32 %v3993, %v3993
    %v4000 = vadd.f32 %v3994, %v3995
    %v4001 = vadd.f32 %v4000, %v3996
    %4002 = vadd.xlane.f32.xlu0 %v4001
    %v4003 = vpop.xlane.xlu0 %4002
    %v4004 = vadd.f32 %v3997, %v3998
    %v4005 = vadd.f32 %v4004, %v3999
    %4006 = vadd.xlane.f32.xlu0 %v4005
    %v4007 = vpop.xlane.xlu0 %4006
    %v4008 = vmul.f32 %v4003, %v3567
    %v4009 = vmul.f32 %v4007, %v3567
    %v4010 = vadd.f32 %v4008, 1e-05
    %v4011 = vadd.f32 %v4009, 1e-05
    %v4012 = vrsqrt.pop %v4010
    %v4013 = vrsqrt.pop %v4011
    %v4014 = vmul.f32 %v3988, %v4012
    %v4015 = vmul.f32 %v3989, %v4012
    %v4016 = vmul.f32 %v3990, %v4012
    %v4017 = vmul.f32 %v3991, %v4013
    %v4018 = vmul.f32 %v3992, %v4013
    %v4019 = vmul.f32 %v3993, %v4013
    %v4021 = vlaneseq
    %v4022 = vshrl.u32 %v4021, 7
    %v4023 = vsub.s32 0, %v4022
    %v4024 = vrot.slane %v927, %v4023
    %v4025 = vlaneseq
    %v4026 = vshrl.u32 %v4025, 7
    %v4027 = vsub.s32 1, %v4026
    %v4028 = vrot.slane %v927, %v4027
    %v4029 = vlaneseq
    %v4030 = vshrl.u32 %v4029, 7
    %v4031 = vsub.s32 2, %v4030
    %v4032 = vrot.slane %v927, %v4031
    %v4036 = vmul.f32 %v4014, %v4024
    %v4037 = vmul.f32 %v4015, %v4028
    %v4038 = vmul.f32 %v4016, %v4032
    %v4039 = vmul.f32 %v4017, %v4024
    %v4040 = vmul.f32 %v4018, %v4028
    %v4041 = vmul.f32 %v4019, %v4032
    %v4043 = vlaneseq
    %v4044 = vshrl.u32 %v4043, 7
    %v4045 = vsub.s32 0, %v4044
    %v4046 = vrot.slane %v928, %v4045
    %v4047 = vlaneseq
    %v4048 = vshrl.u32 %v4047, 7
    %v4049 = vsub.s32 1, %v4048
    %v4050 = vrot.slane %v928, %v4049
    %v4051 = vlaneseq
    %v4052 = vshrl.u32 %v4051, 7
    %v4053 = vsub.s32 2, %v4052
    %v4054 = vrot.slane %v928, %v4053
    %v4058 = vadd.f32 %v4036, %v4046
    %v4059 = vadd.f32 %v4037, %v4050
    %v4060 = vadd.f32 %v4038, %v4054
    %v4061 = vadd.f32 %v4039, %v4046
    %v4062 = vadd.f32 %v4040, %v4050
    %v4063 = vadd.f32 %v4041, %v4054
    %v4064 = vadd.f32 %v4058, %v242
    %v4065 = vadd.f32 %v4059, %v243
    %v4066 = vadd.f32 %v4060, %v244
    %v4067 = vadd.f32 %v4061, %v245
    %v4068 = vadd.f32 %v4062, %v246
    %v4069 = vadd.f32 %v4063, %v247
    %s4070 = scalar_lea.vmem [#allocation7], 3456
    %v4071 = vld [vmem:[%s4070] sm:$0xff]
    %v4072 = vld [vmem:[%s4070 + $0x8] sm:$0xff]
    %v4073 = vld [vmem:[%s4070 + $0x10] sm:$0xff]
    %v4074 = vld [vmem:[%s4070 + $0x18] sm:$0xff]
    %v4075 = vld [vmem:[%s4070 + $0x20] sm:$0xff]
    %v4076 = vld [vmem:[%s4070 + $0x28] sm:$0xff]
    %v4077 = vld [vmem:[%s4070 + $0x30] sm:$0xff]
    %v4078 = vld [vmem:[%s4070 + $0x38] sm:$0xff]
    %v4079 = vld [vmem:[%s4070 + $0x40] sm:$0xff]
    %v4080 = vld [vmem:[%s4070 + $0x48] sm:$0xff]
    %v4081 = vld [vmem:[%s4070 + $0x50] sm:$0xff]
    %v4082 = vld [vmem:[%s4070 + $0x58] sm:$0xff]
    %v4083 = vld [vmem:[%s4070 + $0x60] sm:$0xff]
    %v4084 = vld [vmem:[%s4070 + $0x68] sm:$0xff]
    %v4085 = vld [vmem:[%s4070 + $0x70] sm:$0xff]
    %v4086 = vld [vmem:[%s4070 + $0x78] sm:$0xff]
    %v4087 = vld [vmem:[%s4070 + $0x80] sm:$0xff]
    %v4088 = vld [vmem:[%s4070 + $0x88] sm:$0xff]
    %v4089 = vld [vmem:[%s4070 + $0x90] sm:$0xff]
    %v4090 = vld [vmem:[%s4070 + $0x98] sm:$0xff]
    %v4091 = vld [vmem:[%s4070 + $0xa0] sm:$0xff]
    %v4092 = vld [vmem:[%s4070 + $0xa8] sm:$0xff]
    %v4093 = vld [vmem:[%s4070 + $0xb0] sm:$0xff]
    %v4094 = vld [vmem:[%s4070 + $0xb8] sm:$0xff]
    %v4095 = vld [vmem:[%s4070 + $0xc0] sm:$0xff]
    %v4096 = vld [vmem:[%s4070 + $0xc8] sm:$0xff]
    %v4097 = vld [vmem:[%s4070 + $0xd0] sm:$0xff]
    %v4098 = vld [vmem:[%s4070 + $0xd8] sm:$0xff]
    %v4099 = vld [vmem:[%s4070 + $0xe0] sm:$0xff]
    %v4100 = vld [vmem:[%s4070 + $0xe8] sm:$0xff]
    %v4101 = vld [vmem:[%s4070 + $0xf0] sm:$0xff]
    %v4102 = vld [vmem:[%s4070 + $0xf8] sm:$0xff]
    %v4103 = vld [vmem:[%s4070 + $0x100] sm:$0xff]
    %v4104 = vld [vmem:[%s4070 + $0x108] sm:$0xff]
    %v4105 = vld [vmem:[%s4070 + $0x110] sm:$0xff]
    %v4106 = vld [vmem:[%s4070 + $0x118] sm:$0xff]
    %v4107 = vld [vmem:[%s4070 + $0x120] sm:$0xff]
    %v4108 = vld [vmem:[%s4070 + $0x128] sm:$0xff]
    %v4109 = vld [vmem:[%s4070 + $0x130] sm:$0xff]
    %v4110 = vld [vmem:[%s4070 + $0x138] sm:$0xff]
    %v4111 = vld [vmem:[%s4070 + $0x140] sm:$0xff]
    %v4112 = vld [vmem:[%s4070 + $0x148] sm:$0xff]
    %v4113 = vld [vmem:[%s4070 + $0x150] sm:$0xff]
    %v4114 = vld [vmem:[%s4070 + $0x158] sm:$0xff]
    %v4115 = vld [vmem:[%s4070 + $0x160] sm:$0xff]
    %v4116 = vld [vmem:[%s4070 + $0x168] sm:$0xff]
    %v4117 = vld [vmem:[%s4070 + $0x170] sm:$0xff]
    %v4118 = vld [vmem:[%s4070 + $0x178] sm:$0xff]
    %v4119 = vld [vmem:[%s4070 + $0x180] sm:$0xff]
    %v4120 = vld [vmem:[%s4070 + $0x188] sm:$0xff]
    %v4121 = vld [vmem:[%s4070 + $0x190] sm:$0xff]
    %v4122 = vld [vmem:[%s4070 + $0x198] sm:$0xff]
    %v4123 = vld [vmem:[%s4070 + $0x1a0] sm:$0xff]
    %v4124 = vld [vmem:[%s4070 + $0x1a8] sm:$0xff]
    %v4125 = vld [vmem:[%s4070 + $0x1b0] sm:$0xff]
    %v4126 = vld [vmem:[%s4070 + $0x1b8] sm:$0xff]
    %v4127 = vld [vmem:[%s4070 + $0x1c0] sm:$0xff]
    %v4128 = vld [vmem:[%s4070 + $0x1c8] sm:$0xff]
    %v4129 = vld [vmem:[%s4070 + $0x1d0] sm:$0xff]
    %v4130 = vld [vmem:[%s4070 + $0x1d8] sm:$0xff]
    %v4131 = vld [vmem:[%s4070 + $0x1e0] sm:$0xff]
    %v4132 = vld [vmem:[%s4070 + $0x1e8] sm:$0xff]
    %v4133 = vld [vmem:[%s4070 + $0x1f0] sm:$0xff]
    %v4134 = vld [vmem:[%s4070 + $0x1f8] sm:$0xff]
    %v4135 = vld [vmem:[%s4070 + $0x200] sm:$0xff]
    %v4136 = vld [vmem:[%s4070 + $0x208] sm:$0xff]
    %v4137 = vld [vmem:[%s4070 + $0x210] sm:$0xff]
    %v4138 = vld [vmem:[%s4070 + $0x218] sm:$0xff]
    %v4139 = vld [vmem:[%s4070 + $0x220] sm:$0xff]
    %v4140 = vld [vmem:[%s4070 + $0x228] sm:$0xff]
    %v4141 = vld [vmem:[%s4070 + $0x230] sm:$0xff]
    %v4142 = vld [vmem:[%s4070 + $0x238] sm:$0xff]
    %v4143 = vld [vmem:[%s4070 + $0x240] sm:$0xff]
    %v4144 = vld [vmem:[%s4070 + $0x248] sm:$0xff]
    %v4145 = vld [vmem:[%s4070 + $0x250] sm:$0xff]
    %v4146 = vld [vmem:[%s4070 + $0x258] sm:$0xff]
    %v4147 = vld [vmem:[%s4070 + $0x260] sm:$0xff]
    %v4148 = vld [vmem:[%s4070 + $0x268] sm:$0xff]
    %v4149 = vld [vmem:[%s4070 + $0x270] sm:$0xff]
    %v4150 = vld [vmem:[%s4070 + $0x278] sm:$0xff]
    %v4151 = vld [vmem:[%s4070 + $0x280] sm:$0xff]
    %v4152 = vld [vmem:[%s4070 + $0x288] sm:$0xff]
    %v4153 = vld [vmem:[%s4070 + $0x290] sm:$0xff]
    %v4154 = vld [vmem:[%s4070 + $0x298] sm:$0xff]
    %v4155 = vld [vmem:[%s4070 + $0x2a0] sm:$0xff]
    %v4156 = vld [vmem:[%s4070 + $0x2a8] sm:$0xff]
    %v4157 = vld [vmem:[%s4070 + $0x2b0] sm:$0xff]
    %v4158 = vld [vmem:[%s4070 + $0x2b8] sm:$0xff]
    %v4159 = vld [vmem:[%s4070 + $0x2c0] sm:$0xff]
    %v4160 = vld [vmem:[%s4070 + $0x2c8] sm:$0xff]
    %v4161 = vld [vmem:[%s4070 + $0x2d0] sm:$0xff]
    %v4162 = vld [vmem:[%s4070 + $0x2d8] sm:$0xff]
    %v4163 = vld [vmem:[%s4070 + $0x2e0] sm:$0xff]
    %v4164 = vld [vmem:[%s4070 + $0x2e8] sm:$0xff]
    %v4165 = vld [vmem:[%s4070 + $0x2f0] sm:$0xff]
    %v4166 = vld [vmem:[%s4070 + $0x2f8] sm:$0xff]
    %v4167 = vld [vmem:[%s4070 + $0x300] sm:$0xff]
    %v4168 = vld [vmem:[%s4070 + $0x308] sm:$0xff]
    %v4169 = vld [vmem:[%s4070 + $0x310] sm:$0xff]
    %v4170 = vld [vmem:[%s4070 + $0x318] sm:$0xff]
    %v4171 = vld [vmem:[%s4070 + $0x320] sm:$0xff]
    %v4172 = vld [vmem:[%s4070 + $0x328] sm:$0xff]
    %v4173 = vld [vmem:[%s4070 + $0x330] sm:$0xff]
    %v4174 = vld [vmem:[%s4070 + $0x338] sm:$0xff]
    %v4175 = vld [vmem:[%s4070 + $0x340] sm:$0xff]
    %v4176 = vld [vmem:[%s4070 + $0x348] sm:$0xff]
    %v4177 = vld [vmem:[%s4070 + $0x350] sm:$0xff]
    %v4178 = vld [vmem:[%s4070 + $0x358] sm:$0xff]
    %v4179 = vld [vmem:[%s4070 + $0x360] sm:$0xff]
    %v4180 = vld [vmem:[%s4070 + $0x368] sm:$0xff]
    %v4181 = vld [vmem:[%s4070 + $0x370] sm:$0xff]
    %v4182 = vld [vmem:[%s4070 + $0x378] sm:$0xff]
    %v4183 = vld [vmem:[%s4070 + $0x380] sm:$0xff]
    %v4184 = vld [vmem:[%s4070 + $0x388] sm:$0xff]
    %v4185 = vld [vmem:[%s4070 + $0x390] sm:$0xff]
    %v4186 = vld [vmem:[%s4070 + $0x398] sm:$0xff]
    %v4187 = vld [vmem:[%s4070 + $0x3a0] sm:$0xff]
    %v4188 = vld [vmem:[%s4070 + $0x3a8] sm:$0xff]
    %v4189 = vld [vmem:[%s4070 + $0x3b0] sm:$0xff]
    %v4190 = vld [vmem:[%s4070 + $0x3b8] sm:$0xff]
    %v4191 = vld [vmem:[%s4070 + $0x3c0] sm:$0xff]
    %v4192 = vld [vmem:[%s4070 + $0x3c8] sm:$0xff]
    %v4193 = vld [vmem:[%s4070 + $0x3d0] sm:$0xff]
    %v4194 = vld [vmem:[%s4070 + $0x3d8] sm:$0xff]
    %v4195 = vld [vmem:[%s4070 + $0x3e0] sm:$0xff]
    %v4196 = vld [vmem:[%s4070 + $0x3e8] sm:$0xff]
    %v4197 = vld [vmem:[%s4070 + $0x3f0] sm:$0xff]
    %v4198 = vld [vmem:[%s4070 + $0x3f8] sm:$0xff]
    %v4199 = vld [vmem:[%s4070 + $0x400] sm:$0xff]
    %v4200 = vld [vmem:[%s4070 + $0x408] sm:$0xff]
    %v4201 = vld [vmem:[%s4070 + $0x410] sm:$0xff]
    %v4202 = vld [vmem:[%s4070 + $0x418] sm:$0xff]
    %v4203 = vld [vmem:[%s4070 + $0x420] sm:$0xff]
    %v4204 = vld [vmem:[%s4070 + $0x428] sm:$0xff]
    %v4205 = vld [vmem:[%s4070 + $0x430] sm:$0xff]
    %v4206 = vld [vmem:[%s4070 + $0x438] sm:$0xff]
    %v4207 = vld [vmem:[%s4070 + $0x440] sm:$0xff]
    %v4208 = vld [vmem:[%s4070 + $0x448] sm:$0xff]
    %v4209 = vld [vmem:[%s4070 + $0x450] sm:$0xff]
    %v4210 = vld [vmem:[%s4070 + $0x458] sm:$0xff]
    %v4211 = vld [vmem:[%s4070 + $0x460] sm:$0xff]
    %v4212 = vld [vmem:[%s4070 + $0x468] sm:$0xff]
    %v4213 = vld [vmem:[%s4070 + $0x470] sm:$0xff]
    %v4214 = vld [vmem:[%s4070 + $0x478] sm:$0xff]
    %v4215 = vld [vmem:[%s4070 + $0x480] sm:$0xff]
    %v4216 = vld [vmem:[%s4070 + $0x488] sm:$0xff]
    %v4217 = vld [vmem:[%s4070 + $0x490] sm:$0xff]
    %v4218 = vld [vmem:[%s4070 + $0x498] sm:$0xff]
    %v4219 = vld [vmem:[%s4070 + $0x4a0] sm:$0xff]
    %v4220 = vld [vmem:[%s4070 + $0x4a8] sm:$0xff]
    %v4221 = vld [vmem:[%s4070 + $0x4b0] sm:$0xff]
    %v4222 = vld [vmem:[%s4070 + $0x4b8] sm:$0xff]
    %v4223 = vld [vmem:[%s4070 + $0x4c0] sm:$0xff]
    %v4224 = vld [vmem:[%s4070 + $0x4c8] sm:$0xff]
    %v4225 = vld [vmem:[%s4070 + $0x4d0] sm:$0xff]
    %v4226 = vld [vmem:[%s4070 + $0x4d8] sm:$0xff]
    %v4227 = vld [vmem:[%s4070 + $0x4e0] sm:$0xff]
    %v4228 = vld [vmem:[%s4070 + $0x4e8] sm:$0xff]
    %v4229 = vld [vmem:[%s4070 + $0x4f0] sm:$0xff]
    %v4230 = vld [vmem:[%s4070 + $0x4f8] sm:$0xff]
    %v4231 = vld [vmem:[%s4070 + $0x500] sm:$0xff]
    %v4232 = vld [vmem:[%s4070 + $0x508] sm:$0xff]
    %v4233 = vld [vmem:[%s4070 + $0x510] sm:$0xff]
    %v4234 = vld [vmem:[%s4070 + $0x518] sm:$0xff]
    %v4235 = vld [vmem:[%s4070 + $0x520] sm:$0xff]
    %v4236 = vld [vmem:[%s4070 + $0x528] sm:$0xff]
    %v4237 = vld [vmem:[%s4070 + $0x530] sm:$0xff]
    %v4238 = vld [vmem:[%s4070 + $0x538] sm:$0xff]
    %v4239 = vld [vmem:[%s4070 + $0x540] sm:$0xff]
    %v4240 = vld [vmem:[%s4070 + $0x548] sm:$0xff]
    %v4241 = vld [vmem:[%s4070 + $0x550] sm:$0xff]
    %v4242 = vld [vmem:[%s4070 + $0x558] sm:$0xff]
    %v4243 = vld [vmem:[%s4070 + $0x560] sm:$0xff]
    %v4244 = vld [vmem:[%s4070 + $0x568] sm:$0xff]
    %v4245 = vld [vmem:[%s4070 + $0x570] sm:$0xff]
    %v4246 = vld [vmem:[%s4070 + $0x578] sm:$0xff]
    %v4247 = vld [vmem:[%s4070 + $0x580] sm:$0xff]
    %v4248 = vld [vmem:[%s4070 + $0x588] sm:$0xff]
    %v4249 = vld [vmem:[%s4070 + $0x590] sm:$0xff]
    %v4250 = vld [vmem:[%s4070 + $0x598] sm:$0xff]
    %v4251 = vld [vmem:[%s4070 + $0x5a0] sm:$0xff]
    %v4252 = vld [vmem:[%s4070 + $0x5a8] sm:$0xff]
    %v4253 = vld [vmem:[%s4070 + $0x5b0] sm:$0xff]
    %v4254 = vld [vmem:[%s4070 + $0x5b8] sm:$0xff]
    %v4255 = vld [vmem:[%s4070 + $0x5c0] sm:$0xff]
    %v4256 = vld [vmem:[%s4070 + $0x5c8] sm:$0xff]
    %v4257 = vld [vmem:[%s4070 + $0x5d0] sm:$0xff]
    %v4258 = vld [vmem:[%s4070 + $0x5d8] sm:$0xff]
    %v4259 = vld [vmem:[%s4070 + $0x5e0] sm:$0xff]
    %v4260 = vld [vmem:[%s4070 + $0x5e8] sm:$0xff]
    %v4261 = vld [vmem:[%s4070 + $0x5f0] sm:$0xff]
    %v4262 = vld [vmem:[%s4070 + $0x5f8] sm:$0xff]
    %v4263 = vld [vmem:[%s4070 + $0x600] sm:$0xff]
    %v4264 = vld [vmem:[%s4070 + $0x608] sm:$0xff]
    %v4265 = vld [vmem:[%s4070 + $0x610] sm:$0xff]
    %v4266 = vld [vmem:[%s4070 + $0x618] sm:$0xff]
    %v4267 = vld [vmem:[%s4070 + $0x620] sm:$0xff]
    %v4268 = vld [vmem:[%s4070 + $0x628] sm:$0xff]
    %v4269 = vld [vmem:[%s4070 + $0x630] sm:$0xff]
    %v4270 = vld [vmem:[%s4070 + $0x638] sm:$0xff]
    %v4271 = vld [vmem:[%s4070 + $0x640] sm:$0xff]
    %v4272 = vld [vmem:[%s4070 + $0x648] sm:$0xff]
    %v4273 = vld [vmem:[%s4070 + $0x650] sm:$0xff]
    %v4274 = vld [vmem:[%s4070 + $0x658] sm:$0xff]
    %v4275 = vld [vmem:[%s4070 + $0x660] sm:$0xff]
    %v4276 = vld [vmem:[%s4070 + $0x668] sm:$0xff]
    %v4277 = vld [vmem:[%s4070 + $0x670] sm:$0xff]
    %v4278 = vld [vmem:[%s4070 + $0x678] sm:$0xff]
    %v4279 = vld [vmem:[%s4070 + $0x680] sm:$0xff]
    %v4280 = vld [vmem:[%s4070 + $0x688] sm:$0xff]
    %v4281 = vld [vmem:[%s4070 + $0x690] sm:$0xff]
    %v4282 = vld [vmem:[%s4070 + $0x698] sm:$0xff]
    %v4283 = vld [vmem:[%s4070 + $0x6a0] sm:$0xff]
    %v4284 = vld [vmem:[%s4070 + $0x6a8] sm:$0xff]
    %v4285 = vld [vmem:[%s4070 + $0x6b0] sm:$0xff]
    %v4286 = vld [vmem:[%s4070 + $0x6b8] sm:$0xff]
    %v4287 = vld [vmem:[%s4070 + $0x6c0] sm:$0xff]
    %v4288 = vld [vmem:[%s4070 + $0x6c8] sm:$0xff]
    %v4289 = vld [vmem:[%s4070 + $0x6d0] sm:$0xff]
    %v4290 = vld [vmem:[%s4070 + $0x6d8] sm:$0xff]
    %v4291 = vld [vmem:[%s4070 + $0x6e0] sm:$0xff]
    %v4292 = vld [vmem:[%s4070 + $0x6e8] sm:$0xff]
    %v4293 = vld [vmem:[%s4070 + $0x6f0] sm:$0xff]
    %v4294 = vld [vmem:[%s4070 + $0x6f8] sm:$0xff]
    %v4295 = vld [vmem:[%s4070 + $0x700] sm:$0xff]
    %v4296 = vld [vmem:[%s4070 + $0x708] sm:$0xff]
    %v4297 = vld [vmem:[%s4070 + $0x710] sm:$0xff]
    %v4298 = vld [vmem:[%s4070 + $0x718] sm:$0xff]
    %v4299 = vld [vmem:[%s4070 + $0x720] sm:$0xff]
    %v4300 = vld [vmem:[%s4070 + $0x728] sm:$0xff]
    %v4301 = vld [vmem:[%s4070 + $0x730] sm:$0xff]
    %v4302 = vld [vmem:[%s4070 + $0x738] sm:$0xff]
    %v4303 = vld [vmem:[%s4070 + $0x740] sm:$0xff]
    %v4304 = vld [vmem:[%s4070 + $0x748] sm:$0xff]
    %v4305 = vld [vmem:[%s4070 + $0x750] sm:$0xff]
    %v4306 = vld [vmem:[%s4070 + $0x758] sm:$0xff]
    %v4307 = vld [vmem:[%s4070 + $0x760] sm:$0xff]
    %v4308 = vld [vmem:[%s4070 + $0x768] sm:$0xff]
    %v4309 = vld [vmem:[%s4070 + $0x770] sm:$0xff]
    %v4310 = vld [vmem:[%s4070 + $0x778] sm:$0xff]
    %v4311 = vld [vmem:[%s4070 + $0x780] sm:$0xff]
    %v4312 = vld [vmem:[%s4070 + $0x788] sm:$0xff]
    %v4313 = vld [vmem:[%s4070 + $0x790] sm:$0xff]
    %v4314 = vld [vmem:[%s4070 + $0x798] sm:$0xff]
    %v4315 = vld [vmem:[%s4070 + $0x7a0] sm:$0xff]
    %v4316 = vld [vmem:[%s4070 + $0x7a8] sm:$0xff]
    %v4317 = vld [vmem:[%s4070 + $0x7b0] sm:$0xff]
    %v4318 = vld [vmem:[%s4070 + $0x7b8] sm:$0xff]
    %v4319 = vld [vmem:[%s4070 + $0x7c0] sm:$0xff]
    %v4320 = vld [vmem:[%s4070 + $0x7c8] sm:$0xff]
    %v4321 = vld [vmem:[%s4070 + $0x7d0] sm:$0xff]
    %v4322 = vld [vmem:[%s4070 + $0x7d8] sm:$0xff]
    %v4323 = vld [vmem:[%s4070 + $0x7e0] sm:$0xff]
    %v4324 = vld [vmem:[%s4070 + $0x7e8] sm:$0xff]
    %v4325 = vld [vmem:[%s4070 + $0x7f0] sm:$0xff]
    %v4326 = vld [vmem:[%s4070 + $0x7f8] sm:$0xff]
    %v4327 = vld [vmem:[%s4070 + $0x800] sm:$0xff]
    %v4328 = vld [vmem:[%s4070 + $0x808] sm:$0xff]
    %v4329 = vld [vmem:[%s4070 + $0x810] sm:$0xff]
    %v4330 = vld [vmem:[%s4070 + $0x818] sm:$0xff]
    %v4331 = vld [vmem:[%s4070 + $0x820] sm:$0xff]
    %v4332 = vld [vmem:[%s4070 + $0x828] sm:$0xff]
    %v4333 = vld [vmem:[%s4070 + $0x830] sm:$0xff]
    %v4334 = vld [vmem:[%s4070 + $0x838] sm:$0xff]
    %v4335 = vld [vmem:[%s4070 + $0x840] sm:$0xff]
    %v4336 = vld [vmem:[%s4070 + $0x848] sm:$0xff]
    %v4337 = vld [vmem:[%s4070 + $0x850] sm:$0xff]
    %v4338 = vld [vmem:[%s4070 + $0x858] sm:$0xff]
    %v4339 = vld [vmem:[%s4070 + $0x860] sm:$0xff]
    %v4340 = vld [vmem:[%s4070 + $0x868] sm:$0xff]
    %v4341 = vld [vmem:[%s4070 + $0x870] sm:$0xff]
    %v4342 = vld [vmem:[%s4070 + $0x878] sm:$0xff]
    %v4343 = vld [vmem:[%s4070 + $0x880] sm:$0xff]
    %v4344 = vld [vmem:[%s4070 + $0x888] sm:$0xff]
    %v4345 = vld [vmem:[%s4070 + $0x890] sm:$0xff]
    %v4346 = vld [vmem:[%s4070 + $0x898] sm:$0xff]
    %v4347 = vld [vmem:[%s4070 + $0x8a0] sm:$0xff]
    %v4348 = vld [vmem:[%s4070 + $0x8a8] sm:$0xff]
    %v4349 = vld [vmem:[%s4070 + $0x8b0] sm:$0xff]
    %v4350 = vld [vmem:[%s4070 + $0x8b8] sm:$0xff]
    %v4351 = vld [vmem:[%s4070 + $0x8c0] sm:$0xff]
    %v4352 = vld [vmem:[%s4070 + $0x8c8] sm:$0xff]
    %v4353 = vld [vmem:[%s4070 + $0x8d0] sm:$0xff]
    %v4354 = vld [vmem:[%s4070 + $0x8d8] sm:$0xff]
    %v4355 = vld [vmem:[%s4070 + $0x8e0] sm:$0xff]
    %v4356 = vld [vmem:[%s4070 + $0x8e8] sm:$0xff]
    %v4357 = vld [vmem:[%s4070 + $0x8f0] sm:$0xff]
    %v4358 = vld [vmem:[%s4070 + $0x8f8] sm:$0xff]
    %v4359 = vld [vmem:[%s4070 + $0x900] sm:$0xff]
    %v4360 = vld [vmem:[%s4070 + $0x908] sm:$0xff]
    %v4361 = vld [vmem:[%s4070 + $0x910] sm:$0xff]
    %v4362 = vld [vmem:[%s4070 + $0x918] sm:$0xff]
    %v4363 = vld [vmem:[%s4070 + $0x920] sm:$0xff]
    %v4364 = vld [vmem:[%s4070 + $0x928] sm:$0xff]
    %v4365 = vld [vmem:[%s4070 + $0x930] sm:$0xff]
    %v4366 = vld [vmem:[%s4070 + $0x938] sm:$0xff]
    %v4367 = vld [vmem:[%s4070 + $0x940] sm:$0xff]
    %v4368 = vld [vmem:[%s4070 + $0x948] sm:$0xff]
    %v4369 = vld [vmem:[%s4070 + $0x950] sm:$0xff]
    %v4370 = vld [vmem:[%s4070 + $0x958] sm:$0xff]
    %v4371 = vld [vmem:[%s4070 + $0x960] sm:$0xff]
    %v4372 = vld [vmem:[%s4070 + $0x968] sm:$0xff]
    %v4373 = vld [vmem:[%s4070 + $0x970] sm:$0xff]
    %v4374 = vld [vmem:[%s4070 + $0x978] sm:$0xff]
    %v4375 = vld [vmem:[%s4070 + $0x980] sm:$0xff]
    %v4376 = vld [vmem:[%s4070 + $0x988] sm:$0xff]
    %v4377 = vld [vmem:[%s4070 + $0x990] sm:$0xff]
    %v4378 = vld [vmem:[%s4070 + $0x998] sm:$0xff]
    %v4379 = vld [vmem:[%s4070 + $0x9a0] sm:$0xff]
    %v4380 = vld [vmem:[%s4070 + $0x9a8] sm:$0xff]
    %v4381 = vld [vmem:[%s4070 + $0x9b0] sm:$0xff]
    %v4382 = vld [vmem:[%s4070 + $0x9b8] sm:$0xff]
    %v4383 = vld [vmem:[%s4070 + $0x9c0] sm:$0xff]
    %v4384 = vld [vmem:[%s4070 + $0x9c8] sm:$0xff]
    %v4385 = vld [vmem:[%s4070 + $0x9d0] sm:$0xff]
    %v4386 = vld [vmem:[%s4070 + $0x9d8] sm:$0xff]
    %v4387 = vld [vmem:[%s4070 + $0x9e0] sm:$0xff]
    %v4388 = vld [vmem:[%s4070 + $0x9e8] sm:$0xff]
    %v4389 = vld [vmem:[%s4070 + $0x9f0] sm:$0xff]
    %v4390 = vld [vmem:[%s4070 + $0x9f8] sm:$0xff]
    %v4391 = vld [vmem:[%s4070 + $0xa00] sm:$0xff]
    %v4392 = vld [vmem:[%s4070 + $0xa08] sm:$0xff]
    %v4393 = vld [vmem:[%s4070 + $0xa10] sm:$0xff]
    %v4394 = vld [vmem:[%s4070 + $0xa18] sm:$0xff]
    %v4395 = vld [vmem:[%s4070 + $0xa20] sm:$0xff]
    %v4396 = vld [vmem:[%s4070 + $0xa28] sm:$0xff]
    %v4397 = vld [vmem:[%s4070 + $0xa30] sm:$0xff]
    %v4398 = vld [vmem:[%s4070 + $0xa38] sm:$0xff]
    %v4399 = vld [vmem:[%s4070 + $0xa40] sm:$0xff]
    %v4400 = vld [vmem:[%s4070 + $0xa48] sm:$0xff]
    %v4401 = vld [vmem:[%s4070 + $0xa50] sm:$0xff]
    %v4402 = vld [vmem:[%s4070 + $0xa58] sm:$0xff]
    %v4403 = vld [vmem:[%s4070 + $0xa60] sm:$0xff]
    %v4404 = vld [vmem:[%s4070 + $0xa68] sm:$0xff]
    %v4405 = vld [vmem:[%s4070 + $0xa70] sm:$0xff]
    %v4406 = vld [vmem:[%s4070 + $0xa78] sm:$0xff]
    %v4407 = vld [vmem:[%s4070 + $0xa80] sm:$0xff]
    %v4408 = vld [vmem:[%s4070 + $0xa88] sm:$0xff]
    %v4409 = vld [vmem:[%s4070 + $0xa90] sm:$0xff]
    %v4410 = vld [vmem:[%s4070 + $0xa98] sm:$0xff]
    %v4411 = vld [vmem:[%s4070 + $0xaa0] sm:$0xff]
    %v4412 = vld [vmem:[%s4070 + $0xaa8] sm:$0xff]
    %v4413 = vld [vmem:[%s4070 + $0xab0] sm:$0xff]
    %v4414 = vld [vmem:[%s4070 + $0xab8] sm:$0xff]
    %v4415 = vld [vmem:[%s4070 + $0xac0] sm:$0xff]
    %v4416 = vld [vmem:[%s4070 + $0xac8] sm:$0xff]
    %v4417 = vld [vmem:[%s4070 + $0xad0] sm:$0xff]
    %v4418 = vld [vmem:[%s4070 + $0xad8] sm:$0xff]
    %v4419 = vld [vmem:[%s4070 + $0xae0] sm:$0xff]
    %v4420 = vld [vmem:[%s4070 + $0xae8] sm:$0xff]
    %v4421 = vld [vmem:[%s4070 + $0xaf0] sm:$0xff]
    %v4422 = vld [vmem:[%s4070 + $0xaf8] sm:$0xff]
    %v4423 = vld [vmem:[%s4070 + $0xb00] sm:$0xff]
    %v4424 = vld [vmem:[%s4070 + $0xb08] sm:$0xff]
    %v4425 = vld [vmem:[%s4070 + $0xb10] sm:$0xff]
    %v4426 = vld [vmem:[%s4070 + $0xb18] sm:$0xff]
    %v4427 = vld [vmem:[%s4070 + $0xb20] sm:$0xff]
    %v4428 = vld [vmem:[%s4070 + $0xb28] sm:$0xff]
    %v4429 = vld [vmem:[%s4070 + $0xb30] sm:$0xff]
    %v4430 = vld [vmem:[%s4070 + $0xb38] sm:$0xff]
    %v4431 = vld [vmem:[%s4070 + $0xb40] sm:$0xff]
    %v4432 = vld [vmem:[%s4070 + $0xb48] sm:$0xff]
    %v4433 = vld [vmem:[%s4070 + $0xb50] sm:$0xff]
    %v4434 = vld [vmem:[%s4070 + $0xb58] sm:$0xff]
    %v4435 = vld [vmem:[%s4070 + $0xb60] sm:$0xff]
    %v4436 = vld [vmem:[%s4070 + $0xb68] sm:$0xff]
    %v4437 = vld [vmem:[%s4070 + $0xb70] sm:$0xff]
    %v4438 = vld [vmem:[%s4070 + $0xb78] sm:$0xff]
    %v4439 = vld [vmem:[%s4070 + $0xb80] sm:$0xff]
    %v4440 = vld [vmem:[%s4070 + $0xb88] sm:$0xff]
    %v4441 = vld [vmem:[%s4070 + $0xb90] sm:$0xff]
    %v4442 = vld [vmem:[%s4070 + $0xb98] sm:$0xff]
    %v4443 = vld [vmem:[%s4070 + $0xba0] sm:$0xff]
    %v4444 = vld [vmem:[%s4070 + $0xba8] sm:$0xff]
    %v4445 = vld [vmem:[%s4070 + $0xbb0] sm:$0xff]
    %v4446 = vld [vmem:[%s4070 + $0xbb8] sm:$0xff]
    %v4447 = vld [vmem:[%s4070 + $0xbc0] sm:$0xff]
    %v4448 = vld [vmem:[%s4070 + $0xbc8] sm:$0xff]
    %v4449 = vld [vmem:[%s4070 + $0xbd0] sm:$0xff]
    %v4450 = vld [vmem:[%s4070 + $0xbd8] sm:$0xff]
    %v4451 = vld [vmem:[%s4070 + $0xbe0] sm:$0xff]
    %v4452 = vld [vmem:[%s4070 + $0xbe8] sm:$0xff]
    %v4453 = vld [vmem:[%s4070 + $0xbf0] sm:$0xff]
    %v4454 = vld [vmem:[%s4070 + $0xbf8] sm:$0xff]
    %v4455 = vld [vmem:[%s4070 + $0xc00] sm:$0xff]
    %v4456 = vld [vmem:[%s4070 + $0xc08] sm:$0xff]
    %v4457 = vld [vmem:[%s4070 + $0xc10] sm:$0xff]
    %v4458 = vld [vmem:[%s4070 + $0xc18] sm:$0xff]
    %v4459 = vld [vmem:[%s4070 + $0xc20] sm:$0xff]
    %v4460 = vld [vmem:[%s4070 + $0xc28] sm:$0xff]
    %v4461 = vld [vmem:[%s4070 + $0xc30] sm:$0xff]
    %v4462 = vld [vmem:[%s4070 + $0xc38] sm:$0xff]
    %v4463 = vld [vmem:[%s4070 + $0xc40] sm:$0xff]
    %v4464 = vld [vmem:[%s4070 + $0xc48] sm:$0xff]
    %v4465 = vld [vmem:[%s4070 + $0xc50] sm:$0xff]
    %v4466 = vld [vmem:[%s4070 + $0xc58] sm:$0xff]
    %v4467 = vld [vmem:[%s4070 + $0xc60] sm:$0xff]
    %v4468 = vld [vmem:[%s4070 + $0xc68] sm:$0xff]
    %v4469 = vld [vmem:[%s4070 + $0xc70] sm:$0xff]
    %v4470 = vld [vmem:[%s4070 + $0xc78] sm:$0xff]
    %v4471 = vld [vmem:[%s4070 + $0xc80] sm:$0xff]
    %v4472 = vld [vmem:[%s4070 + $0xc88] sm:$0xff]
    %v4473 = vld [vmem:[%s4070 + $0xc90] sm:$0xff]
    %v4474 = vld [vmem:[%s4070 + $0xc98] sm:$0xff]
    %v4475 = vld [vmem:[%s4070 + $0xca0] sm:$0xff]
    %v4476 = vld [vmem:[%s4070 + $0xca8] sm:$0xff]
    %v4477 = vld [vmem:[%s4070 + $0xcb0] sm:$0xff]
    %v4478 = vld [vmem:[%s4070 + $0xcb8] sm:$0xff]
    %v4479 = vld [vmem:[%s4070 + $0xcc0] sm:$0xff]
    %v4480 = vld [vmem:[%s4070 + $0xcc8] sm:$0xff]
    %v4481 = vld [vmem:[%s4070 + $0xcd0] sm:$0xff]
    %v4482 = vld [vmem:[%s4070 + $0xcd8] sm:$0xff]
    %v4483 = vld [vmem:[%s4070 + $0xce0] sm:$0xff]
    %v4484 = vld [vmem:[%s4070 + $0xce8] sm:$0xff]
    %v4485 = vld [vmem:[%s4070 + $0xcf0] sm:$0xff]
    %v4486 = vld [vmem:[%s4070 + $0xcf8] sm:$0xff]
    %v4487 = vld [vmem:[%s4070 + $0xd00] sm:$0xff]
    %v4488 = vld [vmem:[%s4070 + $0xd08] sm:$0xff]
    %v4489 = vld [vmem:[%s4070 + $0xd10] sm:$0xff]
    %v4490 = vld [vmem:[%s4070 + $0xd18] sm:$0xff]
    %v4491 = vld [vmem:[%s4070 + $0xd20] sm:$0xff]
    %v4492 = vld [vmem:[%s4070 + $0xd28] sm:$0xff]
    %v4493 = vld [vmem:[%s4070 + $0xd30] sm:$0xff]
    %v4494 = vld [vmem:[%s4070 + $0xd38] sm:$0xff]
    %v4495 = vld [vmem:[%s4070 + $0xd40] sm:$0xff]
    %v4496 = vld [vmem:[%s4070 + $0xd48] sm:$0xff]
    %v4497 = vld [vmem:[%s4070 + $0xd50] sm:$0xff]
    %v4498 = vld [vmem:[%s4070 + $0xd58] sm:$0xff]
    %v4499 = vld [vmem:[%s4070 + $0xd60] sm:$0xff]
    %v4500 = vld [vmem:[%s4070 + $0xd68] sm:$0xff]
    %v4501 = vld [vmem:[%s4070 + $0xd70] sm:$0xff]
    %v4502 = vld [vmem:[%s4070 + $0xd78] sm:$0xff]
    %s4503 = scalar_lea.vmem [#allocation8], 9
    %v4504 = vld [vmem:[%s4503] sm:$0xff]
    %v4505 = vld [vmem:[%s4503 + $0x8] sm:$0x1]
    %s4506 = scalar_lea.vmem [#allocation10], 1152
    %v4507 = vld [vmem:[%s4506] sm:$0xff]
    %v4508 = vld [vmem:[%s4506 + $0x8] sm:$0xff]
    %v4509 = vld [vmem:[%s4506 + $0x10] sm:$0xff]
    %v4510 = vld [vmem:[%s4506 + $0x18] sm:$0xff]
    %v4511 = vld [vmem:[%s4506 + $0x20] sm:$0xff]
    %v4512 = vld [vmem:[%s4506 + $0x28] sm:$0xff]
    %v4513 = vld [vmem:[%s4506 + $0x30] sm:$0xff]
    %v4514 = vld [vmem:[%s4506 + $0x38] sm:$0xff]
    %v4515 = vld [vmem:[%s4506 + $0x40] sm:$0xff]
    %v4516 = vld [vmem:[%s4506 + $0x48] sm:$0xff]
    %v4517 = vld [vmem:[%s4506 + $0x50] sm:$0xff]
    %v4518 = vld [vmem:[%s4506 + $0x58] sm:$0xff]
    %v4519 = vld [vmem:[%s4506 + $0x60] sm:$0xff]
    %v4520 = vld [vmem:[%s4506 + $0x68] sm:$0xff]
    %v4521 = vld [vmem:[%s4506 + $0x70] sm:$0xff]
    %v4522 = vld [vmem:[%s4506 + $0x78] sm:$0xff]
    %v4523 = vld [vmem:[%s4506 + $0x80] sm:$0xff]
    %v4524 = vld [vmem:[%s4506 + $0x88] sm:$0xff]
    %v4525 = vld [vmem:[%s4506 + $0x90] sm:$0xff]
    %v4526 = vld [vmem:[%s4506 + $0x98] sm:$0xff]
    %v4527 = vld [vmem:[%s4506 + $0xa0] sm:$0xff]
    %v4528 = vld [vmem:[%s4506 + $0xa8] sm:$0xff]
    %v4529 = vld [vmem:[%s4506 + $0xb0] sm:$0xff]
    %v4530 = vld [vmem:[%s4506 + $0xb8] sm:$0xff]
    %v4531 = vld [vmem:[%s4506 + $0xc0] sm:$0xff]
    %v4532 = vld [vmem:[%s4506 + $0xc8] sm:$0xff]
    %v4533 = vld [vmem:[%s4506 + $0xd0] sm:$0xff]
    %v4534 = vld [vmem:[%s4506 + $0xd8] sm:$0xff]
    %v4535 = vld [vmem:[%s4506 + $0xe0] sm:$0xff]
    %v4536 = vld [vmem:[%s4506 + $0xe8] sm:$0xff]
    %v4537 = vld [vmem:[%s4506 + $0xf0] sm:$0xff]
    %v4538 = vld [vmem:[%s4506 + $0xf8] sm:$0xff]
    %v4539 = vld [vmem:[%s4506 + $0x100] sm:$0xff]
    %v4540 = vld [vmem:[%s4506 + $0x108] sm:$0xff]
    %v4541 = vld [vmem:[%s4506 + $0x110] sm:$0xff]
    %v4542 = vld [vmem:[%s4506 + $0x118] sm:$0xff]
    %v4543 = vld [vmem:[%s4506 + $0x120] sm:$0xff]
    %v4544 = vld [vmem:[%s4506 + $0x128] sm:$0xff]
    %v4545 = vld [vmem:[%s4506 + $0x130] sm:$0xff]
    %v4546 = vld [vmem:[%s4506 + $0x138] sm:$0xff]
    %v4547 = vld [vmem:[%s4506 + $0x140] sm:$0xff]
    %v4548 = vld [vmem:[%s4506 + $0x148] sm:$0xff]
    %v4549 = vld [vmem:[%s4506 + $0x150] sm:$0xff]
    %v4550 = vld [vmem:[%s4506 + $0x158] sm:$0xff]
    %v4551 = vld [vmem:[%s4506 + $0x160] sm:$0xff]
    %v4552 = vld [vmem:[%s4506 + $0x168] sm:$0xff]
    %v4553 = vld [vmem:[%s4506 + $0x170] sm:$0xff]
    %v4554 = vld [vmem:[%s4506 + $0x178] sm:$0xff]
    %v4555 = vld [vmem:[%s4506 + $0x180] sm:$0xff]
    %v4556 = vld [vmem:[%s4506 + $0x188] sm:$0xff]
    %v4557 = vld [vmem:[%s4506 + $0x190] sm:$0xff]
    %v4558 = vld [vmem:[%s4506 + $0x198] sm:$0xff]
    %v4559 = vld [vmem:[%s4506 + $0x1a0] sm:$0xff]
    %v4560 = vld [vmem:[%s4506 + $0x1a8] sm:$0xff]
    %v4561 = vld [vmem:[%s4506 + $0x1b0] sm:$0xff]
    %v4562 = vld [vmem:[%s4506 + $0x1b8] sm:$0xff]
    %v4563 = vld [vmem:[%s4506 + $0x1c0] sm:$0xff]
    %v4564 = vld [vmem:[%s4506 + $0x1c8] sm:$0xff]
    %v4565 = vld [vmem:[%s4506 + $0x1d0] sm:$0xff]
    %v4566 = vld [vmem:[%s4506 + $0x1d8] sm:$0xff]
    %v4567 = vld [vmem:[%s4506 + $0x1e0] sm:$0xff]
    %v4568 = vld [vmem:[%s4506 + $0x1e8] sm:$0xff]
    %v4569 = vld [vmem:[%s4506 + $0x1f0] sm:$0xff]
    %v4570 = vld [vmem:[%s4506 + $0x1f8] sm:$0xff]
    %v4571 = vld [vmem:[%s4506 + $0x200] sm:$0xff]
    %v4572 = vld [vmem:[%s4506 + $0x208] sm:$0xff]
    %v4573 = vld [vmem:[%s4506 + $0x210] sm:$0xff]
    %v4574 = vld [vmem:[%s4506 + $0x218] sm:$0xff]
    %v4575 = vld [vmem:[%s4506 + $0x220] sm:$0xff]
    %v4576 = vld [vmem:[%s4506 + $0x228] sm:$0xff]
    %v4577 = vld [vmem:[%s4506 + $0x230] sm:$0xff]
    %v4578 = vld [vmem:[%s4506 + $0x238] sm:$0xff]
    %v4579 = vld [vmem:[%s4506 + $0x240] sm:$0xff]
    %v4580 = vld [vmem:[%s4506 + $0x248] sm:$0xff]
    %v4581 = vld [vmem:[%s4506 + $0x250] sm:$0xff]
    %v4582 = vld [vmem:[%s4506 + $0x258] sm:$0xff]
    %v4583 = vld [vmem:[%s4506 + $0x260] sm:$0xff]
    %v4584 = vld [vmem:[%s4506 + $0x268] sm:$0xff]
    %v4585 = vld [vmem:[%s4506 + $0x270] sm:$0xff]
    %v4586 = vld [vmem:[%s4506 + $0x278] sm:$0xff]
    %v4587 = vld [vmem:[%s4506 + $0x280] sm:$0xff]
    %v4588 = vld [vmem:[%s4506 + $0x288] sm:$0xff]
    %v4589 = vld [vmem:[%s4506 + $0x290] sm:$0xff]
    %v4590 = vld [vmem:[%s4506 + $0x298] sm:$0xff]
    %v4591 = vld [vmem:[%s4506 + $0x2a0] sm:$0xff]
    %v4592 = vld [vmem:[%s4506 + $0x2a8] sm:$0xff]
    %v4593 = vld [vmem:[%s4506 + $0x2b0] sm:$0xff]
    %v4594 = vld [vmem:[%s4506 + $0x2b8] sm:$0xff]
    %v4595 = vld [vmem:[%s4506 + $0x2c0] sm:$0xff]
    %v4596 = vld [vmem:[%s4506 + $0x2c8] sm:$0xff]
    %v4597 = vld [vmem:[%s4506 + $0x2d0] sm:$0xff]
    %v4598 = vld [vmem:[%s4506 + $0x2d8] sm:$0xff]
    %v4599 = vld [vmem:[%s4506 + $0x2e0] sm:$0xff]
    %v4600 = vld [vmem:[%s4506 + $0x2e8] sm:$0xff]
    %v4601 = vld [vmem:[%s4506 + $0x2f0] sm:$0xff]
    %v4602 = vld [vmem:[%s4506 + $0x2f8] sm:$0xff]
    %v4603 = vld [vmem:[%s4506 + $0x300] sm:$0xff]
    %v4604 = vld [vmem:[%s4506 + $0x308] sm:$0xff]
    %v4605 = vld [vmem:[%s4506 + $0x310] sm:$0xff]
    %v4606 = vld [vmem:[%s4506 + $0x318] sm:$0xff]
    %v4607 = vld [vmem:[%s4506 + $0x320] sm:$0xff]
    %v4608 = vld [vmem:[%s4506 + $0x328] sm:$0xff]
    %v4609 = vld [vmem:[%s4506 + $0x330] sm:$0xff]
    %v4610 = vld [vmem:[%s4506 + $0x338] sm:$0xff]
    %v4611 = vld [vmem:[%s4506 + $0x340] sm:$0xff]
    %v4612 = vld [vmem:[%s4506 + $0x348] sm:$0xff]
    %v4613 = vld [vmem:[%s4506 + $0x350] sm:$0xff]
    %v4614 = vld [vmem:[%s4506 + $0x358] sm:$0xff]
    %v4615 = vld [vmem:[%s4506 + $0x360] sm:$0xff]
    %v4616 = vld [vmem:[%s4506 + $0x368] sm:$0xff]
    %v4617 = vld [vmem:[%s4506 + $0x370] sm:$0xff]
    %v4618 = vld [vmem:[%s4506 + $0x378] sm:$0xff]
    %v4619 = vld [vmem:[%s4506 + $0x380] sm:$0xff]
    %v4620 = vld [vmem:[%s4506 + $0x388] sm:$0xff]
    %v4621 = vld [vmem:[%s4506 + $0x390] sm:$0xff]
    %v4622 = vld [vmem:[%s4506 + $0x398] sm:$0xff]
    %v4623 = vld [vmem:[%s4506 + $0x3a0] sm:$0xff]
    %v4624 = vld [vmem:[%s4506 + $0x3a8] sm:$0xff]
    %v4625 = vld [vmem:[%s4506 + $0x3b0] sm:$0xff]
    %v4626 = vld [vmem:[%s4506 + $0x3b8] sm:$0xff]
    %v4627 = vld [vmem:[%s4506 + $0x3c0] sm:$0xff]
    %v4628 = vld [vmem:[%s4506 + $0x3c8] sm:$0xff]
    %v4629 = vld [vmem:[%s4506 + $0x3d0] sm:$0xff]
    %v4630 = vld [vmem:[%s4506 + $0x3d8] sm:$0xff]
    %v4631 = vld [vmem:[%s4506 + $0x3e0] sm:$0xff]
    %v4632 = vld [vmem:[%s4506 + $0x3e8] sm:$0xff]
    %v4633 = vld [vmem:[%s4506 + $0x3f0] sm:$0xff]
    %v4634 = vld [vmem:[%s4506 + $0x3f8] sm:$0xff]
    %v4635 = vld [vmem:[%s4506 + $0x400] sm:$0xff]
    %v4636 = vld [vmem:[%s4506 + $0x408] sm:$0xff]
    %v4637 = vld [vmem:[%s4506 + $0x410] sm:$0xff]
    %v4638 = vld [vmem:[%s4506 + $0x418] sm:$0xff]
    %v4639 = vld [vmem:[%s4506 + $0x420] sm:$0xff]
    %v4640 = vld [vmem:[%s4506 + $0x428] sm:$0xff]
    %v4641 = vld [vmem:[%s4506 + $0x430] sm:$0xff]
    %v4642 = vld [vmem:[%s4506 + $0x438] sm:$0xff]
    %v4643 = vld [vmem:[%s4506 + $0x440] sm:$0xff]
    %v4644 = vld [vmem:[%s4506 + $0x448] sm:$0xff]
    %v4645 = vld [vmem:[%s4506 + $0x450] sm:$0xff]
    %v4646 = vld [vmem:[%s4506 + $0x458] sm:$0xff]
    %v4647 = vld [vmem:[%s4506 + $0x460] sm:$0xff]
    %v4648 = vld [vmem:[%s4506 + $0x468] sm:$0xff]
    %v4649 = vld [vmem:[%s4506 + $0x470] sm:$0xff]
    %v4650 = vld [vmem:[%s4506 + $0x478] sm:$0xff]
    %s4651 = scalar_lea.vmem [#allocation11], 3
    %v4652 = vld [vmem:[%s4651] sm:$0x7]
    %s4653 = scalar_lea.vmem [#allocation13], 3
    %v4654 = vld [vmem:[%s4653] sm:$0x7]
    %s4655 = scalar_lea.vmem [#allocation14], 3
    %v4656 = vld [vmem:[%s4655] sm:$0x7]
    %s4657 = scalar_lea.vmem [#allocation16], 384
    %v4658 = vld [vmem:[%s4657] sm:$0xff]
    %v4659 = vld [vmem:[%s4657 + $0x8] sm:$0xff]
    %v4660 = vld [vmem:[%s4657 + $0x10] sm:$0xff]
    %v4661 = vld [vmem:[%s4657 + $0x18] sm:$0xff]
    %v4662 = vld [vmem:[%s4657 + $0x20] sm:$0xff]
    %v4663 = vld [vmem:[%s4657 + $0x28] sm:$0xff]
    %v4664 = vld [vmem:[%s4657 + $0x30] sm:$0xff]
    %v4665 = vld [vmem:[%s4657 + $0x38] sm:$0xff]
    %v4666 = vld [vmem:[%s4657 + $0x40] sm:$0xff]
    %v4667 = vld [vmem:[%s4657 + $0x48] sm:$0xff]
    %v4668 = vld [vmem:[%s4657 + $0x50] sm:$0xff]
    %v4669 = vld [vmem:[%s4657 + $0x58] sm:$0xff]
    %v4670 = vld [vmem:[%s4657 + $0x60] sm:$0xff]
    %v4671 = vld [vmem:[%s4657 + $0x68] sm:$0xff]
    %v4672 = vld [vmem:[%s4657 + $0x70] sm:$0xff]
    %v4673 = vld [vmem:[%s4657 + $0x78] sm:$0xff]
    %v4674 = vld [vmem:[%s4657 + $0x80] sm:$0xff]
    %v4675 = vld [vmem:[%s4657 + $0x88] sm:$0xff]
    %v4676 = vld [vmem:[%s4657 + $0x90] sm:$0xff]
    %v4677 = vld [vmem:[%s4657 + $0x98] sm:$0xff]
    %v4678 = vld [vmem:[%s4657 + $0xa0] sm:$0xff]
    %v4679 = vld [vmem:[%s4657 + $0xa8] sm:$0xff]
    %v4680 = vld [vmem:[%s4657 + $0xb0] sm:$0xff]
    %v4681 = vld [vmem:[%s4657 + $0xb8] sm:$0xff]
    %v4682 = vld [vmem:[%s4657 + $0xc0] sm:$0xff]
    %v4683 = vld [vmem:[%s4657 + $0xc8] sm:$0xff]
    %v4684 = vld [vmem:[%s4657 + $0xd0] sm:$0xff]
    %v4685 = vld [vmem:[%s4657 + $0xd8] sm:$0xff]
    %v4686 = vld [vmem:[%s4657 + $0xe0] sm:$0xff]
    %v4687 = vld [vmem:[%s4657 + $0xe8] sm:$0xff]
    %v4688 = vld [vmem:[%s4657 + $0xf0] sm:$0xff]
    %v4689 = vld [vmem:[%s4657 + $0xf8] sm:$0xff]
    %v4690 = vld [vmem:[%s4657 + $0x100] sm:$0xff]
    %v4691 = vld [vmem:[%s4657 + $0x108] sm:$0xff]
    %v4692 = vld [vmem:[%s4657 + $0x110] sm:$0xff]
    %v4693 = vld [vmem:[%s4657 + $0x118] sm:$0xff]
    %v4694 = vld [vmem:[%s4657 + $0x120] sm:$0xff]
    %v4695 = vld [vmem:[%s4657 + $0x128] sm:$0xff]
    %v4696 = vld [vmem:[%s4657 + $0x130] sm:$0xff]
    %v4697 = vld [vmem:[%s4657 + $0x138] sm:$0xff]
    %v4698 = vld [vmem:[%s4657 + $0x140] sm:$0xff]
    %v4699 = vld [vmem:[%s4657 + $0x148] sm:$0xff]
    %v4700 = vld [vmem:[%s4657 + $0x150] sm:$0xff]
    %v4701 = vld [vmem:[%s4657 + $0x158] sm:$0xff]
    %v4702 = vld [vmem:[%s4657 + $0x160] sm:$0xff]
    %v4703 = vld [vmem:[%s4657 + $0x168] sm:$0xff]
    %v4704 = vld [vmem:[%s4657 + $0x170] sm:$0xff]
    %v4705 = vld [vmem:[%s4657 + $0x178] sm:$0xff]
    %s4706 = scalar_lea.vmem [#allocation17], 1
    %v4707 = vld [vmem:[%s4706] sm:$0x1]
    %s4708 = scalar_lea.vmem [#allocation19], 384
    %v4709 = vld [vmem:[%s4708] sm:$0xff]
    %v4710 = vld [vmem:[%s4708 + $0x8] sm:$0xff]
    %v4711 = vld [vmem:[%s4708 + $0x10] sm:$0xff]
    %v4712 = vld [vmem:[%s4708 + $0x18] sm:$0xff]
    %v4713 = vld [vmem:[%s4708 + $0x20] sm:$0xff]
    %v4714 = vld [vmem:[%s4708 + $0x28] sm:$0xff]
    %v4715 = vld [vmem:[%s4708 + $0x30] sm:$0xff]
    %v4716 = vld [vmem:[%s4708 + $0x38] sm:$0xff]
    %v4717 = vld [vmem:[%s4708 + $0x40] sm:$0xff]
    %v4718 = vld [vmem:[%s4708 + $0x48] sm:$0xff]
    %v4719 = vld [vmem:[%s4708 + $0x50] sm:$0xff]
    %v4720 = vld [vmem:[%s4708 + $0x58] sm:$0xff]
    %v4721 = vld [vmem:[%s4708 + $0x60] sm:$0xff]
    %v4722 = vld [vmem:[%s4708 + $0x68] sm:$0xff]
    %v4723 = vld [vmem:[%s4708 + $0x70] sm:$0xff]
    %v4724 = vld [vmem:[%s4708 + $0x78] sm:$0xff]
    %v4725 = vld [vmem:[%s4708 + $0x80] sm:$0xff]
    %v4726 = vld [vmem:[%s4708 + $0x88] sm:$0xff]
    %v4727 = vld [vmem:[%s4708 + $0x90] sm:$0xff]
    %v4728 = vld [vmem:[%s4708 + $0x98] sm:$0xff]
    %v4729 = vld [vmem:[%s4708 + $0xa0] sm:$0xff]
    %v4730 = vld [vmem:[%s4708 + $0xa8] sm:$0xff]
    %v4731 = vld [vmem:[%s4708 + $0xb0] sm:$0xff]
    %v4732 = vld [vmem:[%s4708 + $0xb8] sm:$0xff]
    %v4733 = vld [vmem:[%s4708 + $0xc0] sm:$0xff]
    %v4734 = vld [vmem:[%s4708 + $0xc8] sm:$0xff]
    %v4735 = vld [vmem:[%s4708 + $0xd0] sm:$0xff]
    %v4736 = vld [vmem:[%s4708 + $0xd8] sm:$0xff]
    %v4737 = vld [vmem:[%s4708 + $0xe0] sm:$0xff]
    %v4738 = vld [vmem:[%s4708 + $0xe8] sm:$0xff]
    %v4739 = vld [vmem:[%s4708 + $0xf0] sm:$0xff]
    %v4740 = vld [vmem:[%s4708 + $0xf8] sm:$0xff]
    %v4741 = vld [vmem:[%s4708 + $0x100] sm:$0xff]
    %v4742 = vld [vmem:[%s4708 + $0x108] sm:$0xff]
    %v4743 = vld [vmem:[%s4708 + $0x110] sm:$0xff]
    %v4744 = vld [vmem:[%s4708 + $0x118] sm:$0xff]
    %v4745 = vld [vmem:[%s4708 + $0x120] sm:$0xff]
    %v4746 = vld [vmem:[%s4708 + $0x128] sm:$0xff]
    %v4747 = vld [vmem:[%s4708 + $0x130] sm:$0xff]
    %v4748 = vld [vmem:[%s4708 + $0x138] sm:$0xff]
    %v4749 = vld [vmem:[%s4708 + $0x140] sm:$0xff]
    %v4750 = vld [vmem:[%s4708 + $0x148] sm:$0xff]
    %v4751 = vld [vmem:[%s4708 + $0x150] sm:$0xff]
    %v4752 = vld [vmem:[%s4708 + $0x158] sm:$0xff]
    %v4753 = vld [vmem:[%s4708 + $0x160] sm:$0xff]
    %v4754 = vld [vmem:[%s4708 + $0x168] sm:$0xff]
    %v4755 = vld [vmem:[%s4708 + $0x170] sm:$0xff]
    %v4756 = vld [vmem:[%s4708 + $0x178] sm:$0xff]
    %s4757 = scalar_lea.vmem [#allocation20], 3
    %v4758 = vld [vmem:[%s4757] sm:$0x7]
    %s4759 = scalar_lea.vmem [#allocation22], 3
    %v4760 = vld [vmem:[%s4759] sm:$0x7]
    %s4761 = scalar_lea.vmem [#allocation23], 3
    %v4762 = vld [vmem:[%s4761] sm:$0x7]
    %v4765 = vlaneseq
    %v4766 = vshrl.u32 %v4765, 7
    %v4767 = vsub.s32 0, %v4766
    %v4768 = vrot.slane %v4504, %v4767
    %v4769 = vlaneseq
    %v4770 = vshrl.u32 %v4769, 7
    %v4771 = vsub.s32 1, %v4770
    %v4772 = vrot.slane %v4504, %v4771
    %v4773 = vlaneseq
    %v4774 = vshrl.u32 %v4773, 7
    %v4775 = vsub.s32 2, %v4774
    %v4776 = vrot.slane %v4504, %v4775
    %v4777 = vlaneseq
    %v4778 = vshrl.u32 %v4777, 7
    %v4779 = vsub.s32 3, %v4778
    %v4780 = vrot.slane %v4504, %v4779
    %v4781 = vlaneseq
    %v4782 = vshrl.u32 %v4781, 7
    %v4783 = vsub.s32 4, %v4782
    %v4784 = vrot.slane %v4504, %v4783
    %v4785 = vlaneseq
    %v4786 = vshrl.u32 %v4785, 7
    %v4787 = vsub.s32 5, %v4786
    %v4788 = vrot.slane %v4504, %v4787
    %v4789 = vlaneseq
    %v4790 = vshrl.u32 %v4789, 7
    %v4791 = vsub.s32 6, %v4790
    %v4792 = vrot.slane %v4504, %v4791
    %v4793 = vlaneseq
    %v4794 = vshrl.u32 %v4793, 7
    %v4795 = vsub.s32 7, %v4794
    %v4796 = vrot.slane %v4504, %v4795
    %v4797 = vlaneseq
    %v4798 = vshrl.u32 %v4797, 7
    %v4799 = vsub.s32 0, %v4798
    %v4800 = vrot.slane %v4505, %v4799
    %4810 = vmatprep.subr.mxu0 %v4072
    %4811 = vmatpush1.msra.mxu0 %v4071
    %4812 = vmatprep.subr.mxu0 %v4081
    %4813 = vmatpush1.msra.mxu0 %v4080
    %4814 = vmatprep.subr.mxu0 %v4090
    %4815 = vmatpush1.msra.mxu0 %v4089
    %4816 = vmatprep.subr.mxu0 %v4099
    %4817 = vmatpush1.msra.mxu0 %v4098
    %4818 = vmatprep.subr.mxu0 %v4108
    %4819 = vmatpush1.msra.mxu0 %v4107
    %4820 = vmatprep.subr.mxu0 %v4117
    %4821 = vmatpush1.msra.mxu0 %v4116
    %4822 = vmatprep.subr.mxu0 %v4126
    %4823 = vmatpush1.msra.mxu0 %v4125
    %4824 = vmatprep.subr.mxu0 %v4135
    %4825 = vmatpush1.msra.mxu0 %v4134
    %4826 = vmatprep.subr.mxu0 %v4144
    %4827 = vmatpush1.msra.mxu0 %v4143
    %4828 = vmatprep.subr.mxu0 %v4153
    %4829 = vmatpush1.msra.mxu0 %v4152
    %4830 = vmatprep.subr.mxu0 %v4162
    %4831 = vmatpush1.msra.mxu0 %v4161
    %4832 = vmatprep.subr.mxu0 %v4171
    %4833 = vmatpush1.msra.mxu0 %v4170
    %4834 = vmatprep.subr.mxu0 %v4180
    %4835 = vmatpush1.msra.mxu0 %v4179
    %4836 = vmatprep.subr.mxu0 %v4189
    %4837 = vmatpush1.msra.mxu0 %v4188
    %4838 = vmatprep.subr.mxu0 %v4198
    %4839 = vmatpush1.msra.mxu0 %v4197
    %4840 = vmatprep.subr.mxu0 %v4207
    %4841 = vmatpush1.msra.mxu0 %v4206
    %4842 = vmatprep.subr.mxu0 %v4216
    %4843 = vmatpush1.msra.mxu0 %v4215
    %4844 = vmatprep.subr.mxu0 %v4225
    %4845 = vmatpush1.msra.mxu0 %v4224
    %4846 = vmatprep.subr.mxu0 %v4234
    %4847 = vmatpush1.msra.mxu0 %v4233
    %4848 = vmatprep.subr.mxu0 %v4243
    %4849 = vmatpush1.msra.mxu0 %v4242
    %4850 = vmatprep.subr.mxu0 %v4252
    %4851 = vmatpush1.msra.mxu0 %v4251
    %4852 = vmatprep.subr.mxu0 %v4261
    %4853 = vmatpush1.msra.mxu0 %v4260
    %4854 = vmatprep.subr.mxu0 %v4270
    %4855 = vmatpush1.msra.mxu0 %v4269
    %4856 = vmatprep.subr.mxu0 %v4279
    %4857 = vmatpush1.msra.mxu0 %v4278
    %4858 = vmatprep.subr.mxu0 %v4288
    %4859 = vmatpush1.msra.mxu0 %v4287
    %4860 = vmatprep.subr.mxu0 %v4297
    %4861 = vmatpush1.msra.mxu0 %v4296
    %4862 = vmatprep.subr.mxu0 %v4306
    %4863 = vmatpush1.msra.mxu0 %v4305
    %4864 = vmatprep.subr.mxu0 %v4315
    %4865 = vmatpush1.msra.mxu0 %v4314
    %4866 = vmatprep.subr.mxu0 %v4324
    %4867 = vmatpush1.msra.mxu0 %v4323
    %4868 = vmatprep.subr.mxu0 %v4333
    %4869 = vmatpush1.msra.mxu0 %v4332
    %4870 = vmatprep.subr.mxu0 %v4342
    %4871 = vmatpush1.msra.mxu0 %v4341
    %4872 = vmatprep.subr.mxu0 %v4351
    %4873 = vmatpush1.msra.mxu0 %v4350
    %4874 = vmatprep.mubr.f32.mxu0 %v4065
    %4875 = vmatmul.mubr.f32.gmra.mrb[0].mxu0 %v4064
    %v4876 = vpop.f32.mrb[0].mxu0
    %v4877 = vadd.f32 %v4768, %v4876
    %v4878 = vpop.f32.mrb[0].mxu0
    %v4879 = vadd.f32 %v4772, %v4878
    %4880 = vmatprep.mubr.f32.mxu0 %v4068
    %4881 = vmatmul.mubr.f32.gmra.mrb[0].mxu0 %v4067
    %v4882 = vpop.f32.mrb[0].mxu0
    %v4883 = vadd.f32 %v4768, %v4882
    %v4884 = vpop.f32.mrb[0].mxu0
    %v4885 = vadd.f32 %v4772, %v4884
    %4886 = vdwg.mxu0
    %4887 = vmatprep.subr.mxu0 %v4360
    %4888 = vmatpush1.msra.mxu0 %v4359
    %4889 = vmatprep.subr.mxu0 %v4369
    %4890 = vmatpush1.msra.mxu0 %v4368
    %4891 = vmatprep.subr.mxu0 %v4378
    %4892 = vmatpush1.msra.mxu0 %v4377
    %4893 = vmatprep.subr.mxu0 %v4387
    %4894 = vmatpush1.msra.mxu0 %v4386
    %4895 = vmatprep.subr.mxu0 %v4396
    %4896 = vmatpush1.msra.mxu0 %v4395
    %4897 = vmatprep.subr.mxu0 %v4405
    %4898 = vmatpush1.msra.mxu0 %v4404
    %4899 = vmatprep.subr.mxu0 %v4414
    %4900 = vmatpush1.msra.mxu0 %v4413
    %4901 = vmatprep.subr.mxu0 %v4423
    %4902 = vmatpush1.msra.mxu0 %v4422
    %4903 = vmatprep.subr.mxu0 %v4432
    %4904 = vmatpush1.msra.mxu0 %v4431
    %4905 = vmatprep.subr.mxu0 %v4441
    %4906 = vmatpush1.msra.mxu0 %v4440
    %4907 = vmatprep.subr.mxu0 %v4450
    %4908 = vmatpush1.msra.mxu0 %v4449
    %4909 = vmatprep.subr.mxu0 %v4459
    %4910 = vmatpush1.msra.mxu0 %v4458
    %4911 = vmatprep.subr.mxu0 %v4468
    %4912 = vmatpush1.msra.mxu0 %v4467
    %4913 = vmatprep.subr.mxu0 %v4477
    %4914 = vmatpush1.msra.mxu0 %v4476
    %4915 = vmatprep.subr.mxu0 %v4486
    %4916 = vmatpush1.msra.mxu0 %v4485
    %4917 = vmatprep.subr.mxu0 %v4495
    %4918 = vmatpush1.msra.mxu0 %v4494
    %4919 = vmatprep.subr.mxu0 0.0
    %4920 = vmatpush1.msra.mxu0 0.0
    %4921 = vmatprep.subr.mxu0 0.0
    %4922 = vmatpush1.msra.mxu0 0.0
    %4923 = vmatprep.subr.mxu0 0.0
    %4924 = vmatpush1.msra.mxu0 0.0
    %4925 = vmatprep.subr.mxu0 0.0
    %4926 = vmatpush1.msra.mxu0 0.0
    %4927 = vmatprep.subr.mxu0 0.0
    %4928 = vmatpush1.msra.mxu0 0.0
    %4929 = vmatprep.subr.mxu0 0.0
    %4930 = vmatpush1.msra.mxu0 0.0
    %4931 = vmatprep.subr.mxu0 0.0
    %4932 = vmatpush1.msra.mxu0 0.0
    %4933 = vmatprep.subr.mxu0 0.0
    %4934 = vmatpush1.msra.mxu0 0.0
    %4935 = vmatprep.subr.mxu0 0.0
    %4936 = vmatpush1.msra.mxu0 0.0
    %4937 = vmatprep.subr.mxu0 0.0
    %4938 = vmatpush1.msra.mxu0 0.0
    %4939 = vmatprep.subr.mxu0 0.0
    %4940 = vmatpush1.msra.mxu0 0.0
    %4941 = vmatprep.subr.mxu0 0.0
    %4942 = vmatpush1.msra.mxu0 0.0
    %4943 = vmatprep.subr.mxu0 0.0
    %4944 = vmatpush1.msra.mxu0 0.0
    %4945 = vmatprep.subr.mxu0 0.0
    %4946 = vmatpush1.msra.mxu0 0.0
    %4947 = vmatprep.subr.mxu0 0.0
    %4948 = vmatpush1.msra.mxu0 0.0
    %4949 = vmatprep.subr.mxu0 0.0
    %4950 = vmatpush1.msra.mxu0 0.0
    %4951 = vmatprep.mubr.f32.mxu0 0.0
    %4952 = vmatmul.mubr.f32.gmra.mrb[0].mxu0 %v4066
    %v4953 = vpop.f32.mrb[0].mxu0
    %v4954 = vadd.f32 %v4877, %v4953
    %v4955 = vpop.f32.mrb[0].mxu0
    %v4956 = vadd.f32 %v4879, %v4955
    %4957 = vmatprep.mubr.f32.mxu0 0.0
    %4958 = vmatmul.mubr.f32.gmra.mrb[0].mxu0 %v4069
    %v4959 = vpop.f32.mrb[0].mxu0
    %v4960 = vadd.f32 %v4883, %v4959
    %v4961 = vpop.f32.mrb[0].mxu0
    %v4962 = vadd.f32 %v4885, %v4961
    %4963 = vdwg.mxu0
    %4964 = vmatprep.subr.mxu0 %v4074
    %4965 = vmatpush1.msra.mxu0 %v4073
    %4966 = vmatprep.subr.mxu0 %v4083
    %4967 = vmatpush1.msra.mxu0 %v4082
    %4968 = vmatprep.subr.mxu0 %v4092
    %4969 = vmatpush1.msra.mxu0 %v4091
    %4970 = vmatprep.subr.mxu0 %v4101
    %4971 = vmatpush1.msra.mxu0 %v4100
    %4972 = vmatprep.subr.mxu0 %v4110
    %4973 = vmatpush1.msra.mxu0 %v4109
    %4974 = vmatprep.subr.mxu0 %v4119
    %4975 = vmatpush1.msra.mxu0 %v4118
    %4976 = vmatprep.subr.mxu0 %v4128
    %4977 = vmatpush1.msra.mxu0 %v4127
    %4978 = vmatprep.subr.mxu0 %v4137
    %4979 = vmatpush1.msra.mxu0 %v4136
    %4980 = vmatprep.subr.mxu0 %v4146
    %4981 = vmatpush1.msra.mxu0 %v4145
    %4982 = vmatprep.subr.mxu0 %v4155
    %4983 = vmatpush1.msra.mxu0 %v4154
    %4984 = vmatprep.subr.mxu0 %v4164
    %4985 = vmatpush1.msra.mxu0 %v4163
    %4986 = vmatprep.subr.mxu0 %v4173
    %4987 = vmatpush1.msra.mxu0 %v4172
    %4988 = vmatprep.subr.mxu0 %v4182
    %4989 = vmatpush1.msra.mxu0 %v4181
    %4990 = vmatprep.subr.mxu0 %v4191
    %4991 = vmatpush1.msra.mxu0 %v4190
    %4992 = vmatprep.subr.mxu0 %v4200
    %4993 = vmatpush1.msra.mxu0 %v4199
    %4994 = vmatprep.subr.mxu0 %v4209
    %4995 = vmatpush1.msra.mxu0 %v4208
    %4996 = vmatprep.subr.mxu0 %v4218
    %4997 = vmatpush1.msra.mxu0 %v4217
    %4998 = vmatprep.subr.mxu0 %v4227
    %4999 = vmatpush1.msra.mxu0 %v4226
    %5000 = vmatprep.subr.mxu0 %v4236
    %5001 = vmatpush1.msra.mxu0 %v4235
    %5002 = vmatprep.subr.mxu0 %v4245
    %5003 = vmatpush1.msra.mxu0 %v4244
    %5004 = vmatprep.subr.mxu0 %v4254
    %5005 = vmatpush1.msra.mxu0 %v4253
    %5006 = vmatprep.subr.mxu0 %v4263
    %5007 = vmatpush1.msra.mxu0 %v4262
    %5008 = vmatprep.subr.mxu0 %v4272
    %5009 = vmatpush1.msra.mxu0 %v4271
    %5010 = vmatprep.subr.mxu0 %v4281
    %5011 = vmatpush1.msra.mxu0 %v4280
    %5012 = vmatprep.subr.mxu0 %v4290
    %5013 = vmatpush1.msra.mxu0 %v4289
    %5014 = vmatprep.subr.mxu0 %v4299
    %5015 = vmatpush1.msra.mxu0 %v4298
    %5016 = vmatprep.subr.mxu0 %v4308
    %5017 = vmatpush1.msra.mxu0 %v4307
    %5018 = vmatprep.subr.mxu0 %v4317
    %5019 = vmatpush1.msra.mxu0 %v4316
    %5020 = vmatprep.subr.mxu0 %v4326
    %5021 = vmatpush1.msra.mxu0 %v4325
    %5022 = vmatprep.subr.mxu0 %v4335
    %5023 = vmatpush1.msra.mxu0 %v4334
    %5024 = vmatprep.subr.mxu0 %v4344
    %5025 = vmatpush1.msra.mxu0 %v4343
    %5026 = vmatprep.subr.mxu0 %v4353
    %5027 = vmatpush1.msra.mxu0 %v4352
    %5028 = vmatprep.mubr.f32.mxu0 %v4065
    %5029 = vmatmul.mubr.f32.gmra.mrb[0].mxu0 %v4064
    %v5030 = vpop.f32.mrb[0].mxu0
    %v5031 = vadd.f32 %v4776, %v5030
    %v5032 = vpop.f32.mrb[0].mxu0
    %v5033 = vadd.f32 %v4780, %v5032
    %5034 = vmatprep.mubr.f32.mxu0 %v4068
    %5035 = vmatmul.mubr.f32.gmra.mrb[0].mxu0 %v4067
    %v5036 = vpop.f32.mrb[0].mxu0
    %v5037 = vadd.f32 %v4776, %v5036
    %v5038 = vpop.f32.mrb[0].mxu0
    %v5039 = vadd.f32 %v4780, %v5038
    %5040 = vdwg.mxu0
    %5041 = vmatprep.subr.mxu0 %v4362
    %5042 = vmatpush1.msra.mxu0 %v4361
    %5043 = vmatprep.subr.mxu0 %v4371
    %5044 = vmatpush1.msra.mxu0 %v4370
    %5045 = vmatprep.subr.mxu0 %v4380
    %5046 = vmatpush1.msra.mxu0 %v4379
    %5047 = vmatprep.subr.mxu0 %v4389
    %5048 = vmatpush1.msra.mxu0 %v4388
    %5049 = vmatprep.subr.mxu0 %v4398
    %5050 = vmatpush1.msra.mxu0 %v4397
    %5051 = vmatprep.subr.mxu0 %v4407
    %5052 = vmatpush1.msra.mxu0 %v4406
    %5053 = vmatprep.subr.mxu0 %v4416
    %5054 = vmatpush1.msra.mxu0 %v4415
    %5055 = vmatprep.subr.mxu0 %v4425
    %5056 = vmatpush1.msra.mxu0 %v4424
    %5057 = vmatprep.subr.mxu0 %v4434
    %5058 = vmatpush1.msra.mxu0 %v4433
    %5059 = vmatprep.subr.mxu0 %v4443
    %5060 = vmatpush1.msra.mxu0 %v4442
    %5061 = vmatprep.subr.mxu0 %v4452
    %5062 = vmatpush1.msra.mxu0 %v4451
    %5063 = vmatprep.subr.mxu0 %v4461
    %5064 = vmatpush1.msra.mxu0 %v4460
    %5065 = vmatprep.subr.mxu0 %v4470
    %5066 = vmatpush1.msra.mxu0 %v4469
    %5067 = vmatprep.subr.mxu0 %v4479
    %5068 = vmatpush1.msra.mxu0 %v4478
    %5069 = vmatprep.subr.mxu0 %v4488
    %5070 = vmatpush1.msra.mxu0 %v4487
    %5071 = vmatprep.subr.mxu0 %v4497
    %5072 = vmatpush1.msra.mxu0 %v4496
    %5073 = vmatprep.subr.mxu0 0.0
    %5074 = vmatpush1.msra.mxu0 0.0
    %5075 = vmatprep.subr.mxu0 0.0
    %5076 = vmatpush1.msra.mxu0 0.0
    %5077 = vmatprep.subr.mxu0 0.0
    %5078 = vmatpush1.msra.mxu0 0.0
    %5079 = vmatprep.subr.mxu0 0.0
    %5080 = vmatpush1.msra.mxu0 0.0
    %5081 = vmatprep.subr.mxu0 0.0
    %5082 = vmatpush1.msra.mxu0 0.0
    %5083 = vmatprep.subr.mxu0 0.0
    %5084 = vmatpush1.msra.mxu0 0.0
    %5085 = vmatprep.subr.mxu0 0.0
    %5086 = vmatpush1.msra.mxu0 0.0
    %5087 = vmatprep.subr.mxu0 0.0
    %5088 = vmatpush1.msra.mxu0 0.0
    %5089 = vmatprep.subr.mxu0 0.0
    %5090 = vmatpush1.msra.mxu0 0.0
    %5091 = vmatprep.subr.mxu0 0.0
    %5092 = vmatpush1.msra.mxu0 0.0
    %5093 = vmatprep.subr.mxu0 0.0
    %5094 = vmatpush1.msra.mxu0 0.0
    %5095 = vmatprep.subr.mxu0 0.0
    %5096 = vmatpush1.msra.mxu0 0.0
    %5097 = vmatprep.subr.mxu0 0.0
    %5098 = vmatpush1.msra.mxu0 0.0
    %5099 = vmatprep.subr.mxu0 0.0
    %5100 = vmatpush1.msra.mxu0 0.0
    %5101 = vmatprep.subr.mxu0 0.0
    %5102 = vmatpush1.msra.mxu0 0.0
    %5103 = vmatprep.subr.mxu0 0.0
    %5104 = vmatpush1.msra.mxu0 0.0
    %5105 = vmatprep.mubr.f32.mxu0 0.0
    %5106 = vmatmul.mubr.f32.gmra.mrb[0].mxu0 %v4066
    %v5107 = vpop.f32.mrb[0].mxu0
    %v5108 = vadd.f32 %v5031, %v5107
    %v5109 = vpop.f32.mrb[0].mxu0
    %v5110 = vadd.f32 %v5033, %v5109
    %5111 = vmatprep.mubr.f32.mxu0 0.0
    %5112 = vmatmul.mubr.f32.gmra.mrb[0].mxu0 %v4069
    %v5113 = vpop.f32.mrb[0].mxu0
    %v5114 = vadd.f32 %v5037, %v5113
    %v5115 = vpop.f32.mrb[0].mxu0
    %v5116 = vadd.f32 %v5039, %v5115
    %5117 = vdwg.mxu0
    %5118 = vmatprep.subr.mxu0 %v4076
    %5119 = vmatpush1.msra.mxu0 %v4075
    %5120 = vmatprep.subr.mxu0 %v4085
    %5121 = vmatpush1.msra.mxu0 %v4084
    %5122 = vmatprep.subr.mxu0 %v4094
    %5123 = vmatpush1.msra.mxu0 %v4093
    %5124 = vmatprep.subr.mxu0 %v4103
    %5125 = vmatpush1.msra.mxu0 %v4102
    %5126 = vmatprep.subr.mxu0 %v4112
    %5127 = vmatpush1.msra.mxu0 %v4111
    %5128 = vmatprep.subr.mxu0 %v4121
    %5129 = vmatpush1.msra.mxu0 %v4120
    %5130 = vmatprep.subr.mxu0 %v4130
    %5131 = vmatpush1.msra.mxu0 %v4129
    %5132 = vmatprep.subr.mxu0 %v4139
    %5133 = vmatpush1.msra.mxu0 %v4138
    %5134 = vmatprep.subr.mxu0 %v4148
    %5135 = vmatpush1.msra.mxu0 %v4147
    %5136 = vmatprep.subr.mxu0 %v4157
    %5137 = vmatpush1.msra.mxu0 %v4156
    %5138 = vmatprep.subr.mxu0 %v4166
    %5139 = vmatpush1.msra.mxu0 %v4165
    %5140 = vmatprep.subr.mxu0 %v4175
    %5141 = vmatpush1.msra.mxu0 %v4174
    %5142 = vmatprep.subr.mxu0 %v4184
    %5143 = vmatpush1.msra.mxu0 %v4183
    %5144 = vmatprep.subr.mxu0 %v4193
    %5145 = vmatpush1.msra.mxu0 %v4192
    %5146 = vmatprep.subr.mxu0 %v4202
    %5147 = vmatpush1.msra.mxu0 %v4201
    %5148 = vmatprep.subr.mxu0 %v4211
    %5149 = vmatpush1.msra.mxu0 %v4210
    %5150 = vmatprep.subr.mxu0 %v4220
    %5151 = vmatpush1.msra.mxu0 %v4219
    %5152 = vmatprep.subr.mxu0 %v4229
    %5153 = vmatpush1.msra.mxu0 %v4228
    %5154 = vmatprep.subr.mxu0 %v4238
    %5155 = vmatpush1.msra.mxu0 %v4237
    %5156 = vmatprep.subr.mxu0 %v4247
    %5157 = vmatpush1.msra.mxu0 %v4246
    %5158 = vmatprep.subr.mxu0 %v4256
    %5159 = vmatpush1.msra.mxu0 %v4255
    %5160 = vmatprep.subr.mxu0 %v4265
    %5161 = vmatpush1.msra.mxu0 %v4264
    %5162 = vmatprep.subr.mxu0 %v4274
    %5163 = vmatpush1.msra.mxu0 %v4273
    %5164 = vmatprep.subr.mxu0 %v4283
    %5165 = vmatpush1.msra.mxu0 %v4282
    %5166 = vmatprep.subr.mxu0 %v4292
    %5167 = vmatpush1.msra.mxu0 %v4291
    %5168 = vmatprep.subr.mxu0 %v4301
    %5169 = vmatpush1.msra.mxu0 %v4300
    %5170 = vmatprep.subr.mxu0 %v4310
    %5171 = vmatpush1.msra.mxu0 %v4309
    %5172 = vmatprep.subr.mxu0 %v4319
    %5173 = vmatpush1.msra.mxu0 %v4318
    %5174 = vmatprep.subr.mxu0 %v4328
    %5175 = vmatpush1.msra.mxu0 %v4327
    %5176 = vmatprep.subr.mxu0 %v4337
    %5177 = vmatpush1.msra.mxu0 %v4336
    %5178 = vmatprep.subr.mxu0 %v4346
    %5179 = vmatpush1.msra.mxu0 %v4345
    %5180 = vmatprep.subr.mxu0 %v4355
    %5181 = vmatpush1.msra.mxu0 %v4354
    %5182 = vmatprep.mubr.f32.mxu0 %v4065
    %5183 = vmatmul.mubr.f32.gmra.mrb[0].mxu0 %v4064
    %v5184 = vpop.f32.mrb[0].mxu0
    %v5185 = vadd.f32 %v4784, %v5184
    %v5186 = vpop.f32.mrb[0].mxu0
    %v5187 = vadd.f32 %v4788, %v5186
    %5188 = vmatprep.mubr.f32.mxu0 %v4068
    %5189 = vmatmul.mubr.f32.gmra.mrb[0].mxu0 %v4067
    %v5190 = vpop.f32.mrb[0].mxu0
    %v5191 = vadd.f32 %v4784, %v5190
    %v5192 = vpop.f32.mrb[0].mxu0
    %v5193 = vadd.f32 %v4788, %v5192
    %5194 = vdwg.mxu0
    %5195 = vmatprep.subr.mxu0 %v4364
    %5196 = vmatpush1.msra.mxu0 %v4363
    %5197 = vmatprep.subr.mxu0 %v4373
    %5198 = vmatpush1.msra.mxu0 %v4372
    %5199 = vmatprep.subr.mxu0 %v4382
    %5200 = vmatpush1.msra.mxu0 %v4381
    %5201 = vmatprep.subr.mxu0 %v4391
    %5202 = vmatpush1.msra.mxu0 %v4390
    %5203 = vmatprep.subr.mxu0 %v4400
    %5204 = vmatpush1.msra.mxu0 %v4399
    %5205 = vmatprep.subr.mxu0 %v4409
    %5206 = vmatpush1.msra.mxu0 %v4408
    %5207 = vmatprep.subr.mxu0 %v4418
    %5208 = vmatpush1.msra.mxu0 %v4417
    %5209 = vmatprep.subr.mxu0 %v4427
    %5210 = vmatpush1.msra.mxu0 %v4426
    %5211 = vmatprep.subr.mxu0 %v4436
    %5212 = vmatpush1.msra.mxu0 %v4435
    %5213 = vmatprep.subr.mxu0 %v4445
    %5214 = vmatpush1.msra.mxu0 %v4444
    %5215 = vmatprep.subr.mxu0 %v4454
    %5216 = vmatpush1.msra.mxu0 %v4453
    %5217 = vmatprep.subr.mxu0 %v4463
    %5218 = vmatpush1.msra.mxu0 %v4462
    %5219 = vmatprep.subr.mxu0 %v4472
    %5220 = vmatpush1.msra.mxu0 %v4471
    %5221 = vmatprep.subr.mxu0 %v4481
    %5222 = vmatpush1.msra.mxu0 %v4480
    %5223 = vmatprep.subr.mxu0 %v4490
    %5224 = vmatpush1.msra.mxu0 %v4489
    %5225 = vmatprep.subr.mxu0 %v4499
    %5226 = vmatpush1.msra.mxu0 %v4498
    %5227 = vmatprep.subr.mxu0 0.0
    %5228 = vmatpush1.msra.mxu0 0.0
    %5229 = vmatprep.subr.mxu0 0.0
    %5230 = vmatpush1.msra.mxu0 0.0
    %5231 = vmatprep.subr.mxu0 0.0
    %5232 = vmatpush1.msra.mxu0 0.0
    %5233 = vmatprep.subr.mxu0 0.0
    %5234 = vmatpush1.msra.mxu0 0.0
    %5235 = vmatprep.subr.mxu0 0.0
    %5236 = vmatpush1.msra.mxu0 0.0
    %5237 = vmatprep.subr.mxu0 0.0
    %5238 = vmatpush1.msra.mxu0 0.0
    %5239 = vmatprep.subr.mxu0 0.0
    %5240 = vmatpush1.msra.mxu0 0.0
    %5241 = vmatprep.subr.mxu0 0.0
    %5242 = vmatpush1.msra.mxu0 0.0
    %5243 = vmatprep.subr.mxu0 0.0
    %5244 = vmatpush1.msra.mxu0 0.0
    %5245 = vmatprep.subr.mxu0 0.0
    %5246 = vmatpush1.msra.mxu0 0.0
    %5247 = vmatprep.subr.mxu0 0.0
    %5248 = vmatpush1.msra.mxu0 0.0
    %5249 = vmatprep.subr.mxu0 0.0
    %5250 = vmatpush1.msra.mxu0 0.0
    %5251 = vmatprep.subr.mxu0 0.0
    %5252 = vmatpush1.msra.mxu0 0.0
    %5253 = vmatprep.subr.mxu0 0.0
    %5254 = vmatpush1.msra.mxu0 0.0
    %5255 = vmatprep.subr.mxu0 0.0
    %5256 = vmatpush1.msra.mxu0 0.0
    %5257 = vmatprep.subr.mxu0 0.0
    %5258 = vmatpush1.msra.mxu0 0.0
    %5259 = vmatprep.mubr.f32.mxu0 0.0
    %5260 = vmatmul.mubr.f32.gmra.mrb[0].mxu0 %v4066
    %v5261 = vpop.f32.mrb[0].mxu0
    %v5262 = vadd.f32 %v5185, %v5261
    %v5263 = vpop.f32.mrb[0].mxu0
    %v5264 = vadd.f32 %v5187, %v5263
    %5265 = vmatprep.mubr.f32.mxu0 0.0
    %5266 = vmatmul.mubr.f32.gmra.mrb[0].mxu0 %v4069
    %v5267 = vpop.f32.mrb[0].mxu0
    %v5268 = vadd.f32 %v5191, %v5267
    %v5269 = vpop.f32.mrb[0].mxu0
    %v5270 = vadd.f32 %v5193, %v5269
    %5271 = vdwg.mxu0
    %5272 = vmatprep.subr.mxu0 %v4078
    %5273 = vmatpush1.msra.mxu0 %v4077
    %5274 = vmatprep.subr.mxu0 %v4087
    %5275 = vmatpush1.msra.mxu0 %v4086
    %5276 = vmatprep.subr.mxu0 %v4096
    %5277 = vmatpush1.msra.mxu0 %v4095
    %5278 = vmatprep.subr.mxu0 %v4105
    %5279 = vmatpush1.msra.mxu0 %v4104
    %5280 = vmatprep.subr.mxu0 %v4114
    %5281 = vmatpush1.msra.mxu0 %v4113
    %5282 = vmatprep.subr.mxu0 %v4123
    %5283 = vmatpush1.msra.mxu0 %v4122
    %5284 = vmatprep.subr.mxu0 %v4132
    %5285 = vmatpush1.msra.mxu0 %v4131
    %5286 = vmatprep.subr.mxu0 %v4141
    %5287 = vmatpush1.msra.mxu0 %v4140
    %5288 = vmatprep.subr.mxu0 %v4150
    %5289 = vmatpush1.msra.mxu0 %v4149
    %5290 = vmatprep.subr.mxu0 %v4159
    %5291 = vmatpush1.msra.mxu0 %v4158
    %5292 = vmatprep.subr.mxu0 %v4168
    %5293 = vmatpush1.msra.mxu0 %v4167
    %5294 = vmatprep.subr.mxu0 %v4177
    %5295 = vmatpush1.msra.mxu0 %v4176
    %5296 = vmatprep.subr.mxu0 %v4186
    %5297 = vmatpush1.msra.mxu0 %v4185
    %5298 = vmatprep.subr.mxu0 %v4195
    %5299 = vmatpush1.msra.mxu0 %v4194
    %5300 = vmatprep.subr.mxu0 %v4204
    %5301 = vmatpush1.msra.mxu0 %v4203
    %5302 = vmatprep.subr.mxu0 %v4213
    %5303 = vmatpush1.msra.mxu0 %v4212
    %5304 = vmatprep.subr.mxu0 %v4222
    %5305 = vmatpush1.msra.mxu0 %v4221
    %5306 = vmatprep.subr.mxu0 %v4231
    %5307 = vmatpush1.msra.mxu0 %v4230
    %5308 = vmatprep.subr.mxu0 %v4240
    %5309 = vmatpush1.msra.mxu0 %v4239
    %5310 = vmatprep.subr.mxu0 %v4249
    %5311 = vmatpush1.msra.mxu0 %v4248
    %5312 = vmatprep.subr.mxu0 %v4258
    %5313 = vmatpush1.msra.mxu0 %v4257
    %5314 = vmatprep.subr.mxu0 %v4267
    %5315 = vmatpush1.msra.mxu0 %v4266
    %5316 = vmatprep.subr.mxu0 %v4276
    %5317 = vmatpush1.msra.mxu0 %v4275
    %5318 = vmatprep.subr.mxu0 %v4285
    %5319 = vmatpush1.msra.mxu0 %v4284
    %5320 = vmatprep.subr.mxu0 %v4294
    %5321 = vmatpush1.msra.mxu0 %v4293
    %5322 = vmatprep.subr.mxu0 %v4303
    %5323 = vmatpush1.msra.mxu0 %v4302
    %5324 = vmatprep.subr.mxu0 %v4312
    %5325 = vmatpush1.msra.mxu0 %v4311
    %5326 = vmatprep.subr.mxu0 %v4321
    %5327 = vmatpush1.msra.mxu0 %v4320
    %5328 = vmatprep.subr.mxu0 %v4330
    %5329 = vmatpush1.msra.mxu0 %v4329
    %5330 = vmatprep.subr.mxu0 %v4339
    %5331 = vmatpush1.msra.mxu0 %v4338
    %5332 = vmatprep.subr.mxu0 %v4348
    %5333 = vmatpush1.msra.mxu0 %v4347
    %5334 = vmatprep.subr.mxu0 %v4357
    %5335 = vmatpush1.msra.mxu0 %v4356
    %5336 = vmatprep.mubr.f32.mxu0 %v4065
    %5337 = vmatmul.mubr.f32.gmra.mrb[0].mxu0 %v4064
    %v5338 = vpop.f32.mrb[0].mxu0
    %v5339 = vadd.f32 %v4792, %v5338
    %v5340 = vpop.f32.mrb[0].mxu0
    %v5341 = vadd.f32 %v4796, %v5340
    %5342 = vmatprep.mubr.f32.mxu0 %v4068
    %5343 = vmatmul.mubr.f32.gmra.mrb[0].mxu0 %v4067
    %v5344 = vpop.f32.mrb[0].mxu0
    %v5345 = vadd.f32 %v4792, %v5344
    %v5346 = vpop.f32.mrb[0].mxu0
    %v5347 = vadd.f32 %v4796, %v5346
    %5348 = vdwg.mxu0
    %5349 = vmatprep.subr.mxu0 %v4366
    %5350 = vmatpush1.msra.mxu0 %v4365
    %5351 = vmatprep.subr.mxu0 %v4375
    %5352 = vmatpush1.msra.mxu0 %v4374
    %5353 = vmatprep.subr.mxu0 %v4384
    %5354 = vmatpush1.msra.mxu0 %v4383
    %5355 = vmatprep.subr.mxu0 %v4393
    %5356 = vmatpush1.msra.mxu0 %v4392
    %5357 = vmatprep.subr.mxu0 %v4402
    %5358 = vmatpush1.msra.mxu0 %v4401
    %5359 = vmatprep.subr.mxu0 %v4411
    %5360 = vmatpush1.msra.mxu0 %v4410
    %5361 = vmatprep.subr.mxu0 %v4420
    %5362 = vmatpush1.msra.mxu0 %v4419
    %5363 = vmatprep.subr.mxu0 %v4429
    %5364 = vmatpush1.msra.mxu0 %v4428
    %5365 = vmatprep.subr.mxu0 %v4438
    %5366 = vmatpush1.msra.mxu0 %v4437
    %5367 = vmatprep.subr.mxu0 %v4447
    %5368 = vmatpush1.msra.mxu0 %v4446
    %5369 = vmatprep.subr.mxu0 %v4456
    %5370 = vmatpush1.msra.mxu0 %v4455
    %5371 = vmatprep.subr.mxu0 %v4465
    %5372 = vmatpush1.msra.mxu0 %v4464
    %5373 = vmatprep.subr.mxu0 %v4474
    %5374 = vmatpush1.msra.mxu0 %v4473
    %5375 = vmatprep.subr.mxu0 %v4483
    %5376 = vmatpush1.msra.mxu0 %v4482
    %5377 = vmatprep.subr.mxu0 %v4492
    %5378 = vmatpush1.msra.mxu0 %v4491
    %5379 = vmatprep.subr.mxu0 %v4501
    %5380 = vmatpush1.msra.mxu0 %v4500
    %5381 = vmatprep.subr.mxu0 0.0
    %5382 = vmatpush1.msra.mxu0 0.0
    %5383 = vmatprep.subr.mxu0 0.0
    %5384 = vmatpush1.msra.mxu0 0.0
    %5385 = vmatprep.subr.mxu0 0.0
    %5386 = vmatpush1.msra.mxu0 0.0
    %5387 = vmatprep.subr.mxu0 0.0
    %5388 = vmatpush1.msra.mxu0 0.0
    %5389 = vmatprep.subr.mxu0 0.0
    %5390 = vmatpush1.msra.mxu0 0.0
    %5391 = vmatprep.subr.mxu0 0.0
    %5392 = vmatpush1.msra.mxu0 0.0
    %5393 = vmatprep.subr.mxu0 0.0
    %5394 = vmatpush1.msra.mxu0 0.0
    %5395 = vmatprep.subr.mxu0 0.0
    %5396 = vmatpush1.msra.mxu0 0.0
    %5397 = vmatprep.subr.mxu0 0.0
    %5398 = vmatpush1.msra.mxu0 0.0
    %5399 = vmatprep.subr.mxu0 0.0
    %5400 = vmatpush1.msra.mxu0 0.0
    %5401 = vmatprep.subr.mxu0 0.0
    %5402 = vmatpush1.msra.mxu0 0.0
    %5403 = vmatprep.subr.mxu0 0.0
    %5404 = vmatpush1.msra.mxu0 0.0
    %5405 = vmatprep.subr.mxu0 0.0
    %5406 = vmatpush1.msra.mxu0 0.0
    %5407 = vmatprep.subr.mxu0 0.0
    %5408 = vmatpush1.msra.mxu0 0.0
    %5409 = vmatprep.subr.mxu0 0.0
    %5410 = vmatpush1.msra.mxu0 0.0
    %5411 = vmatprep.subr.mxu0 0.0
    %5412 = vmatpush1.msra.mxu0 0.0
    %5413 = vmatprep.mubr.f32.mxu0 0.0
    %5414 = vmatmul.mubr.f32.gmra.mrb[0].mxu0 %v4066
    %v5415 = vpop.f32.mrb[0].mxu0
    %v5416 = vadd.f32 %v5339, %v5415
    %v5417 = vpop.f32.mrb[0].mxu0
    %v5418 = vadd.f32 %v5341, %v5417
    %5419 = vmatprep.mubr.f32.mxu0 0.0
    %5420 = vmatmul.mubr.f32.gmra.mrb[0].mxu0 %v4069
    %v5421 = vpop.f32.mrb[0].mxu0
    %v5422 = vadd.f32 %v5345, %v5421
    %v5423 = vpop.f32.mrb[0].mxu0
    %v5424 = vadd.f32 %v5347, %v5423
    %5425 = vdwg.mxu0
    %5426 = vmatprep.subr.mxu0 0.0
    %5427 = vmatpush1.msra.mxu0 %v4079
    %5428 = vmatprep.subr.mxu0 0.0
    %5429 = vmatpush1.msra.mxu0 %v4088
    %5430 = vmatprep.subr.mxu0 0.0
    %5431 = vmatpush1.msra.mxu0 %v4097
    %5432 = vmatprep.subr.mxu0 0.0
    %5433 = vmatpush1.msra.mxu0 %v4106
    %5434 = vmatprep.subr.mxu0 0.0
    %5435 = vmatpush1.msra.mxu0 %v4115
    %5436 = vmatprep.subr.mxu0 0.0
    %5437 = vmatpush1.msra.mxu0 %v4124
    %5438 = vmatprep.subr.mxu0 0.0
    %5439 = vmatpush1.msra.mxu0 %v4133
    %5440 = vmatprep.subr.mxu0 0.0
    %5441 = vmatpush1.msra.mxu0 %v4142
    %5442 = vmatprep.subr.mxu0 0.0
    %5443 = vmatpush1.msra.mxu0 %v4151
    %5444 = vmatprep.subr.mxu0 0.0
    %5445 = vmatpush1.msra.mxu0 %v4160
    %5446 = vmatprep.subr.mxu0 0.0
    %5447 = vmatpush1.msra.mxu0 %v4169
    %5448 = vmatprep.subr.mxu0 0.0
    %5449 = vmatpush1.msra.mxu0 %v4178
    %5450 = vmatprep.subr.mxu0 0.0
    %5451 = vmatpush1.msra.mxu0 %v4187
    %5452 = vmatprep.subr.mxu0 0.0
    %5453 = vmatpush1.msra.mxu0 %v4196
    %5454 = vmatprep.subr.mxu0 0.0
    %5455 = vmatpush1.msra.mxu0 %v4205
    %5456 = vmatprep.subr.mxu0 0.0
    %5457 = vmatpush1.msra.mxu0 %v4214
    %5458 = vmatprep.subr.mxu0 0.0
    %5459 = vmatpush1.msra.mxu0 %v4223
    %5460 = vmatprep.subr.mxu0 0.0
    %5461 = vmatpush1.msra.mxu0 %v4232
    %5462 = vmatprep.subr.mxu0 0.0
    %5463 = vmatpush1.msra.mxu0 %v4241
    %5464 = vmatprep.subr.mxu0 0.0
    %5465 = vmatpush1.msra.mxu0 %v4250
    %5466 = vmatprep.subr.mxu0 0.0
    %5467 = vmatpush1.msra.mxu0 %v4259
    %5468 = vmatprep.subr.mxu0 0.0
    %5469 = vmatpush1.msra.mxu0 %v4268
    %5470 = vmatprep.subr.mxu0 0.0
    %5471 = vmatpush1.msra.mxu0 %v4277
    %5472 = vmatprep.subr.mxu0 0.0
    %5473 = vmatpush1.msra.mxu0 %v4286
    %5474 = vmatprep.subr.mxu0 0.0
    %5475 = vmatpush1.msra.mxu0 %v4295
    %5476 = vmatprep.subr.mxu0 0.0
    %5477 = vmatpush1.msra.mxu0 %v4304
    %5478 = vmatprep.subr.mxu0 0.0
    %5479 = vmatpush1.msra.mxu0 %v4313
    %5480 = vmatprep.subr.mxu0 0.0
    %5481 = vmatpush1.msra.mxu0 %v4322
    %5482 = vmatprep.subr.mxu0 0.0
    %5483 = vmatpush1.msra.mxu0 %v4331
    %5484 = vmatprep.subr.mxu0 0.0
    %5485 = vmatpush1.msra.mxu0 %v4340
    %5486 = vmatprep.subr.mxu0 0.0
    %5487 = vmatpush1.msra.mxu0 %v4349
    %5488 = vmatprep.subr.mxu0 0.0
    %5489 = vmatpush1.msra.mxu0 %v4358
    %5490 = vmatprep.mubr.f32.mxu0 %v4065
    %5491 = vmatmul.mubr.f32.gmra.mrb[0].mxu0 %v4064
    %v5492 = vpop.f32.mrb[0].mxu0
    %v5493 = vadd.f32 %v4800, %v5492
    %v5494 = vpop.f32.mrb[0].mxu0
    %5495 = vmatprep.mubr.f32.mxu0 %v4068
    %5496 = vmatmul.mubr.f32.gmra.mrb[0].mxu0 %v4067
    %v5497 = vpop.f32.mrb[0].mxu0
    %v5498 = vadd.f32 %v4800, %v5497
    %v5499 = vpop.f32.mrb[0].mxu0
    %5500 = vdwg.mxu0
    %5501 = vmatprep.subr.mxu0 0.0
    %5502 = vmatpush1.msra.mxu0 %v4367
    %5503 = vmatprep.subr.mxu0 0.0
    %5504 = vmatpush1.msra.mxu0 %v4376
    %5505 = vmatprep.subr.mxu0 0.0
    %5506 = vmatpush1.msra.mxu0 %v4385
    %5507 = vmatprep.subr.mxu0 0.0
    %5508 = vmatpush1.msra.mxu0 %v4394
    %5509 = vmatprep.subr.mxu0 0.0
    %5510 = vmatpush1.msra.mxu0 %v4403
    %5511 = vmatprep.subr.mxu0 0.0
    %5512 = vmatpush1.msra.mxu0 %v4412
    %5513 = vmatprep.subr.mxu0 0.0
    %5514 = vmatpush1.msra.mxu0 %v4421
    %5515 = vmatprep.subr.mxu0 0.0
    %5516 = vmatpush1.msra.mxu0 %v4430
    %5517 = vmatprep.subr.mxu0 0.0
    %5518 = vmatpush1.msra.mxu0 %v4439
    %5519 = vmatprep.subr.mxu0 0.0
    %5520 = vmatpush1.msra.mxu0 %v4448
    %5521 = vmatprep.subr.mxu0 0.0
    %5522 = vmatpush1.msra.mxu0 %v4457
    %5523 = vmatprep.subr.mxu0 0.0
    %5524 = vmatpush1.msra.mxu0 %v4466
    %5525 = vmatprep.subr.mxu0 0.0
    %5526 = vmatpush1.msra.mxu0 %v4475
    %5527 = vmatprep.subr.mxu0 0.0
    %5528 = vmatpush1.msra.mxu0 %v4484
    %5529 = vmatprep.subr.mxu0 0.0
    %5530 = vmatpush1.msra.mxu0 %v4493
    %5531 = vmatprep.subr.mxu0 0.0
    %5532 = vmatpush1.msra.mxu0 %v4502
    %5533 = vmatprep.subr.mxu0 0.0
    %5534 = vmatpush1.msra.mxu0 0.0
    %5535 = vmatprep.subr.mxu0 0.0
    %5536 = vmatpush1.msra.mxu0 0.0
    %5537 = vmatprep.subr.mxu0 0.0
    %5538 = vmatpush1.msra.mxu0 0.0
    %5539 = vmatprep.subr.mxu0 0.0
    %5540 = vmatpush1.msra.mxu0 0.0
    %5541 = vmatprep.subr.mxu0 0.0
    %5542 = vmatpush1.msra.mxu0 0.0
    %5543 = vmatprep.subr.mxu0 0.0
    %5544 = vmatpush1.msra.mxu0 0.0
    %5545 = vmatprep.subr.mxu0 0.0
    %5546 = vmatpush1.msra.mxu0 0.0
    %5547 = vmatprep.subr.mxu0 0.0
    %5548 = vmatpush1.msra.mxu0 0.0
    %5549 = vmatprep.subr.mxu0 0.0
    %5550 = vmatpush1.msra.mxu0 0.0
    %5551 = vmatprep.subr.mxu0 0.0
    %5552 = vmatpush1.msra.mxu0 0.0
    %5553 = vmatprep.subr.mxu0 0.0
    %5554 = vmatpush1.msra.mxu0 0.0
    %5555 = vmatprep.subr.mxu0 0.0
    %5556 = vmatpush1.msra.mxu0 0.0
    %5557 = vmatprep.subr.mxu0 0.0
    %5558 = vmatpush1.msra.mxu0 0.0
    %5559 = vmatprep.subr.mxu0 0.0
    %5560 = vmatpush1.msra.mxu0 0.0
    %5561 = vmatprep.subr.mxu0 0.0
    %5562 = vmatpush1.msra.mxu0 0.0
    %5563 = vmatprep.subr.mxu0 0.0
    %5564 = vmatpush1.msra.mxu0 0.0
    %5565 = vmatprep.mubr.f32.mxu0 0.0
    %5566 = vmatmul.mubr.f32.gmra.mrb[0].mxu0 %v4066
    %v5567 = vpop.f32.mrb[0].mxu0
    %v5568 = vadd.f32 %v5493, %v5567
    %v5569 = vpop.f32.mrb[0].mxu0
    %5570 = vmatprep.mubr.f32.mxu0 0.0
    %5571 = vmatmul.mubr.f32.gmra.mrb[0].mxu0 %v4069
    %v5572 = vpop.f32.mrb[0].mxu0
    %v5573 = vadd.f32 %v5498, %v5572
    %v5574 = vpop.f32.mrb[0].mxu0
    %5575 = vdwg.mxu0
    %5576 = vmatprep.subr.mxu0 0.0
    %5577 = vmatpush1.xpose.msra.mxu0 %v5110
    %5578 = vmatprep.subr.mxu0 0.0
    %5579 = vmatpush1.xpose.msra.mxu0 0.0
    %5580 = vmatprep.subr.mxu0 0.0
    %5581 = vmatpush1.xpose.msra.mxu0 0.0
    %5582 = vmatprep.subr.mxu0 0.0
    %5583 = vmatpush1.xpose.msra.mxu0 0.0
    %5584 = vmatprep.subr.mxu0 0.0
    %5585 = vmatpush1.xpose.msra.mxu0 0.0
    %5586 = vmatprep.subr.mxu0 0.0
    %5587 = vmatpush1.xpose.msra.mxu0 0.0
    %5588 = vmatprep.subr.mxu0 0.0
    %5589 = vmatpush1.xpose.msra.mxu0 0.0
    %5590 = vmatprep.subr.mxu0 0.0
    %5591 = vmatpush1.xpose.msra.mxu0 0.0
    %5592 = vmatprep.subr.mxu0 0.0
    %5593 = vmatpush1.xpose.msra.mxu0 0.0
    %5594 = vmatprep.subr.mxu0 0.0
    %5595 = vmatpush1.xpose.msra.mxu0 0.0
    %5596 = vmatprep.subr.mxu0 0.0
    %5597 = vmatpush1.xpose.msra.mxu0 0.0
    %5598 = vmatprep.subr.mxu0 0.0
    %5599 = vmatpush1.xpose.msra.mxu0 0.0
    %5600 = vmatprep.subr.mxu0 0.0
    %5601 = vmatpush1.xpose.msra.mxu0 0.0
    %5602 = vmatprep.subr.mxu0 0.0
    %5603 = vmatpush1.xpose.msra.mxu0 0.0
    %5604 = vmatprep.subr.mxu0 0.0
    %5605 = vmatpush1.xpose.msra.mxu0 0.0
    %5606 = vmatprep.subr.mxu0 0.0
    %5607 = vmatpush1.xpose.msra.mxu0 0.0
    %5608 = vmatprep.subr.mxu0 0.0
    %5609 = vmatpush1.xpose.msra.mxu0 0.0
    %5610 = vmatprep.subr.mxu0 0.0
    %5611 = vmatpush1.xpose.msra.mxu0 0.0
    %5612 = vmatprep.subr.mxu0 0.0
    %5613 = vmatpush1.xpose.msra.mxu0 0.0
    %5614 = vmatprep.subr.mxu0 0.0
    %5615 = vmatpush1.xpose.msra.mxu0 0.0
    %5616 = vmatprep.subr.mxu0 0.0
    %5617 = vmatpush1.xpose.msra.mxu0 0.0
    %5618 = vmatprep.subr.mxu0 0.0
    %5619 = vmatpush1.xpose.msra.mxu0 0.0
    %5620 = vmatprep.subr.mxu0 0.0
    %5621 = vmatpush1.xpose.msra.mxu0 0.0
    %5622 = vmatprep.subr.mxu0 0.0
    %5623 = vmatpush1.xpose.msra.mxu0 0.0
    %5624 = vmatprep.subr.mxu0 0.0
    %5625 = vmatpush1.xpose.msra.mxu0 0.0
    %5626 = vmatprep.subr.mxu0 0.0
    %5627 = vmatpush1.xpose.msra.mxu0 0.0
    %5628 = vmatprep.subr.mxu0 0.0
    %5629 = vmatpush1.xpose.msra.mxu0 0.0
    %5630 = vmatprep.subr.mxu0 0.0
    %5631 = vmatpush1.xpose.msra.mxu0 0.0
    %5632 = vmatprep.subr.mxu0 0.0
    %5633 = vmatpush1.xpose.msra.mxu0 0.0
    %5634 = vmatprep.subr.mxu0 0.0
    %5635 = vmatpush1.xpose.msra.mxu0 0.0
    %5636 = vmatprep.subr.mxu0 0.0
    %5637 = vmatpush1.xpose.msra.mxu0 0.0
    %5638 = vmatprep.subr.mxu0 0.0
    %5639 = vmatpush1.xpose.msra.mxu0 0.0
    %5640 = vmatprep.mubr.f32.mxu0 0.0
    %5641 = vmatmul.mubr.f32.gmra.mrb[0].mxu0 %v4954
    %v5642 = vpop.f32.mrb[0].mxu0
    %v5643 = vadd.f32 0.0, %v5642
    %v5644 = vpop.f32.mrb[0].mxu0
    %5645 = vdwg.mxu0
    %v5646 = vmul.f32 %v5643, 0.088388346
    %v5647 = vadd.f32 %v5646, %v241
    %v5648 = vsel %vm1814, %v5647, -inf
    %5649 = vmax.xlane.f32.xlu0 %v5648
    %v5650 = vpop.xlane.xlu0 %5649
    %v5651 = vsub.f32 %v5647, %v5650
    %v5652 = vmul.f32 %v5651, 1.442695
    %v5653 = vpow.pop %v5652
    %v5654 = vsel %vm1814, %v5653, 0.0
    %5655 = vadd.xlane.f32.xlu0 %v5654
    %v5656 = vpop.xlane.xlu0 %5655
    %v5657 = vrcp.pop %v5656
    %v5658 = vmul.f32 %v5653, %v5657
    %v5660 = vsel %vm1814, %v5658, 0
    %5662 = vmatprep.subr.mxu0 0.0
    %5663 = vmatpush1.msra.mxu0 %v5416
    %5664 = vmatprep.subr.mxu0 0.0
    %5665 = vmatpush1.msra.mxu0 0.0
    %5666 = vmatprep.subr.mxu0 0.0
    %5667 = vmatpush1.msra.mxu0 0.0
    %5668 = vmatprep.subr.mxu0 0.0
    %5669 = vmatpush1.msra.mxu0 0.0
    %5670 = vmatprep.subr.mxu0 0.0
    %5671 = vmatpush1.msra.mxu0 0.0
    %5672 = vmatprep.subr.mxu0 0.0
    %5673 = vmatpush1.msra.mxu0 0.0
    %5674 = vmatprep.subr.mxu0 0.0
    %5675 = vmatpush1.msra.mxu0 0.0
    %5676 = vmatprep.subr.mxu0 0.0
    %5677 = vmatpush1.msra.mxu0 0.0
    %5678 = vmatprep.subr.mxu0 0.0
    %5679 = vmatpush1.msra.mxu0 0.0
    %5680 = vmatprep.subr.mxu0 0.0
    %5681 = vmatpush1.msra.mxu0 0.0
    %5682 = vmatprep.subr.mxu0 0.0
    %5683 = vmatpush1.msra.mxu0 0.0
    %5684 = vmatprep.subr.mxu0 0.0
    %5685 = vmatpush1.msra.mxu0 0.0
    %5686 = vmatprep.subr.mxu0 0.0
    %5687 = vmatpush1.msra.mxu0 0.0
    %5688 = vmatprep.subr.mxu0 0.0
    %5689 = vmatpush1.msra.mxu0 0.0
    %5690 = vmatprep.subr.mxu0 0.0
    %5691 = vmatpush1.msra.mxu0 0.0
    %5692 = vmatprep.subr.mxu0 0.0
    %5693 = vmatpush1.msra.mxu0 0.0
    %5694 = vmatprep.subr.mxu0 0.0
    %5695 = vmatpush1.msra.mxu0 0.0
    %5696 = vmatprep.subr.mxu0 0.0
    %5697 = vmatpush1.msra.mxu0 0.0
    %5698 = vmatprep.subr.mxu0 0.0
    %5699 = vmatpush1.msra.mxu0 0.0
    %5700 = vmatprep.subr.mxu0 0.0
    %5701 = vmatpush1.msra.mxu0 0.0
    %5702 = vmatprep.subr.mxu0 0.0
    %5703 = vmatpush1.msra.mxu0 0.0
    %5704 = vmatprep.subr.mxu0 0.0
    %5705 = vmatpush1.msra.mxu0 0.0
    %5706 = vmatprep.subr.mxu0 0.0
    %5707 = vmatpush1.msra.mxu0 0.0
    %5708 = vmatprep.subr.mxu0 0.0
    %5709 = vmatpush1.msra.mxu0 0.0
    %5710 = vmatprep.subr.mxu0 0.0
    %5711 = vmatpush1.msra.mxu0 0.0
    %5712 = vmatprep.subr.mxu0 0.0
    %5713 = vmatpush1.msra.mxu0 0.0
    %5714 = vmatprep.subr.mxu0 0.0
    %5715 = vmatpush1.msra.mxu0 0.0
    %5716 = vmatprep.subr.mxu0 0.0
    %5717 = vmatpush1.msra.mxu0 0.0
    %5718 = vmatprep.subr.mxu0 0.0
    %5719 = vmatpush1.msra.mxu0 0.0
    %5720 = vmatprep.subr.mxu0 0.0
    %5721 = vmatpush1.msra.mxu0 0.0
    %5722 = vmatprep.subr.mxu0 0.0
    %5723 = vmatpush1.msra.mxu0 0.0
    %5724 = vmatprep.subr.mxu0 0.0
    %5725 = vmatpush1.msra.mxu0 0.0
    %5726 = vmatprep.mubr.f32.mxu0 0.0
    %5727 = vmatmul.mubr.f32.gmra.mrb[0].mxu0 %v5660
    %v5728 = vpop.f32.mrb[0].mxu0
    %v5729 = vadd.f32 0.0, %v5728
    %v5730 = vpop.f32.mrb[0].mxu0
    %5731 = vdwg.mxu0
    %5732 = vmatprep.subr.mxu0 0.0
    %5733 = vmatpush1.xpose.msra.mxu0 %v5262
    %5734 = vmatprep.subr.mxu0 0.0
    %5735 = vmatpush1.xpose.msra.mxu0 0.0
    %5736 = vmatprep.subr.mxu0 0.0
    %5737 = vmatpush1.xpose.msra.mxu0 0.0
    %5738 = vmatprep.subr.mxu0 0.0
    %5739 = vmatpush1.xpose.msra.mxu0 0.0
    %5740 = vmatprep.subr.mxu0 0.0
    %5741 = vmatpush1.xpose.msra.mxu0 0.0
    %5742 = vmatprep.subr.mxu0 0.0
    %5743 = vmatpush1.xpose.msra.mxu0 0.0
    %5744 = vmatprep.subr.mxu0 0.0
    %5745 = vmatpush1.xpose.msra.mxu0 0.0
    %5746 = vmatprep.subr.mxu0 0.0
    %5747 = vmatpush1.xpose.msra.mxu0 0.0
    %5748 = vmatprep.subr.mxu0 0.0
    %5749 = vmatpush1.xpose.msra.mxu0 0.0
    %5750 = vmatprep.subr.mxu0 0.0
    %5751 = vmatpush1.xpose.msra.mxu0 0.0
    %5752 = vmatprep.subr.mxu0 0.0
    %5753 = vmatpush1.xpose.msra.mxu0 0.0
    %5754 = vmatprep.subr.mxu0 0.0
    %5755 = vmatpush1.xpose.msra.mxu0 0.0
    %5756 = vmatprep.subr.mxu0 0.0
    %5757 = vmatpush1.xpose.msra.mxu0 0.0
    %5758 = vmatprep.subr.mxu0 0.0
    %5759 = vmatpush1.xpose.msra.mxu0 0.0
    %5760 = vmatprep.subr.mxu0 0.0
    %5761 = vmatpush1.xpose.msra.mxu0 0.0
    %5762 = vmatprep.subr.mxu0 0.0
    %5763 = vmatpush1.xpose.msra.mxu0 0.0
    %5764 = vmatprep.subr.mxu0 0.0
    %5765 = vmatpush1.xpose.msra.mxu0 0.0
    %5766 = vmatprep.subr.mxu0 0.0
    %5767 = vmatpush1.xpose.msra.mxu0 0.0
    %5768 = vmatprep.subr.mxu0 0.0
    %5769 = vmatpush1.xpose.msra.mxu0 0.0
    %5770 = vmatprep.subr.mxu0 0.0
    %5771 = vmatpush1.xpose.msra.mxu0 0.0
    %5772 = vmatprep.subr.mxu0 0.0
    %5773 = vmatpush1.xpose.msra.mxu0 0.0
    %5774 = vmatprep.subr.mxu0 0.0
    %5775 = vmatpush1.xpose.msra.mxu0 0.0
    %5776 = vmatprep.subr.mxu0 0.0
    %5777 = vmatpush1.xpose.msra.mxu0 0.0
    %5778 = vmatprep.subr.mxu0 0.0
    %5779 = vmatpush1.xpose.msra.mxu0 0.0
    %5780 = vmatprep.subr.mxu0 0.0
    %5781 = vmatpush1.xpose.msra.mxu0 0.0
    %5782 = vmatprep.subr.mxu0 0.0
    %5783 = vmatpush1.xpose.msra.mxu0 0.0
    %5784 = vmatprep.subr.mxu0 0.0
    %5785 = vmatpush1.xpose.msra.mxu0 0.0
    %5786 = vmatprep.subr.mxu0 0.0
    %5787 = vmatpush1.xpose.msra.mxu0 0.0
    %5788 = vmatprep.subr.mxu0 0.0
    %5789 = vmatpush1.xpose.msra.mxu0 0.0
    %5790 = vmatprep.subr.mxu0 0.0
    %5791 = vmatpush1.xpose.msra.mxu0 0.0
    %5792 = vmatprep.subr.mxu0 0.0
    %5793 = vmatpush1.xpose.msra.mxu0 0.0
    %5794 = vmatprep.subr.mxu0 0.0
    %5795 = vmatpush1.xpose.msra.mxu0 0.0
    %5796 = vmatprep.mubr.f32.mxu0 0.0
    %5797 = vmatmul.mubr.f32.gmra.mrb[0].mxu0 %v4956
    %v5798 = vpop.f32.mrb[0].mxu0
    %v5799 = vadd.f32 0.0, %v5798
    %v5800 = vpop.f32.mrb[0].mxu0
    %5801 = vdwg.mxu0
    %v5802 = vmul.f32 %v5799, 0.088388346
    %v5803 = vadd.f32 %v5802, %v241
    %v5804 = vsel %vm1814, %v5803, -inf
    %5805 = vmax.xlane.f32.xlu0 %v5804
    %v5806 = vpop.xlane.xlu0 %5805
    %v5807 = vsub.f32 %v5803, %v5806
    %v5808 = vmul.f32 %v5807, 1.442695
    %v5809 = vpow.pop %v5808
    %v5810 = vsel %vm1814, %v5809, 0.0
    %5811 = vadd.xlane.f32.xlu0 %v5810
    %v5812 = vpop.xlane.xlu0 %5811
    %v5813 = vrcp.pop %v5812
    %v5814 = vmul.f32 %v5809, %v5813
    %v5816 = vsel %vm1814, %v5814, 0
    %5818 = vmatprep.subr.mxu0 0.0
    %5819 = vmatpush1.msra.mxu0 %v5418
    %5820 = vmatprep.subr.mxu0 0.0
    %5821 = vmatpush1.msra.mxu0 0.0
    %5822 = vmatprep.subr.mxu0 0.0
    %5823 = vmatpush1.msra.mxu0 0.0
    %5824 = vmatprep.subr.mxu0 0.0
    %5825 = vmatpush1.msra.mxu0 0.0
    %5826 = vmatprep.subr.mxu0 0.0
    %5827 = vmatpush1.msra.mxu0 0.0
    %5828 = vmatprep.subr.mxu0 0.0
    %5829 = vmatpush1.msra.mxu0 0.0
    %5830 = vmatprep.subr.mxu0 0.0
    %5831 = vmatpush1.msra.mxu0 0.0
    %5832 = vmatprep.subr.mxu0 0.0
    %5833 = vmatpush1.msra.mxu0 0.0
    %5834 = vmatprep.subr.mxu0 0.0
    %5835 = vmatpush1.msra.mxu0 0.0
    %5836 = vmatprep.subr.mxu0 0.0
    %5837 = vmatpush1.msra.mxu0 0.0
    %5838 = vmatprep.subr.mxu0 0.0
    %5839 = vmatpush1.msra.mxu0 0.0
    %5840 = vmatprep.subr.mxu0 0.0
    %5841 = vmatpush1.msra.mxu0 0.0
    %5842 = vmatprep.subr.mxu0 0.0
    %5843 = vmatpush1.msra.mxu0 0.0
    %5844 = vmatprep.subr.mxu0 0.0
    %5845 = vmatpush1.msra.mxu0 0.0
    %5846 = vmatprep.subr.mxu0 0.0
    %5847 = vmatpush1.msra.mxu0 0.0
    %5848 = vmatprep.subr.mxu0 0.0
    %5849 = vmatpush1.msra.mxu0 0.0
    %5850 = vmatprep.subr.mxu0 0.0
    %5851 = vmatpush1.msra.mxu0 0.0
    %5852 = vmatprep.subr.mxu0 0.0
    %5853 = vmatpush1.msra.mxu0 0.0
    %5854 = vmatprep.subr.mxu0 0.0
    %5855 = vmatpush1.msra.mxu0 0.0
    %5856 = vmatprep.subr.mxu0 0.0
    %5857 = vmatpush1.msra.mxu0 0.0
    %5858 = vmatprep.subr.mxu0 0.0
    %5859 = vmatpush1.msra.mxu0 0.0
    %5860 = vmatprep.subr.mxu0 0.0
    %5861 = vmatpush1.msra.mxu0 0.0
    %5862 = vmatprep.subr.mxu0 0.0
    %5863 = vmatpush1.msra.mxu0 0.0
    %5864 = vmatprep.subr.mxu0 0.0
    %5865 = vmatpush1.msra.mxu0 0.0
    %5866 = vmatprep.subr.mxu0 0.0
    %5867 = vmatpush1.msra.mxu0 0.0
    %5868 = vmatprep.subr.mxu0 0.0
    %5869 = vmatpush1.msra.mxu0 0.0
    %5870 = vmatprep.subr.mxu0 0.0
    %5871 = vmatpush1.msra.mxu0 0.0
    %5872 = vmatprep.subr.mxu0 0.0
    %5873 = vmatpush1.msra.mxu0 0.0
    %5874 = vmatprep.subr.mxu0 0.0
    %5875 = vmatpush1.msra.mxu0 0.0
    %5876 = vmatprep.subr.mxu0 0.0
    %5877 = vmatpush1.msra.mxu0 0.0
    %5878 = vmatprep.subr.mxu0 0.0
    %5879 = vmatpush1.msra.mxu0 0.0
    %5880 = vmatprep.subr.mxu0 0.0
    %5881 = vmatpush1.msra.mxu0 0.0
    %5882 = vmatprep.mubr.f32.mxu0 0.0
    %5883 = vmatmul.mubr.f32.gmra.mrb[0].mxu0 %v5816
    %v5884 = vpop.f32.mrb[0].mxu0
    %v5885 = vadd.f32 0.0, %v5884
    %v5886 = vpop.f32.mrb[0].mxu0
    %5887 = vdwg.mxu0
    %5888 = vmatprep.subr.mxu0 %v4556
    %5889 = vmatpush1.msra.mxu0 %v4555
    %5890 = vmatprep.subr.mxu0 %v4559
    %5891 = vmatpush1.msra.mxu0 %v4558
    %5892 = vmatprep.subr.mxu0 %v4562
    %5893 = vmatpush1.msra.mxu0 %v4561
    %5894 = vmatprep.subr.mxu0 %v4565
    %5895 = vmatpush1.msra.mxu0 %v4564
    %5896 = vmatprep.subr.mxu0 %v4568
    %5897 = vmatpush1.msra.mxu0 %v4567
    %5898 = vmatprep.subr.mxu0 %v4571
    %5899 = vmatpush1.msra.mxu0 %v4570
    %5900 = vmatprep.subr.mxu0 %v4574
    %5901 = vmatpush1.msra.mxu0 %v4573
    %5902 = vmatprep.subr.mxu0 %v4577
    %5903 = vmatpush1.msra.mxu0 %v4576
    %5904 = vmatprep.subr.mxu0 %v4580
    %5905 = vmatpush1.msra.mxu0 %v4579
    %5906 = vmatprep.subr.mxu0 %v4583
    %5907 = vmatpush1.msra.mxu0 %v4582
    %5908 = vmatprep.subr.mxu0 %v4586
    %5909 = vmatpush1.msra.mxu0 %v4585
    %5910 = vmatprep.subr.mxu0 %v4589
    %5911 = vmatpush1.msra.mxu0 %v4588
    %5912 = vmatprep.subr.mxu0 %v4592
    %5913 = vmatpush1.msra.mxu0 %v4591
    %5914 = vmatprep.subr.mxu0 %v4595
    %5915 = vmatpush1.msra.mxu0 %v4594
    %5916 = vmatprep.subr.mxu0 %v4598
    %5917 = vmatpush1.msra.mxu0 %v4597
    %5918 = vmatprep.subr.mxu0 %v4601
    %5919 = vmatpush1.msra.mxu0 %v4600
    %5920 = vmatprep.subr.mxu0 0.0
    %5921 = vmatpush1.msra.mxu0 0.0
    %5922 = vmatprep.subr.mxu0 0.0
    %5923 = vmatpush1.msra.mxu0 0.0
    %5924 = vmatprep.subr.mxu0 0.0
    %5925 = vmatpush1.msra.mxu0 0.0
    %5926 = vmatprep.subr.mxu0 0.0
    %5927 = vmatpush1.msra.mxu0 0.0
    %5928 = vmatprep.subr.mxu0 0.0
    %5929 = vmatpush1.msra.mxu0 0.0
    %5930 = vmatprep.subr.mxu0 0.0
    %5931 = vmatpush1.msra.mxu0 0.0
    %5932 = vmatprep.subr.mxu0 0.0
    %5933 = vmatpush1.msra.mxu0 0.0
    %5934 = vmatprep.subr.mxu0 0.0
    %5935 = vmatpush1.msra.mxu0 0.0
    %5936 = vmatprep.subr.mxu0 0.0
    %5937 = vmatpush1.msra.mxu0 0.0
    %5938 = vmatprep.subr.mxu0 0.0
    %5939 = vmatpush1.msra.mxu0 0.0
    %5940 = vmatprep.subr.mxu0 0.0
    %5941 = vmatpush1.msra.mxu0 0.0
    %5942 = vmatprep.subr.mxu0 0.0
    %5943 = vmatpush1.msra.mxu0 0.0
    %5944 = vmatprep.subr.mxu0 0.0
    %5945 = vmatpush1.msra.mxu0 0.0
    %5946 = vmatprep.subr.mxu0 0.0
    %5947 = vmatpush1.msra.mxu0 0.0
    %5948 = vmatprep.subr.mxu0 0.0
    %5949 = vmatpush1.msra.mxu0 0.0
    %5950 = vmatprep.subr.mxu0 0.0
    %5951 = vmatpush1.msra.mxu0 0.0
    %5952 = vmatprep.mubr.f32.mxu0 0.0
    %5953 = vmatmul.mubr.f32.gmra.mrb[0].mxu0 %v5885
    %v5954 = vpop.f32.mrb[0].mxu0
    %v5955 = vadd.f32 0.0, %v5954
    %v5956 = vpop.f32.mrb[0].mxu0
    %v5957 = vadd.f32 0.0, %v5956
    %5958 = vdwg.mxu0
    %5959 = vmatprep.subr.mxu0 0.0
    %5960 = vmatpush1.msra.mxu0 %v4557
    %5961 = vmatprep.subr.mxu0 0.0
    %5962 = vmatpush1.msra.mxu0 %v4560
    %5963 = vmatprep.subr.mxu0 0.0
    %5964 = vmatpush1.msra.mxu0 %v4563
    %5965 = vmatprep.subr.mxu0 0.0
    %5966 = vmatpush1.msra.mxu0 %v4566
    %5967 = vmatprep.subr.mxu0 0.0
    %5968 = vmatpush1.msra.mxu0 %v4569
    %5969 = vmatprep.subr.mxu0 0.0
    %5970 = vmatpush1.msra.mxu0 %v4572
    %5971 = vmatprep.subr.mxu0 0.0
    %5972 = vmatpush1.msra.mxu0 %v4575
    %5973 = vmatprep.subr.mxu0 0.0
    %5974 = vmatpush1.msra.mxu0 %v4578
    %5975 = vmatprep.subr.mxu0 0.0
    %5976 = vmatpush1.msra.mxu0 %v4581
    %5977 = vmatprep.subr.mxu0 0.0
    %5978 = vmatpush1.msra.mxu0 %v4584
    %5979 = vmatprep.subr.mxu0 0.0
    %5980 = vmatpush1.msra.mxu0 %v4587
    %5981 = vmatprep.subr.mxu0 0.0
    %5982 = vmatpush1.msra.mxu0 %v4590
    %5983 = vmatprep.subr.mxu0 0.0
    %5984 = vmatpush1.msra.mxu0 %v4593
    %5985 = vmatprep.subr.mxu0 0.0
    %5986 = vmatpush1.msra.mxu0 %v4596
    %5987 = vmatprep.subr.mxu0 0.0
    %5988 = vmatpush1.msra.mxu0 %v4599
    %5989 = vmatprep.subr.mxu0 0.0
    %5990 = vmatpush1.msra.mxu0 %v4602
    %5991 = vmatprep.subr.mxu0 0.0
    %5992 = vmatpush1.msra.mxu0 0.0
    %5993 = vmatprep.subr.mxu0 0.0
    %5994 = vmatpush1.msra.mxu0 0.0
    %5995 = vmatprep.subr.mxu0 0.0
    %5996 = vmatpush1.msra.mxu0 0.0
    %5997 = vmatprep.subr.mxu0 0.0
    %5998 = vmatpush1.msra.mxu0 0.0
    %5999 = vmatprep.subr.mxu0 0.0
    %6000 = vmatpush1.msra.mxu0 0.0
    %6001 = vmatprep.subr.mxu0 0.0
    %6002 = vmatpush1.msra.mxu0 0.0
    %6003 = vmatprep.subr.mxu0 0.0
    %6004 = vmatpush1.msra.mxu0 0.0
    %6005 = vmatprep.subr.mxu0 0.0
    %6006 = vmatpush1.msra.mxu0 0.0
    %6007 = vmatprep.subr.mxu0 0.0
    %6008 = vmatpush1.msra.mxu0 0.0
    %6009 = vmatprep.subr.mxu0 0.0
    %6010 = vmatpush1.msra.mxu0 0.0
    %6011 = vmatprep.subr.mxu0 0.0
    %6012 = vmatpush1.msra.mxu0 0.0
    %6013 = vmatprep.subr.mxu0 0.0
    %6014 = vmatpush1.msra.mxu0 0.0
    %6015 = vmatprep.subr.mxu0 0.0
    %6016 = vmatpush1.msra.mxu0 0.0
    %6017 = vmatprep.subr.mxu0 0.0
    %6018 = vmatpush1.msra.mxu0 0.0
    %6019 = vmatprep.subr.mxu0 0.0
    %6020 = vmatpush1.msra.mxu0 0.0
    %6021 = vmatprep.subr.mxu0 0.0
    %6022 = vmatpush1.msra.mxu0 0.0
    %6023 = vmatprep.mubr.f32.mxu0 0.0
    %6024 = vmatmul.mubr.f32.gmra.mrb[0].mxu0 %v5885
    %v6025 = vpop.f32.mrb[0].mxu0
    %v6026 = vadd.f32 0.0, %v6025
    %v6027 = vpop.f32.mrb[0].mxu0
    %6028 = vdwg.mxu0
    %6029 = vmatprep.subr.mxu0 %v4508
    %6030 = vmatpush1.msra.mxu0 %v4507
    %6031 = vmatprep.subr.mxu0 %v4511
    %6032 = vmatpush1.msra.mxu0 %v4510
    %6033 = vmatprep.subr.mxu0 %v4514
    %6034 = vmatpush1.msra.mxu0 %v4513
    %6035 = vmatprep.subr.mxu0 %v4517
    %6036 = vmatpush1.msra.mxu0 %v4516
    %6037 = vmatprep.subr.mxu0 %v4520
    %6038 = vmatpush1.msra.mxu0 %v4519
    %6039 = vmatprep.subr.mxu0 %v4523
    %6040 = vmatpush1.msra.mxu0 %v4522
    %6041 = vmatprep.subr.mxu0 %v4526
    %6042 = vmatpush1.msra.mxu0 %v4525
    %6043 = vmatprep.subr.mxu0 %v4529
    %6044 = vmatpush1.msra.mxu0 %v4528
    %6045 = vmatprep.subr.mxu0 %v4532
    %6046 = vmatpush1.msra.mxu0 %v4531
    %6047 = vmatprep.subr.mxu0 %v4535
    %6048 = vmatpush1.msra.mxu0 %v4534
    %6049 = vmatprep.subr.mxu0 %v4538
    %6050 = vmatpush1.msra.mxu0 %v4537
    %6051 = vmatprep.subr.mxu0 %v4541
    %6052 = vmatpush1.msra.mxu0 %v4540
    %6053 = vmatprep.subr.mxu0 %v4544
    %6054 = vmatpush1.msra.mxu0 %v4543
    %6055 = vmatprep.subr.mxu0 %v4547
    %6056 = vmatpush1.msra.mxu0 %v4546
    %6057 = vmatprep.subr.mxu0 %v4550
    %6058 = vmatpush1.msra.mxu0 %v4549
    %6059 = vmatprep.subr.mxu0 %v4553
    %6060 = vmatpush1.msra.mxu0 %v4552
    %6061 = vmatprep.subr.mxu0 0.0
    %6062 = vmatpush1.msra.mxu0 0.0
    %6063 = vmatprep.subr.mxu0 0.0
    %6064 = vmatpush1.msra.mxu0 0.0
    %6065 = vmatprep.subr.mxu0 0.0
    %6066 = vmatpush1.msra.mxu0 0.0
    %6067 = vmatprep.subr.mxu0 0.0
    %6068 = vmatpush1.msra.mxu0 0.0
    %6069 = vmatprep.subr.mxu0 0.0
    %6070 = vmatpush1.msra.mxu0 0.0
    %6071 = vmatprep.subr.mxu0 0.0
    %6072 = vmatpush1.msra.mxu0 0.0
    %6073 = vmatprep.subr.mxu0 0.0
    %6074 = vmatpush1.msra.mxu0 0.0
    %6075 = vmatprep.subr.mxu0 0.0
    %6076 = vmatpush1.msra.mxu0 0.0
    %6077 = vmatprep.subr.mxu0 0.0
    %6078 = vmatpush1.msra.mxu0 0.0
    %6079 = vmatprep.subr.mxu0 0.0
    %6080 = vmatpush1.msra.mxu0 0.0
    %6081 = vmatprep.subr.mxu0 0.0
    %6082 = vmatpush1.msra.mxu0 0.0
    %6083 = vmatprep.subr.mxu0 0.0
    %6084 = vmatpush1.msra.mxu0 0.0
    %6085 = vmatprep.subr.mxu0 0.0
    %6086 = vmatpush1.msra.mxu0 0.0
    %6087 = vmatprep.subr.mxu0 0.0
    %6088 = vmatpush1.msra.mxu0 0.0
    %6089 = vmatprep.subr.mxu0 0.0
    %6090 = vmatpush1.msra.mxu0 0.0
    %6091 = vmatprep.subr.mxu0 0.0
    %6092 = vmatpush1.msra.mxu0 0.0
    %6093 = vmatprep.mubr.f32.mxu0 0.0
    %6094 = vmatmul.mubr.f32.gmra.mrb[0].mxu0 %v5729
    %v6095 = vpop.f32.mrb[0].mxu0
    %v6096 = vadd.f32 %v5955, %v6095
    %v6097 = vpop.f32.mrb[0].mxu0
    %v6098 = vadd.f32 %v5957, %v6097
    %6099 = vdwg.mxu0
    %6100 = vmatprep.subr.mxu0 0.0
    %6101 = vmatpush1.msra.mxu0 %v4509
    %6102 = vmatprep.subr.mxu0 0.0
    %6103 = vmatpush1.msra.mxu0 %v4512
    %6104 = vmatprep.subr.mxu0 0.0
    %6105 = vmatpush1.msra.mxu0 %v4515
    %6106 = vmatprep.subr.mxu0 0.0
    %6107 = vmatpush1.msra.mxu0 %v4518
    %6108 = vmatprep.subr.mxu0 0.0
    %6109 = vmatpush1.msra.mxu0 %v4521
    %6110 = vmatprep.subr.mxu0 0.0
    %6111 = vmatpush1.msra.mxu0 %v4524
    %6112 = vmatprep.subr.mxu0 0.0
    %6113 = vmatpush1.msra.mxu0 %v4527
    %6114 = vmatprep.subr.mxu0 0.0
    %6115 = vmatpush1.msra.mxu0 %v4530
    %6116 = vmatprep.subr.mxu0 0.0
    %6117 = vmatpush1.msra.mxu0 %v4533
    %6118 = vmatprep.subr.mxu0 0.0
    %6119 = vmatpush1.msra.mxu0 %v4536
    %6120 = vmatprep.subr.mxu0 0.0
    %6121 = vmatpush1.msra.mxu0 %v4539
    %6122 = vmatprep.subr.mxu0 0.0
    %6123 = vmatpush1.msra.mxu0 %v4542
    %6124 = vmatprep.subr.mxu0 0.0
    %6125 = vmatpush1.msra.mxu0 %v4545
    %6126 = vmatprep.subr.mxu0 0.0
    %6127 = vmatpush1.msra.mxu0 %v4548
    %6128 = vmatprep.subr.mxu0 0.0
    %6129 = vmatpush1.msra.mxu0 %v4551
    %6130 = vmatprep.subr.mxu0 0.0
    %6131 = vmatpush1.msra.mxu0 %v4554
    %6132 = vmatprep.subr.mxu0 0.0
    %6133 = vmatpush1.msra.mxu0 0.0
    %6134 = vmatprep.subr.mxu0 0.0
    %6135 = vmatpush1.msra.mxu0 0.0
    %6136 = vmatprep.subr.mxu0 0.0
    %6137 = vmatpush1.msra.mxu0 0.0
    %6138 = vmatprep.subr.mxu0 0.0
    %6139 = vmatpush1.msra.mxu0 0.0
    %6140 = vmatprep.subr.mxu0 0.0
    %6141 = vmatpush1.msra.mxu0 0.0
    %6142 = vmatprep.subr.mxu0 0.0
    %6143 = vmatpush1.msra.mxu0 0.0
    %6144 = vmatprep.subr.mxu0 0.0
    %6145 = vmatpush1.msra.mxu0 0.0
    %6146 = vmatprep.subr.mxu0 0.0
    %6147 = vmatpush1.msra.mxu0 0.0
    %6148 = vmatprep.subr.mxu0 0.0
    %6149 = vmatpush1.msra.mxu0 0.0
    %6150 = vmatprep.subr.mxu0 0.0
    %6151 = vmatpush1.msra.mxu0 0.0
    %6152 = vmatprep.subr.mxu0 0.0
    %6153 = vmatpush1.msra.mxu0 0.0
    %6154 = vmatprep.subr.mxu0 0.0
    %6155 = vmatpush1.msra.mxu0 0.0
    %6156 = vmatprep.subr.mxu0 0.0
    %6157 = vmatpush1.msra.mxu0 0.0
    %6158 = vmatprep.subr.mxu0 0.0
    %6159 = vmatpush1.msra.mxu0 0.0
    %6160 = vmatprep.subr.mxu0 0.0
    %6161 = vmatpush1.msra.mxu0 0.0
    %6162 = vmatprep.subr.mxu0 0.0
    %6163 = vmatpush1.msra.mxu0 0.0
    %6164 = vmatprep.mubr.f32.mxu0 0.0
    %6165 = vmatmul.mubr.f32.gmra.mrb[0].mxu0 %v5729
    %v6166 = vpop.f32.mrb[0].mxu0
    %v6167 = vadd.f32 %v6026, %v6166
    %v6168 = vpop.f32.mrb[0].mxu0
    %6169 = vdwg.mxu0
    %6170 = vmatprep.subr.mxu0 0.0
    %6171 = vmatpush1.xpose.msra.mxu0 %v5264
    %6172 = vmatprep.subr.mxu0 0.0
    %6173 = vmatpush1.xpose.msra.mxu0 0.0
    %6174 = vmatprep.subr.mxu0 0.0
    %6175 = vmatpush1.xpose.msra.mxu0 0.0
    %6176 = vmatprep.subr.mxu0 0.0
    %6177 = vmatpush1.xpose.msra.mxu0 0.0
    %6178 = vmatprep.subr.mxu0 0.0
    %6179 = vmatpush1.xpose.msra.mxu0 0.0
    %6180 = vmatprep.subr.mxu0 0.0
    %6181 = vmatpush1.xpose.msra.mxu0 0.0
    %6182 = vmatprep.subr.mxu0 0.0
    %6183 = vmatpush1.xpose.msra.mxu0 0.0
    %6184 = vmatprep.subr.mxu0 0.0
    %6185 = vmatpush1.xpose.msra.mxu0 0.0
    %6186 = vmatprep.subr.mxu0 0.0
    %6187 = vmatpush1.xpose.msra.mxu0 0.0
    %6188 = vmatprep.subr.mxu0 0.0
    %6189 = vmatpush1.xpose.msra.mxu0 0.0
    %6190 = vmatprep.subr.mxu0 0.0
    %6191 = vmatpush1.xpose.msra.mxu0 0.0
    %6192 = vmatprep.subr.mxu0 0.0
    %6193 = vmatpush1.xpose.msra.mxu0 0.0
    %6194 = vmatprep.subr.mxu0 0.0
    %6195 = vmatpush1.xpose.msra.mxu0 0.0
    %6196 = vmatprep.subr.mxu0 0.0
    %6197 = vmatpush1.xpose.msra.mxu0 0.0
    %6198 = vmatprep.subr.mxu0 0.0
    %6199 = vmatpush1.xpose.msra.mxu0 0.0
    %6200 = vmatprep.subr.mxu0 0.0
    %6201 = vmatpush1.xpose.msra.mxu0 0.0
    %6202 = vmatprep.subr.mxu0 0.0
    %6203 = vmatpush1.xpose.msra.mxu0 0.0
    %6204 = vmatprep.subr.mxu0 0.0
    %6205 = vmatpush1.xpose.msra.mxu0 0.0
    %6206 = vmatprep.subr.mxu0 0.0
    %6207 = vmatpush1.xpose.msra.mxu0 0.0
    %6208 = vmatprep.subr.mxu0 0.0
    %6209 = vmatpush1.xpose.msra.mxu0 0.0
    %6210 = vmatprep.subr.mxu0 0.0
    %6211 = vmatpush1.xpose.msra.mxu0 0.0
    %6212 = vmatprep.subr.mxu0 0.0
    %6213 = vmatpush1.xpose.msra.mxu0 0.0
    %6214 = vmatprep.subr.mxu0 0.0
    %6215 = vmatpush1.xpose.msra.mxu0 0.0
    %6216 = vmatprep.subr.mxu0 0.0
    %6217 = vmatpush1.xpose.msra.mxu0 0.0
    %6218 = vmatprep.subr.mxu0 0.0
    %6219 = vmatpush1.xpose.msra.mxu0 0.0
    %6220 = vmatprep.subr.mxu0 0.0
    %6221 = vmatpush1.xpose.msra.mxu0 0.0
    %6222 = vmatprep.subr.mxu0 0.0
    %6223 = vmatpush1.xpose.msra.mxu0 0.0
    %6224 = vmatprep.subr.mxu0 0.0
    %6225 = vmatpush1.xpose.msra.mxu0 0.0
    %6226 = vmatprep.subr.mxu0 0.0
    %6227 = vmatpush1.xpose.msra.mxu0 0.0
    %6228 = vmatprep.subr.mxu0 0.0
    %6229 = vmatpush1.xpose.msra.mxu0 0.0
    %6230 = vmatprep.subr.mxu0 0.0
    %6231 = vmatpush1.xpose.msra.mxu0 0.0
    %6232 = vmatprep.subr.mxu0 0.0
    %6233 = vmatpush1.xpose.msra.mxu0 0.0
    %6234 = vmatprep.mubr.f32.mxu0 0.0
    %6235 = vmatmul.mubr.f32.gmra.mrb[0].mxu0 %v5108
    %v6236 = vpop.f32.mrb[0].mxu0
    %v6237 = vadd.f32 0.0, %v6236
    %v6238 = vpop.f32.mrb[0].mxu0
    %6239 = vdwg.mxu0
    %v6240 = vmul.f32 %v6237, 0.088388346
    %v6241 = vadd.f32 %v6240, %v241
    %v6242 = vsel %vm1814, %v6241, -inf
    %6243 = vmax.xlane.f32.xlu0 %v6242
    %v6244 = vpop.xlane.xlu0 %6243
    %v6245 = vsub.f32 %v6241, %v6244
    %v6246 = vmul.f32 %v6245, 1.442695
    %v6247 = vpow.pop %v6246
    %v6248 = vsel %vm1814, %v6247, 0.0
    %6249 = vadd.xlane.f32.xlu0 %v6248
    %v6250 = vpop.xlane.xlu0 %6249
    %v6251 = vrcp.pop %v6250
    %v6252 = vmul.f32 %v6247, %v6251
    %v6254 = vsel %vm1814, %v6252, 0
    %6256 = vmatprep.subr.mxu0 0.0
    %6257 = vmatpush1.msra.mxu0 %v5568
    %6258 = vmatprep.subr.mxu0 0.0
    %6259 = vmatpush1.msra.mxu0 0.0
    %6260 = vmatprep.subr.mxu0 0.0
    %6261 = vmatpush1.msra.mxu0 0.0
    %6262 = vmatprep.subr.mxu0 0.0
    %6263 = vmatpush1.msra.mxu0 0.0
    %6264 = vmatprep.subr.mxu0 0.0
    %6265 = vmatpush1.msra.mxu0 0.0
    %6266 = vmatprep.subr.mxu0 0.0
    %6267 = vmatpush1.msra.mxu0 0.0
    %6268 = vmatprep.subr.mxu0 0.0
    %6269 = vmatpush1.msra.mxu0 0.0
    %6270 = vmatprep.subr.mxu0 0.0
    %6271 = vmatpush1.msra.mxu0 0.0
    %6272 = vmatprep.subr.mxu0 0.0
    %6273 = vmatpush1.msra.mxu0 0.0
    %6274 = vmatprep.subr.mxu0 0.0
    %6275 = vmatpush1.msra.mxu0 0.0
    %6276 = vmatprep.subr.mxu0 0.0
    %6277 = vmatpush1.msra.mxu0 0.0
    %6278 = vmatprep.subr.mxu0 0.0
    %6279 = vmatpush1.msra.mxu0 0.0
    %6280 = vmatprep.subr.mxu0 0.0
    %6281 = vmatpush1.msra.mxu0 0.0
    %6282 = vmatprep.subr.mxu0 0.0
    %6283 = vmatpush1.msra.mxu0 0.0
    %6284 = vmatprep.subr.mxu0 0.0
    %6285 = vmatpush1.msra.mxu0 0.0
    %6286 = vmatprep.subr.mxu0 0.0
    %6287 = vmatpush1.msra.mxu0 0.0
    %6288 = vmatprep.subr.mxu0 0.0
    %6289 = vmatpush1.msra.mxu0 0.0
    %6290 = vmatprep.subr.mxu0 0.0
    %6291 = vmatpush1.msra.mxu0 0.0
    %6292 = vmatprep.subr.mxu0 0.0
    %6293 = vmatpush1.msra.mxu0 0.0
    %6294 = vmatprep.subr.mxu0 0.0
    %6295 = vmatpush1.msra.mxu0 0.0
    %6296 = vmatprep.subr.mxu0 0.0
    %6297 = vmatpush1.msra.mxu0 0.0
    %6298 = vmatprep.subr.mxu0 0.0
    %6299 = vmatpush1.msra.mxu0 0.0
    %6300 = vmatprep.subr.mxu0 0.0
    %6301 = vmatpush1.msra.mxu0 0.0
    %6302 = vmatprep.subr.mxu0 0.0
    %6303 = vmatpush1.msra.mxu0 0.0
    %6304 = vmatprep.subr.mxu0 0.0
    %6305 = vmatpush1.msra.mxu0 0.0
    %6306 = vmatprep.subr.mxu0 0.0
    %6307 = vmatpush1.msra.mxu0 0.0
    %6308 = vmatprep.subr.mxu0 0.0
    %6309 = vmatpush1.msra.mxu0 0.0
    %6310 = vmatprep.subr.mxu0 0.0
    %6311 = vmatpush1.msra.mxu0 0.0
    %6312 = vmatprep.subr.mxu0 0.0
    %6313 = vmatpush1.msra.mxu0 0.0
    %6314 = vmatprep.subr.mxu0 0.0
    %6315 = vmatpush1.msra.mxu0 0.0
    %6316 = vmatprep.subr.mxu0 0.0
    %6317 = vmatpush1.msra.mxu0 0.0
    %6318 = vmatprep.subr.mxu0 0.0
    %6319 = vmatpush1.msra.mxu0 0.0
    %6320 = vmatprep.mubr.f32.mxu0 0.0
    %6321 = vmatmul.mubr.f32.gmra.mrb[0].mxu0 %v6254
    %v6322 = vpop.f32.mrb[0].mxu0
    %v6323 = vadd.f32 0.0, %v6322
    %v6324 = vpop.f32.mrb[0].mxu0
    %6325 = vdwg.mxu0
    %6326 = vmatprep.subr.mxu0 %v4604
    %6327 = vmatpush1.msra.mxu0 %v4603
    %6328 = vmatprep.subr.mxu0 %v4607
    %6329 = vmatpush1.msra.mxu0 %v4606
    %6330 = vmatprep.subr.mxu0 %v4610
    %6331 = vmatpush1.msra.mxu0 %v4609
    %6332 = vmatprep.subr.mxu0 %v4613
    %6333 = vmatpush1.msra.mxu0 %v4612
    %6334 = vmatprep.subr.mxu0 %v4616
    %6335 = vmatpush1.msra.mxu0 %v4615
    %6336 = vmatprep.subr.mxu0 %v4619
    %6337 = vmatpush1.msra.mxu0 %v4618
    %6338 = vmatprep.subr.mxu0 %v4622
    %6339 = vmatpush1.msra.mxu0 %v4621
    %6340 = vmatprep.subr.mxu0 %v4625
    %6341 = vmatpush1.msra.mxu0 %v4624
    %6342 = vmatprep.subr.mxu0 %v4628
    %6343 = vmatpush1.msra.mxu0 %v4627
    %6344 = vmatprep.subr.mxu0 %v4631
    %6345 = vmatpush1.msra.mxu0 %v4630
    %6346 = vmatprep.subr.mxu0 %v4634
    %6347 = vmatpush1.msra.mxu0 %v4633
    %6348 = vmatprep.subr.mxu0 %v4637
    %6349 = vmatpush1.msra.mxu0 %v4636
    %6350 = vmatprep.subr.mxu0 %v4640
    %6351 = vmatpush1.msra.mxu0 %v4639
    %6352 = vmatprep.subr.mxu0 %v4643
    %6353 = vmatpush1.msra.mxu0 %v4642
    %6354 = vmatprep.subr.mxu0 %v4646
    %6355 = vmatpush1.msra.mxu0 %v4645
    %6356 = vmatprep.subr.mxu0 %v4649
    %6357 = vmatpush1.msra.mxu0 %v4648
    %6358 = vmatprep.subr.mxu0 0.0
    %6359 = vmatpush1.msra.mxu0 0.0
    %6360 = vmatprep.subr.mxu0 0.0
    %6361 = vmatpush1.msra.mxu0 0.0
    %6362 = vmatprep.subr.mxu0 0.0
    %6363 = vmatpush1.msra.mxu0 0.0
    %6364 = vmatprep.subr.mxu0 0.0
    %6365 = vmatpush1.msra.mxu0 0.0
    %6366 = vmatprep.subr.mxu0 0.0
    %6367 = vmatpush1.msra.mxu0 0.0
    %6368 = vmatprep.subr.mxu0 0.0
    %6369 = vmatpush1.msra.mxu0 0.0
    %6370 = vmatprep.subr.mxu0 0.0
    %6371 = vmatpush1.msra.mxu0 0.0
    %6372 = vmatprep.subr.mxu0 0.0
    %6373 = vmatpush1.msra.mxu0 0.0
    %6374 = vmatprep.subr.mxu0 0.0
    %6375 = vmatpush1.msra.mxu0 0.0
    %6376 = vmatprep.subr.mxu0 0.0
    %6377 = vmatpush1.msra.mxu0 0.0
    %6378 = vmatprep.subr.mxu0 0.0
    %6379 = vmatpush1.msra.mxu0 0.0
    %6380 = vmatprep.subr.mxu0 0.0
    %6381 = vmatpush1.msra.mxu0 0.0
    %6382 = vmatprep.subr.mxu0 0.0
    %6383 = vmatpush1.msra.mxu0 0.0
    %6384 = vmatprep.subr.mxu0 0.0
    %6385 = vmatpush1.msra.mxu0 0.0
    %6386 = vmatprep.subr.mxu0 0.0
    %6387 = vmatpush1.msra.mxu0 0.0
    %6388 = vmatprep.subr.mxu0 0.0
    %6389 = vmatpush1.msra.mxu0 0.0
    %6390 = vmatprep.mubr.f32.mxu0 0.0
    %6391 = vmatmul.mubr.f32.gmra.mrb[0].mxu0 %v6323
    %v6392 = vpop.f32.mrb[0].mxu0
    %v6393 = vadd.f32 0.0, %v6392
    %v6394 = vpop.f32.mrb[0].mxu0
    %v6395 = vadd.f32 0.0, %v6394
    %6396 = vdwg.mxu0
    %6397 = vmatprep.subr.mxu0 0.0
    %6398 = vmatpush1.msra.mxu0 %v4605
    %6399 = vmatprep.subr.mxu0 0.0
    %6400 = vmatpush1.msra.mxu0 %v4608
    %6401 = vmatprep.subr.mxu0 0.0
    %6402 = vmatpush1.msra.mxu0 %v4611
    %6403 = vmatprep.subr.mxu0 0.0
    %6404 = vmatpush1.msra.mxu0 %v4614
    %6405 = vmatprep.subr.mxu0 0.0
    %6406 = vmatpush1.msra.mxu0 %v4617
    %6407 = vmatprep.subr.mxu0 0.0
    %6408 = vmatpush1.msra.mxu0 %v4620
    %6409 = vmatprep.subr.mxu0 0.0
    %6410 = vmatpush1.msra.mxu0 %v4623
    %6411 = vmatprep.subr.mxu0 0.0
    %6412 = vmatpush1.msra.mxu0 %v4626
    %6413 = vmatprep.subr.mxu0 0.0
    %6414 = vmatpush1.msra.mxu0 %v4629
    %6415 = vmatprep.subr.mxu0 0.0
    %6416 = vmatpush1.msra.mxu0 %v4632
    %6417 = vmatprep.subr.mxu0 0.0
    %6418 = vmatpush1.msra.mxu0 %v4635
    %6419 = vmatprep.subr.mxu0 0.0
    %6420 = vmatpush1.msra.mxu0 %v4638
    %6421 = vmatprep.subr.mxu0 0.0
    %6422 = vmatpush1.msra.mxu0 %v4641
    %6423 = vmatprep.subr.mxu0 0.0
    %6424 = vmatpush1.msra.mxu0 %v4644
    %6425 = vmatprep.subr.mxu0 0.0
    %6426 = vmatpush1.msra.mxu0 %v4647
    %6427 = vmatprep.subr.mxu0 0.0
    %6428 = vmatpush1.msra.mxu0 %v4650
    %6429 = vmatprep.subr.mxu0 0.0
    %6430 = vmatpush1.msra.mxu0 0.0
    %6431 = vmatprep.subr.mxu0 0.0
    %6432 = vmatpush1.msra.mxu0 0.0
    %6433 = vmatprep.subr.mxu0 0.0
    %6434 = vmatpush1.msra.mxu0 0.0
    %6435 = vmatprep.subr.mxu0 0.0
    %6436 = vmatpush1.msra.mxu0 0.0
    %6437 = vmatprep.subr.mxu0 0.0
    %6438 = vmatpush1.msra.mxu0 0.0
    %6439 = vmatprep.subr.mxu0 0.0
    %6440 = vmatpush1.msra.mxu0 0.0
    %6441 = vmatprep.subr.mxu0 0.0
    %6442 = vmatpush1.msra.mxu0 0.0
    %6443 = vmatprep.subr.mxu0 0.0
    %6444 = vmatpush1.msra.mxu0 0.0
    %6445 = vmatprep.subr.mxu0 0.0
    %6446 = vmatpush1.msra.mxu0 0.0
    %6447 = vmatprep.subr.mxu0 0.0
    %6448 = vmatpush1.msra.mxu0 0.0
    %6449 = vmatprep.subr.mxu0 0.0
    %6450 = vmatpush1.msra.mxu0 0.0
    %6451 = vmatprep.subr.mxu0 0.0
    %6452 = vmatpush1.msra.mxu0 0.0
    %6453 = vmatprep.subr.mxu0 0.0
    %6454 = vmatpush1.msra.mxu0 0.0
    %6455 = vmatprep.subr.mxu0 0.0
    %6456 = vmatpush1.msra.mxu0 0.0
    %6457 = vmatprep.subr.mxu0 0.0
    %6458 = vmatpush1.msra.mxu0 0.0
    %6459 = vmatprep.subr.mxu0 0.0
    %6460 = vmatpush1.msra.mxu0 0.0
    %6461 = vmatprep.mubr.f32.mxu0 0.0
    %6462 = vmatmul.mubr.f32.gmra.mrb[0].mxu0 %v6323
    %v6463 = vpop.f32.mrb[0].mxu0
    %v6464 = vadd.f32 0.0, %v6463
    %v6465 = vpop.f32.mrb[0].mxu0
    %6466 = vdwg.mxu0
    %v6467 = vadd.f32 %v6096, %v6393
    %v6468 = vadd.f32 %v6098, %v6395
    %v6469 = vadd.f32 %v6167, %v6464
    %6470 = vmatprep.subr.mxu0 0.0
    %6471 = vmatpush1.xpose.msra.mxu0 %v5116
    %6472 = vmatprep.subr.mxu0 0.0
    %6473 = vmatpush1.xpose.msra.mxu0 0.0
    %6474 = vmatprep.subr.mxu0 0.0
    %6475 = vmatpush1.xpose.msra.mxu0 0.0
    %6476 = vmatprep.subr.mxu0 0.0
    %6477 = vmatpush1.xpose.msra.mxu0 0.0
    %6478 = vmatprep.subr.mxu0 0.0
    %6479 = vmatpush1.xpose.msra.mxu0 0.0
    %6480 = vmatprep.subr.mxu0 0.0
    %6481 = vmatpush1.xpose.msra.mxu0 0.0
    %6482 = vmatprep.subr.mxu0 0.0
    %6483 = vmatpush1.xpose.msra.mxu0 0.0
    %6484 = vmatprep.subr.mxu0 0.0
    %6485 = vmatpush1.xpose.msra.mxu0 0.0
    %6486 = vmatprep.subr.mxu0 0.0
    %6487 = vmatpush1.xpose.msra.mxu0 0.0
    %6488 = vmatprep.subr.mxu0 0.0
    %6489 = vmatpush1.xpose.msra.mxu0 0.0
    %6490 = vmatprep.subr.mxu0 0.0
    %6491 = vmatpush1.xpose.msra.mxu0 0.0
    %6492 = vmatprep.subr.mxu0 0.0
    %6493 = vmatpush1.xpose.msra.mxu0 0.0
    %6494 = vmatprep.subr.mxu0 0.0
    %6495 = vmatpush1.xpose.msra.mxu0 0.0
    %6496 = vmatprep.subr.mxu0 0.0
    %6497 = vmatpush1.xpose.msra.mxu0 0.0
    %6498 = vmatprep.subr.mxu0 0.0
    %6499 = vmatpush1.xpose.msra.mxu0 0.0
    %6500 = vmatprep.subr.mxu0 0.0
    %6501 = vmatpush1.xpose.msra.mxu0 0.0
    %6502 = vmatprep.subr.mxu0 0.0
    %6503 = vmatpush1.xpose.msra.mxu0 0.0
    %6504 = vmatprep.subr.mxu0 0.0
    %6505 = vmatpush1.xpose.msra.mxu0 0.0
    %6506 = vmatprep.subr.mxu0 0.0
    %6507 = vmatpush1.xpose.msra.mxu0 0.0
    %6508 = vmatprep.subr.mxu0 0.0
    %6509 = vmatpush1.xpose.msra.mxu0 0.0
    %6510 = vmatprep.subr.mxu0 0.0
    %6511 = vmatpush1.xpose.msra.mxu0 0.0
    %6512 = vmatprep.subr.mxu0 0.0
    %6513 = vmatpush1.xpose.msra.mxu0 0.0
    %6514 = vmatprep.subr.mxu0 0.0
    %6515 = vmatpush1.xpose.msra.mxu0 0.0
    %6516 = vmatprep.subr.mxu0 0.0
    %6517 = vmatpush1.xpose.msra.mxu0 0.0
    %6518 = vmatprep.subr.mxu0 0.0
    %6519 = vmatpush1.xpose.msra.mxu0 0.0
    %6520 = vmatprep.subr.mxu0 0.0
    %6521 = vmatpush1.xpose.msra.mxu0 0.0
    %6522 = vmatprep.subr.mxu0 0.0
    %6523 = vmatpush1.xpose.msra.mxu0 0.0
    %6524 = vmatprep.subr.mxu0 0.0
    %6525 = vmatpush1.xpose.msra.mxu0 0.0
    %6526 = vmatprep.subr.mxu0 0.0
    %6527 = vmatpush1.xpose.msra.mxu0 0.0
    %6528 = vmatprep.subr.mxu0 0.0
    %6529 = vmatpush1.xpose.msra.mxu0 0.0
    %6530 = vmatprep.subr.mxu0 0.0
    %6531 = vmatpush1.xpose.msra.mxu0 0.0
    %6532 = vmatprep.subr.mxu0 0.0
    %6533 = vmatpush1.xpose.msra.mxu0 0.0
    %6534 = vmatprep.mubr.f32.mxu0 0.0
    %6535 = vmatmul.mubr.f32.gmra.mrb[0].mxu0 %v4960
    %v6536 = vpop.f32.mrb[0].mxu0
    %v6537 = vadd.f32 0.0, %v6536
    %v6538 = vpop.f32.mrb[0].mxu0
    %6539 = vdwg.mxu0
    %v6540 = vmul.f32 %v6537, 0.088388346
    %v6541 = vadd.f32 %v6540, %v241
    %v6542 = vsel %vm1814, %v6541, -inf
    %6543 = vmax.xlane.f32.xlu0 %v6542
    %v6544 = vpop.xlane.xlu0 %6543
    %v6545 = vsub.f32 %v6541, %v6544
    %v6546 = vmul.f32 %v6545, 1.442695
    %v6547 = vpow.pop %v6546
    %v6548 = vsel %vm1814, %v6547, 0.0
    %6549 = vadd.xlane.f32.xlu0 %v6548
    %v6550 = vpop.xlane.xlu0 %6549
    %v6551 = vrcp.pop %v6550
    %v6552 = vmul.f32 %v6547, %v6551
    %v6554 = vsel %vm1814, %v6552, 0
    %6556 = vmatprep.subr.mxu0 0.0
    %6557 = vmatpush1.msra.mxu0 %v5422
    %6558 = vmatprep.subr.mxu0 0.0
    %6559 = vmatpush1.msra.mxu0 0.0
    %6560 = vmatprep.subr.mxu0 0.0
    %6561 = vmatpush1.msra.mxu0 0.0
    %6562 = vmatprep.subr.mxu0 0.0
    %6563 = vmatpush1.msra.mxu0 0.0
    %6564 = vmatprep.subr.mxu0 0.0
    %6565 = vmatpush1.msra.mxu0 0.0
    %6566 = vmatprep.subr.mxu0 0.0
    %6567 = vmatpush1.msra.mxu0 0.0
    %6568 = vmatprep.subr.mxu0 0.0
    %6569 = vmatpush1.msra.mxu0 0.0
    %6570 = vmatprep.subr.mxu0 0.0
    %6571 = vmatpush1.msra.mxu0 0.0
    %6572 = vmatprep.subr.mxu0 0.0
    %6573 = vmatpush1.msra.mxu0 0.0
    %6574 = vmatprep.subr.mxu0 0.0
    %6575 = vmatpush1.msra.mxu0 0.0
    %6576 = vmatprep.subr.mxu0 0.0
    %6577 = vmatpush1.msra.mxu0 0.0
    %6578 = vmatprep.subr.mxu0 0.0
    %6579 = vmatpush1.msra.mxu0 0.0
    %6580 = vmatprep.subr.mxu0 0.0
    %6581 = vmatpush1.msra.mxu0 0.0
    %6582 = vmatprep.subr.mxu0 0.0
    %6583 = vmatpush1.msra.mxu0 0.0
    %6584 = vmatprep.subr.mxu0 0.0
    %6585 = vmatpush1.msra.mxu0 0.0
    %6586 = vmatprep.subr.mxu0 0.0
    %6587 = vmatpush1.msra.mxu0 0.0
    %6588 = vmatprep.subr.mxu0 0.0
    %6589 = vmatpush1.msra.mxu0 0.0
    %6590 = vmatprep.subr.mxu0 0.0
    %6591 = vmatpush1.msra.mxu0 0.0
    %6592 = vmatprep.subr.mxu0 0.0
    %6593 = vmatpush1.msra.mxu0 0.0
    %6594 = vmatprep.subr.mxu0 0.0
    %6595 = vmatpush1.msra.mxu0 0.0
    %6596 = vmatprep.subr.mxu0 0.0
    %6597 = vmatpush1.msra.mxu0 0.0
    %6598 = vmatprep.subr.mxu0 0.0
    %6599 = vmatpush1.msra.mxu0 0.0
    %6600 = vmatprep.subr.mxu0 0.0
    %6601 = vmatpush1.msra.mxu0 0.0
    %6602 = vmatprep.subr.mxu0 0.0
    %6603 = vmatpush1.msra.mxu0 0.0
    %6604 = vmatprep.subr.mxu0 0.0
    %6605 = vmatpush1.msra.mxu0 0.0
    %6606 = vmatprep.subr.mxu0 0.0
    %6607 = vmatpush1.msra.mxu0 0.0
    %6608 = vmatprep.subr.mxu0 0.0
    %6609 = vmatpush1.msra.mxu0 0.0
    %6610 = vmatprep.subr.mxu0 0.0
    %6611 = vmatpush1.msra.mxu0 0.0
    %6612 = vmatprep.subr.mxu0 0.0
    %6613 = vmatpush1.msra.mxu0 0.0
    %6614 = vmatprep.subr.mxu0 0.0
    %6615 = vmatpush1.msra.mxu0 0.0
    %6616 = vmatprep.subr.mxu0 0.0
    %6617 = vmatpush1.msra.mxu0 0.0
    %6618 = vmatprep.subr.mxu0 0.0
    %6619 = vmatpush1.msra.mxu0 0.0
    %6620 = vmatprep.mubr.f32.mxu0 0.0
    %6621 = vmatmul.mubr.f32.gmra.mrb[0].mxu0 %v6554
    %v6622 = vpop.f32.mrb[0].mxu0
    %v6623 = vadd.f32 0.0, %v6622
    %v6624 = vpop.f32.mrb[0].mxu0
    %6625 = vdwg.mxu0
    %6626 = vmatprep.subr.mxu0 0.0
    %6627 = vmatpush1.xpose.msra.mxu0 %v5268
    %6628 = vmatprep.subr.mxu0 0.0
    %6629 = vmatpush1.xpose.msra.mxu0 0.0
    %6630 = vmatprep.subr.mxu0 0.0
    %6631 = vmatpush1.xpose.msra.mxu0 0.0
    %6632 = vmatprep.subr.mxu0 0.0
    %6633 = vmatpush1.xpose.msra.mxu0 0.0
    %6634 = vmatprep.subr.mxu0 0.0
    %6635 = vmatpush1.xpose.msra.mxu0 0.0
    %6636 = vmatprep.subr.mxu0 0.0
    %6637 = vmatpush1.xpose.msra.mxu0 0.0
    %6638 = vmatprep.subr.mxu0 0.0
    %6639 = vmatpush1.xpose.msra.mxu0 0.0
    %6640 = vmatprep.subr.mxu0 0.0
    %6641 = vmatpush1.xpose.msra.mxu0 0.0
    %6642 = vmatprep.subr.mxu0 0.0
    %6643 = vmatpush1.xpose.msra.mxu0 0.0
    %6644 = vmatprep.subr.mxu0 0.0
    %6645 = vmatpush1.xpose.msra.mxu0 0.0
    %6646 = vmatprep.subr.mxu0 0.0
    %6647 = vmatpush1.xpose.msra.mxu0 0.0
    %6648 = vmatprep.subr.mxu0 0.0
    %6649 = vmatpush1.xpose.msra.mxu0 0.0
    %6650 = vmatprep.subr.mxu0 0.0
    %6651 = vmatpush1.xpose.msra.mxu0 0.0
    %6652 = vmatprep.subr.mxu0 0.0
    %6653 = vmatpush1.xpose.msra.mxu0 0.0
    %6654 = vmatprep.subr.mxu0 0.0
    %6655 = vmatpush1.xpose.msra.mxu0 0.0
    %6656 = vmatprep.subr.mxu0 0.0
    %6657 = vmatpush1.xpose.msra.mxu0 0.0
    %6658 = vmatprep.subr.mxu0 0.0
    %6659 = vmatpush1.xpose.msra.mxu0 0.0
    %6660 = vmatprep.subr.mxu0 0.0
    %6661 = vmatpush1.xpose.msra.mxu0 0.0
    %6662 = vmatprep.subr.mxu0 0.0
    %6663 = vmatpush1.xpose.msra.mxu0 0.0
    %6664 = vmatprep.subr.mxu0 0.0
    %6665 = vmatpush1.xpose.msra.mxu0 0.0
    %6666 = vmatprep.subr.mxu0 0.0
    %6667 = vmatpush1.xpose.msra.mxu0 0.0
    %6668 = vmatprep.subr.mxu0 0.0
    %6669 = vmatpush1.xpose.msra.mxu0 0.0
    %6670 = vmatprep.subr.mxu0 0.0
    %6671 = vmatpush1.xpose.msra.mxu0 0.0
    %6672 = vmatprep.subr.mxu0 0.0
    %6673 = vmatpush1.xpose.msra.mxu0 0.0
    %6674 = vmatprep.subr.mxu0 0.0
    %6675 = vmatpush1.xpose.msra.mxu0 0.0
    %6676 = vmatprep.subr.mxu0 0.0
    %6677 = vmatpush1.xpose.msra.mxu0 0.0
    %6678 = vmatprep.subr.mxu0 0.0
    %6679 = vmatpush1.xpose.msra.mxu0 0.0
    %6680 = vmatprep.subr.mxu0 0.0
    %6681 = vmatpush1.xpose.msra.mxu0 0.0
    %6682 = vmatprep.subr.mxu0 0.0
    %6683 = vmatpush1.xpose.msra.mxu0 0.0
    %6684 = vmatprep.subr.mxu0 0.0
    %6685 = vmatpush1.xpose.msra.mxu0 0.0
    %6686 = vmatprep.subr.mxu0 0.0
    %6687 = vmatpush1.xpose.msra.mxu0 0.0
    %6688 = vmatprep.subr.mxu0 0.0
    %6689 = vmatpush1.xpose.msra.mxu0 0.0
    %6690 = vmatprep.mubr.f32.mxu0 0.0
    %6691 = vmatmul.mubr.f32.gmra.mrb[0].mxu0 %v4962
    %v6692 = vpop.f32.mrb[0].mxu0
    %v6693 = vadd.f32 0.0, %v6692
    %v6694 = vpop.f32.mrb[0].mxu0
    %6695 = vdwg.mxu0
    %v6696 = vmul.f32 %v6693, 0.088388346
    %v6697 = vadd.f32 %v6696, %v241
    %v6698 = vsel %vm1814, %v6697, -inf
    %6699 = vmax.xlane.f32.xlu0 %v6698
    %v6700 = vpop.xlane.xlu0 %6699
    %v6701 = vsub.f32 %v6697, %v6700
    %v6702 = vmul.f32 %v6701, 1.442695
    %v6703 = vpow.pop %v6702
    %v6704 = vsel %vm1814, %v6703, 0.0
    %6705 = vadd.xlane.f32.xlu0 %v6704
    %v6706 = vpop.xlane.xlu0 %6705
    %v6707 = vrcp.pop %v6706
    %v6708 = vmul.f32 %v6703, %v6707
    %v6710 = vsel %vm1814, %v6708, 0
    %6712 = vmatprep.subr.mxu0 0.0
    %6713 = vmatpush1.msra.mxu0 %v5424
    %6714 = vmatprep.subr.mxu0 0.0
    %6715 = vmatpush1.msra.mxu0 0.0
    %6716 = vmatprep.subr.mxu0 0.0
    %6717 = vmatpush1.msra.mxu0 0.0
    %6718 = vmatprep.subr.mxu0 0.0
    %6719 = vmatpush1.msra.mxu0 0.0
    %6720 = vmatprep.subr.mxu0 0.0
    %6721 = vmatpush1.msra.mxu0 0.0
    %6722 = vmatprep.subr.mxu0 0.0
    %6723 = vmatpush1.msra.mxu0 0.0
    %6724 = vmatprep.subr.mxu0 0.0
    %6725 = vmatpush1.msra.mxu0 0.0
    %6726 = vmatprep.subr.mxu0 0.0
    %6727 = vmatpush1.msra.mxu0 0.0
    %6728 = vmatprep.subr.mxu0 0.0
    %6729 = vmatpush1.msra.mxu0 0.0
    %6730 = vmatprep.subr.mxu0 0.0
    %6731 = vmatpush1.msra.mxu0 0.0
    %6732 = vmatprep.subr.mxu0 0.0
    %6733 = vmatpush1.msra.mxu0 0.0
    %6734 = vmatprep.subr.mxu0 0.0
    %6735 = vmatpush1.msra.mxu0 0.0
    %6736 = vmatprep.subr.mxu0 0.0
    %6737 = vmatpush1.msra.mxu0 0.0
    %6738 = vmatprep.subr.mxu0 0.0
    %6739 = vmatpush1.msra.mxu0 0.0
    %6740 = vmatprep.subr.mxu0 0.0
    %6741 = vmatpush1.msra.mxu0 0.0
    %6742 = vmatprep.subr.mxu0 0.0
    %6743 = vmatpush1.msra.mxu0 0.0
    %6744 = vmatprep.subr.mxu0 0.0
    %6745 = vmatpush1.msra.mxu0 0.0
    %6746 = vmatprep.subr.mxu0 0.0
    %6747 = vmatpush1.msra.mxu0 0.0
    %6748 = vmatprep.subr.mxu0 0.0
    %6749 = vmatpush1.msra.mxu0 0.0
    %6750 = vmatprep.subr.mxu0 0.0
    %6751 = vmatpush1.msra.mxu0 0.0
    %6752 = vmatprep.subr.mxu0 0.0
    %6753 = vmatpush1.msra.mxu0 0.0
    %6754 = vmatprep.subr.mxu0 0.0
    %6755 = vmatpush1.msra.mxu0 0.0
    %6756 = vmatprep.subr.mxu0 0.0
    %6757 = vmatpush1.msra.mxu0 0.0
    %6758 = vmatprep.subr.mxu0 0.0
    %6759 = vmatpush1.msra.mxu0 0.0
    %6760 = vmatprep.subr.mxu0 0.0
    %6761 = vmatpush1.msra.mxu0 0.0
    %6762 = vmatprep.subr.mxu0 0.0
    %6763 = vmatpush1.msra.mxu0 0.0
    %6764 = vmatprep.subr.mxu0 0.0
    %6765 = vmatpush1.msra.mxu0 0.0
    %6766 = vmatprep.subr.mxu0 0.0
    %6767 = vmatpush1.msra.mxu0 0.0
    %6768 = vmatprep.subr.mxu0 0.0
    %6769 = vmatpush1.msra.mxu0 0.0
    %6770 = vmatprep.subr.mxu0 0.0
    %6771 = vmatpush1.msra.mxu0 0.0
    %6772 = vmatprep.subr.mxu0 0.0
    %6773 = vmatpush1.msra.mxu0 0.0
    %6774 = vmatprep.subr.mxu0 0.0
    %6775 = vmatpush1.msra.mxu0 0.0
    %6776 = vmatprep.mubr.f32.mxu0 0.0
    %6777 = vmatmul.mubr.f32.gmra.mrb[0].mxu0 %v6710
    %v6778 = vpop.f32.mrb[0].mxu0
    %v6779 = vadd.f32 0.0, %v6778
    %v6780 = vpop.f32.mrb[0].mxu0
    %6781 = vdwg.mxu0
    %6782 = vmatprep.subr.mxu0 %v4556
    %6783 = vmatpush1.msra.mxu0 %v4555
    %6784 = vmatprep.subr.mxu0 %v4559
    %6785 = vmatpush1.msra.mxu0 %v4558
    %6786 = vmatprep.subr.mxu0 %v4562
    %6787 = vmatpush1.msra.mxu0 %v4561
    %6788 = vmatprep.subr.mxu0 %v4565
    %6789 = vmatpush1.msra.mxu0 %v4564
    %6790 = vmatprep.subr.mxu0 %v4568
    %6791 = vmatpush1.msra.mxu0 %v4567
    %6792 = vmatprep.subr.mxu0 %v4571
    %6793 = vmatpush1.msra.mxu0 %v4570
    %6794 = vmatprep.subr.mxu0 %v4574
    %6795 = vmatpush1.msra.mxu0 %v4573
    %6796 = vmatprep.subr.mxu0 %v4577
    %6797 = vmatpush1.msra.mxu0 %v4576
    %6798 = vmatprep.subr.mxu0 %v4580
    %6799 = vmatpush1.msra.mxu0 %v4579
    %6800 = vmatprep.subr.mxu0 %v4583
    %6801 = vmatpush1.msra.mxu0 %v4582
    %6802 = vmatprep.subr.mxu0 %v4586
    %6803 = vmatpush1.msra.mxu0 %v4585
    %6804 = vmatprep.subr.mxu0 %v4589
    %6805 = vmatpush1.msra.mxu0 %v4588
    %6806 = vmatprep.subr.mxu0 %v4592
    %6807 = vmatpush1.msra.mxu0 %v4591
    %6808 = vmatprep.subr.mxu0 %v4595
    %6809 = vmatpush1.msra.mxu0 %v4594
    %6810 = vmatprep.subr.mxu0 %v4598
    %6811 = vmatpush1.msra.mxu0 %v4597
    %6812 = vmatprep.subr.mxu0 %v4601
    %6813 = vmatpush1.msra.mxu0 %v4600
    %6814 = vmatprep.subr.mxu0 0.0
    %6815 = vmatpush1.msra.mxu0 0.0
    %6816 = vmatprep.subr.mxu0 0.0
    %6817 = vmatpush1.msra.mxu0 0.0
    %6818 = vmatprep.subr.mxu0 0.0
    %6819 = vmatpush1.msra.mxu0 0.0
    %6820 = vmatprep.subr.mxu0 0.0
    %6821 = vmatpush1.msra.mxu0 0.0
    %6822 = vmatprep.subr.mxu0 0.0
    %6823 = vmatpush1.msra.mxu0 0.0
    %6824 = vmatprep.subr.mxu0 0.0
    %6825 = vmatpush1.msra.mxu0 0.0
    %6826 = vmatprep.subr.mxu0 0.0
    %6827 = vmatpush1.msra.mxu0 0.0
    %6828 = vmatprep.subr.mxu0 0.0
    %6829 = vmatpush1.msra.mxu0 0.0
    %6830 = vmatprep.subr.mxu0 0.0
    %6831 = vmatpush1.msra.mxu0 0.0
    %6832 = vmatprep.subr.mxu0 0.0
    %6833 = vmatpush1.msra.mxu0 0.0
    %6834 = vmatprep.subr.mxu0 0.0
    %6835 = vmatpush1.msra.mxu0 0.0
    %6836 = vmatprep.subr.mxu0 0.0
    %6837 = vmatpush1.msra.mxu0 0.0
    %6838 = vmatprep.subr.mxu0 0.0
    %6839 = vmatpush1.msra.mxu0 0.0
    %6840 = vmatprep.subr.mxu0 0.0
    %6841 = vmatpush1.msra.mxu0 0.0
    %6842 = vmatprep.subr.mxu0 0.0
    %6843 = vmatpush1.msra.mxu0 0.0
    %6844 = vmatprep.subr.mxu0 0.0
    %6845 = vmatpush1.msra.mxu0 0.0
    %6846 = vmatprep.mubr.f32.mxu0 0.0
    %6847 = vmatmul.mubr.f32.gmra.mrb[0].mxu0 %v6779
    %v6848 = vpop.f32.mrb[0].mxu0
    %v6849 = vadd.f32 0.0, %v6848
    %v6850 = vpop.f32.mrb[0].mxu0
    %v6851 = vadd.f32 0.0, %v6850
    %6852 = vdwg.mxu0
    %6853 = vmatprep.subr.mxu0 0.0
    %6854 = vmatpush1.msra.mxu0 %v4557
    %6855 = vmatprep.subr.mxu0 0.0
    %6856 = vmatpush1.msra.mxu0 %v4560
    %6857 = vmatprep.subr.mxu0 0.0
    %6858 = vmatpush1.msra.mxu0 %v4563
    %6859 = vmatprep.subr.mxu0 0.0
    %6860 = vmatpush1.msra.mxu0 %v4566
    %6861 = vmatprep.subr.mxu0 0.0
    %6862 = vmatpush1.msra.mxu0 %v4569
    %6863 = vmatprep.subr.mxu0 0.0
    %6864 = vmatpush1.msra.mxu0 %v4572
    %6865 = vmatprep.subr.mxu0 0.0
    %6866 = vmatpush1.msra.mxu0 %v4575
    %6867 = vmatprep.subr.mxu0 0.0
    %6868 = vmatpush1.msra.mxu0 %v4578
    %6869 = vmatprep.subr.mxu0 0.0
    %6870 = vmatpush1.msra.mxu0 %v4581
    %6871 = vmatprep.subr.mxu0 0.0
    %6872 = vmatpush1.msra.mxu0 %v4584
    %6873 = vmatprep.subr.mxu0 0.0
    %6874 = vmatpush1.msra.mxu0 %v4587
    %6875 = vmatprep.subr.mxu0 0.0
    %6876 = vmatpush1.msra.mxu0 %v4590
    %6877 = vmatprep.subr.mxu0 0.0
    %6878 = vmatpush1.msra.mxu0 %v4593
    %6879 = vmatprep.subr.mxu0 0.0
    %6880 = vmatpush1.msra.mxu0 %v4596
    %6881 = vmatprep.subr.mxu0 0.0
    %6882 = vmatpush1.msra.mxu0 %v4599
    %6883 = vmatprep.subr.mxu0 0.0
    %6884 = vmatpush1.msra.mxu0 %v4602
    %6885 = vmatprep.subr.mxu0 0.0
    %6886 = vmatpush1.msra.mxu0 0.0
    %6887 = vmatprep.subr.mxu0 0.0
    %6888 = vmatpush1.msra.mxu0 0.0
    %6889 = vmatprep.subr.mxu0 0.0
    %6890 = vmatpush1.msra.mxu0 0.0
    %6891 = vmatprep.subr.mxu0 0.0
    %6892 = vmatpush1.msra.mxu0 0.0
    %6893 = vmatprep.subr.mxu0 0.0
    %6894 = vmatpush1.msra.mxu0 0.0
    %6895 = vmatprep.subr.mxu0 0.0
    %6896 = vmatpush1.msra.mxu0 0.0
    %6897 = vmatprep.subr.mxu0 0.0
    %6898 = vmatpush1.msra.mxu0 0.0
    %6899 = vmatprep.subr.mxu0 0.0
    %6900 = vmatpush1.msra.mxu0 0.0
    %6901 = vmatprep.subr.mxu0 0.0
    %6902 = vmatpush1.msra.mxu0 0.0
    %6903 = vmatprep.subr.mxu0 0.0
    %6904 = vmatpush1.msra.mxu0 0.0
    %6905 = vmatprep.subr.mxu0 0.0
    %6906 = vmatpush1.msra.mxu0 0.0
    %6907 = vmatprep.subr.mxu0 0.0
    %6908 = vmatpush1.msra.mxu0 0.0
    %6909 = vmatprep.subr.mxu0 0.0
    %6910 = vmatpush1.msra.mxu0 0.0
    %6911 = vmatprep.subr.mxu0 0.0
    %6912 = vmatpush1.msra.mxu0 0.0
    %6913 = vmatprep.subr.mxu0 0.0
    %6914 = vmatpush1.msra.mxu0 0.0
    %6915 = vmatprep.subr.mxu0 0.0
    %6916 = vmatpush1.msra.mxu0 0.0
    %6917 = vmatprep.mubr.f32.mxu0 0.0
    %6918 = vmatmul.mubr.f32.gmra.mrb[0].mxu0 %v6779
    %v6919 = vpop.f32.mrb[0].mxu0
    %v6920 = vadd.f32 0.0, %v6919
    %v6921 = vpop.f32.mrb[0].mxu0
    %6922 = vdwg.mxu0
    %6923 = vmatprep.subr.mxu0 %v4508
    %6924 = vmatpush1.msra.mxu0 %v4507
    %6925 = vmatprep.subr.mxu0 %v4511
    %6926 = vmatpush1.msra.mxu0 %v4510
    %6927 = vmatprep.subr.mxu0 %v4514
    %6928 = vmatpush1.msra.mxu0 %v4513
    %6929 = vmatprep.subr.mxu0 %v4517
    %6930 = vmatpush1.msra.mxu0 %v4516
    %6931 = vmatprep.subr.mxu0 %v4520
    %6932 = vmatpush1.msra.mxu0 %v4519
    %6933 = vmatprep.subr.mxu0 %v4523
    %6934 = vmatpush1.msra.mxu0 %v4522
    %6935 = vmatprep.subr.mxu0 %v4526
    %6936 = vmatpush1.msra.mxu0 %v4525
    %6937 = vmatprep.subr.mxu0 %v4529
    %6938 = vmatpush1.msra.mxu0 %v4528
    %6939 = vmatprep.subr.mxu0 %v4532
    %6940 = vmatpush1.msra.mxu0 %v4531
    %6941 = vmatprep.subr.mxu0 %v4535
    %6942 = vmatpush1.msra.mxu0 %v4534
    %6943 = vmatprep.subr.mxu0 %v4538
    %6944 = vmatpush1.msra.mxu0 %v4537
    %6945 = vmatprep.subr.mxu0 %v4541
    %6946 = vmatpush1.msra.mxu0 %v4540
    %6947 = vmatprep.subr.mxu0 %v4544
    %6948 = vmatpush1.msra.mxu0 %v4543
    %6949 = vmatprep.subr.mxu0 %v4547
    %6950 = vmatpush1.msra.mxu0 %v4546
    %6951 = vmatprep.subr.mxu0 %v4550
    %6952 = vmatpush1.msra.mxu0 %v4549
    %6953 = vmatprep.subr.mxu0 %v4553
    %6954 = vmatpush1.msra.mxu0 %v4552
    %6955 = vmatprep.subr.mxu0 0.0
    %6956 = vmatpush1.msra.mxu0 0.0
    %6957 = vmatprep.subr.mxu0 0.0
    %6958 = vmatpush1.msra.mxu0 0.0
    %6959 = vmatprep.subr.mxu0 0.0
    %6960 = vmatpush1.msra.mxu0 0.0
    %6961 = vmatprep.subr.mxu0 0.0
    %6962 = vmatpush1.msra.mxu0 0.0
    %6963 = vmatprep.subr.mxu0 0.0
    %6964 = vmatpush1.msra.mxu0 0.0
    %6965 = vmatprep.subr.mxu0 0.0
    %6966 = vmatpush1.msra.mxu0 0.0
    %6967 = vmatprep.subr.mxu0 0.0
    %6968 = vmatpush1.msra.mxu0 0.0
    %6969 = vmatprep.subr.mxu0 0.0
    %6970 = vmatpush1.msra.mxu0 0.0
    %6971 = vmatprep.subr.mxu0 0.0
    %6972 = vmatpush1.msra.mxu0 0.0
    %6973 = vmatprep.subr.mxu0 0.0
    %6974 = vmatpush1.msra.mxu0 0.0
    %6975 = vmatprep.subr.mxu0 0.0
    %6976 = vmatpush1.msra.mxu0 0.0
    %6977 = vmatprep.subr.mxu0 0.0
    %6978 = vmatpush1.msra.mxu0 0.0
    %6979 = vmatprep.subr.mxu0 0.0
    %6980 = vmatpush1.msra.mxu0 0.0
    %6981 = vmatprep.subr.mxu0 0.0
    %6982 = vmatpush1.msra.mxu0 0.0
    %6983 = vmatprep.subr.mxu0 0.0
    %6984 = vmatpush1.msra.mxu0 0.0
    %6985 = vmatprep.subr.mxu0 0.0
    %6986 = vmatpush1.msra.mxu0 0.0
    %6987 = vmatprep.mubr.f32.mxu0 0.0
    %6988 = vmatmul.mubr.f32.gmra.mrb[0].mxu0 %v6623
    %v6989 = vpop.f32.mrb[0].mxu0
    %v6990 = vadd.f32 %v6849, %v6989
    %v6991 = vpop.f32.mrb[0].mxu0
    %v6992 = vadd.f32 %v6851, %v6991
    %6993 = vdwg.mxu0
    %6994 = vmatprep.subr.mxu0 0.0
    %6995 = vmatpush1.msra.mxu0 %v4509
    %6996 = vmatprep.subr.mxu0 0.0
    %6997 = vmatpush1.msra.mxu0 %v4512
    %6998 = vmatprep.subr.mxu0 0.0
    %6999 = vmatpush1.msra.mxu0 %v4515
    %7000 = vmatprep.subr.mxu0 0.0
    %7001 = vmatpush1.msra.mxu0 %v4518
    %7002 = vmatprep.subr.mxu0 0.0
    %7003 = vmatpush1.msra.mxu0 %v4521
    %7004 = vmatprep.subr.mxu0 0.0
    %7005 = vmatpush1.msra.mxu0 %v4524
    %7006 = vmatprep.subr.mxu0 0.0
    %7007 = vmatpush1.msra.mxu0 %v4527
    %7008 = vmatprep.subr.mxu0 0.0
    %7009 = vmatpush1.msra.mxu0 %v4530
    %7010 = vmatprep.subr.mxu0 0.0
    %7011 = vmatpush1.msra.mxu0 %v4533
    %7012 = vmatprep.subr.mxu0 0.0
    %7013 = vmatpush1.msra.mxu0 %v4536
    %7014 = vmatprep.subr.mxu0 0.0
    %7015 = vmatpush1.msra.mxu0 %v4539
    %7016 = vmatprep.subr.mxu0 0.0
    %7017 = vmatpush1.msra.mxu0 %v4542
    %7018 = vmatprep.subr.mxu0 0.0
    %7019 = vmatpush1.msra.mxu0 %v4545
    %7020 = vmatprep.subr.mxu0 0.0
    %7021 = vmatpush1.msra.mxu0 %v4548
    %7022 = vmatprep.subr.mxu0 0.0
    %7023 = vmatpush1.msra.mxu0 %v4551
    %7024 = vmatprep.subr.mxu0 0.0
    %7025 = vmatpush1.msra.mxu0 %v4554
    %7026 = vmatprep.subr.mxu0 0.0
    %7027 = vmatpush1.msra.mxu0 0.0
    %7028 = vmatprep.subr.mxu0 0.0
    %7029 = vmatpush1.msra.mxu0 0.0
    %7030 = vmatprep.subr.mxu0 0.0
    %7031 = vmatpush1.msra.mxu0 0.0
    %7032 = vmatprep.subr.mxu0 0.0
    %7033 = vmatpush1.msra.mxu0 0.0
    %7034 = vmatprep.subr.mxu0 0.0
    %7035 = vmatpush1.msra.mxu0 0.0
    %7036 = vmatprep.subr.mxu0 0.0
    %7037 = vmatpush1.msra.mxu0 0.0
    %7038 = vmatprep.subr.mxu0 0.0
    %7039 = vmatpush1.msra.mxu0 0.0
    %7040 = vmatprep.subr.mxu0 0.0
    %7041 = vmatpush1.msra.mxu0 0.0
    %7042 = vmatprep.subr.mxu0 0.0
    %7043 = vmatpush1.msra.mxu0 0.0
    %7044 = vmatprep.subr.mxu0 0.0
    %7045 = vmatpush1.msra.mxu0 0.0
    %7046 = vmatprep.subr.mxu0 0.0
    %7047 = vmatpush1.msra.mxu0 0.0
    %7048 = vmatprep.subr.mxu0 0.0
    %7049 = vmatpush1.msra.mxu0 0.0
    %7050 = vmatprep.subr.mxu0 0.0
    %7051 = vmatpush1.msra.mxu0 0.0
    %7052 = vmatprep.subr.mxu0 0.0
    %7053 = vmatpush1.msra.mxu0 0.0
    %7054 = vmatprep.subr.mxu0 0.0
    %7055 = vmatpush1.msra.mxu0 0.0
    %7056 = vmatprep.subr.mxu0 0.0
    %7057 = vmatpush1.msra.mxu0 0.0
    %7058 = vmatprep.mubr.f32.mxu0 0.0
    %7059 = vmatmul.mubr.f32.gmra.mrb[0].mxu0 %v6623
    %v7060 = vpop.f32.mrb[0].mxu0
    %v7061 = vadd.f32 %v6920, %v7060
    %v7062 = vpop.f32.mrb[0].mxu0
    %7063 = vdwg.mxu0
    %7064 = vmatprep.subr.mxu0 0.0
    %7065 = vmatpush1.xpose.msra.mxu0 %v5270
    %7066 = vmatprep.subr.mxu0 0.0
    %7067 = vmatpush1.xpose.msra.mxu0 0.0
    %7068 = vmatprep.subr.mxu0 0.0
    %7069 = vmatpush1.xpose.msra.mxu0 0.0
    %7070 = vmatprep.subr.mxu0 0.0
    %7071 = vmatpush1.xpose.msra.mxu0 0.0
    %7072 = vmatprep.subr.mxu0 0.0
    %7073 = vmatpush1.xpose.msra.mxu0 0.0
    %7074 = vmatprep.subr.mxu0 0.0
    %7075 = vmatpush1.xpose.msra.mxu0 0.0
    %7076 = vmatprep.subr.mxu0 0.0
    %7077 = vmatpush1.xpose.msra.mxu0 0.0
    %7078 = vmatprep.subr.mxu0 0.0
    %7079 = vmatpush1.xpose.msra.mxu0 0.0
    %7080 = vmatprep.subr.mxu0 0.0
    %7081 = vmatpush1.xpose.msra.mxu0 0.0
    %7082 = vmatprep.subr.mxu0 0.0
    %7083 = vmatpush1.xpose.msra.mxu0 0.0
    %7084 = vmatprep.subr.mxu0 0.0
    %7085 = vmatpush1.xpose.msra.mxu0 0.0
    %7086 = vmatprep.subr.mxu0 0.0
    %7087 = vmatpush1.xpose.msra.mxu0 0.0
    %7088 = vmatprep.subr.mxu0 0.0
    %7089 = vmatpush1.xpose.msra.mxu0 0.0
    %7090 = vmatprep.subr.mxu0 0.0
    %7091 = vmatpush1.xpose.msra.mxu0 0.0
    %7092 = vmatprep.subr.mxu0 0.0
    %7093 = vmatpush1.xpose.msra.mxu0 0.0
    %7094 = vmatprep.subr.mxu0 0.0
    %7095 = vmatpush1.xpose.msra.mxu0 0.0
    %7096 = vmatprep.subr.mxu0 0.0
    %7097 = vmatpush1.xpose.msra.mxu0 0.0
    %7098 = vmatprep.subr.mxu0 0.0
    %7099 = vmatpush1.xpose.msra.mxu0 0.0
    %7100 = vmatprep.subr.mxu0 0.0
    %7101 = vmatpush1.xpose.msra.mxu0 0.0
    %7102 = vmatprep.subr.mxu0 0.0
    %7103 = vmatpush1.xpose.msra.mxu0 0.0
    %7104 = vmatprep.subr.mxu0 0.0
    %7105 = vmatpush1.xpose.msra.mxu0 0.0
    %7106 = vmatprep.subr.mxu0 0.0
    %7107 = vmatpush1.xpose.msra.mxu0 0.0
    %7108 = vmatprep.subr.mxu0 0.0
    %7109 = vmatpush1.xpose.msra.mxu0 0.0
    %7110 = vmatprep.subr.mxu0 0.0
    %7111 = vmatpush1.xpose.msra.mxu0 0.0
    %7112 = vmatprep.subr.mxu0 0.0
    %7113 = vmatpush1.xpose.msra.mxu0 0.0
    %7114 = vmatprep.subr.mxu0 0.0
    %7115 = vmatpush1.xpose.msra.mxu0 0.0
    %7116 = vmatprep.subr.mxu0 0.0
    %7117 = vmatpush1.xpose.msra.mxu0 0.0
    %7118 = vmatprep.subr.mxu0 0.0
    %7119 = vmatpush1.xpose.msra.mxu0 0.0
    %7120 = vmatprep.subr.mxu0 0.0
    %7121 = vmatpush1.xpose.msra.mxu0 0.0
    %7122 = vmatprep.subr.mxu0 0.0
    %7123 = vmatpush1.xpose.msra.mxu0 0.0
    %7124 = vmatprep.subr.mxu0 0.0
    %7125 = vmatpush1.xpose.msra.mxu0 0.0
    %7126 = vmatprep.subr.mxu0 0.0
    %7127 = vmatpush1.xpose.msra.mxu0 0.0
    %7128 = vmatprep.mubr.f32.mxu0 0.0
    %7129 = vmatmul.mubr.f32.gmra.mrb[0].mxu0 %v5114
    %v7130 = vpop.f32.mrb[0].mxu0
    %v7131 = vadd.f32 0.0, %v7130
    %v7132 = vpop.f32.mrb[0].mxu0
    %7133 = vdwg.mxu0
    %v7134 = vmul.f32 %v7131, 0.088388346
    %v7135 = vadd.f32 %v7134, %v241
    %v7136 = vsel %vm1814, %v7135, -inf
    %7137 = vmax.xlane.f32.xlu0 %v7136
    %v7138 = vpop.xlane.xlu0 %7137
    %v7139 = vsub.f32 %v7135, %v7138
    %v7140 = vmul.f32 %v7139, 1.442695
    %v7141 = vpow.pop %v7140
    %v7142 = vsel %vm1814, %v7141, 0.0
    %7143 = vadd.xlane.f32.xlu0 %v7142
    %v7144 = vpop.xlane.xlu0 %7143
    %v7145 = vrcp.pop %v7144
    %v7146 = vmul.f32 %v7141, %v7145
    %v7148 = vsel %vm1814, %v7146, 0
    %7150 = vmatprep.subr.mxu0 0.0
    %7151 = vmatpush1.msra.mxu0 %v5573
    %7152 = vmatprep.subr.mxu0 0.0
    %7153 = vmatpush1.msra.mxu0 0.0
    %7154 = vmatprep.subr.mxu0 0.0
    %7155 = vmatpush1.msra.mxu0 0.0
    %7156 = vmatprep.subr.mxu0 0.0
    %7157 = vmatpush1.msra.mxu0 0.0
    %7158 = vmatprep.subr.mxu0 0.0
    %7159 = vmatpush1.msra.mxu0 0.0
    %7160 = vmatprep.subr.mxu0 0.0
    %7161 = vmatpush1.msra.mxu0 0.0
    %7162 = vmatprep.subr.mxu0 0.0
    %7163 = vmatpush1.msra.mxu0 0.0
    %7164 = vmatprep.subr.mxu0 0.0
    %7165 = vmatpush1.msra.mxu0 0.0
    %7166 = vmatprep.subr.mxu0 0.0
    %7167 = vmatpush1.msra.mxu0 0.0
    %7168 = vmatprep.subr.mxu0 0.0
    %7169 = vmatpush1.msra.mxu0 0.0
    %7170 = vmatprep.subr.mxu0 0.0
    %7171 = vmatpush1.msra.mxu0 0.0
    %7172 = vmatprep.subr.mxu0 0.0
    %7173 = vmatpush1.msra.mxu0 0.0
    %7174 = vmatprep.subr.mxu0 0.0
    %7175 = vmatpush1.msra.mxu0 0.0
    %7176 = vmatprep.subr.mxu0 0.0
    %7177 = vmatpush1.msra.mxu0 0.0
    %7178 = vmatprep.subr.mxu0 0.0
    %7179 = vmatpush1.msra.mxu0 0.0
    %7180 = vmatprep.subr.mxu0 0.0
    %7181 = vmatpush1.msra.mxu0 0.0
    %7182 = vmatprep.subr.mxu0 0.0
    %7183 = vmatpush1.msra.mxu0 0.0
    %7184 = vmatprep.subr.mxu0 0.0
    %7185 = vmatpush1.msra.mxu0 0.0
    %7186 = vmatprep.subr.mxu0 0.0
    %7187 = vmatpush1.msra.mxu0 0.0
    %7188 = vmatprep.subr.mxu0 0.0
    %7189 = vmatpush1.msra.mxu0 0.0
    %7190 = vmatprep.subr.mxu0 0.0
    %7191 = vmatpush1.msra.mxu0 0.0
    %7192 = vmatprep.subr.mxu0 0.0
    %7193 = vmatpush1.msra.mxu0 0.0
    %7194 = vmatprep.subr.mxu0 0.0
    %7195 = vmatpush1.msra.mxu0 0.0
    %7196 = vmatprep.subr.mxu0 0.0
    %7197 = vmatpush1.msra.mxu0 0.0
    %7198 = vmatprep.subr.mxu0 0.0
    %7199 = vmatpush1.msra.mxu0 0.0
    %7200 = vmatprep.subr.mxu0 0.0
    %7201 = vmatpush1.msra.mxu0 0.0
    %7202 = vmatprep.subr.mxu0 0.0
    %7203 = vmatpush1.msra.mxu0 0.0
    %7204 = vmatprep.subr.mxu0 0.0
    %7205 = vmatpush1.msra.mxu0 0.0
    %7206 = vmatprep.subr.mxu0 0.0
    %7207 = vmatpush1.msra.mxu0 0.0
    %7208 = vmatprep.subr.mxu0 0.0
    %7209 = vmatpush1.msra.mxu0 0.0
    %7210 = vmatprep.subr.mxu0 0.0
    %7211 = vmatpush1.msra.mxu0 0.0
    %7212 = vmatprep.subr.mxu0 0.0
    %7213 = vmatpush1.msra.mxu0 0.0
    %7214 = vmatprep.mubr.f32.mxu0 0.0
    %7215 = vmatmul.mubr.f32.gmra.mrb[0].mxu0 %v7148
    %v7216 = vpop.f32.mrb[0].mxu0
    %v7217 = vadd.f32 0.0, %v7216
    %v7218 = vpop.f32.mrb[0].mxu0
    %7219 = vdwg.mxu0
    %7220 = vmatprep.subr.mxu0 %v4604
    %7221 = vmatpush1.msra.mxu0 %v4603
    %7222 = vmatprep.subr.mxu0 %v4607
    %7223 = vmatpush1.msra.mxu0 %v4606
    %7224 = vmatprep.subr.mxu0 %v4610
    %7225 = vmatpush1.msra.mxu0 %v4609
    %7226 = vmatprep.subr.mxu0 %v4613
    %7227 = vmatpush1.msra.mxu0 %v4612
    %7228 = vmatprep.subr.mxu0 %v4616
    %7229 = vmatpush1.msra.mxu0 %v4615
    %7230 = vmatprep.subr.mxu0 %v4619
    %7231 = vmatpush1.msra.mxu0 %v4618
    %7232 = vmatprep.subr.mxu0 %v4622
    %7233 = vmatpush1.msra.mxu0 %v4621
    %7234 = vmatprep.subr.mxu0 %v4625
    %7235 = vmatpush1.msra.mxu0 %v4624
    %7236 = vmatprep.subr.mxu0 %v4628
    %7237 = vmatpush1.msra.mxu0 %v4627
    %7238 = vmatprep.subr.mxu0 %v4631
    %7239 = vmatpush1.msra.mxu0 %v4630
    %7240 = vmatprep.subr.mxu0 %v4634
    %7241 = vmatpush1.msra.mxu0 %v4633
    %7242 = vmatprep.subr.mxu0 %v4637
    %7243 = vmatpush1.msra.mxu0 %v4636
    %7244 = vmatprep.subr.mxu0 %v4640
    %7245 = vmatpush1.msra.mxu0 %v4639
    %7246 = vmatprep.subr.mxu0 %v4643
    %7247 = vmatpush1.msra.mxu0 %v4642
    %7248 = vmatprep.subr.mxu0 %v4646
    %7249 = vmatpush1.msra.mxu0 %v4645
    %7250 = vmatprep.subr.mxu0 %v4649
    %7251 = vmatpush1.msra.mxu0 %v4648
    %7252 = vmatprep.subr.mxu0 0.0
    %7253 = vmatpush1.msra.mxu0 0.0
    %7254 = vmatprep.subr.mxu0 0.0
    %7255 = vmatpush1.msra.mxu0 0.0
    %7256 = vmatprep.subr.mxu0 0.0
    %7257 = vmatpush1.msra.mxu0 0.0
    %7258 = vmatprep.subr.mxu0 0.0
    %7259 = vmatpush1.msra.mxu0 0.0
    %7260 = vmatprep.subr.mxu0 0.0
    %7261 = vmatpush1.msra.mxu0 0.0
    %7262 = vmatprep.subr.mxu0 0.0
    %7263 = vmatpush1.msra.mxu0 0.0
    %7264 = vmatprep.subr.mxu0 0.0
    %7265 = vmatpush1.msra.mxu0 0.0
    %7266 = vmatprep.subr.mxu0 0.0
    %7267 = vmatpush1.msra.mxu0 0.0
    %7268 = vmatprep.subr.mxu0 0.0
    %7269 = vmatpush1.msra.mxu0 0.0
    %7270 = vmatprep.subr.mxu0 0.0
    %7271 = vmatpush1.msra.mxu0 0.0
    %7272 = vmatprep.subr.mxu0 0.0
    %7273 = vmatpush1.msra.mxu0 0.0
    %7274 = vmatprep.subr.mxu0 0.0
    %7275 = vmatpush1.msra.mxu0 0.0
    %7276 = vmatprep.subr.mxu0 0.0
    %7277 = vmatpush1.msra.mxu0 0.0
    %7278 = vmatprep.subr.mxu0 0.0
    %7279 = vmatpush1.msra.mxu0 0.0
    %7280 = vmatprep.subr.mxu0 0.0
    %7281 = vmatpush1.msra.mxu0 0.0
    %7282 = vmatprep.subr.mxu0 0.0
    %7283 = vmatpush1.msra.mxu0 0.0
    %7284 = vmatprep.mubr.f32.mxu0 0.0
    %7285 = vmatmul.mubr.f32.gmra.mrb[0].mxu0 %v7217
    %v7286 = vpop.f32.mrb[0].mxu0
    %v7287 = vadd.f32 0.0, %v7286
    %v7288 = vpop.f32.mrb[0].mxu0
    %v7289 = vadd.f32 0.0, %v7288
    %7290 = vdwg.mxu0
    %7291 = vmatprep.subr.mxu0 0.0
    %7292 = vmatpush1.msra.mxu0 %v4605
    %7293 = vmatprep.subr.mxu0 0.0
    %7294 = vmatpush1.msra.mxu0 %v4608
    %7295 = vmatprep.subr.mxu0 0.0
    %7296 = vmatpush1.msra.mxu0 %v4611
    %7297 = vmatprep.subr.mxu0 0.0
    %7298 = vmatpush1.msra.mxu0 %v4614
    %7299 = vmatprep.subr.mxu0 0.0
    %7300 = vmatpush1.msra.mxu0 %v4617
    %7301 = vmatprep.subr.mxu0 0.0
    %7302 = vmatpush1.msra.mxu0 %v4620
    %7303 = vmatprep.subr.mxu0 0.0
    %7304 = vmatpush1.msra.mxu0 %v4623
    %7305 = vmatprep.subr.mxu0 0.0
    %7306 = vmatpush1.msra.mxu0 %v4626
    %7307 = vmatprep.subr.mxu0 0.0
    %7308 = vmatpush1.msra.mxu0 %v4629
    %7309 = vmatprep.subr.mxu0 0.0
    %7310 = vmatpush1.msra.mxu0 %v4632
    %7311 = vmatprep.subr.mxu0 0.0
    %7312 = vmatpush1.msra.mxu0 %v4635
    %7313 = vmatprep.subr.mxu0 0.0
    %7314 = vmatpush1.msra.mxu0 %v4638
    %7315 = vmatprep.subr.mxu0 0.0
    %7316 = vmatpush1.msra.mxu0 %v4641
    %7317 = vmatprep.subr.mxu0 0.0
    %7318 = vmatpush1.msra.mxu0 %v4644
    %7319 = vmatprep.subr.mxu0 0.0
    %7320 = vmatpush1.msra.mxu0 %v4647
    %7321 = vmatprep.subr.mxu0 0.0
    %7322 = vmatpush1.msra.mxu0 %v4650
    %7323 = vmatprep.subr.mxu0 0.0
    %7324 = vmatpush1.msra.mxu0 0.0
    %7325 = vmatprep.subr.mxu0 0.0
    %7326 = vmatpush1.msra.mxu0 0.0
    %7327 = vmatprep.subr.mxu0 0.0
    %7328 = vmatpush1.msra.mxu0 0.0
    %7329 = vmatprep.subr.mxu0 0.0
    %7330 = vmatpush1.msra.mxu0 0.0
    %7331 = vmatprep.subr.mxu0 0.0
    %7332 = vmatpush1.msra.mxu0 0.0
    %7333 = vmatprep.subr.mxu0 0.0
    %7334 = vmatpush1.msra.mxu0 0.0
    %7335 = vmatprep.subr.mxu0 0.0
    %7336 = vmatpush1.msra.mxu0 0.0
    %7337 = vmatprep.subr.mxu0 0.0
    %7338 = vmatpush1.msra.mxu0 0.0
    %7339 = vmatprep.subr.mxu0 0.0
    %7340 = vmatpush1.msra.mxu0 0.0
    %7341 = vmatprep.subr.mxu0 0.0
    %7342 = vmatpush1.msra.mxu0 0.0
    %7343 = vmatprep.subr.mxu0 0.0
    %7344 = vmatpush1.msra.mxu0 0.0
    %7345 = vmatprep.subr.mxu0 0.0
    %7346 = vmatpush1.msra.mxu0 0.0
    %7347 = vmatprep.subr.mxu0 0.0
    %7348 = vmatpush1.msra.mxu0 0.0
    %7349 = vmatprep.subr.mxu0 0.0
    %7350 = vmatpush1.msra.mxu0 0.0
    %7351 = vmatprep.subr.mxu0 0.0
    %7352 = vmatpush1.msra.mxu0 0.0
    %7353 = vmatprep.subr.mxu0 0.0
    %7354 = vmatpush1.msra.mxu0 0.0
    %7355 = vmatprep.mubr.f32.mxu0 0.0
    %7356 = vmatmul.mubr.f32.gmra.mrb[0].mxu0 %v7217
    %v7357 = vpop.f32.mrb[0].mxu0
    %v7358 = vadd.f32 0.0, %v7357
    %v7359 = vpop.f32.mrb[0].mxu0
    %7360 = vdwg.mxu0
    %v7361 = vadd.f32 %v6990, %v7287
    %v7362 = vadd.f32 %v6992, %v7289
    %v7363 = vadd.f32 %v7061, %v7358
    %v7365 = vlaneseq
    %v7366 = vshrl.u32 %v7365, 7
    %v7367 = vsub.s32 0, %v7366
    %v7368 = vrot.slane %v4652, %v7367
    %v7369 = vlaneseq
    %v7370 = vshrl.u32 %v7369, 7
    %v7371 = vsub.s32 1, %v7370
    %v7372 = vrot.slane %v4652, %v7371
    %v7373 = vlaneseq
    %v7374 = vshrl.u32 %v7373, 7
    %v7375 = vsub.s32 2, %v7374
    %v7376 = vrot.slane %v4652, %v7375
    %v7380 = vadd.f32 %v6467, %v7368
    %v7381 = vadd.f32 %v6468, %v7372
    %v7382 = vadd.f32 %v6469, %v7376
    %v7383 = vadd.f32 %v7361, %v7368
    %v7384 = vadd.f32 %v7362, %v7372
    %v7385 = vadd.f32 %v7363, %v7376
    %v7386 = vadd.f32 %v4064, %v7380
    %v7387 = vadd.f32 %v4065, %v7381
    %v7388 = vadd.f32 %v4066, %v7382
    %v7389 = vadd.f32 %v4067, %v7383
    %v7390 = vadd.f32 %v4068, %v7384
    %v7391 = vadd.f32 %v4069, %v7385
    %v7392 = vadd.f32 %v7386, %v7387
    %v7393 = vadd.f32 %v7392, %v7388
    %7394 = vadd.xlane.f32.xlu0 %v7393
    %v7395 = vpop.xlane.xlu0 %7394
    %v7396 = vadd.f32 %v7389, %v7390
    %v7397 = vadd.f32 %v7396, %v7391
    %7398 = vadd.xlane.f32.xlu0 %v7397
    %v7399 = vpop.xlane.xlu0 %7398
    %v7400 = vmul.f32 %v7395, %v3567
    %v7401 = vmul.f32 %v7399, %v3567
    %v7402 = vsub.f32 %v7386, %v7400
    %v7403 = vsub.f32 %v7387, %v7400
    %v7404 = vsub.f32 %v7388, %v7400
    %v7405 = vsub.f32 %v7389, %v7401
    %v7406 = vsub.f32 %v7390, %v7401
    %v7407 = vsub.f32 %v7391, %v7401
    %v7408 = vmul.f32 %v7402, %v7402
    %v7409 = vmul.f32 %v7403, %v7403
    %v7410 = vmul.f32 %v7404, %v7404
    %v7411 = vmul.f32 %v7405, %v7405
    %v7412 = vmul.f32 %v7406, %v7406
    %v7413 = vmul.f32 %v7407, %v7407
    %v7414 = vadd.f32 %v7408, %v7409
    %v7415 = vadd.f32 %v7414, %v7410
    %7416 = vadd.xlane.f32.xlu0 %v7415
    %v7417 = vpop.xlane.xlu0 %7416
    %v7418 = vadd.f32 %v7411, %v7412
    %v7419 = vadd.f32 %v7418, %v7413
    %7420 = vadd.xlane.f32.xlu0 %v7419
    %v7421 = vpop.xlane.xlu0 %7420
    %v7422 = vmul.f32 %v7417, %v3567
    %v7423 = vmul.f32 %v7421, %v3567
    %v7424 = vadd.f32 %v7422, 1e-05
    %v7425 = vadd.f32 %v7423, 1e-05
    %v7426 = vrsqrt.pop %v7424
    %v7427 = vrsqrt.pop %v7425
    %v7428 = vmul.f32 %v7402, %v7426
    %v7429 = vmul.f32 %v7403, %v7426
    %v7430 = vmul.f32 %v7404, %v7426
    %v7431 = vmul.f32 %v7405, %v7427
    %v7432 = vmul.f32 %v7406, %v7427
    %v7433 = vmul.f32 %v7407, %v7427
    %v7435 = vlaneseq
    %v7436 = vshrl.u32 %v7435, 7
    %v7437 = vsub.s32 0, %v7436
    %v7438 = vrot.slane %v4654, %v7437
    %v7439 = vlaneseq
    %v7440 = vshrl.u32 %v7439, 7
    %v7441 = vsub.s32 1, %v7440
    %v7442 = vrot.slane %v4654, %v7441
    %v7443 = vlaneseq
    %v7444 = vshrl.u32 %v7443, 7
    %v7445 = vsub.s32 2, %v7444
    %v7446 = vrot.slane %v4654, %v7445
    %v7450 = vmul.f32 %v7428, %v7438
    %v7451 = vmul.f32 %v7429, %v7442
    %v7452 = vmul.f32 %v7430, %v7446
    %v7453 = vmul.f32 %v7431, %v7438
    %v7454 = vmul.f32 %v7432, %v7442
    %v7455 = vmul.f32 %v7433, %v7446
    %v7457 = vlaneseq
    %v7458 = vshrl.u32 %v7457, 7
    %v7459 = vsub.s32 0, %v7458
    %v7460 = vrot.slane %v4656, %v7459
    %v7461 = vlaneseq
    %v7462 = vshrl.u32 %v7461, 7
    %v7463 = vsub.s32 1, %v7462
    %v7464 = vrot.slane %v4656, %v7463
    %v7465 = vlaneseq
    %v7466 = vshrl.u32 %v7465, 7
    %v7467 = vsub.s32 2, %v7466
    %v7468 = vrot.slane %v4656, %v7467
    %v7472 = vadd.f32 %v7450, %v7460
    %v7473 = vadd.f32 %v7451, %v7464
    %v7474 = vadd.f32 %v7452, %v7468
    %v7475 = vadd.f32 %v7453, %v7460
    %v7476 = vadd.f32 %v7454, %v7464
    %v7477 = vadd.f32 %v7455, %v7468
    %v7479 = vlaneseq
    %v7480 = vshrl.u32 %v7479, 7
    %v7481 = vsub.s32 0, %v7480
    %v7482 = vrot.slane %v4707, %v7481
    %7484 = vmatprep.subr.mxu0 0.0
    %7485 = vmatpush1.msra.mxu0 %v4658
    %7486 = vmatprep.subr.mxu0 0.0
    %7487 = vmatpush1.msra.mxu0 %v4659
    %7488 = vmatprep.subr.mxu0 0.0
    %7489 = vmatpush1.msra.mxu0 %v4660
    %7490 = vmatprep.subr.mxu0 0.0
    %7491 = vmatpush1.msra.mxu0 %v4661
    %7492 = vmatprep.subr.mxu0 0.0
    %7493 = vmatpush1.msra.mxu0 %v4662
    %7494 = vmatprep.subr.mxu0 0.0
    %7495 = vmatpush1.msra.mxu0 %v4663
    %7496 = vmatprep.subr.mxu0 0.0
    %7497 = vmatpush1.msra.mxu0 %v4664
    %7498 = vmatprep.subr.mxu0 0.0
    %7499 = vmatpush1.msra.mxu0 %v4665
    %7500 = vmatprep.subr.mxu0 0.0
    %7501 = vmatpush1.msra.mxu0 %v4666
    %7502 = vmatprep.subr.mxu0 0.0
    %7503 = vmatpush1.msra.mxu0 %v4667
    %7504 = vmatprep.subr.mxu0 0.0
    %7505 = vmatpush1.msra.mxu0 %v4668
    %7506 = vmatprep.subr.mxu0 0.0
    %7507 = vmatpush1.msra.mxu0 %v4669
    %7508 = vmatprep.subr.mxu0 0.0
    %7509 = vmatpush1.msra.mxu0 %v4670
    %7510 = vmatprep.subr.mxu0 0.0
    %7511 = vmatpush1.msra.mxu0 %v4671
    %7512 = vmatprep.subr.mxu0 0.0
    %7513 = vmatpush1.msra.mxu0 %v4672
    %7514 = vmatprep.subr.mxu0 0.0
    %7515 = vmatpush1.msra.mxu0 %v4673
    %7516 = vmatprep.subr.mxu0 0.0
    %7517 = vmatpush1.msra.mxu0 %v4674
    %7518 = vmatprep.subr.mxu0 0.0
    %7519 = vmatpush1.msra.mxu0 %v4675
    %7520 = vmatprep.subr.mxu0 0.0
    %7521 = vmatpush1.msra.mxu0 %v4676
    %7522 = vmatprep.subr.mxu0 0.0
    %7523 = vmatpush1.msra.mxu0 %v4677
    %7524 = vmatprep.subr.mxu0 0.0
    %7525 = vmatpush1.msra.mxu0 %v4678
    %7526 = vmatprep.subr.mxu0 0.0
    %7527 = vmatpush1.msra.mxu0 %v4679
    %7528 = vmatprep.subr.mxu0 0.0
    %7529 = vmatpush1.msra.mxu0 %v4680
    %7530 = vmatprep.subr.mxu0 0.0
    %7531 = vmatpush1.msra.mxu0 %v4681
    %7532 = vmatprep.subr.mxu0 0.0
    %7533 = vmatpush1.msra.mxu0 %v4682
    %7534 = vmatprep.subr.mxu0 0.0
    %7535 = vmatpush1.msra.mxu0 %v4683
    %7536 = vmatprep.subr.mxu0 0.0
    %7537 = vmatpush1.msra.mxu0 %v4684
    %7538 = vmatprep.subr.mxu0 0.0
    %7539 = vmatpush1.msra.mxu0 %v4685
    %7540 = vmatprep.subr.mxu0 0.0
    %7541 = vmatpush1.msra.mxu0 %v4686
    %7542 = vmatprep.subr.mxu0 0.0
    %7543 = vmatpush1.msra.mxu0 %v4687
    %7544 = vmatprep.subr.mxu0 0.0
    %7545 = vmatpush1.msra.mxu0 %v4688
    %7546 = vmatprep.subr.mxu0 0.0
    %7547 = vmatpush1.msra.mxu0 %v4689
    %7548 = vmatprep.mubr.f32.mxu0 %v7473
    %7549 = vmatmul.mubr.f32.gmra.mrb[0].mxu0 %v7472
    %v7550 = vpop.f32.mrb[0].mxu0
    %v7551 = vadd.f32 %v7482, %v7550
    %v7552 = vpop.f32.mrb[0].mxu0
    %7553 = vmatprep.mubr.f32.mxu0 %v7476
    %7554 = vmatmul.mubr.f32.gmra.mrb[0].mxu0 %v7475
    %v7555 = vpop.f32.mrb[0].mxu0
    %v7556 = vadd.f32 %v7482, %v7555
    %v7557 = vpop.f32.mrb[0].mxu0
    %7558 = vdwg.mxu0
    %7559 = vmatprep.subr.mxu0 0.0
    %7560 = vmatpush1.msra.mxu0 %v4690
    %7561 = vmatprep.subr.mxu0 0.0
    %7562 = vmatpush1.msra.mxu0 %v4691
    %7563 = vmatprep.subr.mxu0 0.0
    %7564 = vmatpush1.msra.mxu0 %v4692
    %7565 = vmatprep.subr.mxu0 0.0
    %7566 = vmatpush1.msra.mxu0 %v4693
    %7567 = vmatprep.subr.mxu0 0.0
    %7568 = vmatpush1.msra.mxu0 %v4694
    %7569 = vmatprep.subr.mxu0 0.0
    %7570 = vmatpush1.msra.mxu0 %v4695
    %7571 = vmatprep.subr.mxu0 0.0
    %7572 = vmatpush1.msra.mxu0 %v4696
    %7573 = vmatprep.subr.mxu0 0.0
    %7574 = vmatpush1.msra.mxu0 %v4697
    %7575 = vmatprep.subr.mxu0 0.0
    %7576 = vmatpush1.msra.mxu0 %v4698
    %7577 = vmatprep.subr.mxu0 0.0
    %7578 = vmatpush1.msra.mxu0 %v4699
    %7579 = vmatprep.subr.mxu0 0.0
    %7580 = vmatpush1.msra.mxu0 %v4700
    %7581 = vmatprep.subr.mxu0 0.0
    %7582 = vmatpush1.msra.mxu0 %v4701
    %7583 = vmatprep.subr.mxu0 0.0
    %7584 = vmatpush1.msra.mxu0 %v4702
    %7585 = vmatprep.subr.mxu0 0.0
    %7586 = vmatpush1.msra.mxu0 %v4703
    %7587 = vmatprep.subr.mxu0 0.0
    %7588 = vmatpush1.msra.mxu0 %v4704
    %7589 = vmatprep.subr.mxu0 0.0
    %7590 = vmatpush1.msra.mxu0 %v4705
    %7591 = vmatprep.subr.mxu0 0.0
    %7592 = vmatpush1.msra.mxu0 0.0
    %7593 = vmatprep.subr.mxu0 0.0
    %7594 = vmatpush1.msra.mxu0 0.0
    %7595 = vmatprep.subr.mxu0 0.0
    %7596 = vmatpush1.msra.mxu0 0.0
    %7597 = vmatprep.subr.mxu0 0.0
    %7598 = vmatpush1.msra.mxu0 0.0
    %7599 = vmatprep.subr.mxu0 0.0
    %7600 = vmatpush1.msra.mxu0 0.0
    %7601 = vmatprep.subr.mxu0 0.0
    %7602 = vmatpush1.msra.mxu0 0.0
    %7603 = vmatprep.subr.mxu0 0.0
    %7604 = vmatpush1.msra.mxu0 0.0
    %7605 = vmatprep.subr.mxu0 0.0
    %7606 = vmatpush1.msra.mxu0 0.0
    %7607 = vmatprep.subr.mxu0 0.0
    %7608 = vmatpush1.msra.mxu0 0.0
    %7609 = vmatprep.subr.mxu0 0.0
    %7610 = vmatpush1.msra.mxu0 0.0
    %7611 = vmatprep.subr.mxu0 0.0
    %7612 = vmatpush1.msra.mxu0 0.0
    %7613 = vmatprep.subr.mxu0 0.0
    %7614 = vmatpush1.msra.mxu0 0.0
    %7615 = vmatprep.subr.mxu0 0.0
    %7616 = vmatpush1.msra.mxu0 0.0
    %7617 = vmatprep.subr.mxu0 0.0
    %7618 = vmatpush1.msra.mxu0 0.0
    %7619 = vmatprep.subr.mxu0 0.0
    %7620 = vmatpush1.msra.mxu0 0.0
    %7621 = vmatprep.subr.mxu0 0.0
    %7622 = vmatpush1.msra.mxu0 0.0
    %7623 = vmatprep.mubr.f32.mxu0 0.0
    %7624 = vmatmul.mubr.f32.gmra.mrb[0].mxu0 %v7474
    %v7625 = vpop.f32.mrb[0].mxu0
    %v7626 = vadd.f32 %v7551, %v7625
    %v7627 = vpop.f32.mrb[0].mxu0
    %7628 = vmatprep.mubr.f32.mxu0 0.0
    %7629 = vmatmul.mubr.f32.gmra.mrb[0].mxu0 %v7477
    %v7630 = vpop.f32.mrb[0].mxu0
    %v7631 = vadd.f32 %v7556, %v7630
    %v7632 = vpop.f32.mrb[0].mxu0
    %7633 = vdwg.mxu0
    %v7634 = vmax.f32 %v7626, 0.0
    %v7635 = vmax.f32 %v7631, 0.0
    %v7637 = vlaneseq
    %v7638 = vshrl.u32 %v7637, 7
    %v7639 = vsub.s32 0, %v7638
    %v7640 = vrot.slane %v4758, %v7639
    %v7641 = vlaneseq
    %v7642 = vshrl.u32 %v7641, 7
    %v7643 = vsub.s32 1, %v7642
    %v7644 = vrot.slane %v4758, %v7643
    %v7645 = vlaneseq
    %v7646 = vshrl.u32 %v7645, 7
    %v7647 = vsub.s32 2, %v7646
    %v7648 = vrot.slane %v4758, %v7647
    %7652 = vmatprep.subr.mxu0 %v4710
    %7653 = vmatpush1.msra.mxu0 %v4709
    %7654 = vmatprep.subr.mxu0 %v4713
    %7655 = vmatpush1.msra.mxu0 %v4712
    %7656 = vmatprep.subr.mxu0 %v4716
    %7657 = vmatpush1.msra.mxu0 %v4715
    %7658 = vmatprep.subr.mxu0 %v4719
    %7659 = vmatpush1.msra.mxu0 %v4718
    %7660 = vmatprep.subr.mxu0 %v4722
    %7661 = vmatpush1.msra.mxu0 %v4721
    %7662 = vmatprep.subr.mxu0 %v4725
    %7663 = vmatpush1.msra.mxu0 %v4724
    %7664 = vmatprep.subr.mxu0 %v4728
    %7665 = vmatpush1.msra.mxu0 %v4727
    %7666 = vmatprep.subr.mxu0 %v4731
    %7667 = vmatpush1.msra.mxu0 %v4730
    %7668 = vmatprep.subr.mxu0 %v4734
    %7669 = vmatpush1.msra.mxu0 %v4733
    %7670 = vmatprep.subr.mxu0 %v4737
    %7671 = vmatpush1.msra.mxu0 %v4736
    %7672 = vmatprep.subr.mxu0 %v4740
    %7673 = vmatpush1.msra.mxu0 %v4739
    %7674 = vmatprep.subr.mxu0 %v4743
    %7675 = vmatpush1.msra.mxu0 %v4742
    %7676 = vmatprep.subr.mxu0 %v4746
    %7677 = vmatpush1.msra.mxu0 %v4745
    %7678 = vmatprep.subr.mxu0 %v4749
    %7679 = vmatpush1.msra.mxu0 %v4748
    %7680 = vmatprep.subr.mxu0 %v4752
    %7681 = vmatpush1.msra.mxu0 %v4751
    %7682 = vmatprep.subr.mxu0 %v4755
    %7683 = vmatpush1.msra.mxu0 %v4754
    %7684 = vmatprep.subr.mxu0 0.0
    %7685 = vmatpush1.msra.mxu0 0.0
    %7686 = vmatprep.subr.mxu0 0.0
    %7687 = vmatpush1.msra.mxu0 0.0
    %7688 = vmatprep.subr.mxu0 0.0
    %7689 = vmatpush1.msra.mxu0 0.0
    %7690 = vmatprep.subr.mxu0 0.0
    %7691 = vmatpush1.msra.mxu0 0.0
    %7692 = vmatprep.subr.mxu0 0.0
    %7693 = vmatpush1.msra.mxu0 0.0
    %7694 = vmatprep.subr.mxu0 0.0
    %7695 = vmatpush1.msra.mxu0 0.0
    %7696 = vmatprep.subr.mxu0 0.0
    %7697 = vmatpush1.msra.mxu0 0.0
    %7698 = vmatprep.subr.mxu0 0.0
    %7699 = vmatpush1.msra.mxu0 0.0
    %7700 = vmatprep.subr.mxu0 0.0
    %7701 = vmatpush1.msra.mxu0 0.0
    %7702 = vmatprep.subr.mxu0 0.0
    %7703 = vmatpush1.msra.mxu0 0.0
    %7704 = vmatprep.subr.mxu0 0.0
    %7705 = vmatpush1.msra.mxu0 0.0
    %7706 = vmatprep.subr.mxu0 0.0
    %7707 = vmatpush1.msra.mxu0 0.0
    %7708 = vmatprep.subr.mxu0 0.0
    %7709 = vmatpush1.msra.mxu0 0.0
    %7710 = vmatprep.subr.mxu0 0.0
    %7711 = vmatpush1.msra.mxu0 0.0
    %7712 = vmatprep.subr.mxu0 0.0
    %7713 = vmatpush1.msra.mxu0 0.0
    %7714 = vmatprep.subr.mxu0 0.0
    %7715 = vmatpush1.msra.mxu0 0.0
    %7716 = vmatprep.mubr.f32.mxu0 0.0
    %7717 = vmatmul.mubr.f32.gmra.mrb[0].mxu0 %v7634
    %v7718 = vpop.f32.mrb[0].mxu0
    %v7719 = vadd.f32 %v7640, %v7718
    %v7720 = vpop.f32.mrb[0].mxu0
    %v7721 = vadd.f32 %v7644, %v7720
    %7722 = vmatprep.mubr.f32.mxu0 0.0
    %7723 = vmatmul.mubr.f32.gmra.mrb[0].mxu0 %v7635
    %v7724 = vpop.f32.mrb[0].mxu0
    %v7725 = vadd.f32 %v7640, %v7724
    %v7726 = vpop.f32.mrb[0].mxu0
    %v7727 = vadd.f32 %v7644, %v7726
    %7728 = vdwg.mxu0
    %7729 = vmatprep.subr.mxu0 0.0
    %7730 = vmatpush1.msra.mxu0 %v4711
    %7731 = vmatprep.subr.mxu0 0.0
    %7732 = vmatpush1.msra.mxu0 %v4714
    %7733 = vmatprep.subr.mxu0 0.0
    %7734 = vmatpush1.msra.mxu0 %v4717
    %7735 = vmatprep.subr.mxu0 0.0
    %7736 = vmatpush1.msra.mxu0 %v4720
    %7737 = vmatprep.subr.mxu0 0.0
    %7738 = vmatpush1.msra.mxu0 %v4723
    %7739 = vmatprep.subr.mxu0 0.0
    %7740 = vmatpush1.msra.mxu0 %v4726
    %7741 = vmatprep.subr.mxu0 0.0
    %7742 = vmatpush1.msra.mxu0 %v4729
    %7743 = vmatprep.subr.mxu0 0.0
    %7744 = vmatpush1.msra.mxu0 %v4732
    %7745 = vmatprep.subr.mxu0 0.0
    %7746 = vmatpush1.msra.mxu0 %v4735
    %7747 = vmatprep.subr.mxu0 0.0
    %7748 = vmatpush1.msra.mxu0 %v4738
    %7749 = vmatprep.subr.mxu0 0.0
    %7750 = vmatpush1.msra.mxu0 %v4741
    %7751 = vmatprep.subr.mxu0 0.0
    %7752 = vmatpush1.msra.mxu0 %v4744
    %7753 = vmatprep.subr.mxu0 0.0
    %7754 = vmatpush1.msra.mxu0 %v4747
    %7755 = vmatprep.subr.mxu0 0.0
    %7756 = vmatpush1.msra.mxu0 %v4750
    %7757 = vmatprep.subr.mxu0 0.0
    %7758 = vmatpush1.msra.mxu0 %v4753
    %7759 = vmatprep.subr.mxu0 0.0
    %7760 = vmatpush1.msra.mxu0 %v4756
    %7761 = vmatprep.subr.mxu0 0.0
    %7762 = vmatpush1.msra.mxu0 0.0
    %7763 = vmatprep.subr.mxu0 0.0
    %7764 = vmatpush1.msra.mxu0 0.0
    %7765 = vmatprep.subr.mxu0 0.0
    %7766 = vmatpush1.msra.mxu0 0.0
    %7767 = vmatprep.subr.mxu0 0.0
    %7768 = vmatpush1.msra.mxu0 0.0
    %7769 = vmatprep.subr.mxu0 0.0
    %7770 = vmatpush1.msra.mxu0 0.0
    %7771 = vmatprep.subr.mxu0 0.0
    %7772 = vmatpush1.msra.mxu0 0.0
    %7773 = vmatprep.subr.mxu0 0.0
    %7774 = vmatpush1.msra.mxu0 0.0
    %7775 = vmatprep.subr.mxu0 0.0
    %7776 = vmatpush1.msra.mxu0 0.0
    %7777 = vmatprep.subr.mxu0 0.0
    %7778 = vmatpush1.msra.mxu0 0.0
    %7779 = vmatprep.subr.mxu0 0.0
    %7780 = vmatpush1.msra.mxu0 0.0
    %7781 = vmatprep.subr.mxu0 0.0
    %7782 = vmatpush1.msra.mxu0 0.0
    %7783 = vmatprep.subr.mxu0 0.0
    %7784 = vmatpush1.msra.mxu0 0.0
    %7785 = vmatprep.subr.mxu0 0.0
    %7786 = vmatpush1.msra.mxu0 0.0
    %7787 = vmatprep.subr.mxu0 0.0
    %7788 = vmatpush1.msra.mxu0 0.0
    %7789 = vmatprep.subr.mxu0 0.0
    %7790 = vmatpush1.msra.mxu0 0.0
    %7791 = vmatprep.subr.mxu0 0.0
    %7792 = vmatpush1.msra.mxu0 0.0
    %7793 = vmatprep.mubr.f32.mxu0 0.0
    %7794 = vmatmul.mubr.f32.gmra.mrb[0].mxu0 %v7634
    %v7795 = vpop.f32.mrb[0].mxu0
    %v7796 = vadd.f32 %v7648, %v7795
    %v7797 = vpop.f32.mrb[0].mxu0
    %7798 = vmatprep.mubr.f32.mxu0 0.0
    %7799 = vmatmul.mubr.f32.gmra.mrb[0].mxu0 %v7635
    %v7800 = vpop.f32.mrb[0].mxu0
    %v7801 = vadd.f32 %v7648, %v7800
    %v7802 = vpop.f32.mrb[0].mxu0
    %7803 = vdwg.mxu0
    %v7804 = vadd.f32 %v7472, %v7719
    %v7805 = vadd.f32 %v7473, %v7721
    %v7806 = vadd.f32 %v7474, %v7796
    %v7807 = vadd.f32 %v7475, %v7725
    %v7808 = vadd.f32 %v7476, %v7727
    %v7809 = vadd.f32 %v7477, %v7801
    %v7810 = vadd.f32 %v7804, %v7805
    %v7811 = vadd.f32 %v7810, %v7806
    %7812 = vadd.xlane.f32.xlu0 %v7811
    %v7813 = vpop.xlane.xlu0 %7812
    %v7814 = vadd.f32 %v7807, %v7808
    %v7815 = vadd.f32 %v7814, %v7809
    %7816 = vadd.xlane.f32.xlu0 %v7815
    %v7817 = vpop.xlane.xlu0 %7816
    %v7818 = vmul.f32 %v7813, %v3567
    %v7819 = vmul.f32 %v7817, %v3567
    %v7820 = vsub.f32 %v7804, %v7818
    %v7821 = vsub.f32 %v7805, %v7818
    %v7822 = vsub.f32 %v7806, %v7818
    %v7823 = vsub.f32 %v7807, %v7819
    %v7824 = vsub.f32 %v7808, %v7819
    %v7825 = vsub.f32 %v7809, %v7819
    %v7826 = vmul.f32 %v7820, %v7820
    %v7827 = vmul.f32 %v7821, %v7821
    %v7828 = vmul.f32 %v7822, %v7822
    %v7829 = vmul.f32 %v7823, %v7823
    %v7830 = vmul.f32 %v7824, %v7824
    %v7831 = vmul.f32 %v7825, %v7825
    %v7832 = vadd.f32 %v7826, %v7827
    %v7833 = vadd.f32 %v7832, %v7828
    %7834 = vadd.xlane.f32.xlu0 %v7833
    %v7835 = vpop.xlane.xlu0 %7834
    %v7836 = vadd.f32 %v7829, %v7830
    %v7837 = vadd.f32 %v7836, %v7831
    %7838 = vadd.xlane.f32.xlu0 %v7837
    %v7839 = vpop.xlane.xlu0 %7838
    %v7840 = vmul.f32 %v7835, %v3567
    %v7841 = vmul.f32 %v7839, %v3567
    %v7842 = vadd.f32 %v7840, 1e-05
    %v7843 = vadd.f32 %v7841, 1e-05
    %v7844 = vrsqrt.pop %v7842
    %v7845 = vrsqrt.pop %v7843
    %v7846 = vmul.f32 %v7820, %v7844
    %v7847 = vmul.f32 %v7823, %v7845
    %v7849 = vlaneseq
    %v7850 = vshrl.u32 %v7849, 7
    %v7851 = vsub.s32 0, %v7850
    %v7852 = vrot.slane %v4760, %v7851
    %v7854 = vmul.f32 %v7846, %v7852
    %v7855 = vmul.f32 %v7847, %v7852
    %v7857 = vlaneseq
    %v7858 = vshrl.u32 %v7857, 7
    %v7859 = vsub.s32 0, %v7858
    %v7860 = vrot.slane %v4762, %v7859
    %v7862 = vadd.f32 %v7854, %v7860
    %v7863 = vadd.f32 %v7855, %v7860
    %v7864 = vadd.f32 %v7862, %v4064
    %v7865 = vadd.f32 %v7863, %v4067
    %v7866 = vadd.s32 %v237, 8
    %v7867 = vld [vmem:[#allocation5] sm:$0x1]
    %v7868 = vlaneseq
    %v7869 = vshrl.u32 %v7868, 7
    %v7870 = vsub.s32 0, %v7869
    %v7871 = vrot.slane %v7867, %v7870
    %vm7872 = vcmp.eq.s32.totalorder %v7871, %v237
    %vm7873 = vcmp.eq.s32.totalorder %v7871, %v7866
    %v7874 = vsel %vm7872, 1, 0
    %v7875 = vsel %vm7873, 1, 0
    %v7876 = vcvt.s32.f32 %v7874
    %v7877 = vcvt.s32.f32 %v7875
    %vm7878 = vcmask 130048
    %v7880 = vsel %vm7878, %v7876, 0
    %v7883 = vsel %vm7878, %v7877, 0
    %7885 = vmatprep.subr.mxu0 0.0
    %7886 = vmatpush1.msra.mxu0 %v7864
    %7887 = vmatprep.subr.mxu0 0.0
    %7888 = vmatpush1.msra.mxu0 %v7865
    %7889 = vmatprep.subr.mxu0 0.0
    %7890 = vmatpush1.msra.mxu0 0.0
    %7891 = vmatprep.subr.mxu0 0.0
    %7892 = vmatpush1.msra.mxu0 0.0
    %7893 = vmatprep.subr.mxu0 0.0
    %7894 = vmatpush1.msra.mxu0 0.0
    %7895 = vmatprep.subr.mxu0 0.0
    %7896 = vmatpush1.msra.mxu0 0.0
    %7897 = vmatprep.subr.mxu0 0.0
    %7898 = vmatpush1.msra.mxu0 0.0
    %7899 = vmatprep.subr.mxu0 0.0
    %7900 = vmatpush1.msra.mxu0 0.0
    %7901 = vmatprep.subr.mxu0 0.0
    %7902 = vmatpush1.msra.mxu0 0.0
    %7903 = vmatprep.subr.mxu0 0.0
    %7904 = vmatpush1.msra.mxu0 0.0
    %7905 = vmatprep.subr.mxu0 0.0
    %7906 = vmatpush1.msra.mxu0 0.0
    %7907 = vmatprep.subr.mxu0 0.0
    %7908 = vmatpush1.msra.mxu0 0.0
    %7909 = vmatprep.subr.mxu0 0.0
    %7910 = vmatpush1.msra.mxu0 0.0
    %7911 = vmatprep.subr.mxu0 0.0
    %7912 = vmatpush1.msra.mxu0 0.0
    %7913 = vmatprep.subr.mxu0 0.0
    %7914 = vmatpush1.msra.mxu0 0.0
    %7915 = vmatprep.subr.mxu0 0.0
    %7916 = vmatpush1.msra.mxu0 0.0
    %7917 = vmatprep.subr.mxu0 0.0
    %7918 = vmatpush1.msra.mxu0 0.0
    %7919 = vmatprep.subr.mxu0 0.0
    %7920 = vmatpush1.msra.mxu0 0.0
    %7921 = vmatprep.subr.mxu0 0.0
    %7922 = vmatpush1.msra.mxu0 0.0
    %7923 = vmatprep.subr.mxu0 0.0
    %7924 = vmatpush1.msra.mxu0 0.0
    %7925 = vmatprep.subr.mxu0 0.0
    %7926 = vmatpush1.msra.mxu0 0.0
    %7927 = vmatprep.subr.mxu0 0.0
    %7928 = vmatpush1.msra.mxu0 0.0
    %7929 = vmatprep.subr.mxu0 0.0
    %7930 = vmatpush1.msra.mxu0 0.0
    %7931 = vmatprep.subr.mxu0 0.0
    %7932 = vmatpush1.msra.mxu0 0.0
    %7933 = vmatprep.subr.mxu0 0.0
    %7934 = vmatpush1.msra.mxu0 0.0
    %7935 = vmatprep.subr.mxu0 0.0
    %7936 = vmatpush1.msra.mxu0 0.0
    %7937 = vmatprep.subr.mxu0 0.0
    %7938 = vmatpush1.msra.mxu0 0.0
    %7939 = vmatprep.subr.mxu0 0.0
    %7940 = vmatpush1.msra.mxu0 0.0
    %7941 = vmatprep.subr.mxu0 0.0
    %7942 = vmatpush1.msra.mxu0 0.0
    %7943 = vmatprep.subr.mxu0 0.0
    %7944 = vmatpush1.msra.mxu0 0.0
    %7945 = vmatprep.subr.mxu0 0.0
    %7946 = vmatpush1.msra.mxu0 0.0
    %7947 = vmatprep.subr.mxu0 0.0
    %7948 = vmatpush1.msra.mxu0 0.0
    %7949 = vmatprep.mubr.f32.mxu0 0.0
    %7950 = vmatmul.mubr.f32.gmra.mrb[0].mxu0 %v7880
    %v7951 = vpop.f32.mrb[0].mxu0
    %v7952 = vadd.f32 0.0, %v7951
    %v7953 = vpop.f32.mrb[0].mxu0
    %7954 = vmatprep.mubr.f32.mxu0 0.0
    %7955 = vmatmul.mubr.f32.gmra.mrb[0].mxu0 %v7883
    %v7956 = vpop.f32.mrb[0].mxu0
    %v7957 = vadd.f32 0.0, %v7956
    %v7958 = vpop.f32.mrb[0].mxu0
    %7959 = vdwg.mxu0
    %v7960 = vsel %vm7878, %v7876, 0.0
    %7961 = vadd.xlane.f32.xlu0 %v7960
    %v7962 = vpop.xlane.xlu0 %7961
    %vm7963 = vcmask 125952
    %v7964 = vsel %vm7963, %v7877, 0.0
    %7965 = vadd.xlane.f32.xlu0 %v7964
    %v7966 = vpop.xlane.xlu0 %7965
    %vm7967 = vcmp.gt.f32.partialorder %v7962, 0.0
    %vm7968 = vcmp.gt.f32.partialorder %v7966, 0.0
    %v7969 = vmax.f32 %v7962, 1.0
    %v7970 = vmax.f32 %v7966, 1.0
    %v7971 = vrcp.pop %v7969
    %v7972 = vmul.f32 %v7952, %v7971
    %v7973 = vrcp.pop %v7970
    %v7974 = vmul.f32 %v7957, %v7973
    %v7975 = vsel %vm7967, 1, 0
    %v7976 = vsel %vm7968, 1, 0
    %vm7977 = vcmp.eq.s32.totalorder %v7975, 1
    %vm7978 = vcmp.eq.s32.totalorder %v7976, 1
    %v7979 = vsel %vm7977, %v7972, 0.0
    %v7980 = vsel %vm7978, %v7974, 0.0
    %vm7981 = vcmask 523264
    %7982 = vst.msk [vmem:[#allocation25] sm:$0xff] %vm7981, %v7979
    %vm7983 = vcmask 519168
    %7984 = vst.msk [vmem:[#allocation25 + $0x8] sm:$0xf] %vm7983, %v7980
    // Predicated region
    $region114: #{tpu_custom_call.1} parent=1 // pred_check
      _
    $region115: #{tpu_custom_call.1} parent=1 // pred_check_branch
      %7986 = sbr.rel (0) target = $region117
    $region116: #{tpu_custom_call.1} parent=1 // pred_region
      %s7988 = ssub.s32 256, 256
      %7989 = vsyncadd [#allocation4], %s7988
      %s7990 = sshll.u32 [#allocation25], 4
      %s7991 = int_to_ptr.vmem [resolvable:$true] %s7990
      %7996 = dma.vmem_to_hbm [thread:$0]  %s7991, 256, %s14, [#allocation4], 128, 128, 8
    $region117: #{tpu_custom_call.1} parent=1 // pred_fallthru
      _
    // Predicated region
    $region118: #{tpu_custom_call.1} parent=1 // pred_check
      _
    $region119: #{tpu_custom_call.1} parent=1 // pred_check_branch
      %7998 = sbr.rel (0) target = $region121
    $region120: #{tpu_custom_call.1} parent=1 // pred_region
      %7999 = dma.done [#allocation4], 256
    $region121: #{tpu_custom_call.1} parent=1 // pred_fallthru
      _
    %8000 = vsyncpa [#allocation3], 1
    %8001 = vsyncpa [#allocation6], 1
    %8002 = vsyncpa [#allocation9], 1
    %8003 = vsyncpa [#allocation12], 1
    %8004 = vsyncpa [#allocation15], 1
    %8005 = vsyncpa [#allocation18], 1
    %8006 = vsyncpa [#allocation21], 1
    %8007 = vsyncpa [#allocation24], 1
    %8008 = vsyncpa [#allocation4], 1

</llo_original>
